<compile_context>
chip_gen: v7x
topology: tpu7x:2x2x1
jax: 0.10.0
libtpu: 0.0.40
codegen_flags: <defaults>
</compile_context>

<pallas_src>
import functools

import numpy as np
import jax
import jax.numpy as jnp
from jax import lax
from jax.experimental import pallas as pl
from jax.experimental.pallas import tpu as pltpu


NUM_TC = 2  # leading "parallel" grid extent so both v7x TensorCores get work


# --------------------------------- in-kernel helpers ---------------------------------

def _zero_halo(pad_ref, H, W, C):
    """Zero the 1-pixel halo border of an exactly-sized (H+2, W+2, C) scratch."""
    zrow = jnp.zeros((1, W + 2, C), jnp.float32)
    pad_ref[0:1, :, :] = zrow
    pad_ref[H + 1:H + 2, :, :] = zrow
    zcol = jnp.zeros((H, 1, C), jnp.float32)           # corners already zeroed by rows
    pad_ref[1:H + 1, 0:1, :] = zcol
    pad_ref[1:H + 1, W + 1:W + 2, :] = zcol


def _conv3x3_sac(pad_ref, w_ref, b_ref, H, W, Cin, Cout):
    """3x3 'SAME' conv as shift-and-accumulate: 9 small bf16 MXU dots into an f32 acc.

    pad_ref : (H+2, W+2, Cin) zero-halo scratch whose interior holds the conv input.
    w_ref   : (9, Cin, Cout) bf16 tap weights, tap index = dy*3 + dx.
    returns : (H*W, Cout) f32
    """
    acc = jnp.zeros((H * W, Cout), jnp.float32)
    for dy in range(3):
        for dx in range(3):
            slab = pad_ref[dy:dy + H, dx:dx + W, :].reshape(H * W, Cin)
            acc = acc + jnp.dot(slab.astype(jnp.bfloat16), w_ref[dy * 3 + dx],
                                preferred_element_type=jnp.float32)
    return acc + b_ref[...]


def _decimate2x(res, H, W, C):
    """F.interpolate(scale=0.5, mode='nearest'): keep even rows/cols.

    Pure reshapes (lane dim stays C) + static slices -- no strided access, no matmul.
    res: (H*W, C) -> (Ho*Wo, C)
    """
    Ho, Wo = H // 2, W // 2
    r = res.reshape(Ho, 2 * W, C)[:, 0:W, :]            # keep even rows
    r = r.reshape(Ho * Wo, 2, C)[:, 0:1, :]             # keep even columns
    return r.reshape(Ho * Wo, C)


# --------------------------------- fused network kernel ---------------------------------

def discriminator_kernel(x_ref, *rest, dims, Bh):
    """Whole discriminator for Bh samples: all PreActResBlocks (+ downsample) + head.

    dims : tuple of (H, W, Cin, Cout) per block.
    x_ref: (Bh, H0, W0, Cin0) f32,  o_ref: (1, 1, Bh) f32 scores.
    """
    nb = len(dims)
    wrefs = rest[:6 * nb]
    head_w_ref = rest[6 * nb]
    head_b_ref = rest[6 * nb + 1]
    o_ref = rest[6 * nb + 2]
    pads = rest[6 * nb + 3:]                            # 2 scratches per block

    # Re-zero only the halo borders every grid step (interiors fully overwritten below);
    # done per-step so it stays correct when the batch grid is sharded across cores.
    for i, (H, W, Cin, Cout) in enumerate(dims):
        _zero_halo(pads[2 * i], H, W, Cin)
        _zero_halo(pads[2 * i + 1], H, W, Cout)

    scores = []
    for s in range(Bh):
        H0, W0, Cin0, _ = dims[0]
        cur = x_ref[s].reshape(H0 * W0, Cin0)           # (H*W, Cin) f32

        for i, (H, W, Cin, Cout) in enumerate(dims):
            w1, b1, w2, b2, ws, bs = wrefs[6 * i:6 * i + 6]
            pad1, pad2 = pads[2 * i], pads[2 * i + 1]

            # ---- conv_1: relu -> 3x3 conv (padding=1) ----
            pad1[1:H + 1, 1:W + 1, :] = jnp.maximum(cur, 0.0).reshape(H, W, Cin)
            a1 = _conv3x3_sac(pad1, w1, b1, H, W, Cin, Cout)       # (H*W, Cout)

            # ---- conv_2: relu -> 3x3 conv (padding=1) ----
            pad2[1:H + 1, 1:W + 1, :] = jnp.maximum(a1, 0.0).reshape(H, W, Cout)
            a2 = _conv3x3_sac(pad2, w2, b2, H, W, Cout, Cout)      # (H*W, Cout)

            # ---- skip connection on the un-activated block input ----
            if Cin == Cout:                          # identity skip
                skip = cur
            else:                                    # 1x1 conv skip
                skip = jnp.dot(cur.astype(jnp.bfloat16), ws[...],
                               preferred_element_type=jnp.float32) + bs[...]
            res = a2 + skip                                          # (H*W, Cout) f32

            # ---- fused nearest 2x downsample ----
            cur = _decimate2x(res, H, W, Cout)                       # (Ho*Wo, Cout)

        # ---- head: relu -> 4x4 sum pool -> psi + projection, folded into one dot ----
        phi = jnp.sum(jnp.maximum(cur, 0.0), axis=0, keepdims=True)  # (1, C_last)
        scores.append(jnp.sum(phi * head_w_ref[...], axis=1, keepdims=True)
                      + head_b_ref[...])                              # (1, 1)

    o_ref[0] = jnp.concatenate(scores, axis=1) if Bh > 1 else scores[0]


# ------------------------------------ forward + params -----------------------------------

def discriminator_forward(x_nchw, labels, params, use_projection_head):
    x = jnp.transpose(x_nchw, (0, 2, 3, 1)).astype(jnp.float32)      # NCHW -> NHWC
    B, H, W, Cin0 = x.shape
    blocks = params["blocks"]
    nb = len(blocks)
    assert H // (2 ** nb) == 4 and W // (2 ** nb) == 4, \
        "head expects a 4x4 feature map (AvgPool2d(4))"

    # projection head folded to one vector: score = phi . (psi_w + sum_j y_j) + psi_b
    head_w = params["psi_w"].reshape(1, -1)                          # (1, C_last)
    if use_projection_head:
        y = jnp.take(params["embed"], labels, axis=0)                # (B, C_last)
        head_w = head_w + jnp.sum(y, axis=0, keepdims=True)
    head_b = params["psi_b"].reshape(1, 1)

    G = NUM_TC if B % NUM_TC == 0 else 1
    Bh = B // G

    dims = []
    args = [x]
    in_specs = [pl.BlockSpec((Bh, H, W, Cin0), lambda g: (g, 0, 0, 0))]
    scratch_shapes = []
    cin, h, w = Cin0, H, W
    for blk in blocks:
        cout = blk["b1"].shape[1]
        dims.append((h, w, cin, cout))
        args += [blk["w1"], blk["b1"], blk["w2"], blk["b2"], blk["ws"], blk["bs"]]
        in_specs += [
            pl.BlockSpec(blk["w1"].shape, lambda g: (0, 0, 0)),
            pl.BlockSpec(blk["b1"].shape, lambda g: (0, 0)),
            pl.BlockSpec(blk["w2"].shape, lambda g: (0, 0, 0)),
            pl.BlockSpec(blk["b2"].shape, lambda g: (0, 0)),
            pl.BlockSpec(blk["ws"].shape, lambda g: (0, 0)),
            pl.BlockSpec(blk["bs"].shape, lambda g: (0, 0)),
        ]
        scratch_shapes += [pltpu.VMEM((h + 2, w + 2, cin), jnp.float32),
                           pltpu.VMEM((h + 2, w + 2, cout), jnp.float32)]
        cin, h, w = cout, h // 2, w // 2

    args += [head_w, head_b]
    in_specs += [pl.BlockSpec(head_w.shape, lambda g: (0, 0)),
                 pl.BlockSpec(head_b.shape, lambda g: (0, 0))]

    kern = functools.partial(discriminator_kernel, dims=tuple(dims), Bh=Bh)
    out = pl.pallas_call(
        kern,
        out_shape=jax.ShapeDtypeStruct((G, 1, Bh), jnp.float32),
        grid=(G,),
        in_specs=in_specs,
        out_specs=pl.BlockSpec((1, 1, Bh), lambda g: (g, 0, 0)),
        scratch_shapes=scratch_shapes,
        compiler_params=pltpu.CompilerParams(dimension_semantics=("parallel",)),
    )(*args)
    return out.reshape(-1)                                           # (B,)


def _spectral_normalize(w):
    # spectral_norm reparameterization: W / sigma_max(W viewed as a matrix).
    m = np.asarray(w).reshape(-1, w.shape[-1])
    sigma = np.linalg.svd(m, compute_uv=False)[0]
    return jnp.asarray(w / sigma, jnp.float32)


def init_params(key, min_channels, max_channels, num_classes, num_blocks):
    blocks = []
    cur, nxt = 3, min_channels
    for i in range(num_blocks):
        key, k1, k2, k3 = jax.random.split(key, 4)
        w1 = _spectral_normalize(0.1 * jax.random.normal(k1, (3, 3, cur, nxt), jnp.float32))
        w2 = _spectral_normalize(0.1 * jax.random.normal(k2, (3, 3, nxt, nxt), jnp.float32))
        ws = _spectral_normalize(0.1 * jax.random.normal(k3, (cur, nxt), jnp.float32))
        blocks.append(dict(
            # kernel layout: per-tap (9, Cin, Cout) bf16 weights for shift-and-accumulate
            w1=w1.reshape(9, cur, nxt).astype(jnp.bfloat16),
            w2=w2.reshape(9, nxt, nxt).astype(jnp.bfloat16),
            ws=ws.astype(jnp.bfloat16),
            b1=jnp.full((1, nxt), 0.01 * (i + 1), jnp.float32),
            b2=jnp.full((1, nxt), -0.01, jnp.float32),
            bs=jnp.zeros((1, nxt), jnp.float32),
            # f32 HWIO copies, used only by the pure-JAX reference
            w1_hwio=w1, w2_hwio=w2, ws_hwio=ws,
        ))
        cur, nxt = nxt, min(max_channels, nxt * 2)
    key, ke, kp = jax.random.split(key, 3)
    embed = _spectral_normalize(0.1 * jax.random.normal(ke, (num_classes, cur), jnp.float32))
    psi_w = _spectral_normalize(0.1 * jax.random.normal(kp, (cur, 1), jnp.float32))
    psi_b = jnp.zeros((1,), jnp.float32)
    return dict(blocks=blocks, embed=embed, psi_w=psi_w, psi_b=psi_b)


# --------------------------------- pure-JAX reference -------------------------------------

def reference_forward(x_nchw, labels, params, use_projection_head):
    x = jnp.transpose(x_nchw, (0, 2, 3, 1)).astype(jnp.float32)
    for blk in params["blocks"]:
        Cin, Cout = x.shape[-1], blk["w1_hwio"].shape[-1]
        h = jax.nn.relu(x)
        h = lax.conv_general_dilated(h, blk["w1_hwio"], (1, 1), "SAME",
                dimension_numbers=("NHWC", "HWIO", "NHWC")) + blk["b1"]
        h = jax.nn.relu(h)
        h = lax.conv_general_dilated(h, blk["w2_hwio"], (1, 1), "SAME",
                dimension_numbers=("NHWC", "HWIO", "NHWC")) + blk["b2"]
        skip = x if Cin == Cout else jnp.einsum("bhwc,cd->bhwd", x, blk["ws_hwio"]) + blk["bs"]
        x = (h + skip)[:, ::2, ::2, :]
    phi = jnp.sum(jax.nn.relu(x), axis=(1, 2))
    scores = (phi @ params["psi_w"] + params["psi_b"]).reshape(-1)
    if use_projection_head:
        y = params["embed"][labels]
        scores = scores + jnp.sum(phi @ y.T, axis=1)
    return scores


# --------------------------------------------- main ---------------------------------------

if __name__ == "__main__":
    min_channels, max_channels = 8, 16
    num_classes, num_blocks = 5, 2
    use_projection_head = True

    key = jax.random.PRNGKey(0)
    kx, kl, kp = jax.random.split(key, 3)
    x = jax.random.normal(kx, (2, 3, 16, 16), jnp.float32)       # NCHW like PyTorch
    labels = jax.random.randint(kl, (2,), 0, num_classes)
    params = init_params(kp, min_channels, max_channels, num_classes, num_blocks)

    fwd = jax.jit(discriminator_forward, static_argnames=("use_projection_head",))
    scores = fwd(x, labels, params, use_projection_head=use_projection_head)
    scores = jax.block_until_ready(scores)
    assert scores.shape == (x.shape[0],)
    assert bool(jnp.all(jnp.isfinite(scores)))

    # bf16 MXU operands in the kernel vs f32 reference weights -> loose tolerance.
    ref = reference_forward(x, labels, params, use_projection_head)
    assert bool(jnp.allclose(scores, ref, rtol=5e-2, atol=5e-2)), (scores, ref)

    print("KERNEL_OK")
</pallas_src>

<mosaic_0001>
module attributes {stable_mosaic.version = 11 : i64} {
  func.func @discriminator_kernel(%arg0: i32, %arg1: memref<1x16x16x3xf32, #tpu.memory_space<vmem>>, %arg2: memref<9x3x8xbf16, #tpu.memory_space<vmem>>, %arg3: memref<1x8xf32, #tpu.memory_space<vmem>>, %arg4: memref<9x8x8xbf16, #tpu.memory_space<vmem>>, %arg5: memref<1x8xf32, #tpu.memory_space<vmem>>, %arg6: memref<3x8xbf16, #tpu.memory_space<vmem>>, %arg7: memref<1x8xf32, #tpu.memory_space<vmem>>, %arg8: memref<9x8x16xbf16, #tpu.memory_space<vmem>>, %arg9: memref<1x16xf32, #tpu.memory_space<vmem>>, %arg10: memref<9x16x16xbf16, #tpu.memory_space<vmem>>, %arg11: memref<1x16xf32, #tpu.memory_space<vmem>>, %arg12: memref<8x16xbf16, #tpu.memory_space<vmem>>, %arg13: memref<1x16xf32, #tpu.memory_space<vmem>>, %arg14: memref<1x16xf32, #tpu.memory_space<vmem>>, %arg15: memref<1x1xf32, #tpu.memory_space<vmem>>, %arg16: memref<1x1x1xf32, #tpu.memory_space<vmem>>, %arg17: memref<18x18x3xf32, #tpu.memory_space<vmem>>, %arg18: memref<18x18x8xf32, #tpu.memory_space<vmem>>, %arg19: memref<10x10x8xf32, #tpu.memory_space<vmem>>, %arg20: memref<10x10x16xf32, #tpu.memory_space<vmem>>) attributes {dimension_semantics = [#tpu.dimension_semantics<parallel>], iteration_bounds = array<i64: 2>, scalar_prefetch = 0 : i64, scratch_operands = 4 : i64, tpu.core_type = #tpu.core_type<tc>, window_params = [{transform_indices = @transform_0, window_bounds = array<i64: 1, 16, 16, 3>}, {pipeline_mode = #tpu.pipeline_mode<synchronous>, transform_indices = @transform_1, window_bounds = array<i64: 9, 3, 8>}, {pipeline_mode = #tpu.pipeline_mode<synchronous>, transform_indices = @transform_2, window_bounds = array<i64: 1, 8>}, {pipeline_mode = #tpu.pipeline_mode<synchronous>, transform_indices = @transform_3, window_bounds = array<i64: 9, 8, 8>}, {pipeline_mode = #tpu.pipeline_mode<synchronous>, transform_indices = @transform_4, window_bounds = array<i64: 1, 8>}, {pipeline_mode = #tpu.pipeline_mode<synchronous>, transform_indices = @transform_5, window_bounds = array<i64: 3, 8>}, {pipeline_mode = #tpu.pipeline_mode<synchronous>, transform_indices = @transform_6, window_bounds = array<i64: 1, 8>}, {pipeline_mode = #tpu.pipeline_mode<synchronous>, transform_indices = @transform_7, window_bounds = array<i64: 9, 8, 16>}, {pipeline_mode = #tpu.pipeline_mode<synchronous>, transform_indices = @transform_8, window_bounds = array<i64: 1, 16>}, {pipeline_mode = #tpu.pipeline_mode<synchronous>, transform_indices = @transform_9, window_bounds = array<i64: 9, 16, 16>}, {pipeline_mode = #tpu.pipeline_mode<synchronous>, transform_indices = @transform_10, window_bounds = array<i64: 1, 16>}, {pipeline_mode = #tpu.pipeline_mode<synchronous>, transform_indices = @transform_11, window_bounds = array<i64: 8, 16>}, {pipeline_mode = #tpu.pipeline_mode<synchronous>, transform_indices = @transform_12, window_bounds = array<i64: 1, 16>}, {pipeline_mode = #tpu.pipeline_mode<synchronous>, transform_indices = @transform_13, window_bounds = array<i64: 1, 16>}, {pipeline_mode = #tpu.pipeline_mode<synchronous>, transform_indices = @transform_14, window_bounds = array<i64: 1, 1>}, {transform_indices = @transform_15, window_bounds = array<i64: 1, 1, 1>}]} {
    %cst = arith.constant 0.000000e+00 : f32
    %0 = vector.broadcast %cst : f32 to vector<1x18x3xf32>
    %c0 = arith.constant 0 : index
    %c0_0 = arith.constant 0 : index
    %c0_1 = arith.constant 0 : index
    %1 = vector.load %arg17[%c0, %c0_0, %c0_1] : memref<18x18x3xf32, #tpu.memory_space<vmem>>, vector<1x18x3xf32>
    tpu.vector_store %arg17[%c0, %c0_0, %c0_1], %0 {strides = array<i32>} : memref<18x18x3xf32, #tpu.memory_space<vmem>>, vector<1x18x3xf32>,
    %c17 = arith.constant 17 : index
    %c0_2 = arith.constant 0 : index
    %c0_3 = arith.constant 0 : index
    %2 = vector.load %arg17[%c17, %c0_2, %c0_3] : memref<18x18x3xf32, #tpu.memory_space<vmem>>, vector<1x18x3xf32>
    tpu.vector_store %arg17[%c17, %c0_2, %c0_3], %0 {strides = array<i32>} : memref<18x18x3xf32, #tpu.memory_space<vmem>>, vector<1x18x3xf32>,
    %cst_4 = arith.constant 0.000000e+00 : f32
    %3 = vector.broadcast %cst_4 : f32 to vector<16x1x3xf32>
    %c1 = arith.constant 1 : index
    %c0_5 = arith.constant 0 : index
    %c0_6 = arith.constant 0 : index
    %4 = vector.load %arg17[%c1, %c0_5, %c0_6] : memref<18x18x3xf32, #tpu.memory_space<vmem>>, vector<16x1x3xf32>
    tpu.vector_store %arg17[%c1, %c0_5, %c0_6], %3 {strides = array<i32>} : memref<18x18x3xf32, #tpu.memory_space<vmem>>, vector<16x1x3xf32>,
    %c1_7 = arith.constant 1 : index
    %c17_8 = arith.constant 17 : index
    %c0_9 = arith.constant 0 : index
    %5 = vector.load %arg17[%c1_7, %c17_8, %c0_9] : memref<18x18x3xf32, #tpu.memory_space<vmem>>, vector<16x1x3xf32>
    tpu.vector_store %arg17[%c1_7, %c17_8, %c0_9], %3 {strides = array<i32>} : memref<18x18x3xf32, #tpu.memory_space<vmem>>, vector<16x1x3xf32>,
    %cst_10 = arith.constant 0.000000e+00 : f32
    %6 = vector.broadcast %cst_10 : f32 to vector<1x18x8xf32>
    %c0_11 = arith.constant 0 : index
    %c0_12 = arith.constant 0 : index
    %c0_13 = arith.constant 0 : index
    %7 = vector.load %arg18[%c0_11, %c0_12, %c0_13] : memref<18x18x8xf32, #tpu.memory_space<vmem>>, vector<1x18x8xf32>
    tpu.vector_store %arg18[%c0_11, %c0_12, %c0_13], %6 {strides = array<i32>} : memref<18x18x8xf32, #tpu.memory_space<vmem>>, vector<1x18x8xf32>,
    %c17_14 = arith.constant 17 : index
    %c0_15 = arith.constant 0 : index
    %c0_16 = arith.constant 0 : index
    %8 = vector.load %arg18[%c17_14, %c0_15, %c0_16] : memref<18x18x8xf32, #tpu.memory_space<vmem>>, vector<1x18x8xf32>
    tpu.vector_store %arg18[%c17_14, %c0_15, %c0_16], %6 {strides = array<i32>} : memref<18x18x8xf32, #tpu.memory_space<vmem>>, vector<1x18x8xf32>,
    %cst_17 = arith.constant 0.000000e+00 : f32
    %9 = vector.broadcast %cst_17 : f32 to vector<16x1x8xf32>
    %c1_18 = arith.constant 1 : index
    %c0_19 = arith.constant 0 : index
    %c0_20 = arith.constant 0 : index
    %10 = vector.load %arg18[%c1_18, %c0_19, %c0_20] : memref<18x18x8xf32, #tpu.memory_space<vmem>>, vector<16x1x8xf32>
    tpu.vector_store %arg18[%c1_18, %c0_19, %c0_20], %9 {strides = array<i32>} : memref<18x18x8xf32, #tpu.memory_space<vmem>>, vector<16x1x8xf32>,
    %c1_21 = arith.constant 1 : index
    %c17_22 = arith.constant 17 : index
    %c0_23 = arith.constant 0 : index
    %11 = vector.load %arg18[%c1_21, %c17_22, %c0_23] : memref<18x18x8xf32, #tpu.memory_space<vmem>>, vector<16x1x8xf32>
    tpu.vector_store %arg18[%c1_21, %c17_22, %c0_23], %9 {strides = array<i32>} : memref<18x18x8xf32, #tpu.memory_space<vmem>>, vector<16x1x8xf32>,
    %cst_24 = arith.constant 0.000000e+00 : f32
    %12 = vector.broadcast %cst_24 : f32 to vector<1x10x8xf32>
    %c0_25 = arith.constant 0 : index
    %c0_26 = arith.constant 0 : index
    %c0_27 = arith.constant 0 : index
    %13 = vector.load %arg19[%c0_25, %c0_26, %c0_27] : memref<10x10x8xf32, #tpu.memory_space<vmem>>, vector<1x10x8xf32>
    tpu.vector_store %arg19[%c0_25, %c0_26, %c0_27], %12 {strides = array<i32>} : memref<10x10x8xf32, #tpu.memory_space<vmem>>, vector<1x10x8xf32>,
    %c9 = arith.constant 9 : index
    %c0_28 = arith.constant 0 : index
    %c0_29 = arith.constant 0 : index
    %14 = vector.load %arg19[%c9, %c0_28, %c0_29] : memref<10x10x8xf32, #tpu.memory_space<vmem>>, vector<1x10x8xf32>
    tpu.vector_store %arg19[%c9, %c0_28, %c0_29], %12 {strides = array<i32>} : memref<10x10x8xf32, #tpu.memory_space<vmem>>, vector<1x10x8xf32>,
    %cst_30 = arith.constant 0.000000e+00 : f32
    %15 = vector.broadcast %cst_30 : f32 to vector<8x1x8xf32>
    %c1_31 = arith.constant 1 : index
    %c0_32 = arith.constant 0 : index
    %c0_33 = arith.constant 0 : index
    %16 = vector.load %arg19[%c1_31, %c0_32, %c0_33] : memref<10x10x8xf32, #tpu.memory_space<vmem>>, vector<8x1x8xf32>
    tpu.vector_store %arg19[%c1_31, %c0_32, %c0_33], %15 {strides = array<i32>} : memref<10x10x8xf32, #tpu.memory_space<vmem>>, vector<8x1x8xf32>,
    %c1_34 = arith.constant 1 : index
    %c9_35 = arith.constant 9 : index
    %c0_36 = arith.constant 0 : index
    %17 = vector.load %arg19[%c1_34, %c9_35, %c0_36] : memref<10x10x8xf32, #tpu.memory_space<vmem>>, vector<8x1x8xf32>
    tpu.vector_store %arg19[%c1_34, %c9_35, %c0_36], %15 {strides = array<i32>} : memref<10x10x8xf32, #tpu.memory_space<vmem>>, vector<8x1x8xf32>,
    %cst_37 = arith.constant 0.000000e+00 : f32
    %18 = vector.broadcast %cst_37 : f32 to vector<1x10x16xf32>
    %c0_38 = arith.constant 0 : index
    %c0_39 = arith.constant 0 : index
    %c0_40 = arith.constant 0 : index
    %19 = vector.load %arg20[%c0_38, %c0_39, %c0_40] : memref<10x10x16xf32, #tpu.memory_space<vmem>>, vector<1x10x16xf32>
    tpu.vector_store %arg20[%c0_38, %c0_39, %c0_40], %18 {strides = array<i32>} : memref<10x10x16xf32, #tpu.memory_space<vmem>>, vector<1x10x16xf32>,
    %c9_41 = arith.constant 9 : index
    %c0_42 = arith.constant 0 : index
    %c0_43 = arith.constant 0 : index
    %20 = vector.load %arg20[%c9_41, %c0_42, %c0_43] : memref<10x10x16xf32, #tpu.memory_space<vmem>>, vector<1x10x16xf32>
    tpu.vector_store %arg20[%c9_41, %c0_42, %c0_43], %18 {strides = array<i32>} : memref<10x10x16xf32, #tpu.memory_space<vmem>>, vector<1x10x16xf32>,
    %cst_44 = arith.constant 0.000000e+00 : f32
    %21 = vector.broadcast %cst_44 : f32 to vector<8x1x16xf32>
    %c1_45 = arith.constant 1 : index
    %c0_46 = arith.constant 0 : index
    %c0_47 = arith.constant 0 : index
    %22 = vector.load %arg20[%c1_45, %c0_46, %c0_47] : memref<10x10x16xf32, #tpu.memory_space<vmem>>, vector<8x1x16xf32>
    tpu.vector_store %arg20[%c1_45, %c0_46, %c0_47], %21 {strides = array<i32>} : memref<10x10x16xf32, #tpu.memory_space<vmem>>, vector<8x1x16xf32>,
    %c1_48 = arith.constant 1 : index
    %c9_49 = arith.constant 9 : index
    %c0_50 = arith.constant 0 : index
    %23 = vector.load %arg20[%c1_48, %c9_49, %c0_50] : memref<10x10x16xf32, #tpu.memory_space<vmem>>, vector<8x1x16xf32>
    tpu.vector_store %arg20[%c1_48, %c9_49, %c0_50], %21 {strides = array<i32>} : memref<10x10x16xf32, #tpu.memory_space<vmem>>, vector<8x1x16xf32>,
    %c0_51 = arith.constant 0 : index
    %c0_52 = arith.constant 0 : index
    %c0_53 = arith.constant 0 : index
    %c0_54 = arith.constant 0 : index
    %24 = vector.load %arg1[%c0_51, %c0_52, %c0_53, %c0_54] : memref<1x16x16x3xf32, #tpu.memory_space<vmem>>, vector<1x16x16x3xf32>
    %25 = vector.shape_cast %24 : vector<1x16x16x3xf32> to vector<16x16x3xf32>
    %26 = vector.shape_cast %25 : vector<16x16x3xf32> to vector<256x3xf32>
    %cst_55 = arith.constant 0.000000e+00 : f32
    %27 = vector.broadcast %cst_55 : f32 to vector<256x3xf32>
    %28 = arith.maximumf %26, %27 : vector<256x3xf32>
    %29 = vector.shape_cast %28 : vector<256x3xf32> to vector<16x16x3xf32>
    %c1_56 = arith.constant 1 : index
    %c1_57 = arith.constant 1 : index
    %c0_58 = arith.constant 0 : index
    %30 = vector.load %arg17[%c1_56, %c1_57, %c0_58] : memref<18x18x3xf32, #tpu.memory_space<vmem>>, vector<16x16x3xf32>
    tpu.vector_store %arg17[%c1_56, %c1_57, %c0_58], %29 {strides = array<i32>} : memref<18x18x3xf32, #tpu.memory_space<vmem>>, vector<16x16x3xf32>,
    %cst_59 = arith.constant 0.000000e+00 : f32
    %31 = vector.broadcast %cst_59 : f32 to vector<256x8xf32>
    %c0_60 = arith.constant 0 : index
    %c0_61 = arith.constant 0 : index
    %c0_62 = arith.constant 0 : index
    %32 = vector.load %arg17[%c0_60, %c0_61, %c0_62] : memref<18x18x3xf32, #tpu.memory_space<vmem>>, vector<16x16x3xf32>
    %33 = vector.shape_cast %32 : vector<16x16x3xf32> to vector<256x3xf32>
    %34 = arith.truncf %33 : vector<256x3xf32> to vector<256x3xbf16>
    %c0_63 = arith.constant 0 : index
    %c0_64 = arith.constant 0 : index
    %c0_65 = arith.constant 0 : index
    %35 = vector.load %arg2[%c0_63, %c0_64, %c0_65] : memref<9x3x8xbf16, #tpu.memory_space<vmem>>, vector<1x3x8xbf16>
    %36 = vector.shape_cast %35 : vector<1x3x8xbf16> to vector<3x8xbf16>
    %cst_66 = arith.constant dense<0.000000e+00> : vector<256x8xf32>
    %37 = tpu.matmul %34, %36, %cst_66 {dimension_numbers = #tpu.dot_dimension_numbers<[1], [0], [0], [1], [0, 0, 1, 1], [], []>} : vector<256x3xbf16>, vector<3x8xbf16>, vector<256x8xf32> -> vector<256x8xf32>
    %38 = arith.addf %31, %37 : vector<256x8xf32>
    %c0_67 = arith.constant 0 : index
    %c1_68 = arith.constant 1 : index
    %c0_69 = arith.constant 0 : index
    %39 = vector.load %arg17[%c0_67, %c1_68, %c0_69] : memref<18x18x3xf32, #tpu.memory_space<vmem>>, vector<16x16x3xf32>
    %40 = vector.shape_cast %39 : vector<16x16x3xf32> to vector<256x3xf32>
    %41 = arith.truncf %40 : vector<256x3xf32> to vector<256x3xbf16>
    %c1_70 = arith.constant 1 : index
    %c0_71 = arith.constant 0 : index
    %c0_72 = arith.constant 0 : index
    %42 = vector.load %arg2[%c1_70, %c0_71, %c0_72] : memref<9x3x8xbf16, #tpu.memory_space<vmem>>, vector<1x3x8xbf16>
    %43 = vector.shape_cast %42 : vector<1x3x8xbf16> to vector<3x8xbf16>
    %cst_73 = arith.constant dense<0.000000e+00> : vector<256x8xf32>
    %44 = tpu.matmul %41, %43, %cst_73 {dimension_numbers = #tpu.dot_dimension_numbers<[1], [0], [0], [1], [0, 0, 1, 1], [], []>} : vector<256x3xbf16>, vector<3x8xbf16>, vector<256x8xf32> -> vector<256x8xf32>
    %45 = arith.addf %38, %44 : vector<256x8xf32>
    %c0_74 = arith.constant 0 : index
    %c2 = arith.constant 2 : index
    %c0_75 = arith.constant 0 : index
    %46 = vector.load %arg17[%c0_74, %c2, %c0_75] : memref<18x18x3xf32, #tpu.memory_space<vmem>>, vector<16x16x3xf32>
    %47 = vector.shape_cast %46 : vector<16x16x3xf32> to vector<256x3xf32>
    %48 = arith.truncf %47 : vector<256x3xf32> to vector<256x3xbf16>
    %c2_76 = arith.constant 2 : index
    %c0_77 = arith.constant 0 : index
    %c0_78 = arith.constant 0 : index
    %49 = vector.load %arg2[%c2_76, %c0_77, %c0_78] : memref<9x3x8xbf16, #tpu.memory_space<vmem>>, vector<1x3x8xbf16>
    %50 = vector.shape_cast %49 : vector<1x3x8xbf16> to vector<3x8xbf16>
    %cst_79 = arith.constant dense<0.000000e+00> : vector<256x8xf32>
    %51 = tpu.matmul %48, %50, %cst_79 {dimension_numbers = #tpu.dot_dimension_numbers<[1], [0], [0], [1], [0, 0, 1, 1], [], []>} : vector<256x3xbf16>, vector<3x8xbf16>, vector<256x8xf32> -> vector<256x8xf32>
    %52 = arith.addf %45, %51 : vector<256x8xf32>
    %c1_80 = arith.constant 1 : index
    %c0_81 = arith.constant 0 : index
    %c0_82 = arith.constant 0 : index
    %53 = vector.load %arg17[%c1_80, %c0_81, %c0_82] : memref<18x18x3xf32, #tpu.memory_space<vmem>>, vector<16x16x3xf32>
    %54 = vector.shape_cast %53 : vector<16x16x3xf32> to vector<256x3xf32>
    %55 = arith.truncf %54 : vector<256x3xf32> to vector<256x3xbf16>
    %c3 = arith.constant 3 : index
    %c0_83 = arith.constant 0 : index
    %c0_84 = arith.constant 0 : index
    %56 = vector.load %arg2[%c3, %c0_83, %c0_84] : memref<9x3x8xbf16, #tpu.memory_space<vmem>>, vector<1x3x8xbf16>
    %57 = vector.shape_cast %56 : vector<1x3x8xbf16> to vector<3x8xbf16>
    %cst_85 = arith.constant dense<0.000000e+00> : vector<256x8xf32>
    %58 = tpu.matmul %55, %57, %cst_85 {dimension_numbers = #tpu.dot_dimension_numbers<[1], [0], [0], [1], [0, 0, 1, 1], [], []>} : vector<256x3xbf16>, vector<3x8xbf16>, vector<256x8xf32> -> vector<256x8xf32>
    %59 = arith.addf %52, %58 : vector<256x8xf32>
    %c1_86 = arith.constant 1 : index
    %c1_87 = arith.constant 1 : index
    %c0_88 = arith.constant 0 : index
    %60 = vector.load %arg17[%c1_86, %c1_87, %c0_88] : memref<18x18x3xf32, #tpu.memory_space<vmem>>, vector<16x16x3xf32>
    %61 = vector.shape_cast %60 : vector<16x16x3xf32> to vector<256x3xf32>
    %62 = arith.truncf %61 : vector<256x3xf32> to vector<256x3xbf16>
    %c4 = arith.constant 4 : index
    %c0_89 = arith.constant 0 : index
    %c0_90 = arith.constant 0 : index
    %63 = vector.load %arg2[%c4, %c0_89, %c0_90] : memref<9x3x8xbf16, #tpu.memory_space<vmem>>, vector<1x3x8xbf16>
    %64 = vector.shape_cast %63 : vector<1x3x8xbf16> to vector<3x8xbf16>
    %cst_91 = arith.constant dense<0.000000e+00> : vector<256x8xf32>
    %65 = tpu.matmul %62, %64, %cst_91 {dimension_numbers = #tpu.dot_dimension_numbers<[1], [0], [0], [1], [0, 0, 1, 1], [], []>} : vector<256x3xbf16>, vector<3x8xbf16>, vector<256x8xf32> -> vector<256x8xf32>
    %66 = arith.addf %59, %65 : vector<256x8xf32>
    %c1_92 = arith.constant 1 : index
    %c2_93 = arith.constant 2 : index
    %c0_94 = arith.constant 0 : index
    %67 = vector.load %arg17[%c1_92, %c2_93, %c0_94] : memref<18x18x3xf32, #tpu.memory_space<vmem>>, vector<16x16x3xf32>
    %68 = vector.shape_cast %67 : vector<16x16x3xf32> to vector<256x3xf32>
    %69 = arith.truncf %68 : vector<256x3xf32> to vector<256x3xbf16>
    %c5 = arith.constant 5 : index
    %c0_95 = arith.constant 0 : index
    %c0_96 = arith.constant 0 : index
    %70 = vector.load %arg2[%c5, %c0_95, %c0_96] : memref<9x3x8xbf16, #tpu.memory_space<vmem>>, vector<1x3x8xbf16>
    %71 = vector.shape_cast %70 : vector<1x3x8xbf16> to vector<3x8xbf16>
    %cst_97 = arith.constant dense<0.000000e+00> : vector<256x8xf32>
    %72 = tpu.matmul %69, %71, %cst_97 {dimension_numbers = #tpu.dot_dimension_numbers<[1], [0], [0], [1], [0, 0, 1, 1], [], []>} : vector<256x3xbf16>, vector<3x8xbf16>, vector<256x8xf32> -> vector<256x8xf32>
    %73 = arith.addf %66, %72 : vector<256x8xf32>
    %c2_98 = arith.constant 2 : index
    %c0_99 = arith.constant 0 : index
    %c0_100 = arith.constant 0 : index
    %74 = vector.load %arg17[%c2_98, %c0_99, %c0_100] : memref<18x18x3xf32, #tpu.memory_space<vmem>>, vector<16x16x3xf32>
    %75 = vector.shape_cast %74 : vector<16x16x3xf32> to vector<256x3xf32>
    %76 = arith.truncf %75 : vector<256x3xf32> to vector<256x3xbf16>
    %c6 = arith.constant 6 : index
    %c0_101 = arith.constant 0 : index
    %c0_102 = arith.constant 0 : index
    %77 = vector.load %arg2[%c6, %c0_101, %c0_102] : memref<9x3x8xbf16, #tpu.memory_space<vmem>>, vector<1x3x8xbf16>
    %78 = vector.shape_cast %77 : vector<1x3x8xbf16> to vector<3x8xbf16>
    %cst_103 = arith.constant dense<0.000000e+00> : vector<256x8xf32>
    %79 = tpu.matmul %76, %78, %cst_103 {dimension_numbers = #tpu.dot_dimension_numbers<[1], [0], [0], [1], [0, 0, 1, 1], [], []>} : vector<256x3xbf16>, vector<3x8xbf16>, vector<256x8xf32> -> vector<256x8xf32>
    %80 = arith.addf %73, %79 : vector<256x8xf32>
    %c2_104 = arith.constant 2 : index
    %c1_105 = arith.constant 1 : index
    %c0_106 = arith.constant 0 : index
    %81 = vector.load %arg17[%c2_104, %c1_105, %c0_106] : memref<18x18x3xf32, #tpu.memory_space<vmem>>, vector<16x16x3xf32>
    %82 = vector.shape_cast %81 : vector<16x16x3xf32> to vector<256x3xf32>
    %83 = arith.truncf %82 : vector<256x3xf32> to vector<256x3xbf16>
    %c7 = arith.constant 7 : index
    %c0_107 = arith.constant 0 : index
    %c0_108 = arith.constant 0 : index
    %84 = vector.load %arg2[%c7, %c0_107, %c0_108] : memref<9x3x8xbf16, #tpu.memory_space<vmem>>, vector<1x3x8xbf16>
    %85 = vector.shape_cast %84 : vector<1x3x8xbf16> to vector<3x8xbf16>
    %cst_109 = arith.constant dense<0.000000e+00> : vector<256x8xf32>
    %86 = tpu.matmul %83, %85, %cst_109 {dimension_numbers = #tpu.dot_dimension_numbers<[1], [0], [0], [1], [0, 0, 1, 1], [], []>} : vector<256x3xbf16>, vector<3x8xbf16>, vector<256x8xf32> -> vector<256x8xf32>
    %87 = arith.addf %80, %86 : vector<256x8xf32>
    %c2_110 = arith.constant 2 : index
    %c2_111 = arith.constant 2 : index
    %c0_112 = arith.constant 0 : index
    %88 = vector.load %arg17[%c2_110, %c2_111, %c0_112] : memref<18x18x3xf32, #tpu.memory_space<vmem>>, vector<16x16x3xf32>
    %89 = vector.shape_cast %88 : vector<16x16x3xf32> to vector<256x3xf32>
    %90 = arith.truncf %89 : vector<256x3xf32> to vector<256x3xbf16>
    %c8 = arith.constant 8 : index
    %c0_113 = arith.constant 0 : index
    %c0_114 = arith.constant 0 : index
    %91 = vector.load %arg2[%c8, %c0_113, %c0_114] : memref<9x3x8xbf16, #tpu.memory_space<vmem>>, vector<1x3x8xbf16>
    %92 = vector.shape_cast %91 : vector<1x3x8xbf16> to vector<3x8xbf16>
    %cst_115 = arith.constant dense<0.000000e+00> : vector<256x8xf32>
    %93 = tpu.matmul %90, %92, %cst_115 {dimension_numbers = #tpu.dot_dimension_numbers<[1], [0], [0], [1], [0, 0, 1, 1], [], []>} : vector<256x3xbf16>, vector<3x8xbf16>, vector<256x8xf32> -> vector<256x8xf32>
    %94 = arith.addf %87, %93 : vector<256x8xf32>
    %c0_116 = arith.constant 0 : index
    %c0_117 = arith.constant 0 : index
    %95 = vector.load %arg3[%c0_116, %c0_117] : memref<1x8xf32, #tpu.memory_space<vmem>>, vector<1x8xf32>
    %96 = vector.broadcast %95 : vector<1x8xf32> to vector<256x8xf32>
    %97 = arith.addf %94, %96 : vector<256x8xf32>
    %cst_118 = arith.constant 0.000000e+00 : f32
    %98 = vector.broadcast %cst_118 : f32 to vector<256x8xf32>
    %99 = arith.maximumf %97, %98 : vector<256x8xf32>
    %100 = vector.shape_cast %99 : vector<256x8xf32> to vector<16x16x8xf32>
    %c1_119 = arith.constant 1 : index
    %c1_120 = arith.constant 1 : index
    %c0_121 = arith.constant 0 : index
    %101 = vector.load %arg18[%c1_119, %c1_120, %c0_121] : memref<18x18x8xf32, #tpu.memory_space<vmem>>, vector<16x16x8xf32>
    tpu.vector_store %arg18[%c1_119, %c1_120, %c0_121], %100 {strides = array<i32>} : memref<18x18x8xf32, #tpu.memory_space<vmem>>, vector<16x16x8xf32>,
    %cst_122 = arith.constant 0.000000e+00 : f32
    %102 = vector.broadcast %cst_122 : f32 to vector<256x8xf32>
    %c0_123 = arith.constant 0 : index
    %c0_124 = arith.constant 0 : index
    %c0_125 = arith.constant 0 : index
    %103 = vector.load %arg18[%c0_123, %c0_124, %c0_125] : memref<18x18x8xf32, #tpu.memory_space<vmem>>, vector<16x16x8xf32>
    %104 = vector.shape_cast %103 : vector<16x16x8xf32> to vector<256x8xf32>
    %105 = arith.truncf %104 : vector<256x8xf32> to vector<256x8xbf16>
    %c0_126 = arith.constant 0 : index
    %c0_127 = arith.constant 0 : index
    %c0_128 = arith.constant 0 : index
    %106 = vector.load %arg4[%c0_126, %c0_127, %c0_128] : memref<9x8x8xbf16, #tpu.memory_space<vmem>>, vector<1x8x8xbf16>
    %107 = vector.shape_cast %106 : vector<1x8x8xbf16> to vector<8x8xbf16>
    %cst_129 = arith.constant dense<0.000000e+00> : vector<256x8xf32>
    %108 = tpu.matmul %105, %107, %cst_129 {dimension_numbers = #tpu.dot_dimension_numbers<[1], [0], [0], [1], [0, 0, 1, 1], [], []>} : vector<256x8xbf16>, vector<8x8xbf16>, vector<256x8xf32> -> vector<256x8xf32>
    %109 = arith.addf %102, %108 : vector<256x8xf32>
    %c0_130 = arith.constant 0 : index
    %c1_131 = arith.constant 1 : index
    %c0_132 = arith.constant 0 : index
    %110 = vector.load %arg18[%c0_130, %c1_131, %c0_132] : memref<18x18x8xf32, #tpu.memory_space<vmem>>, vector<16x16x8xf32>
    %111 = vector.shape_cast %110 : vector<16x16x8xf32> to vector<256x8xf32>
    %112 = arith.truncf %111 : vector<256x8xf32> to vector<256x8xbf16>
    %c1_133 = arith.constant 1 : index
    %c0_134 = arith.constant 0 : index
    %c0_135 = arith.constant 0 : index
    %113 = vector.load %arg4[%c1_133, %c0_134, %c0_135] : memref<9x8x8xbf16, #tpu.memory_space<vmem>>, vector<1x8x8xbf16>
    %114 = vector.shape_cast %113 : vector<1x8x8xbf16> to vector<8x8xbf16>
    %cst_136 = arith.constant dense<0.000000e+00> : vector<256x8xf32>
    %115 = tpu.matmul %112, %114, %cst_136 {dimension_numbers = #tpu.dot_dimension_numbers<[1], [0], [0], [1], [0, 0, 1, 1], [], []>} : vector<256x8xbf16>, vector<8x8xbf16>, vector<256x8xf32> -> vector<256x8xf32>
    %116 = arith.addf %109, %115 : vector<256x8xf32>
    %c0_137 = arith.constant 0 : index
    %c2_138 = arith.constant 2 : index
    %c0_139 = arith.constant 0 : index
    %117 = vector.load %arg18[%c0_137, %c2_138, %c0_139] : memref<18x18x8xf32, #tpu.memory_space<vmem>>, vector<16x16x8xf32>
    %118 = vector.shape_cast %117 : vector<16x16x8xf32> to vector<256x8xf32>
    %119 = arith.truncf %118 : vector<256x8xf32> to vector<256x8xbf16>
    %c2_140 = arith.constant 2 : index
    %c0_141 = arith.constant 0 : index
    %c0_142 = arith.constant 0 : index
    %120 = vector.load %arg4[%c2_140, %c0_141, %c0_142] : memref<9x8x8xbf16, #tpu.memory_space<vmem>>, vector<1x8x8xbf16>
    %121 = vector.shape_cast %120 : vector<1x8x8xbf16> to vector<8x8xbf16>
    %cst_143 = arith.constant dense<0.000000e+00> : vector<256x8xf32>
    %122 = tpu.matmul %119, %121, %cst_143 {dimension_numbers = #tpu.dot_dimension_numbers<[1], [0], [0], [1], [0, 0, 1, 1], [], []>} : vector<256x8xbf16>, vector<8x8xbf16>, vector<256x8xf32> -> vector<256x8xf32>
    %123 = arith.addf %116, %122 : vector<256x8xf32>
    %c1_144 = arith.constant 1 : index
    %c0_145 = arith.constant 0 : index
    %c0_146 = arith.constant 0 : index
    %124 = vector.load %arg18[%c1_144, %c0_145, %c0_146] : memref<18x18x8xf32, #tpu.memory_space<vmem>>, vector<16x16x8xf32>
    %125 = vector.shape_cast %124 : vector<16x16x8xf32> to vector<256x8xf32>
    %126 = arith.truncf %125 : vector<256x8xf32> to vector<256x8xbf16>
    %c3_147 = arith.constant 3 : index
    %c0_148 = arith.constant 0 : index
    %c0_149 = arith.constant 0 : index
    %127 = vector.load %arg4[%c3_147, %c0_148, %c0_149] : memref<9x8x8xbf16, #tpu.memory_space<vmem>>, vector<1x8x8xbf16>
    %128 = vector.shape_cast %127 : vector<1x8x8xbf16> to vector<8x8xbf16>
    %cst_150 = arith.constant dense<0.000000e+00> : vector<256x8xf32>
    %129 = tpu.matmul %126, %128, %cst_150 {dimension_numbers = #tpu.dot_dimension_numbers<[1], [0], [0], [1], [0, 0, 1, 1], [], []>} : vector<256x8xbf16>, vector<8x8xbf16>, vector<256x8xf32> -> vector<256x8xf32>
    %130 = arith.addf %123, %129 : vector<256x8xf32>
    %c1_151 = arith.constant 1 : index
    %c1_152 = arith.constant 1 : index
    %c0_153 = arith.constant 0 : index
    %131 = vector.load %arg18[%c1_151, %c1_152, %c0_153] : memref<18x18x8xf32, #tpu.memory_space<vmem>>, vector<16x16x8xf32>
    %132 = vector.shape_cast %131 : vector<16x16x8xf32> to vector<256x8xf32>
    %133 = arith.truncf %132 : vector<256x8xf32> to vector<256x8xbf16>
    %c4_154 = arith.constant 4 : index
    %c0_155 = arith.constant 0 : index
    %c0_156 = arith.constant 0 : index
    %134 = vector.load %arg4[%c4_154, %c0_155, %c0_156] : memref<9x8x8xbf16, #tpu.memory_space<vmem>>, vector<1x8x8xbf16>
    %135 = vector.shape_cast %134 : vector<1x8x8xbf16> to vector<8x8xbf16>
    %cst_157 = arith.constant dense<0.000000e+00> : vector<256x8xf32>
    %136 = tpu.matmul %133, %135, %cst_157 {dimension_numbers = #tpu.dot_dimension_numbers<[1], [0], [0], [1], [0, 0, 1, 1], [], []>} : vector<256x8xbf16>, vector<8x8xbf16>, vector<256x8xf32> -> vector<256x8xf32>
    %137 = arith.addf %130, %136 : vector<256x8xf32>
    %c1_158 = arith.constant 1 : index
    %c2_159 = arith.constant 2 : index
    %c0_160 = arith.constant 0 : index
    %138 = vector.load %arg18[%c1_158, %c2_159, %c0_160] : memref<18x18x8xf32, #tpu.memory_space<vmem>>, vector<16x16x8xf32>
    %139 = vector.shape_cast %138 : vector<16x16x8xf32> to vector<256x8xf32>
    %140 = arith.truncf %139 : vector<256x8xf32> to vector<256x8xbf16>
    %c5_161 = arith.constant 5 : index
    %c0_162 = arith.constant 0 : index
    %c0_163 = arith.constant 0 : index
    %141 = vector.load %arg4[%c5_161, %c0_162, %c0_163] : memref<9x8x8xbf16, #tpu.memory_space<vmem>>, vector<1x8x8xbf16>
    %142 = vector.shape_cast %141 : vector<1x8x8xbf16> to vector<8x8xbf16>
    %cst_164 = arith.constant dense<0.000000e+00> : vector<256x8xf32>
    %143 = tpu.matmul %140, %142, %cst_164 {dimension_numbers = #tpu.dot_dimension_numbers<[1], [0], [0], [1], [0, 0, 1, 1], [], []>} : vector<256x8xbf16>, vector<8x8xbf16>, vector<256x8xf32> -> vector<256x8xf32>
    %144 = arith.addf %137, %143 : vector<256x8xf32>
    %c2_165 = arith.constant 2 : index
    %c0_166 = arith.constant 0 : index
    %c0_167 = arith.constant 0 : index
    %145 = vector.load %arg18[%c2_165, %c0_166, %c0_167] : memref<18x18x8xf32, #tpu.memory_space<vmem>>, vector<16x16x8xf32>
    %146 = vector.shape_cast %145 : vector<16x16x8xf32> to vector<256x8xf32>
    %147 = arith.truncf %146 : vector<256x8xf32> to vector<256x8xbf16>
    %c6_168 = arith.constant 6 : index
    %c0_169 = arith.constant 0 : index
    %c0_170 = arith.constant 0 : index
    %148 = vector.load %arg4[%c6_168, %c0_169, %c0_170] : memref<9x8x8xbf16, #tpu.memory_space<vmem>>, vector<1x8x8xbf16>
    %149 = vector.shape_cast %148 : vector<1x8x8xbf16> to vector<8x8xbf16>
    %cst_171 = arith.constant dense<0.000000e+00> : vector<256x8xf32>
    %150 = tpu.matmul %147, %149, %cst_171 {dimension_numbers = #tpu.dot_dimension_numbers<[1], [0], [0], [1], [0, 0, 1, 1], [], []>} : vector<256x8xbf16>, vector<8x8xbf16>, vector<256x8xf32> -> vector<256x8xf32>
    %151 = arith.addf %144, %150 : vector<256x8xf32>
    %c2_172 = arith.constant 2 : index
    %c1_173 = arith.constant 1 : index
    %c0_174 = arith.constant 0 : index
    %152 = vector.load %arg18[%c2_172, %c1_173, %c0_174] : memref<18x18x8xf32, #tpu.memory_space<vmem>>, vector<16x16x8xf32>
    %153 = vector.shape_cast %152 : vector<16x16x8xf32> to vector<256x8xf32>
    %154 = arith.truncf %153 : vector<256x8xf32> to vector<256x8xbf16>
    %c7_175 = arith.constant 7 : index
    %c0_176 = arith.constant 0 : index
    %c0_177 = arith.constant 0 : index
    %155 = vector.load %arg4[%c7_175, %c0_176, %c0_177] : memref<9x8x8xbf16, #tpu.memory_space<vmem>>, vector<1x8x8xbf16>
    %156 = vector.shape_cast %155 : vector<1x8x8xbf16> to vector<8x8xbf16>
    %cst_178 = arith.constant dense<0.000000e+00> : vector<256x8xf32>
    %157 = tpu.matmul %154, %156, %cst_178 {dimension_numbers = #tpu.dot_dimension_numbers<[1], [0], [0], [1], [0, 0, 1, 1], [], []>} : vector<256x8xbf16>, vector<8x8xbf16>, vector<256x8xf32> -> vector<256x8xf32>
    %158 = arith.addf %151, %157 : vector<256x8xf32>
    %c2_179 = arith.constant 2 : index
    %c2_180 = arith.constant 2 : index
    %c0_181 = arith.constant 0 : index
    %159 = vector.load %arg18[%c2_179, %c2_180, %c0_181] : memref<18x18x8xf32, #tpu.memory_space<vmem>>, vector<16x16x8xf32>
    %160 = vector.shape_cast %159 : vector<16x16x8xf32> to vector<256x8xf32>
    %161 = arith.truncf %160 : vector<256x8xf32> to vector<256x8xbf16>
    %c8_182 = arith.constant 8 : index
    %c0_183 = arith.constant 0 : index
    %c0_184 = arith.constant 0 : index
    %162 = vector.load %arg4[%c8_182, %c0_183, %c0_184] : memref<9x8x8xbf16, #tpu.memory_space<vmem>>, vector<1x8x8xbf16>
    %163 = vector.shape_cast %162 : vector<1x8x8xbf16> to vector<8x8xbf16>
    %cst_185 = arith.constant dense<0.000000e+00> : vector<256x8xf32>
    %164 = tpu.matmul %161, %163, %cst_185 {dimension_numbers = #tpu.dot_dimension_numbers<[1], [0], [0], [1], [0, 0, 1, 1], [], []>} : vector<256x8xbf16>, vector<8x8xbf16>, vector<256x8xf32> -> vector<256x8xf32>
    %165 = arith.addf %158, %164 : vector<256x8xf32>
    %c0_186 = arith.constant 0 : index
    %c0_187 = arith.constant 0 : index
    %166 = vector.load %arg5[%c0_186, %c0_187] : memref<1x8xf32, #tpu.memory_space<vmem>>, vector<1x8xf32>
    %167 = vector.broadcast %166 : vector<1x8xf32> to vector<256x8xf32>
    %168 = arith.addf %165, %167 : vector<256x8xf32>
    %169 = arith.truncf %26 : vector<256x3xf32> to vector<256x3xbf16>
    %c0_188 = arith.constant 0 : index
    %c0_189 = arith.constant 0 : index
    %170 = vector.load %arg6[%c0_188, %c0_189] : memref<3x8xbf16, #tpu.memory_space<vmem>>, vector<3x8xbf16>
    %cst_190 = arith.constant dense<0.000000e+00> : vector<256x8xf32>
    %171 = tpu.matmul %169, %170, %cst_190 {dimension_numbers = #tpu.dot_dimension_numbers<[1], [0], [0], [1], [0, 0, 1, 1], [], []>} : vector<256x3xbf16>, vector<3x8xbf16>, vector<256x8xf32> -> vector<256x8xf32>
    %c0_191 = arith.constant 0 : index
    %c0_192 = arith.constant 0 : index
    %172 = vector.load %arg7[%c0_191, %c0_192] : memref<1x8xf32, #tpu.memory_space<vmem>>, vector<1x8xf32>
    %173 = vector.broadcast %172 : vector<1x8xf32> to vector<256x8xf32>
    %174 = arith.addf %171, %173 : vector<256x8xf32>
    %175 = arith.addf %168, %174 : vector<256x8xf32>
    %176 = vector.shape_cast %175 : vector<256x8xf32> to vector<8x32x8xf32>
    %177 = vector.extract_strided_slice %176 {offsets = [0, 0, 0], sizes = [8, 16, 8], strides = [1, 1, 1]} : vector<8x32x8xf32> to vector<8x16x8xf32>
    %178 = vector.shape_cast %177 : vector<8x16x8xf32> to vector<64x2x8xf32>
    %179 = vector.extract_strided_slice %178 {offsets = [0, 0, 0], sizes = [64, 1, 8], strides = [1, 1, 1]} : vector<64x2x8xf32> to vector<64x1x8xf32>
    %180 = vector.shape_cast %179 : vector<64x1x8xf32> to vector<64x8xf32>
    %cst_193 = arith.constant 0.000000e+00 : f32
    %181 = vector.broadcast %cst_193 : f32 to vector<64x8xf32>
    %182 = arith.maximumf %180, %181 : vector<64x8xf32>
    %183 = vector.shape_cast %182 : vector<64x8xf32> to vector<8x8x8xf32>
    %c1_194 = arith.constant 1 : index
    %c1_195 = arith.constant 1 : index
    %c0_196 = arith.constant 0 : index
    %184 = vector.load %arg19[%c1_194, %c1_195, %c0_196] : memref<10x10x8xf32, #tpu.memory_space<vmem>>, vector<8x8x8xf32>
    tpu.vector_store %arg19[%c1_194, %c1_195, %c0_196], %183 {strides = array<i32>} : memref<10x10x8xf32, #tpu.memory_space<vmem>>, vector<8x8x8xf32>,
    %cst_197 = arith.constant 0.000000e+00 : f32
    %185 = vector.broadcast %cst_197 : f32 to vector<64x16xf32>
    %c0_198 = arith.constant 0 : index
    %c0_199 = arith.constant 0 : index
    %c0_200 = arith.constant 0 : index
    %186 = vector.load %arg19[%c0_198, %c0_199, %c0_200] : memref<10x10x8xf32, #tpu.memory_space<vmem>>, vector<8x8x8xf32>
    %187 = vector.shape_cast %186 : vector<8x8x8xf32> to vector<64x8xf32>
    %188 = arith.truncf %187 : vector<64x8xf32> to vector<64x8xbf16>
    %c0_201 = arith.constant 0 : index
    %c0_202 = arith.constant 0 : index
    %c0_203 = arith.constant 0 : index
    %189 = vector.load %arg8[%c0_201, %c0_202, %c0_203] : memref<9x8x16xbf16, #tpu.memory_space<vmem>>, vector<1x8x16xbf16>
    %190 = vector.shape_cast %189 : vector<1x8x16xbf16> to vector<8x16xbf16>
    %cst_204 = arith.constant dense<0.000000e+00> : vector<64x16xf32>
    %191 = tpu.matmul %188, %190, %cst_204 {dimension_numbers = #tpu.dot_dimension_numbers<[1], [0], [0], [1], [0, 0, 1, 1], [], []>} : vector<64x8xbf16>, vector<8x16xbf16>, vector<64x16xf32> -> vector<64x16xf32>
    %192 = arith.addf %185, %191 : vector<64x16xf32>
    %c0_205 = arith.constant 0 : index
    %c1_206 = arith.constant 1 : index
    %c0_207 = arith.constant 0 : index
    %193 = vector.load %arg19[%c0_205, %c1_206, %c0_207] : memref<10x10x8xf32, #tpu.memory_space<vmem>>, vector<8x8x8xf32>
    %194 = vector.shape_cast %193 : vector<8x8x8xf32> to vector<64x8xf32>
    %195 = arith.truncf %194 : vector<64x8xf32> to vector<64x8xbf16>
    %c1_208 = arith.constant 1 : index
    %c0_209 = arith.constant 0 : index
    %c0_210 = arith.constant 0 : index
    %196 = vector.load %arg8[%c1_208, %c0_209, %c0_210] : memref<9x8x16xbf16, #tpu.memory_space<vmem>>, vector<1x8x16xbf16>
    %197 = vector.shape_cast %196 : vector<1x8x16xbf16> to vector<8x16xbf16>
    %cst_211 = arith.constant dense<0.000000e+00> : vector<64x16xf32>
    %198 = tpu.matmul %195, %197, %cst_211 {dimension_numbers = #tpu.dot_dimension_numbers<[1], [0], [0], [1], [0, 0, 1, 1], [], []>} : vector<64x8xbf16>, vector<8x16xbf16>, vector<64x16xf32> -> vector<64x16xf32>
    %199 = arith.addf %192, %198 : vector<64x16xf32>
    %c0_212 = arith.constant 0 : index
    %c2_213 = arith.constant 2 : index
    %c0_214 = arith.constant 0 : index
    %200 = vector.load %arg19[%c0_212, %c2_213, %c0_214] : memref<10x10x8xf32, #tpu.memory_space<vmem>>, vector<8x8x8xf32>
    %201 = vector.shape_cast %200 : vector<8x8x8xf32> to vector<64x8xf32>
    %202 = arith.truncf %201 : vector<64x8xf32> to vector<64x8xbf16>
    %c2_215 = arith.constant 2 : index
    %c0_216 = arith.constant 0 : index
    %c0_217 = arith.constant 0 : index
    %203 = vector.load %arg8[%c2_215, %c0_216, %c0_217] : memref<9x8x16xbf16, #tpu.memory_space<vmem>>, vector<1x8x16xbf16>
    %204 = vector.shape_cast %203 : vector<1x8x16xbf16> to vector<8x16xbf16>
    %cst_218 = arith.constant dense<0.000000e+00> : vector<64x16xf32>
    %205 = tpu.matmul %202, %204, %cst_218 {dimension_numbers = #tpu.dot_dimension_numbers<[1], [0], [0], [1], [0, 0, 1, 1], [], []>} : vector<64x8xbf16>, vector<8x16xbf16>, vector<64x16xf32> -> vector<64x16xf32>
    %206 = arith.addf %199, %205 : vector<64x16xf32>
    %c1_219 = arith.constant 1 : index
    %c0_220 = arith.constant 0 : index
    %c0_221 = arith.constant 0 : index
    %207 = vector.load %arg19[%c1_219, %c0_220, %c0_221] : memref<10x10x8xf32, #tpu.memory_space<vmem>>, vector<8x8x8xf32>
    %208 = vector.shape_cast %207 : vector<8x8x8xf32> to vector<64x8xf32>
    %209 = arith.truncf %208 : vector<64x8xf32> to vector<64x8xbf16>
    %c3_222 = arith.constant 3 : index
    %c0_223 = arith.constant 0 : index
    %c0_224 = arith.constant 0 : index
    %210 = vector.load %arg8[%c3_222, %c0_223, %c0_224] : memref<9x8x16xbf16, #tpu.memory_space<vmem>>, vector<1x8x16xbf16>
    %211 = vector.shape_cast %210 : vector<1x8x16xbf16> to vector<8x16xbf16>
    %cst_225 = arith.constant dense<0.000000e+00> : vector<64x16xf32>
    %212 = tpu.matmul %209, %211, %cst_225 {dimension_numbers = #tpu.dot_dimension_numbers<[1], [0], [0], [1], [0, 0, 1, 1], [], []>} : vector<64x8xbf16>, vector<8x16xbf16>, vector<64x16xf32> -> vector<64x16xf32>
    %213 = arith.addf %206, %212 : vector<64x16xf32>
    %c1_226 = arith.constant 1 : index
    %c1_227 = arith.constant 1 : index
    %c0_228 = arith.constant 0 : index
    %214 = vector.load %arg19[%c1_226, %c1_227, %c0_228] : memref<10x10x8xf32, #tpu.memory_space<vmem>>, vector<8x8x8xf32>
    %215 = vector.shape_cast %214 : vector<8x8x8xf32> to vector<64x8xf32>
    %216 = arith.truncf %215 : vector<64x8xf32> to vector<64x8xbf16>
    %c4_229 = arith.constant 4 : index
    %c0_230 = arith.constant 0 : index
    %c0_231 = arith.constant 0 : index
    %217 = vector.load %arg8[%c4_229, %c0_230, %c0_231] : memref<9x8x16xbf16, #tpu.memory_space<vmem>>, vector<1x8x16xbf16>
    %218 = vector.shape_cast %217 : vector<1x8x16xbf16> to vector<8x16xbf16>
    %cst_232 = arith.constant dense<0.000000e+00> : vector<64x16xf32>
    %219 = tpu.matmul %216, %218, %cst_232 {dimension_numbers = #tpu.dot_dimension_numbers<[1], [0], [0], [1], [0, 0, 1, 1], [], []>} : vector<64x8xbf16>, vector<8x16xbf16>, vector<64x16xf32> -> vector<64x16xf32>
    %220 = arith.addf %213, %219 : vector<64x16xf32>
    %c1_233 = arith.constant 1 : index
    %c2_234 = arith.constant 2 : index
    %c0_235 = arith.constant 0 : index
    %221 = vector.load %arg19[%c1_233, %c2_234, %c0_235] : memref<10x10x8xf32, #tpu.memory_space<vmem>>, vector<8x8x8xf32>
    %222 = vector.shape_cast %221 : vector<8x8x8xf32> to vector<64x8xf32>
    %223 = arith.truncf %222 : vector<64x8xf32> to vector<64x8xbf16>
    %c5_236 = arith.constant 5 : index
    %c0_237 = arith.constant 0 : index
    %c0_238 = arith.constant 0 : index
    %224 = vector.load %arg8[%c5_236, %c0_237, %c0_238] : memref<9x8x16xbf16, #tpu.memory_space<vmem>>, vector<1x8x16xbf16>
    %225 = vector.shape_cast %224 : vector<1x8x16xbf16> to vector<8x16xbf16>
    %cst_239 = arith.constant dense<0.000000e+00> : vector<64x16xf32>
    %226 = tpu.matmul %223, %225, %cst_239 {dimension_numbers = #tpu.dot_dimension_numbers<[1], [0], [0], [1], [0, 0, 1, 1], [], []>} : vector<64x8xbf16>, vector<8x16xbf16>, vector<64x16xf32> -> vector<64x16xf32>
    %227 = arith.addf %220, %226 : vector<64x16xf32>
    %c2_240 = arith.constant 2 : index
    %c0_241 = arith.constant 0 : index
    %c0_242 = arith.constant 0 : index
    %228 = vector.load %arg19[%c2_240, %c0_241, %c0_242] : memref<10x10x8xf32, #tpu.memory_space<vmem>>, vector<8x8x8xf32>
    %229 = vector.shape_cast %228 : vector<8x8x8xf32> to vector<64x8xf32>
    %230 = arith.truncf %229 : vector<64x8xf32> to vector<64x8xbf16>
    %c6_243 = arith.constant 6 : index
    %c0_244 = arith.constant 0 : index
    %c0_245 = arith.constant 0 : index
    %231 = vector.load %arg8[%c6_243, %c0_244, %c0_245] : memref<9x8x16xbf16, #tpu.memory_space<vmem>>, vector<1x8x16xbf16>
    %232 = vector.shape_cast %231 : vector<1x8x16xbf16> to vector<8x16xbf16>
    %cst_246 = arith.constant dense<0.000000e+00> : vector<64x16xf32>
    %233 = tpu.matmul %230, %232, %cst_246 {dimension_numbers = #tpu.dot_dimension_numbers<[1], [0], [0], [1], [0, 0, 1, 1], [], []>} : vector<64x8xbf16>, vector<8x16xbf16>, vector<64x16xf32> -> vector<64x16xf32>
    %234 = arith.addf %227, %233 : vector<64x16xf32>
    %c2_247 = arith.constant 2 : index
    %c1_248 = arith.constant 1 : index
    %c0_249 = arith.constant 0 : index
    %235 = vector.load %arg19[%c2_247, %c1_248, %c0_249] : memref<10x10x8xf32, #tpu.memory_space<vmem>>, vector<8x8x8xf32>
    %236 = vector.shape_cast %235 : vector<8x8x8xf32> to vector<64x8xf32>
    %237 = arith.truncf %236 : vector<64x8xf32> to vector<64x8xbf16>
    %c7_250 = arith.constant 7 : index
    %c0_251 = arith.constant 0 : index
    %c0_252 = arith.constant 0 : index
    %238 = vector.load %arg8[%c7_250, %c0_251, %c0_252] : memref<9x8x16xbf16, #tpu.memory_space<vmem>>, vector<1x8x16xbf16>
    %239 = vector.shape_cast %238 : vector<1x8x16xbf16> to vector<8x16xbf16>
    %cst_253 = arith.constant dense<0.000000e+00> : vector<64x16xf32>
    %240 = tpu.matmul %237, %239, %cst_253 {dimension_numbers = #tpu.dot_dimension_numbers<[1], [0], [0], [1], [0, 0, 1, 1], [], []>} : vector<64x8xbf16>, vector<8x16xbf16>, vector<64x16xf32> -> vector<64x16xf32>
    %241 = arith.addf %234, %240 : vector<64x16xf32>
    %c2_254 = arith.constant 2 : index
    %c2_255 = arith.constant 2 : index
    %c0_256 = arith.constant 0 : index
    %242 = vector.load %arg19[%c2_254, %c2_255, %c0_256] : memref<10x10x8xf32, #tpu.memory_space<vmem>>, vector<8x8x8xf32>
    %243 = vector.shape_cast %242 : vector<8x8x8xf32> to vector<64x8xf32>
    %244 = arith.truncf %243 : vector<64x8xf32> to vector<64x8xbf16>
    %c8_257 = arith.constant 8 : index
    %c0_258 = arith.constant 0 : index
    %c0_259 = arith.constant 0 : index
    %245 = vector.load %arg8[%c8_257, %c0_258, %c0_259] : memref<9x8x16xbf16, #tpu.memory_space<vmem>>, vector<1x8x16xbf16>
    %246 = vector.shape_cast %245 : vector<1x8x16xbf16> to vector<8x16xbf16>
    %cst_260 = arith.constant dense<0.000000e+00> : vector<64x16xf32>
    %247 = tpu.matmul %244, %246, %cst_260 {dimension_numbers = #tpu.dot_dimension_numbers<[1], [0], [0], [1], [0, 0, 1, 1], [], []>} : vector<64x8xbf16>, vector<8x16xbf16>, vector<64x16xf32> -> vector<64x16xf32>
    %248 = arith.addf %241, %247 : vector<64x16xf32>
    %c0_261 = arith.constant 0 : index
    %c0_262 = arith.constant 0 : index
    %249 = vector.load %arg9[%c0_261, %c0_262] : memref<1x16xf32, #tpu.memory_space<vmem>>, vector<1x16xf32>
    %250 = vector.broadcast %249 : vector<1x16xf32> to vector<64x16xf32>
    %251 = arith.addf %248, %250 : vector<64x16xf32>
    %cst_263 = arith.constant 0.000000e+00 : f32
    %252 = vector.broadcast %cst_263 : f32 to vector<64x16xf32>
    %253 = arith.maximumf %251, %252 : vector<64x16xf32>
    %254 = vector.shape_cast %253 : vector<64x16xf32> to vector<8x8x16xf32>
    %c1_264 = arith.constant 1 : index
    %c1_265 = arith.constant 1 : index
    %c0_266 = arith.constant 0 : index
    %255 = vector.load %arg20[%c1_264, %c1_265, %c0_266] : memref<10x10x16xf32, #tpu.memory_space<vmem>>, vector<8x8x16xf32>
    tpu.vector_store %arg20[%c1_264, %c1_265, %c0_266], %254 {strides = array<i32>} : memref<10x10x16xf32, #tpu.memory_space<vmem>>, vector<8x8x16xf32>,
    %cst_267 = arith.constant 0.000000e+00 : f32
    %256 = vector.broadcast %cst_267 : f32 to vector<64x16xf32>
    %c0_268 = arith.constant 0 : index
    %c0_269 = arith.constant 0 : index
    %c0_270 = arith.constant 0 : index
    %257 = vector.load %arg20[%c0_268, %c0_269, %c0_270] : memref<10x10x16xf32, #tpu.memory_space<vmem>>, vector<8x8x16xf32>
    %258 = vector.shape_cast %257 : vector<8x8x16xf32> to vector<64x16xf32>
    %259 = arith.truncf %258 : vector<64x16xf32> to vector<64x16xbf16>
    %c0_271 = arith.constant 0 : index
    %c0_272 = arith.constant 0 : index
    %c0_273 = arith.constant 0 : index
    %260 = vector.load %arg10[%c0_271, %c0_272, %c0_273] : memref<9x16x16xbf16, #tpu.memory_space<vmem>>, vector<1x16x16xbf16>
    %261 = vector.shape_cast %260 : vector<1x16x16xbf16> to vector<16x16xbf16>
    %cst_274 = arith.constant dense<0.000000e+00> : vector<64x16xf32>
    %262 = tpu.matmul %259, %261, %cst_274 {dimension_numbers = #tpu.dot_dimension_numbers<[1], [0], [0], [1], [0, 0, 1, 1], [], []>} : vector<64x16xbf16>, vector<16x16xbf16>, vector<64x16xf32> -> vector<64x16xf32>
    %263 = arith.addf %256, %262 : vector<64x16xf32>
    %c0_275 = arith.constant 0 : index
    %c1_276 = arith.constant 1 : index
    %c0_277 = arith.constant 0 : index
    %264 = vector.load %arg20[%c0_275, %c1_276, %c0_277] : memref<10x10x16xf32, #tpu.memory_space<vmem>>, vector<8x8x16xf32>
    %265 = vector.shape_cast %264 : vector<8x8x16xf32> to vector<64x16xf32>
    %266 = arith.truncf %265 : vector<64x16xf32> to vector<64x16xbf16>
    %c1_278 = arith.constant 1 : index
    %c0_279 = arith.constant 0 : index
    %c0_280 = arith.constant 0 : index
    %267 = vector.load %arg10[%c1_278, %c0_279, %c0_280] : memref<9x16x16xbf16, #tpu.memory_space<vmem>>, vector<1x16x16xbf16>
    %268 = vector.shape_cast %267 : vector<1x16x16xbf16> to vector<16x16xbf16>
    %cst_281 = arith.constant dense<0.000000e+00> : vector<64x16xf32>
    %269 = tpu.matmul %266, %268, %cst_281 {dimension_numbers = #tpu.dot_dimension_numbers<[1], [0], [0], [1], [0, 0, 1, 1], [], []>} : vector<64x16xbf16>, vector<16x16xbf16>, vector<64x16xf32> -> vector<64x16xf32>
    %270 = arith.addf %263, %269 : vector<64x16xf32>
    %c0_282 = arith.constant 0 : index
    %c2_283 = arith.constant 2 : index
    %c0_284 = arith.constant 0 : index
    %271 = vector.load %arg20[%c0_282, %c2_283, %c0_284] : memref<10x10x16xf32, #tpu.memory_space<vmem>>, vector<8x8x16xf32>
    %272 = vector.shape_cast %271 : vector<8x8x16xf32> to vector<64x16xf32>
    %273 = arith.truncf %272 : vector<64x16xf32> to vector<64x16xbf16>
    %c2_285 = arith.constant 2 : index
    %c0_286 = arith.constant 0 : index
    %c0_287 = arith.constant 0 : index
    %274 = vector.load %arg10[%c2_285, %c0_286, %c0_287] : memref<9x16x16xbf16, #tpu.memory_space<vmem>>, vector<1x16x16xbf16>
    %275 = vector.shape_cast %274 : vector<1x16x16xbf16> to vector<16x16xbf16>
    %cst_288 = arith.constant dense<0.000000e+00> : vector<64x16xf32>
    %276 = tpu.matmul %273, %275, %cst_288 {dimension_numbers = #tpu.dot_dimension_numbers<[1], [0], [0], [1], [0, 0, 1, 1], [], []>} : vector<64x16xbf16>, vector<16x16xbf16>, vector<64x16xf32> -> vector<64x16xf32>
    %277 = arith.addf %270, %276 : vector<64x16xf32>
    %c1_289 = arith.constant 1 : index
    %c0_290 = arith.constant 0 : index
    %c0_291 = arith.constant 0 : index
    %278 = vector.load %arg20[%c1_289, %c0_290, %c0_291] : memref<10x10x16xf32, #tpu.memory_space<vmem>>, vector<8x8x16xf32>
    %279 = vector.shape_cast %278 : vector<8x8x16xf32> to vector<64x16xf32>
    %280 = arith.truncf %279 : vector<64x16xf32> to vector<64x16xbf16>
    %c3_292 = arith.constant 3 : index
    %c0_293 = arith.constant 0 : index
    %c0_294 = arith.constant 0 : index
    %281 = vector.load %arg10[%c3_292, %c0_293, %c0_294] : memref<9x16x16xbf16, #tpu.memory_space<vmem>>, vector<1x16x16xbf16>
    %282 = vector.shape_cast %281 : vector<1x16x16xbf16> to vector<16x16xbf16>
    %cst_295 = arith.constant dense<0.000000e+00> : vector<64x16xf32>
    %283 = tpu.matmul %280, %282, %cst_295 {dimension_numbers = #tpu.dot_dimension_numbers<[1], [0], [0], [1], [0, 0, 1, 1], [], []>} : vector<64x16xbf16>, vector<16x16xbf16>, vector<64x16xf32> -> vector<64x16xf32>
    %284 = arith.addf %277, %283 : vector<64x16xf32>
    %c1_296 = arith.constant 1 : index
    %c1_297 = arith.constant 1 : index
    %c0_298 = arith.constant 0 : index
    %285 = vector.load %arg20[%c1_296, %c1_297, %c0_298] : memref<10x10x16xf32, #tpu.memory_space<vmem>>, vector<8x8x16xf32>
    %286 = vector.shape_cast %285 : vector<8x8x16xf32> to vector<64x16xf32>
    %287 = arith.truncf %286 : vector<64x16xf32> to vector<64x16xbf16>
    %c4_299 = arith.constant 4 : index
    %c0_300 = arith.constant 0 : index
    %c0_301 = arith.constant 0 : index
    %288 = vector.load %arg10[%c4_299, %c0_300, %c0_301] : memref<9x16x16xbf16, #tpu.memory_space<vmem>>, vector<1x16x16xbf16>
    %289 = vector.shape_cast %288 : vector<1x16x16xbf16> to vector<16x16xbf16>
    %cst_302 = arith.constant dense<0.000000e+00> : vector<64x16xf32>
    %290 = tpu.matmul %287, %289, %cst_302 {dimension_numbers = #tpu.dot_dimension_numbers<[1], [0], [0], [1], [0, 0, 1, 1], [], []>} : vector<64x16xbf16>, vector<16x16xbf16>, vector<64x16xf32> -> vector<64x16xf32>
    %291 = arith.addf %284, %290 : vector<64x16xf32>
    %c1_303 = arith.constant 1 : index
    %c2_304 = arith.constant 2 : index
    %c0_305 = arith.constant 0 : index
    %292 = vector.load %arg20[%c1_303, %c2_304, %c0_305] : memref<10x10x16xf32, #tpu.memory_space<vmem>>, vector<8x8x16xf32>
    %293 = vector.shape_cast %292 : vector<8x8x16xf32> to vector<64x16xf32>
    %294 = arith.truncf %293 : vector<64x16xf32> to vector<64x16xbf16>
    %c5_306 = arith.constant 5 : index
    %c0_307 = arith.constant 0 : index
    %c0_308 = arith.constant 0 : index
    %295 = vector.load %arg10[%c5_306, %c0_307, %c0_308] : memref<9x16x16xbf16, #tpu.memory_space<vmem>>, vector<1x16x16xbf16>
    %296 = vector.shape_cast %295 : vector<1x16x16xbf16> to vector<16x16xbf16>
    %cst_309 = arith.constant dense<0.000000e+00> : vector<64x16xf32>
    %297 = tpu.matmul %294, %296, %cst_309 {dimension_numbers = #tpu.dot_dimension_numbers<[1], [0], [0], [1], [0, 0, 1, 1], [], []>} : vector<64x16xbf16>, vector<16x16xbf16>, vector<64x16xf32> -> vector<64x16xf32>
    %298 = arith.addf %291, %297 : vector<64x16xf32>
    %c2_310 = arith.constant 2 : index
    %c0_311 = arith.constant 0 : index
    %c0_312 = arith.constant 0 : index
    %299 = vector.load %arg20[%c2_310, %c0_311, %c0_312] : memref<10x10x16xf32, #tpu.memory_space<vmem>>, vector<8x8x16xf32>
    %300 = vector.shape_cast %299 : vector<8x8x16xf32> to vector<64x16xf32>
    %301 = arith.truncf %300 : vector<64x16xf32> to vector<64x16xbf16>
    %c6_313 = arith.constant 6 : index
    %c0_314 = arith.constant 0 : index
    %c0_315 = arith.constant 0 : index
    %302 = vector.load %arg10[%c6_313, %c0_314, %c0_315] : memref<9x16x16xbf16, #tpu.memory_space<vmem>>, vector<1x16x16xbf16>
    %303 = vector.shape_cast %302 : vector<1x16x16xbf16> to vector<16x16xbf16>
    %cst_316 = arith.constant dense<0.000000e+00> : vector<64x16xf32>
    %304 = tpu.matmul %301, %303, %cst_316 {dimension_numbers = #tpu.dot_dimension_numbers<[1], [0], [0], [1], [0, 0, 1, 1], [], []>} : vector<64x16xbf16>, vector<16x16xbf16>, vector<64x16xf32> -> vector<64x16xf32>
    %305 = arith.addf %298, %304 : vector<64x16xf32>
    %c2_317 = arith.constant 2 : index
    %c1_318 = arith.constant 1 : index
    %c0_319 = arith.constant 0 : index
    %306 = vector.load %arg20[%c2_317, %c1_318, %c0_319] : memref<10x10x16xf32, #tpu.memory_space<vmem>>, vector<8x8x16xf32>
    %307 = vector.shape_cast %306 : vector<8x8x16xf32> to vector<64x16xf32>
    %308 = arith.truncf %307 : vector<64x16xf32> to vector<64x16xbf16>
    %c7_320 = arith.constant 7 : index
    %c0_321 = arith.constant 0 : index
    %c0_322 = arith.constant 0 : index
    %309 = vector.load %arg10[%c7_320, %c0_321, %c0_322] : memref<9x16x16xbf16, #tpu.memory_space<vmem>>, vector<1x16x16xbf16>
    %310 = vector.shape_cast %309 : vector<1x16x16xbf16> to vector<16x16xbf16>
    %cst_323 = arith.constant dense<0.000000e+00> : vector<64x16xf32>
    %311 = tpu.matmul %308, %310, %cst_323 {dimension_numbers = #tpu.dot_dimension_numbers<[1], [0], [0], [1], [0, 0, 1, 1], [], []>} : vector<64x16xbf16>, vector<16x16xbf16>, vector<64x16xf32> -> vector<64x16xf32>
    %312 = arith.addf %305, %311 : vector<64x16xf32>
    %c2_324 = arith.constant 2 : index
    %c2_325 = arith.constant 2 : index
    %c0_326 = arith.constant 0 : index
    %313 = vector.load %arg20[%c2_324, %c2_325, %c0_326] : memref<10x10x16xf32, #tpu.memory_space<vmem>>, vector<8x8x16xf32>
    %314 = vector.shape_cast %313 : vector<8x8x16xf32> to vector<64x16xf32>
    %315 = arith.truncf %314 : vector<64x16xf32> to vector<64x16xbf16>
    %c8_327 = arith.constant 8 : index
    %c0_328 = arith.constant 0 : index
    %c0_329 = arith.constant 0 : index
    %316 = vector.load %arg10[%c8_327, %c0_328, %c0_329] : memref<9x16x16xbf16, #tpu.memory_space<vmem>>, vector<1x16x16xbf16>
    %317 = vector.shape_cast %316 : vector<1x16x16xbf16> to vector<16x16xbf16>
    %cst_330 = arith.constant dense<0.000000e+00> : vector<64x16xf32>
    %318 = tpu.matmul %315, %317, %cst_330 {dimension_numbers = #tpu.dot_dimension_numbers<[1], [0], [0], [1], [0, 0, 1, 1], [], []>} : vector<64x16xbf16>, vector<16x16xbf16>, vector<64x16xf32> -> vector<64x16xf32>
    %319 = arith.addf %312, %318 : vector<64x16xf32>
    %c0_331 = arith.constant 0 : index
    %c0_332 = arith.constant 0 : index
    %320 = vector.load %arg11[%c0_331, %c0_332] : memref<1x16xf32, #tpu.memory_space<vmem>>, vector<1x16xf32>
    %321 = vector.broadcast %320 : vector<1x16xf32> to vector<64x16xf32>
    %322 = arith.addf %319, %321 : vector<64x16xf32>
    %323 = arith.truncf %180 : vector<64x8xf32> to vector<64x8xbf16>
    %c0_333 = arith.constant 0 : index
    %c0_334 = arith.constant 0 : index
    %324 = vector.load %arg12[%c0_333, %c0_334] : memref<8x16xbf16, #tpu.memory_space<vmem>>, vector<8x16xbf16>
    %cst_335 = arith.constant dense<0.000000e+00> : vector<64x16xf32>
    %325 = tpu.matmul %323, %324, %cst_335 {dimension_numbers = #tpu.dot_dimension_numbers<[1], [0], [0], [1], [0, 0, 1, 1], [], []>} : vector<64x8xbf16>, vector<8x16xbf16>, vector<64x16xf32> -> vector<64x16xf32>
    %c0_336 = arith.constant 0 : index
    %c0_337 = arith.constant 0 : index
    %326 = vector.load %arg13[%c0_336, %c0_337] : memref<1x16xf32, #tpu.memory_space<vmem>>, vector<1x16xf32>
    %327 = vector.broadcast %326 : vector<1x16xf32> to vector<64x16xf32>
    %328 = arith.addf %325, %327 : vector<64x16xf32>
    %329 = arith.addf %322, %328 : vector<64x16xf32>
    %330 = vector.shape_cast %329 : vector<64x16xf32> to vector<4x16x16xf32>
    %331 = vector.extract_strided_slice %330 {offsets = [0, 0, 0], sizes = [4, 8, 16], strides = [1, 1, 1]} : vector<4x16x16xf32> to vector<4x8x16xf32>
    %332 = vector.shape_cast %331 : vector<4x8x16xf32> to vector<16x2x16xf32>
    %333 = vector.extract_strided_slice %332 {offsets = [0, 0, 0], sizes = [16, 1, 16], strides = [1, 1, 1]} : vector<16x2x16xf32> to vector<16x1x16xf32>
    %334 = vector.shape_cast %333 : vector<16x1x16xf32> to vector<16x16xf32>
    %cst_338 = arith.constant 0.000000e+00 : f32
    %335 = vector.broadcast %cst_338 : f32 to vector<16x16xf32>
    %336 = arith.maximumf %334, %335 : vector<16x16xf32>
    %cst_339 = arith.constant dense<0.000000e+00> : vector<16xf32>
    %337 = vector.multi_reduction <add>, %336, %cst_339 [0] : vector<16x16xf32> to vector<16xf32>
    %338 = vector.shape_cast %337 : vector<16xf32> to vector<1x16xf32>
    %c0_340 = arith.constant 0 : index
    %c0_341 = arith.constant 0 : index
    %339 = vector.load %arg14[%c0_340, %c0_341] : memref<1x16xf32, #tpu.memory_space<vmem>>, vector<1x16xf32>
    %340 = arith.mulf %338, %339 : vector<1x16xf32>
    %cst_342 = arith.constant dense<0.000000e+00> : vector<1xf32>
    %341 = vector.multi_reduction <add>, %340, %cst_342 [1] : vector<1x16xf32> to vector<1xf32>
    %342 = vector.shape_cast %341 : vector<1xf32> to vector<1x1xf32>
    %c0_343 = arith.constant 0 : index
    %c0_344 = arith.constant 0 : index
    %343 = vector.load %arg15[%c0_343, %c0_344] : memref<1x1xf32, #tpu.memory_space<vmem>>, vector<1x1xf32>
    %344 = arith.addf %342, %343 : vector<1x1xf32>
    %c0_345 = arith.constant 0 : index
    %c0_346 = arith.constant 0 : index
    %c0_347 = arith.constant 0 : index
    %345 = vector.load %arg16[%c0_345, %c0_346, %c0_347] : memref<1x1x1xf32, #tpu.memory_space<vmem>>, vector<1x1x1xf32>
    %346 = vector.shape_cast %345 : vector<1x1x1xf32> to vector<1x1xf32>
    %347 = vector.shape_cast %344 : vector<1x1xf32> to vector<1x1x1xf32>
    tpu.vector_store %arg16[%c0_345, %c0_346, %c0_347], %347 {strides = array<i32>} : memref<1x1x1xf32, #tpu.memory_space<vmem>>, vector<1x1x1xf32>,
    return
  }
  func.func @transform_0(%arg0: i32) -> (i32, i32, i32, i32) {
    %c0_i32 = arith.constant 0 : i32
    %c0_i32_0 = arith.constant 0 : i32
    %c0_i32_1 = arith.constant 0 : i32
    %c0_i32_2 = arith.constant 0 : i32
    return %arg0, %c0_i32, %c0_i32_0, %c0_i32_1 : i32, i32, i32, i32
  }
  func.func @transform_1(%arg0: i32) -> (i32, i32, i32) {
    %c0_i32 = arith.constant 0 : i32
    %c0_i32_0 = arith.constant 0 : i32
    %c0_i32_1 = arith.constant 0 : i32
    %c0_i32_2 = arith.constant 0 : i32
    return %c0_i32, %c0_i32_0, %c0_i32_1 : i32, i32, i32
  }
  func.func @transform_2(%arg0: i32) -> (i32, i32) {
    %c0_i32 = arith.constant 0 : i32
    %c0_i32_0 = arith.constant 0 : i32
    %c0_i32_1 = arith.constant 0 : i32
    return %c0_i32, %c0_i32_0 : i32, i32
  }
  func.func @transform_3(%arg0: i32) -> (i32, i32, i32) {
    %c0_i32 = arith.constant 0 : i32
    %c0_i32_0 = arith.constant 0 : i32
    %c0_i32_1 = arith.constant 0 : i32
    %c0_i32_2 = arith.constant 0 : i32
    return %c0_i32, %c0_i32_0, %c0_i32_1 : i32, i32, i32
  }
  func.func @transform_4(%arg0: i32) -> (i32, i32) {
    %c0_i32 = arith.constant 0 : i32
    %c0_i32_0 = arith.constant 0 : i32
    %c0_i32_1 = arith.constant 0 : i32
    return %c0_i32, %c0_i32_0 : i32, i32
  }
  func.func @transform_5(%arg0: i32) -> (i32, i32) {
    %c0_i32 = arith.constant 0 : i32
    %c0_i32_0 = arith.constant 0 : i32
    %c0_i32_1 = arith.constant 0 : i32
    return %c0_i32, %c0_i32_0 : i32, i32
  }
  func.func @transform_6(%arg0: i32) -> (i32, i32) {
    %c0_i32 = arith.constant 0 : i32
    %c0_i32_0 = arith.constant 0 : i32
    %c0_i32_1 = arith.constant 0 : i32
    return %c0_i32, %c0_i32_0 : i32, i32
  }
  func.func @transform_7(%arg0: i32) -> (i32, i32, i32) {
    %c0_i32 = arith.constant 0 : i32
    %c0_i32_0 = arith.constant 0 : i32
    %c0_i32_1 = arith.constant 0 : i32
    %c0_i32_2 = arith.constant 0 : i32
    return %c0_i32, %c0_i32_0, %c0_i32_1 : i32, i32, i32
  }
  func.func @transform_8(%arg0: i32) -> (i32, i32) {
    %c0_i32 = arith.constant 0 : i32
    %c0_i32_0 = arith.constant 0 : i32
    %c0_i32_1 = arith.constant 0 : i32
    return %c0_i32, %c0_i32_0 : i32, i32
  }
  func.func @transform_9(%arg0: i32) -> (i32, i32, i32) {
    %c0_i32 = arith.constant 0 : i32
    %c0_i32_0 = arith.constant 0 : i32
    %c0_i32_1 = arith.constant 0 : i32
    %c0_i32_2 = arith.constant 0 : i32
    return %c0_i32, %c0_i32_0, %c0_i32_1 : i32, i32, i32
  }
  func.func @transform_10(%arg0: i32) -> (i32, i32) {
    %c0_i32 = arith.constant 0 : i32
    %c0_i32_0 = arith.constant 0 : i32
    %c0_i32_1 = arith.constant 0 : i32
    return %c0_i32, %c0_i32_0 : i32, i32
  }
  func.func @transform_11(%arg0: i32) -> (i32, i32) {
    %c0_i32 = arith.constant 0 : i32
    %c0_i32_0 = arith.constant 0 : i32
    %c0_i32_1 = arith.constant 0 : i32
    return %c0_i32, %c0_i32_0 : i32, i32
  }
  func.func @transform_12(%arg0: i32) -> (i32, i32) {
    %c0_i32 = arith.constant 0 : i32
    %c0_i32_0 = arith.constant 0 : i32
    %c0_i32_1 = arith.constant 0 : i32
    return %c0_i32, %c0_i32_0 : i32, i32
  }
  func.func @transform_13(%arg0: i32) -> (i32, i32) {
    %c0_i32 = arith.constant 0 : i32
    %c0_i32_0 = arith.constant 0 : i32
    %c0_i32_1 = arith.constant 0 : i32
    return %c0_i32, %c0_i32_0 : i32, i32
  }
  func.func @transform_14(%arg0: i32) -> (i32, i32) {
    %c0_i32 = arith.constant 0 : i32
    %c0_i32_0 = arith.constant 0 : i32
    %c0_i32_1 = arith.constant 0 : i32
    return %c0_i32, %c0_i32_0 : i32, i32
  }
  func.func @transform_15(%arg0: i32) -> (i32, i32, i32) {
    %c0_i32 = arith.constant 0 : i32
    %c0_i32_0 = arith.constant 0 : i32
    %c0_i32_1 = arith.constant 0 : i32
    return %arg0, %c0_i32, %c0_i32_0 : i32, i32, i32
  }
}

</mosaic_0001>

<llo_original>
// kernel: discriminator_forward.1
$region0: #{discriminator_forward.1}
  #allocation0 [shape = 'u32[]', space=smem, size = 0x4, offset = 0x4, fixed_abs, tag = 'smem constant byte address 0x4 - core index']
  #allocation1 [shape = 'u32[144,128]{1,0:T(1,128)}', space=vmem, size = 0x12000, scoped, tag = 'internal scratch']
  #allocation2 [shape = 'f32[18,18,3]{2,1,0:T(8,128)}', space=vmem, size = 0x36000, scoped, tag = 'scratch operand']
  #allocation3 [shape = 'f32[18,18,8]{2,1,0:T(8,128)}', space=vmem, size = 0x36000, scoped, tag = 'scratch operand']
  #allocation4 [shape = 'f32[10,10,8]{2,1,0:T(8,128)}', space=vmem, size = 0x14000, scoped, tag = 'scratch operand']
  #allocation5 [shape = 'f32[10,10,16]{2,1,0:T(8,128)}', space=vmem, size = 0x14000, scoped, tag = 'scratch operand']
  #allocation6 [shape = 'f32[1,1]{1,0:T(1,128)S(1)}', space=vmem, size = 0x200, scoped, tag = 'scoped memory for discriminator_forward.1']
  %s0 = inlined_call_operand.vmem [shape: f32[2,16,16,3], index: 0, kind: input, shape index: {}]
  %s1 = inlined_call_operand.vmem [shape: bf16[9,3,8], index: 1, kind: input, shape index: {}]
  %s2 = inlined_call_operand.vmem [shape: f32[1,8], index: 2, kind: input, shape index: {}]
  %s3 = inlined_call_operand.vmem [shape: bf16[9,8,8], index: 3, kind: input, shape index: {}]
  %s4 = inlined_call_operand.vmem [shape: f32[1,8], index: 4, kind: input, shape index: {}]
  %s5 = inlined_call_operand.vmem [shape: bf16[3,8], index: 5, kind: input, shape index: {}]
  %s6 = inlined_call_operand.vmem [shape: f32[1,8], index: 6, kind: input, shape index: {}]
  %s7 = inlined_call_operand.vmem [shape: bf16[9,8,16], index: 7, kind: input, shape index: {}]
  %s8 = inlined_call_operand.vmem [shape: f32[1,16], index: 8, kind: input, shape index: {}]
  %s9 = inlined_call_operand.vmem [shape: bf16[9,16,16], index: 9, kind: input, shape index: {}]
  %s10 = inlined_call_operand.vmem [shape: f32[1,16], index: 10, kind: input, shape index: {}]
  %s11 = inlined_call_operand.vmem [shape: bf16[8,16], index: 11, kind: input, shape index: {}]
  %s12 = inlined_call_operand.vmem [shape: f32[1,16], index: 12, kind: input, shape index: {}]
  %s13 = inlined_call_operand.vmem [shape: f32[1,16], index: 13, kind: input, shape index: {}]
  %s14 = inlined_call_operand.<no memory space> [shape: f32[1,1], index: 14, kind: input, shape index: {}]
  %s15 = inlined_call_operand.vmem [shape: f32[2,1,1], index: 15, kind: output, shape index: {}]
  %s16 = sld [smem:[#allocation0]]
  $region93: #{discriminator_forward.1} parent=0
    _
  %s18 = ssub.s32 1, %s16
  %s19 = scalar_select 0, %s18, %s16
  %v20 = vstv %s14
  %21 = vst [vmem:[#allocation6] sm:$0x1] %v20
  loop: start=0, step=1, limit=4
  $region2: #{discriminator_forward.1} parent=0 // loop_pre_header
    _
  $region3: #{discriminator_forward.1} parent=0 // loop_header
    %s23 = sphi 0, %s27
    %p24 = scmp.ge.s32.totalorder %s23, 4
    %s33 = sphi 0, %s35
    %s36 = sphi 0, %s33
    %s37 = sphi 0, %s36
    %s53 = sphi 0, %s37
    %s57 = sphi 0, %s57
    %s59 = sphi 0, %s57
    %s60 = sphi 0, %s59
    %s74 = sphi 0, %s60
    %s78 = sphi 0, %s78
    %s80 = sphi 0, %s78
    %s81 = sphi 0, %s80
    %s95 = sphi 0, %s81
    %s99 = sphi 0, %s99
    %s101 = sphi 0, %s99
    %s102 = sphi 0, %s101
    %s116 = sphi 0, %s102
    %s120 = sphi 0, %s120
    %s122 = sphi 0, %s120
    %s123 = sphi 0, %s122
    %s137 = sphi 0, %s123
    %s141 = sphi 0, %s141
    %s143 = sphi 0, %s141
    %s144 = sphi 0, %s143
    %s158 = sphi 0, %s144
    %s162 = sphi 0, %s162
    %s164 = sphi 0, %s162
    %s165 = sphi 0, %s164
    %s179 = sphi 0, %s165
    %s183 = sphi 0, %s183
    %s185 = sphi 0, %s183
    %s186 = sphi 0, %s185
    %s200 = sphi 0, %s186
    %s204 = sphi 0, %s204
    %s206 = sphi 0, %s204
    %s207 = sphi 0, %s206
    %s221 = sphi 0, %s207
    %s225 = sphi 0, %s225
    %s227 = sphi 0, %s225
    %s228 = sphi 0, %s227
    %s242 = sphi 0, %s228
    %s246 = sphi 0, %s246
    %s248 = sphi 0, %s246
    %s249 = sphi 0, %s248
    %s263 = sphi 0, %s249
    %s267 = sphi 0, %s267
    %s269 = sphi 0, %s267
    %s270 = sphi 0, %s269
    %s284 = sphi 0, %s270
    %s288 = sphi 0, %s288
    %s290 = sphi 0, %s288
    %s291 = sphi 0, %s290
    %s305 = sphi 0, %s291
    %s309 = sphi 0, %s309
    %s311 = sphi 0, %s309
    %s312 = sphi 0, %s311
    %s326 = sphi 0, %s312
    %s330 = sphi 0, %s330
    %s332 = sphi 0, %s330
    %s333 = sphi 0, %s332
    %s347 = sphi 0, %s333
    %s353 = sphi 0, %s355
    %s356 = sphi 0, %s353
    %s357 = sphi 0, %s356
    %s373 = sphi 0, %s357
  $region4: #{discriminator_forward.1} parent=0 // loop_header_branch
    %26 = sbr.rel (%p24) target = $region8
  $region5: #{discriminator_forward.1} parent=0 // loop_body
    %s28 = ssub.s32 %s23, 1
    %s29 = ssub.s32 %s23, 2
    %s30 = sadd.s32 %s23, 1
    %s31 = ssub.s32 %s23, %s30
    %p32 = scmp.eq.s32.totalorder %s31, 0
    %s34 = sadd.s32 %s33, 1
    %s35 = scalar_select %p32, %s33, %s34
    %p38 = pneg %p32
    %p39 = scmp.eq.s32.totalorder %s23, 1
    %p40 = por %p38, %p39
    %p41 = scmp.ne.s32.totalorder %s33, %s36
    %p42 = scmp.eq.s32.totalorder %s23, 0
    %p43 = por %p41, %p42
    %p44 = scmp.ne.s32.totalorder %s33, %s36
    %p45 = scmp.eq.s32.totalorder %s28, 1
    %p46 = por %p44, %p45
    %p47 = scmp.ne.s32.totalorder %s36, %s37
    %p48 = scmp.eq.s32.totalorder %s28, 0
    %p49 = por %p47, %p48
    %p50 = scmp.ne.s32.totalorder %s36, %s37
    %p51 = scmp.eq.s32.totalorder %s29, 1
    %p52 = por %p50, %p51
    %p54 = scmp.ne.s32.totalorder %s37, %s53
    %p55 = scmp.eq.s32.totalorder %s29, 0
    %p56 = por %p54, %p55
    %s58 = sadd.s32 %s57, 1
    %p61 = scmp.eq.s32.totalorder %s23, 1
    %p62 = scmp.ne.s32.totalorder %s57, %s59
    %p63 = scmp.eq.s32.totalorder %s23, 0
    %p64 = por %p62, %p63
    %p65 = scmp.ne.s32.totalorder %s57, %s59
    %p66 = scmp.eq.s32.totalorder %s28, 1
    %p67 = por %p65, %p66
    %p68 = scmp.ne.s32.totalorder %s59, %s60
    %p69 = scmp.eq.s32.totalorder %s28, 0
    %p70 = por %p68, %p69
    %p71 = scmp.ne.s32.totalorder %s59, %s60
    %p72 = scmp.eq.s32.totalorder %s29, 1
    %p73 = por %p71, %p72
    %p75 = scmp.ne.s32.totalorder %s60, %s74
    %p76 = scmp.eq.s32.totalorder %s29, 0
    %p77 = por %p75, %p76
    %s79 = sadd.s32 %s78, 1
    %p82 = scmp.eq.s32.totalorder %s23, 1
    %p83 = scmp.ne.s32.totalorder %s78, %s80
    %p84 = scmp.eq.s32.totalorder %s23, 0
    %p85 = por %p83, %p84
    %p86 = scmp.ne.s32.totalorder %s78, %s80
    %p87 = scmp.eq.s32.totalorder %s28, 1
    %p88 = por %p86, %p87
    %p89 = scmp.ne.s32.totalorder %s80, %s81
    %p90 = scmp.eq.s32.totalorder %s28, 0
    %p91 = por %p89, %p90
    %p92 = scmp.ne.s32.totalorder %s80, %s81
    %p93 = scmp.eq.s32.totalorder %s29, 1
    %p94 = por %p92, %p93
    %p96 = scmp.ne.s32.totalorder %s81, %s95
    %p97 = scmp.eq.s32.totalorder %s29, 0
    %p98 = por %p96, %p97
    %s100 = sadd.s32 %s99, 1
    %p103 = scmp.eq.s32.totalorder %s23, 1
    %p104 = scmp.ne.s32.totalorder %s99, %s101
    %p105 = scmp.eq.s32.totalorder %s23, 0
    %p106 = por %p104, %p105
    %p107 = scmp.ne.s32.totalorder %s99, %s101
    %p108 = scmp.eq.s32.totalorder %s28, 1
    %p109 = por %p107, %p108
    %p110 = scmp.ne.s32.totalorder %s101, %s102
    %p111 = scmp.eq.s32.totalorder %s28, 0
    %p112 = por %p110, %p111
    %p113 = scmp.ne.s32.totalorder %s101, %s102
    %p114 = scmp.eq.s32.totalorder %s29, 1
    %p115 = por %p113, %p114
    %p117 = scmp.ne.s32.totalorder %s102, %s116
    %p118 = scmp.eq.s32.totalorder %s29, 0
    %p119 = por %p117, %p118
    %s121 = sadd.s32 %s120, 1
    %p124 = scmp.eq.s32.totalorder %s23, 1
    %p125 = scmp.ne.s32.totalorder %s120, %s122
    %p126 = scmp.eq.s32.totalorder %s23, 0
    %p127 = por %p125, %p126
    %p128 = scmp.ne.s32.totalorder %s120, %s122
    %p129 = scmp.eq.s32.totalorder %s28, 1
    %p130 = por %p128, %p129
    %p131 = scmp.ne.s32.totalorder %s122, %s123
    %p132 = scmp.eq.s32.totalorder %s28, 0
    %p133 = por %p131, %p132
    %p134 = scmp.ne.s32.totalorder %s122, %s123
    %p135 = scmp.eq.s32.totalorder %s29, 1
    %p136 = por %p134, %p135
    %p138 = scmp.ne.s32.totalorder %s123, %s137
    %p139 = scmp.eq.s32.totalorder %s29, 0
    %p140 = por %p138, %p139
    %s142 = sadd.s32 %s141, 1
    %p145 = scmp.eq.s32.totalorder %s23, 1
    %p146 = scmp.ne.s32.totalorder %s141, %s143
    %p147 = scmp.eq.s32.totalorder %s23, 0
    %p148 = por %p146, %p147
    %p149 = scmp.ne.s32.totalorder %s141, %s143
    %p150 = scmp.eq.s32.totalorder %s28, 1
    %p151 = por %p149, %p150
    %p152 = scmp.ne.s32.totalorder %s143, %s144
    %p153 = scmp.eq.s32.totalorder %s28, 0
    %p154 = por %p152, %p153
    %p155 = scmp.ne.s32.totalorder %s143, %s144
    %p156 = scmp.eq.s32.totalorder %s29, 1
    %p157 = por %p155, %p156
    %p159 = scmp.ne.s32.totalorder %s144, %s158
    %p160 = scmp.eq.s32.totalorder %s29, 0
    %p161 = por %p159, %p160
    %s163 = sadd.s32 %s162, 1
    %p166 = scmp.eq.s32.totalorder %s23, 1
    %p167 = scmp.ne.s32.totalorder %s162, %s164
    %p168 = scmp.eq.s32.totalorder %s23, 0
    %p169 = por %p167, %p168
    %p170 = scmp.ne.s32.totalorder %s162, %s164
    %p171 = scmp.eq.s32.totalorder %s28, 1
    %p172 = por %p170, %p171
    %p173 = scmp.ne.s32.totalorder %s164, %s165
    %p174 = scmp.eq.s32.totalorder %s28, 0
    %p175 = por %p173, %p174
    %p176 = scmp.ne.s32.totalorder %s164, %s165
    %p177 = scmp.eq.s32.totalorder %s29, 1
    %p178 = por %p176, %p177
    %p180 = scmp.ne.s32.totalorder %s165, %s179
    %p181 = scmp.eq.s32.totalorder %s29, 0
    %p182 = por %p180, %p181
    %s184 = sadd.s32 %s183, 1
    %p187 = scmp.eq.s32.totalorder %s23, 1
    %p188 = scmp.ne.s32.totalorder %s183, %s185
    %p189 = scmp.eq.s32.totalorder %s23, 0
    %p190 = por %p188, %p189
    %p191 = scmp.ne.s32.totalorder %s183, %s185
    %p192 = scmp.eq.s32.totalorder %s28, 1
    %p193 = por %p191, %p192
    %p194 = scmp.ne.s32.totalorder %s185, %s186
    %p195 = scmp.eq.s32.totalorder %s28, 0
    %p196 = por %p194, %p195
    %p197 = scmp.ne.s32.totalorder %s185, %s186
    %p198 = scmp.eq.s32.totalorder %s29, 1
    %p199 = por %p197, %p198
    %p201 = scmp.ne.s32.totalorder %s186, %s200
    %p202 = scmp.eq.s32.totalorder %s29, 0
    %p203 = por %p201, %p202
    %s205 = sadd.s32 %s204, 1
    %p208 = scmp.eq.s32.totalorder %s23, 1
    %p209 = scmp.ne.s32.totalorder %s204, %s206
    %p210 = scmp.eq.s32.totalorder %s23, 0
    %p211 = por %p209, %p210
    %p212 = scmp.ne.s32.totalorder %s204, %s206
    %p213 = scmp.eq.s32.totalorder %s28, 1
    %p214 = por %p212, %p213
    %p215 = scmp.ne.s32.totalorder %s206, %s207
    %p216 = scmp.eq.s32.totalorder %s28, 0
    %p217 = por %p215, %p216
    %p218 = scmp.ne.s32.totalorder %s206, %s207
    %p219 = scmp.eq.s32.totalorder %s29, 1
    %p220 = por %p218, %p219
    %p222 = scmp.ne.s32.totalorder %s207, %s221
    %p223 = scmp.eq.s32.totalorder %s29, 0
    %p224 = por %p222, %p223
    %s226 = sadd.s32 %s225, 1
    %p229 = scmp.eq.s32.totalorder %s23, 1
    %p230 = scmp.ne.s32.totalorder %s225, %s227
    %p231 = scmp.eq.s32.totalorder %s23, 0
    %p232 = por %p230, %p231
    %p233 = scmp.ne.s32.totalorder %s225, %s227
    %p234 = scmp.eq.s32.totalorder %s28, 1
    %p235 = por %p233, %p234
    %p236 = scmp.ne.s32.totalorder %s227, %s228
    %p237 = scmp.eq.s32.totalorder %s28, 0
    %p238 = por %p236, %p237
    %p239 = scmp.ne.s32.totalorder %s227, %s228
    %p240 = scmp.eq.s32.totalorder %s29, 1
    %p241 = por %p239, %p240
    %p243 = scmp.ne.s32.totalorder %s228, %s242
    %p244 = scmp.eq.s32.totalorder %s29, 0
    %p245 = por %p243, %p244
    %s247 = sadd.s32 %s246, 1
    %p250 = scmp.eq.s32.totalorder %s23, 1
    %p251 = scmp.ne.s32.totalorder %s246, %s248
    %p252 = scmp.eq.s32.totalorder %s23, 0
    %p253 = por %p251, %p252
    %p254 = scmp.ne.s32.totalorder %s246, %s248
    %p255 = scmp.eq.s32.totalorder %s28, 1
    %p256 = por %p254, %p255
    %p257 = scmp.ne.s32.totalorder %s248, %s249
    %p258 = scmp.eq.s32.totalorder %s28, 0
    %p259 = por %p257, %p258
    %p260 = scmp.ne.s32.totalorder %s248, %s249
    %p261 = scmp.eq.s32.totalorder %s29, 1
    %p262 = por %p260, %p261
    %p264 = scmp.ne.s32.totalorder %s249, %s263
    %p265 = scmp.eq.s32.totalorder %s29, 0
    %p266 = por %p264, %p265
    %s268 = sadd.s32 %s267, 1
    %p271 = scmp.eq.s32.totalorder %s23, 1
    %p272 = scmp.ne.s32.totalorder %s267, %s269
    %p273 = scmp.eq.s32.totalorder %s23, 0
    %p274 = por %p272, %p273
    %p275 = scmp.ne.s32.totalorder %s267, %s269
    %p276 = scmp.eq.s32.totalorder %s28, 1
    %p277 = por %p275, %p276
    %p278 = scmp.ne.s32.totalorder %s269, %s270
    %p279 = scmp.eq.s32.totalorder %s28, 0
    %p280 = por %p278, %p279
    %p281 = scmp.ne.s32.totalorder %s269, %s270
    %p282 = scmp.eq.s32.totalorder %s29, 1
    %p283 = por %p281, %p282
    %p285 = scmp.ne.s32.totalorder %s270, %s284
    %p286 = scmp.eq.s32.totalorder %s29, 0
    %p287 = por %p285, %p286
    %s289 = sadd.s32 %s288, 1
    %p292 = scmp.eq.s32.totalorder %s23, 1
    %p293 = scmp.ne.s32.totalorder %s288, %s290
    %p294 = scmp.eq.s32.totalorder %s23, 0
    %p295 = por %p293, %p294
    %p296 = scmp.ne.s32.totalorder %s288, %s290
    %p297 = scmp.eq.s32.totalorder %s28, 1
    %p298 = por %p296, %p297
    %p299 = scmp.ne.s32.totalorder %s290, %s291
    %p300 = scmp.eq.s32.totalorder %s28, 0
    %p301 = por %p299, %p300
    %p302 = scmp.ne.s32.totalorder %s290, %s291
    %p303 = scmp.eq.s32.totalorder %s29, 1
    %p304 = por %p302, %p303
    %p306 = scmp.ne.s32.totalorder %s291, %s305
    %p307 = scmp.eq.s32.totalorder %s29, 0
    %p308 = por %p306, %p307
    %s310 = sadd.s32 %s309, 1
    %p313 = scmp.eq.s32.totalorder %s23, 1
    %p314 = scmp.ne.s32.totalorder %s309, %s311
    %p315 = scmp.eq.s32.totalorder %s23, 0
    %p316 = por %p314, %p315
    %p317 = scmp.ne.s32.totalorder %s309, %s311
    %p318 = scmp.eq.s32.totalorder %s28, 1
    %p319 = por %p317, %p318
    %p320 = scmp.ne.s32.totalorder %s311, %s312
    %p321 = scmp.eq.s32.totalorder %s28, 0
    %p322 = por %p320, %p321
    %p323 = scmp.ne.s32.totalorder %s311, %s312
    %p324 = scmp.eq.s32.totalorder %s29, 1
    %p325 = por %p323, %p324
    %p327 = scmp.ne.s32.totalorder %s312, %s326
    %p328 = scmp.eq.s32.totalorder %s29, 0
    %p329 = por %p327, %p328
    %s331 = sadd.s32 %s330, 1
    %p334 = scmp.eq.s32.totalorder %s23, 1
    %p335 = scmp.ne.s32.totalorder %s330, %s332
    %p336 = scmp.eq.s32.totalorder %s23, 0
    %p337 = por %p335, %p336
    %p338 = scmp.ne.s32.totalorder %s330, %s332
    %p339 = scmp.eq.s32.totalorder %s28, 1
    %p340 = por %p338, %p339
    %p341 = scmp.ne.s32.totalorder %s332, %s333
    %p342 = scmp.eq.s32.totalorder %s28, 0
    %p343 = por %p341, %p342
    %p344 = scmp.ne.s32.totalorder %s332, %s333
    %p345 = scmp.eq.s32.totalorder %s29, 1
    %p346 = por %p344, %p345
    %p348 = scmp.ne.s32.totalorder %s333, %s347
    %p349 = scmp.eq.s32.totalorder %s29, 0
    %p350 = por %p348, %p349
    %s351 = ssub.s32 %s23, %s30
    %p352 = scmp.eq.s32.totalorder %s351, 0
    %s354 = sadd.s32 %s353, 1
    %s355 = scalar_select %p352, %s353, %s354
    %p358 = pneg %p352
    %p359 = scmp.eq.s32.totalorder %s23, 1
    %p360 = por %p358, %p359
    %p361 = scmp.ne.s32.totalorder %s353, %s356
    %p362 = scmp.eq.s32.totalorder %s23, 0
    %p363 = por %p361, %p362
    %p364 = scmp.ne.s32.totalorder %s353, %s356
    %p365 = scmp.eq.s32.totalorder %s28, 1
    %p366 = por %p364, %p365
    %p367 = scmp.ne.s32.totalorder %s356, %s357
    %p368 = scmp.eq.s32.totalorder %s28, 0
    %p369 = por %p367, %p368
    %p370 = scmp.ne.s32.totalorder %s356, %s357
    %p371 = scmp.eq.s32.totalorder %s29, 1
    %p372 = por %p370, %p371
    %p374 = scmp.ne.s32.totalorder %s357, %s373
    %p375 = scmp.eq.s32.totalorder %s29, 0
    %p376 = por %p374, %p375
    %p377 = scmp.le.s32.totalorder 1, %s23
    %p378 = scmp.lt.s32.totalorder %s23, 3
    %p379 = pnand %p377, %p378
    %p380 = pneg %p379
    // Predicated region
    $region9: #{discriminator_forward.1} parent=5 // pred_check
      _
    $region10: #{discriminator_forward.1} parent=5 // pred_check_branch
      %382 = sbr.rel (%p379) target = $region12
    $region11: #{discriminator_forward.1} parent=5 // pred_region
      %s383 = ssub.s32 %s23, 1
      // Predicated region
      $region13: #{discriminator_forward.1} parent=11 // pred_check
        %p384 = pneg %p70
      $region14: #{discriminator_forward.1} parent=11 // pred_check_branch
        %386 = sbr.rel (%p384) target = $region16
      $region15: #{discriminator_forward.1} parent=11 // pred_region
        _
      $region16: #{discriminator_forward.1} parent=11 // pred_fallthru
        _
      // Predicated region
      $region17: #{discriminator_forward.1} parent=11 // pred_check
        %p387 = pneg %p91
      $region18: #{discriminator_forward.1} parent=11 // pred_check_branch
        %389 = sbr.rel (%p387) target = $region20
      $region19: #{discriminator_forward.1} parent=11 // pred_region
        _
      $region20: #{discriminator_forward.1} parent=11 // pred_fallthru
        _
      // Predicated region
      $region21: #{discriminator_forward.1} parent=11 // pred_check
        %p390 = pneg %p112
      $region22: #{discriminator_forward.1} parent=11 // pred_check_branch
        %392 = sbr.rel (%p390) target = $region24
      $region23: #{discriminator_forward.1} parent=11 // pred_region
        _
      $region24: #{discriminator_forward.1} parent=11 // pred_fallthru
        _
      // Predicated region
      $region25: #{discriminator_forward.1} parent=11 // pred_check
        %p393 = pneg %p133
      $region26: #{discriminator_forward.1} parent=11 // pred_check_branch
        %395 = sbr.rel (%p393) target = $region28
      $region27: #{discriminator_forward.1} parent=11 // pred_region
        _
      $region28: #{discriminator_forward.1} parent=11 // pred_fallthru
        _
      // Predicated region
      $region29: #{discriminator_forward.1} parent=11 // pred_check
        %p396 = pneg %p154
      $region30: #{discriminator_forward.1} parent=11 // pred_check_branch
        %398 = sbr.rel (%p396) target = $region32
      $region31: #{discriminator_forward.1} parent=11 // pred_region
        _
      $region32: #{discriminator_forward.1} parent=11 // pred_fallthru
        _
      // Predicated region
      $region33: #{discriminator_forward.1} parent=11 // pred_check
        %p399 = pneg %p175
      $region34: #{discriminator_forward.1} parent=11 // pred_check_branch
        %401 = sbr.rel (%p399) target = $region36
      $region35: #{discriminator_forward.1} parent=11 // pred_region
        _
      $region36: #{discriminator_forward.1} parent=11 // pred_fallthru
        _
      // Predicated region
      $region37: #{discriminator_forward.1} parent=11 // pred_check
        %p402 = pneg %p196
      $region38: #{discriminator_forward.1} parent=11 // pred_check_branch
        %404 = sbr.rel (%p402) target = $region40
      $region39: #{discriminator_forward.1} parent=11 // pred_region
        _
      $region40: #{discriminator_forward.1} parent=11 // pred_fallthru
        _
      // Predicated region
      $region41: #{discriminator_forward.1} parent=11 // pred_check
        %p405 = pneg %p217
      $region42: #{discriminator_forward.1} parent=11 // pred_check_branch
        %407 = sbr.rel (%p405) target = $region44
      $region43: #{discriminator_forward.1} parent=11 // pred_region
        _
      $region44: #{discriminator_forward.1} parent=11 // pred_fallthru
        _
      // Predicated region
      $region45: #{discriminator_forward.1} parent=11 // pred_check
        %p408 = pneg %p238
      $region46: #{discriminator_forward.1} parent=11 // pred_check_branch
        %410 = sbr.rel (%p408) target = $region48
      $region47: #{discriminator_forward.1} parent=11 // pred_region
        _
      $region48: #{discriminator_forward.1} parent=11 // pred_fallthru
        _
      // Predicated region
      $region49: #{discriminator_forward.1} parent=11 // pred_check
        %p411 = pneg %p259
      $region50: #{discriminator_forward.1} parent=11 // pred_check_branch
        %413 = sbr.rel (%p411) target = $region52
      $region51: #{discriminator_forward.1} parent=11 // pred_region
        _
      $region52: #{discriminator_forward.1} parent=11 // pred_fallthru
        _
      // Predicated region
      $region53: #{discriminator_forward.1} parent=11 // pred_check
        %p414 = pneg %p280
      $region54: #{discriminator_forward.1} parent=11 // pred_check_branch
        %416 = sbr.rel (%p414) target = $region56
      $region55: #{discriminator_forward.1} parent=11 // pred_region
        _
      $region56: #{discriminator_forward.1} parent=11 // pred_fallthru
        _
      // Predicated region
      $region57: #{discriminator_forward.1} parent=11 // pred_check
        %p417 = pneg %p301
      $region58: #{discriminator_forward.1} parent=11 // pred_check_branch
        %419 = sbr.rel (%p417) target = $region60
      $region59: #{discriminator_forward.1} parent=11 // pred_region
        _
      $region60: #{discriminator_forward.1} parent=11 // pred_fallthru
        _
      // Predicated region
      $region61: #{discriminator_forward.1} parent=11 // pred_check
        %p420 = pneg %p322
      $region62: #{discriminator_forward.1} parent=11 // pred_check_branch
        %422 = sbr.rel (%p420) target = $region64
      $region63: #{discriminator_forward.1} parent=11 // pred_region
        _
      $region64: #{discriminator_forward.1} parent=11 // pred_fallthru
        _
      // Predicated region
      $region65: #{discriminator_forward.1} parent=11 // pred_check
        %p423 = pneg %p343
      $region66: #{discriminator_forward.1} parent=11 // pred_check_branch
        %425 = sbr.rel (%p423) target = $region68
      $region67: #{discriminator_forward.1} parent=11 // pred_region
        _
      $region68: #{discriminator_forward.1} parent=11 // pred_fallthru
        _
    $region12: #{discriminator_forward.1} parent=5 // pred_fallthru
      _
    %p426 = scmp.lt.s32.totalorder %s23, 2
    // Predicated region
    $region69: #{discriminator_forward.1} parent=5 // pred_check
      %p427 = pneg %p426
    $region70: #{discriminator_forward.1} parent=5 // pred_check_branch
      %429 = sbr.rel (%p427) target = $region72
    $region71: #{discriminator_forward.1} parent=5 // pred_region
      // Predicated region
      $region73: #{discriminator_forward.1} parent=71 // pred_check
        %p430 = pneg %p43
      $region74: #{discriminator_forward.1} parent=71 // pred_check_branch
        %432 = sbr.rel (%p430) target = $region76
      $region75: #{discriminator_forward.1} parent=71 // pred_region
        %p433 = scmp.lt.s32.totalorder %s23, 1
        %s434 = scalar_select %p433, %s23, 1
        %s435 = smul.addr %s434, 32
        %s436 = smul.addr %s435, 8
        %s437 = scalar_lea.vmem %s0, %s436
      $region76: #{discriminator_forward.1} parent=71 // pred_fallthru
        _
    $region72: #{discriminator_forward.1} parent=5 // pred_fallthru
      _
    %p438 = scmp.le.s32.totalorder 1, %s23
    %p439 = scmp.lt.s32.totalorder %s23, 3
    %p440 = pnand %p438, %p439
    %p441 = pneg %p440
    // Predicated region
    $region77: #{discriminator_forward.1} parent=5 // pred_check
      _
    $region78: #{discriminator_forward.1} parent=5 // pred_check_branch
      %443 = sbr.rel (%p440) target = $region80
    $region79: #{discriminator_forward.1} parent=5 // pred_region
      %s444 = ssub.s32 %s23, 1
      %p445 = scmp.lt.s32.totalorder %s28, 1
      %s446 = scalar_select %p445, %s28, 1
      %s447 = smul.addr %s446, 32
      %s448 = smul.addr %s447, 8
      %s449 = scalar_lea.vmem %s0, %s448
      %p450 = pneg %p49
      %p451 = pneg %p46
      %p452 = pneg %p70
      %p453 = pneg %p67
      %p454 = pneg %p91
      %p455 = pneg %p88
      %p456 = pneg %p112
      %p457 = pneg %p109
      %p458 = pneg %p133
      %p459 = pneg %p130
      %p460 = pneg %p154
      %p461 = pneg %p151
      %p462 = pneg %p175
      %p463 = pneg %p172
      %p464 = pneg %p196
      %p465 = pneg %p193
      %p466 = pneg %p217
      %p467 = pneg %p214
      %p468 = pneg %p238
      %p469 = pneg %p235
      %p470 = pneg %p259
      %p471 = pneg %p256
      %p472 = pneg %p280
      %p473 = pneg %p277
      %p474 = pneg %p301
      %p475 = pneg %p298
      %p476 = pneg %p322
      %p477 = pneg %p319
      %p478 = pneg %p343
      %p479 = pneg %p340
      %p480 = pneg %p369
      %p481 = pneg %p366
      %p482 = scmp.lt.s32.totalorder %s28, 1
      %s483 = scalar_select %p482, %s28, 1
      %s484 = scalar_lea.vmem %s15, %s483
      %p485 = scmp.lt.s32.totalorder %s28, 1
      %s486 = scalar_select %p485, %s28, 1
      %s487 = smul.addr %s486, 32
      %s488 = smul.addr %s487, 8
      %s489 = scalar_lea.vmem %s0, %s488
      %p490 = scmp.lt.s32.totalorder %s28, 1
      %s491 = scalar_select %p490, %s28, 1
      %s492 = scalar_lea.vmem %s15, %s491
      %vm494 = vcmask 23552
      %495 = vst.msk [vmem:[#allocation2] sm:$0xff] %vm494, 0.0
      %496 = vst.msk [vmem:[#allocation2 + $0x8] sm:$0xff] %vm494, 0.0
      %vm497 = vcmask 17408
      %498 = vst.msk [vmem:[#allocation2 + $0x10] sm:$0x3] %vm497, 0.0
      %s499 = scalar_lea.vmem [#allocation2], 408
      %500 = vst.msk [vmem:[%s499] sm:$0xff] %vm494, 0.0
      %501 = vst.msk [vmem:[%s499 + $0x8] sm:$0xff] %vm494, 0.0
      %502 = vst.msk [vmem:[%s499 + $0x10] sm:$0x3] %vm497, 0.0
      %s503 = scalar_lea.vmem [#allocation2], 24
      %vm504 = vcmask 16384
      %505 = vst.msk [vmem:[%s503] sm:$0x1] %vm504, 0.0
      %506 = vst.msk [vmem:[%s503 + $0x18] sm:$0x1] %vm504, 0.0
      %507 = vst.msk [vmem:[%s503 + $0x30] sm:$0x1] %vm504, 0.0
      %508 = vst.msk [vmem:[%s503 + $0x48] sm:$0x1] %vm504, 0.0
      %509 = vst.msk [vmem:[%s503 + $0x60] sm:$0x1] %vm504, 0.0
      %510 = vst.msk [vmem:[%s503 + $0x78] sm:$0x1] %vm504, 0.0
      %511 = vst.msk [vmem:[%s503 + $0x90] sm:$0x1] %vm504, 0.0
      %512 = vst.msk [vmem:[%s503 + $0xa8] sm:$0x1] %vm504, 0.0
      %513 = vst.msk [vmem:[%s503 + $0xc0] sm:$0x1] %vm504, 0.0
      %514 = vst.msk [vmem:[%s503 + $0xd8] sm:$0x1] %vm504, 0.0
      %515 = vst.msk [vmem:[%s503 + $0xf0] sm:$0x1] %vm504, 0.0
      %516 = vst.msk [vmem:[%s503 + $0x108] sm:$0x1] %vm504, 0.0
      %517 = vst.msk [vmem:[%s503 + $0x120] sm:$0x1] %vm504, 0.0
      %518 = vst.msk [vmem:[%s503 + $0x138] sm:$0x1] %vm504, 0.0
      %519 = vst.msk [vmem:[%s503 + $0x150] sm:$0x1] %vm504, 0.0
      %520 = vst.msk [vmem:[%s503 + $0x168] sm:$0x1] %vm504, 0.0
      %521 = vst.msk [vmem:[%s503 + $0x11] sm:$0x1] %vm504, 0.0
      %522 = vst.msk [vmem:[%s503 + $0x29] sm:$0x1] %vm504, 0.0
      %523 = vst.msk [vmem:[%s503 + $0x41] sm:$0x1] %vm504, 0.0
      %524 = vst.msk [vmem:[%s503 + $0x59] sm:$0x1] %vm504, 0.0
      %525 = vst.msk [vmem:[%s503 + $0x71] sm:$0x1] %vm504, 0.0
      %526 = vst.msk [vmem:[%s503 + $0x89] sm:$0x1] %vm504, 0.0
      %527 = vst.msk [vmem:[%s503 + $0xa1] sm:$0x1] %vm504, 0.0
      %528 = vst.msk [vmem:[%s503 + $0xb9] sm:$0x1] %vm504, 0.0
      %529 = vst.msk [vmem:[%s503 + $0xd1] sm:$0x1] %vm504, 0.0
      %530 = vst.msk [vmem:[%s503 + $0xe9] sm:$0x1] %vm504, 0.0
      %531 = vst.msk [vmem:[%s503 + $0x101] sm:$0x1] %vm504, 0.0
      %532 = vst.msk [vmem:[%s503 + $0x119] sm:$0x1] %vm504, 0.0
      %533 = vst.msk [vmem:[%s503 + $0x131] sm:$0x1] %vm504, 0.0
      %534 = vst.msk [vmem:[%s503 + $0x149] sm:$0x1] %vm504, 0.0
      %535 = vst.msk [vmem:[%s503 + $0x161] sm:$0x1] %vm504, 0.0
      %536 = vst.msk [vmem:[%s503 + $0x179] sm:$0x1] %vm504, 0.0
      %vm537 = vcmask 64512
      %538 = vst.msk [vmem:[#allocation3] sm:$0xff] %vm537, 0.0
      %539 = vst.msk [vmem:[#allocation3 + $0x8] sm:$0xff] %vm537, 0.0
      %vm540 = vcmask 58368
      %541 = vst.msk [vmem:[#allocation3 + $0x10] sm:$0x3] %vm540, 0.0
      %s542 = scalar_lea.vmem [#allocation3], 408
      %543 = vst.msk [vmem:[%s542] sm:$0xff] %vm537, 0.0
      %544 = vst.msk [vmem:[%s542 + $0x8] sm:$0xff] %vm537, 0.0
      %545 = vst.msk [vmem:[%s542 + $0x10] sm:$0x3] %vm540, 0.0
      %s546 = scalar_lea.vmem [#allocation3], 24
      %vm547 = vcmask 57344
      %548 = vst.msk [vmem:[%s546] sm:$0x1] %vm547, 0.0
      %549 = vst.msk [vmem:[%s546 + $0x18] sm:$0x1] %vm547, 0.0
      %550 = vst.msk [vmem:[%s546 + $0x30] sm:$0x1] %vm547, 0.0
      %551 = vst.msk [vmem:[%s546 + $0x48] sm:$0x1] %vm547, 0.0
      %552 = vst.msk [vmem:[%s546 + $0x60] sm:$0x1] %vm547, 0.0
      %553 = vst.msk [vmem:[%s546 + $0x78] sm:$0x1] %vm547, 0.0
      %554 = vst.msk [vmem:[%s546 + $0x90] sm:$0x1] %vm547, 0.0
      %555 = vst.msk [vmem:[%s546 + $0xa8] sm:$0x1] %vm547, 0.0
      %556 = vst.msk [vmem:[%s546 + $0xc0] sm:$0x1] %vm547, 0.0
      %557 = vst.msk [vmem:[%s546 + $0xd8] sm:$0x1] %vm547, 0.0
      %558 = vst.msk [vmem:[%s546 + $0xf0] sm:$0x1] %vm547, 0.0
      %559 = vst.msk [vmem:[%s546 + $0x108] sm:$0x1] %vm547, 0.0
      %560 = vst.msk [vmem:[%s546 + $0x120] sm:$0x1] %vm547, 0.0
      %561 = vst.msk [vmem:[%s546 + $0x138] sm:$0x1] %vm547, 0.0
      %562 = vst.msk [vmem:[%s546 + $0x150] sm:$0x1] %vm547, 0.0
      %563 = vst.msk [vmem:[%s546 + $0x168] sm:$0x1] %vm547, 0.0
      %564 = vst.msk [vmem:[%s546 + $0x11] sm:$0x1] %vm547, 0.0
      %565 = vst.msk [vmem:[%s546 + $0x29] sm:$0x1] %vm547, 0.0
      %566 = vst.msk [vmem:[%s546 + $0x41] sm:$0x1] %vm547, 0.0
      %567 = vst.msk [vmem:[%s546 + $0x59] sm:$0x1] %vm547, 0.0
      %568 = vst.msk [vmem:[%s546 + $0x71] sm:$0x1] %vm547, 0.0
      %569 = vst.msk [vmem:[%s546 + $0x89] sm:$0x1] %vm547, 0.0
      %570 = vst.msk [vmem:[%s546 + $0xa1] sm:$0x1] %vm547, 0.0
      %571 = vst.msk [vmem:[%s546 + $0xb9] sm:$0x1] %vm547, 0.0
      %572 = vst.msk [vmem:[%s546 + $0xd1] sm:$0x1] %vm547, 0.0
      %573 = vst.msk [vmem:[%s546 + $0xe9] sm:$0x1] %vm547, 0.0
      %574 = vst.msk [vmem:[%s546 + $0x101] sm:$0x1] %vm547, 0.0
      %575 = vst.msk [vmem:[%s546 + $0x119] sm:$0x1] %vm547, 0.0
      %576 = vst.msk [vmem:[%s546 + $0x131] sm:$0x1] %vm547, 0.0
      %577 = vst.msk [vmem:[%s546 + $0x149] sm:$0x1] %vm547, 0.0
      %578 = vst.msk [vmem:[%s546 + $0x161] sm:$0x1] %vm547, 0.0
      %579 = vst.msk [vmem:[%s546 + $0x179] sm:$0x1] %vm547, 0.0
      %580 = vst.msk [vmem:[#allocation4] sm:$0xff] %vm537, 0.0
      %581 = vst.msk [vmem:[#allocation4 + $0x8] sm:$0x3] %vm540, 0.0
      %s582 = scalar_lea.vmem [#allocation4], 144
      %583 = vst.msk [vmem:[%s582] sm:$0xff] %vm537, 0.0
      %584 = vst.msk [vmem:[%s582 + $0x8] sm:$0x3] %vm540, 0.0
      %s585 = scalar_lea.vmem [#allocation4], 16
      %586 = vst.msk [vmem:[%s585] sm:$0x1] %vm547, 0.0
      %587 = vst.msk [vmem:[%s585 + $0x10] sm:$0x1] %vm547, 0.0
      %588 = vst.msk [vmem:[%s585 + $0x20] sm:$0x1] %vm547, 0.0
      %589 = vst.msk [vmem:[%s585 + $0x30] sm:$0x1] %vm547, 0.0
      %590 = vst.msk [vmem:[%s585 + $0x40] sm:$0x1] %vm547, 0.0
      %591 = vst.msk [vmem:[%s585 + $0x50] sm:$0x1] %vm547, 0.0
      %592 = vst.msk [vmem:[%s585 + $0x60] sm:$0x1] %vm547, 0.0
      %593 = vst.msk [vmem:[%s585 + $0x70] sm:$0x1] %vm547, 0.0
      %594 = vst.msk [vmem:[%s585 + $0x9] sm:$0x1] %vm547, 0.0
      %595 = vst.msk [vmem:[%s585 + $0x19] sm:$0x1] %vm547, 0.0
      %596 = vst.msk [vmem:[%s585 + $0x29] sm:$0x1] %vm547, 0.0
      %597 = vst.msk [vmem:[%s585 + $0x39] sm:$0x1] %vm547, 0.0
      %598 = vst.msk [vmem:[%s585 + $0x49] sm:$0x1] %vm547, 0.0
      %599 = vst.msk [vmem:[%s585 + $0x59] sm:$0x1] %vm547, 0.0
      %600 = vst.msk [vmem:[%s585 + $0x69] sm:$0x1] %vm547, 0.0
      %601 = vst.msk [vmem:[%s585 + $0x79] sm:$0x1] %vm547, 0.0
      %vm602 = vcmask 130048
      %603 = vst.msk [vmem:[#allocation5] sm:$0xff] %vm602, 0.0
      %vm604 = vcmask 123904
      %605 = vst.msk [vmem:[#allocation5 + $0x8] sm:$0x3] %vm604, 0.0
      %s606 = scalar_lea.vmem [#allocation5], 144
      %607 = vst.msk [vmem:[%s606] sm:$0xff] %vm602, 0.0
      %608 = vst.msk [vmem:[%s606 + $0x8] sm:$0x3] %vm604, 0.0
      %s609 = scalar_lea.vmem [#allocation5], 16
      %vm610 = vcmask 122880
      %611 = vst.msk [vmem:[%s609] sm:$0x1] %vm610, 0.0
      %612 = vst.msk [vmem:[%s609 + $0x10] sm:$0x1] %vm610, 0.0
      %613 = vst.msk [vmem:[%s609 + $0x20] sm:$0x1] %vm610, 0.0
      %614 = vst.msk [vmem:[%s609 + $0x30] sm:$0x1] %vm610, 0.0
      %615 = vst.msk [vmem:[%s609 + $0x40] sm:$0x1] %vm610, 0.0
      %616 = vst.msk [vmem:[%s609 + $0x50] sm:$0x1] %vm610, 0.0
      %617 = vst.msk [vmem:[%s609 + $0x60] sm:$0x1] %vm610, 0.0
      %618 = vst.msk [vmem:[%s609 + $0x70] sm:$0x1] %vm610, 0.0
      %619 = vst.msk [vmem:[%s609 + $0x9] sm:$0x1] %vm610, 0.0
      %620 = vst.msk [vmem:[%s609 + $0x19] sm:$0x1] %vm610, 0.0
      %621 = vst.msk [vmem:[%s609 + $0x29] sm:$0x1] %vm610, 0.0
      %622 = vst.msk [vmem:[%s609 + $0x39] sm:$0x1] %vm610, 0.0
      %623 = vst.msk [vmem:[%s609 + $0x49] sm:$0x1] %vm610, 0.0
      %624 = vst.msk [vmem:[%s609 + $0x59] sm:$0x1] %vm610, 0.0
      %625 = vst.msk [vmem:[%s609 + $0x69] sm:$0x1] %vm610, 0.0
      %626 = vst.msk [vmem:[%s609 + $0x79] sm:$0x1] %vm610, 0.0
      %v627 = vld [vmem:[%s489] sm:$0xff]
      %v628 = vld [vmem:[%s489 + $0x8] sm:$0xff]
      %v629 = vld [vmem:[%s489 + $0x10] sm:$0xff]
      %v630 = vld [vmem:[%s489 + $0x18] sm:$0xff]
      %v631 = vld [vmem:[%s489 + $0x20] sm:$0xff]
      %v632 = vld [vmem:[%s489 + $0x28] sm:$0xff]
      %v633 = vld [vmem:[%s489 + $0x30] sm:$0xff]
      %v634 = vld [vmem:[%s489 + $0x38] sm:$0xff]
      %v635 = vld [vmem:[%s489 + $0x40] sm:$0xff]
      %v636 = vld [vmem:[%s489 + $0x48] sm:$0xff]
      %v637 = vld [vmem:[%s489 + $0x50] sm:$0xff]
      %v638 = vld [vmem:[%s489 + $0x58] sm:$0xff]
      %v639 = vld [vmem:[%s489 + $0x60] sm:$0xff]
      %v640 = vld [vmem:[%s489 + $0x68] sm:$0xff]
      %v641 = vld [vmem:[%s489 + $0x70] sm:$0xff]
      %v642 = vld [vmem:[%s489 + $0x78] sm:$0xff]
      %v643 = vld [vmem:[%s489 + $0x80] sm:$0xff]
      %v644 = vld [vmem:[%s489 + $0x88] sm:$0xff]
      %v645 = vld [vmem:[%s489 + $0x90] sm:$0xff]
      %v646 = vld [vmem:[%s489 + $0x98] sm:$0xff]
      %v647 = vld [vmem:[%s489 + $0xa0] sm:$0xff]
      %v648 = vld [vmem:[%s489 + $0xa8] sm:$0xff]
      %v649 = vld [vmem:[%s489 + $0xb0] sm:$0xff]
      %v650 = vld [vmem:[%s489 + $0xb8] sm:$0xff]
      %v651 = vld [vmem:[%s489 + $0xc0] sm:$0xff]
      %v652 = vld [vmem:[%s489 + $0xc8] sm:$0xff]
      %v653 = vld [vmem:[%s489 + $0xd0] sm:$0xff]
      %v654 = vld [vmem:[%s489 + $0xd8] sm:$0xff]
      %v655 = vld [vmem:[%s489 + $0xe0] sm:$0xff]
      %v656 = vld [vmem:[%s489 + $0xe8] sm:$0xff]
      %v657 = vld [vmem:[%s489 + $0xf0] sm:$0xff]
      %v658 = vld [vmem:[%s489 + $0xf8] sm:$0xff]
      %v659 = vmax.f32 %v627, 0.0
      %v660 = vmax.f32 %v628, 0.0
      %v661 = vmax.f32 %v629, 0.0
      %v662 = vmax.f32 %v630, 0.0
      %v663 = vmax.f32 %v631, 0.0
      %v664 = vmax.f32 %v632, 0.0
      %v665 = vmax.f32 %v633, 0.0
      %v666 = vmax.f32 %v634, 0.0
      %v667 = vmax.f32 %v635, 0.0
      %v668 = vmax.f32 %v636, 0.0
      %v669 = vmax.f32 %v637, 0.0
      %v670 = vmax.f32 %v638, 0.0
      %v671 = vmax.f32 %v639, 0.0
      %v672 = vmax.f32 %v640, 0.0
      %v673 = vmax.f32 %v641, 0.0
      %v674 = vmax.f32 %v642, 0.0
      %v675 = vmax.f32 %v643, 0.0
      %v676 = vmax.f32 %v644, 0.0
      %v677 = vmax.f32 %v645, 0.0
      %v678 = vmax.f32 %v646, 0.0
      %v679 = vmax.f32 %v647, 0.0
      %v680 = vmax.f32 %v648, 0.0
      %v681 = vmax.f32 %v649, 0.0
      %v682 = vmax.f32 %v650, 0.0
      %v683 = vmax.f32 %v651, 0.0
      %v684 = vmax.f32 %v652, 0.0
      %v685 = vmax.f32 %v653, 0.0
      %v686 = vmax.f32 %v654, 0.0
      %v687 = vmax.f32 %v655, 0.0
      %v688 = vmax.f32 %v656, 0.0
      %v689 = vmax.f32 %v657, 0.0
      %v690 = vmax.f32 %v658, 0.0
      %691 = vst.msk [vmem:[%s503 + $0x1] sm:$0xff] %vm494, %v659
      %692 = vst.msk [vmem:[%s503 + $0x9] sm:$0xff] %vm494, %v660
      %693 = vst.msk [vmem:[%s503 + $0x19] sm:$0xff] %vm494, %v661
      %694 = vst.msk [vmem:[%s503 + $0x21] sm:$0xff] %vm494, %v662
      %695 = vst.msk [vmem:[%s503 + $0x31] sm:$0xff] %vm494, %v663
      %696 = vst.msk [vmem:[%s503 + $0x39] sm:$0xff] %vm494, %v664
      %697 = vst.msk [vmem:[%s503 + $0x49] sm:$0xff] %vm494, %v665
      %698 = vst.msk [vmem:[%s503 + $0x51] sm:$0xff] %vm494, %v666
      %699 = vst.msk [vmem:[%s503 + $0x61] sm:$0xff] %vm494, %v667
      %700 = vst.msk [vmem:[%s503 + $0x69] sm:$0xff] %vm494, %v668
      %701 = vst.msk [vmem:[%s503 + $0x79] sm:$0xff] %vm494, %v669
      %702 = vst.msk [vmem:[%s503 + $0x81] sm:$0xff] %vm494, %v670
      %703 = vst.msk [vmem:[%s503 + $0x91] sm:$0xff] %vm494, %v671
      %704 = vst.msk [vmem:[%s503 + $0x99] sm:$0xff] %vm494, %v672
      %705 = vst.msk [vmem:[%s503 + $0xa9] sm:$0xff] %vm494, %v673
      %706 = vst.msk [vmem:[%s503 + $0xb1] sm:$0xff] %vm494, %v674
      %707 = vst.msk [vmem:[%s503 + $0xc1] sm:$0xff] %vm494, %v675
      %708 = vst.msk [vmem:[%s503 + $0xc9] sm:$0xff] %vm494, %v676
      %709 = vst.msk [vmem:[%s503 + $0xd9] sm:$0xff] %vm494, %v677
      %710 = vst.msk [vmem:[%s503 + $0xe1] sm:$0xff] %vm494, %v678
      %711 = vst.msk [vmem:[%s503 + $0xf1] sm:$0xff] %vm494, %v679
      %712 = vst.msk [vmem:[%s503 + $0xf9] sm:$0xff] %vm494, %v680
      %713 = vst.msk [vmem:[%s503 + $0x109] sm:$0xff] %vm494, %v681
      %714 = vst.msk [vmem:[%s503 + $0x111] sm:$0xff] %vm494, %v682
      %715 = vst.msk [vmem:[%s503 + $0x121] sm:$0xff] %vm494, %v683
      %716 = vst.msk [vmem:[%s503 + $0x129] sm:$0xff] %vm494, %v684
      %717 = vst.msk [vmem:[%s503 + $0x139] sm:$0xff] %vm494, %v685
      %718 = vst.msk [vmem:[%s503 + $0x141] sm:$0xff] %vm494, %v686
      %719 = vst.msk [vmem:[%s503 + $0x151] sm:$0xff] %vm494, %v687
      %720 = vst.msk [vmem:[%s503 + $0x159] sm:$0xff] %vm494, %v688
      %721 = vst.msk [vmem:[%s503 + $0x169] sm:$0xff] %vm494, %v689
      %722 = vst.msk [vmem:[%s503 + $0x171] sm:$0xff] %vm494, %v690
      %v723 = vld [vmem:[#allocation2] sm:$0xff]
      %v724 = vld [vmem:[#allocation2 + $0x8] sm:$0xff]
      %v725 = vld [vmem:[#allocation2 + $0x18] sm:$0xff]
      %v726 = vld [vmem:[#allocation2 + $0x20] sm:$0xff]
      %v727 = vld [vmem:[#allocation2 + $0x30] sm:$0xff]
      %v728 = vld [vmem:[#allocation2 + $0x38] sm:$0xff]
      %v729 = vld [vmem:[#allocation2 + $0x48] sm:$0xff]
      %v730 = vld [vmem:[#allocation2 + $0x50] sm:$0xff]
      %v731 = vld [vmem:[#allocation2 + $0x60] sm:$0xff]
      %v732 = vld [vmem:[#allocation2 + $0x68] sm:$0xff]
      %v733 = vld [vmem:[#allocation2 + $0x78] sm:$0xff]
      %v734 = vld [vmem:[#allocation2 + $0x80] sm:$0xff]
      %v735 = vld [vmem:[#allocation2 + $0x90] sm:$0xff]
      %v736 = vld [vmem:[#allocation2 + $0x98] sm:$0xff]
      %v737 = vld [vmem:[#allocation2 + $0xa8] sm:$0xff]
      %v738 = vld [vmem:[#allocation2 + $0xb0] sm:$0xff]
      %v739 = vld [vmem:[#allocation2 + $0xc0] sm:$0xff]
      %v740 = vld [vmem:[#allocation2 + $0xc8] sm:$0xff]
      %v741 = vld [vmem:[#allocation2 + $0xd8] sm:$0xff]
      %v742 = vld [vmem:[#allocation2 + $0xe0] sm:$0xff]
      %v743 = vld [vmem:[#allocation2 + $0xf0] sm:$0xff]
      %v744 = vld [vmem:[#allocation2 + $0xf8] sm:$0xff]
      %v745 = vld [vmem:[#allocation2 + $0x108] sm:$0xff]
      %v746 = vld [vmem:[#allocation2 + $0x110] sm:$0xff]
      %v747 = vld [vmem:[#allocation2 + $0x120] sm:$0xff]
      %v748 = vld [vmem:[#allocation2 + $0x128] sm:$0xff]
      %v749 = vld [vmem:[#allocation2 + $0x138] sm:$0xff]
      %v750 = vld [vmem:[#allocation2 + $0x140] sm:$0xff]
      %v751 = vld [vmem:[#allocation2 + $0x150] sm:$0xff]
      %v752 = vld [vmem:[#allocation2 + $0x158] sm:$0xff]
      %v753 = vld [vmem:[#allocation2 + $0x168] sm:$0xff]
      %v754 = vld [vmem:[#allocation2 + $0x170] sm:$0xff]
      %v755 = vpack.c.bf16 %v724, %v723
      %v756 = vpack.c.bf16 %v726, %v725
      %v757 = vpack.c.bf16 %v728, %v727
      %v758 = vpack.c.bf16 %v730, %v729
      %v759 = vpack.c.bf16 %v732, %v731
      %v760 = vpack.c.bf16 %v734, %v733
      %v761 = vpack.c.bf16 %v736, %v735
      %v762 = vpack.c.bf16 %v738, %v737
      %v763 = vpack.c.bf16 %v740, %v739
      %v764 = vpack.c.bf16 %v742, %v741
      %v765 = vpack.c.bf16 %v744, %v743
      %v766 = vpack.c.bf16 %v746, %v745
      %v767 = vpack.c.bf16 %v748, %v747
      %v768 = vpack.c.bf16 %v750, %v749
      %v769 = vpack.c.bf16 %v752, %v751
      %v770 = vpack.c.bf16 %v754, %v753
      %v771 = vld [vmem:[%s1] sm:$0x3]
      %v772 = vld [vmem:[#allocation2 + $0x1] sm:$0xff]
      %v773 = vld [vmem:[#allocation2 + $0x9] sm:$0xff]
      %v774 = vld [vmem:[#allocation2 + $0x19] sm:$0xff]
      %v775 = vld [vmem:[#allocation2 + $0x21] sm:$0xff]
      %v776 = vld [vmem:[#allocation2 + $0x31] sm:$0xff]
      %v777 = vld [vmem:[#allocation2 + $0x39] sm:$0xff]
      %v778 = vld [vmem:[#allocation2 + $0x49] sm:$0xff]
      %v779 = vld [vmem:[#allocation2 + $0x51] sm:$0xff]
      %v780 = vld [vmem:[#allocation2 + $0x61] sm:$0xff]
      %v781 = vld [vmem:[#allocation2 + $0x69] sm:$0xff]
      %v782 = vld [vmem:[#allocation2 + $0x79] sm:$0xff]
      %v783 = vld [vmem:[#allocation2 + $0x81] sm:$0xff]
      %v784 = vld [vmem:[#allocation2 + $0x91] sm:$0xff]
      %v785 = vld [vmem:[#allocation2 + $0x99] sm:$0xff]
      %v786 = vld [vmem:[#allocation2 + $0xa9] sm:$0xff]
      %v787 = vld [vmem:[#allocation2 + $0xb1] sm:$0xff]
      %v788 = vld [vmem:[#allocation2 + $0xc1] sm:$0xff]
      %v789 = vld [vmem:[#allocation2 + $0xc9] sm:$0xff]
      %v790 = vld [vmem:[#allocation2 + $0xd9] sm:$0xff]
      %v791 = vld [vmem:[#allocation2 + $0xe1] sm:$0xff]
      %v792 = vld [vmem:[#allocation2 + $0xf1] sm:$0xff]
      %v793 = vld [vmem:[#allocation2 + $0xf9] sm:$0xff]
      %v794 = vld [vmem:[#allocation2 + $0x109] sm:$0xff]
      %v795 = vld [vmem:[#allocation2 + $0x111] sm:$0xff]
      %v796 = vld [vmem:[#allocation2 + $0x121] sm:$0xff]
      %v797 = vld [vmem:[#allocation2 + $0x129] sm:$0xff]
      %v798 = vld [vmem:[#allocation2 + $0x139] sm:$0xff]
      %v799 = vld [vmem:[#allocation2 + $0x141] sm:$0xff]
      %v800 = vld [vmem:[#allocation2 + $0x151] sm:$0xff]
      %v801 = vld [vmem:[#allocation2 + $0x159] sm:$0xff]
      %v802 = vld [vmem:[#allocation2 + $0x169] sm:$0xff]
      %v803 = vld [vmem:[#allocation2 + $0x171] sm:$0xff]
      %v804 = vpack.c.bf16 %v773, %v772
      %v805 = vpack.c.bf16 %v775, %v774
      %v806 = vpack.c.bf16 %v777, %v776
      %v807 = vpack.c.bf16 %v779, %v778
      %v808 = vpack.c.bf16 %v781, %v780
      %v809 = vpack.c.bf16 %v783, %v782
      %v810 = vpack.c.bf16 %v785, %v784
      %v811 = vpack.c.bf16 %v787, %v786
      %v812 = vpack.c.bf16 %v789, %v788
      %v813 = vpack.c.bf16 %v791, %v790
      %v814 = vpack.c.bf16 %v793, %v792
      %v815 = vpack.c.bf16 %v795, %v794
      %v816 = vpack.c.bf16 %v797, %v796
      %v817 = vpack.c.bf16 %v799, %v798
      %v818 = vpack.c.bf16 %v801, %v800
      %v819 = vpack.c.bf16 %v803, %v802
      %s820 = scalar_lea.vmem %s1, 2
      %v821 = vld [vmem:[%s820] sm:$0x3]
      %v823 = vsel %vm494, %v804, 0
      %v826 = vsel %vm494, %v805, 0
      %v829 = vsel %vm494, %v806, 0
      %v832 = vsel %vm494, %v807, 0
      %v835 = vsel %vm494, %v808, 0
      %v838 = vsel %vm494, %v809, 0
      %v841 = vsel %vm494, %v810, 0
      %v844 = vsel %vm494, %v811, 0
      %v847 = vsel %vm494, %v812, 0
      %v850 = vsel %vm494, %v813, 0
      %v853 = vsel %vm494, %v814, 0
      %v856 = vsel %vm494, %v815, 0
      %v859 = vsel %vm494, %v816, 0
      %v862 = vsel %vm494, %v817, 0
      %v865 = vsel %vm494, %v818, 0
      %v868 = vsel %vm494, %v819, 0
      %vm870 = vcmask 1040384
      %vm871 = vcmask 1041408
      %v872 = vsel %vm870, 4294967295, 65535
      %v873 = vsel %vm871, %v872, 0
      %v875 = vand.u32 %v821, %v873
      %877 = vmatprep.subr.bf16.mxu0 0
      %878 = vmatpush1.bf16.msra.mxu0 %v875
      %879 = vmatprep.subr.bf16.mxu0 0
      %880 = vmatpush1.bf16.msra.mxu0 0
      %881 = vmatprep.subr.bf16.mxu0 0
      %882 = vmatpush1.bf16.msra.mxu0 0
      %883 = vmatprep.subr.bf16.mxu0 0
      %884 = vmatpush1.bf16.msra.mxu0 0
      %885 = vmatprep.subr.bf16.mxu0 0
      %886 = vmatpush1.bf16.msra.mxu0 0
      %887 = vmatprep.subr.bf16.mxu0 0
      %888 = vmatpush1.bf16.msra.mxu0 0
      %889 = vmatprep.subr.bf16.mxu0 0
      %890 = vmatpush1.bf16.msra.mxu0 0
      %891 = vmatprep.subr.bf16.mxu0 0
      %892 = vmatpush1.bf16.msra.mxu0 0
      %893 = vmatprep.subr.bf16.mxu0 0
      %894 = vmatpush1.bf16.msra.mxu0 0
      %895 = vmatprep.subr.bf16.mxu0 0
      %896 = vmatpush1.bf16.msra.mxu0 0
      %897 = vmatprep.subr.bf16.mxu0 0
      %898 = vmatpush1.bf16.msra.mxu0 0
      %899 = vmatprep.subr.bf16.mxu0 0
      %900 = vmatpush1.bf16.msra.mxu0 0
      %901 = vmatprep.subr.bf16.mxu0 0
      %902 = vmatpush1.bf16.msra.mxu0 0
      %903 = vmatprep.subr.bf16.mxu0 0
      %904 = vmatpush1.bf16.msra.mxu0 0
      %905 = vmatprep.subr.bf16.mxu0 0
      %906 = vmatpush1.bf16.msra.mxu0 0
      %907 = vmatprep.subr.bf16.mxu0 0
      %908 = vmatpush1.bf16.msra.mxu0 0
      %909 = vmatprep.mubr.bf16.mxu0 0
      %910 = vmatmul.mubr.bf16.gmra.mrb[0].mxu0 %v823
      %v911 = vpop.f32.mrb[0].mxu0
      %v912 = vadd.f32 0.0, %v911
      %v913 = vpop.f32.mrb[0].mxu0
      %v914 = vpop.f32.mrb[0].mxu0
      %v915 = vadd.f32 0.0, %v914
      %v916 = vpop.f32.mrb[0].mxu0
      %917 = vmatprep.mubr.bf16.mxu0 0
      %918 = vmatmul.mubr.bf16.gmra.mrb[0].mxu0 %v826
      %v919 = vpop.f32.mrb[0].mxu0
      %v920 = vadd.f32 0.0, %v919
      %v921 = vpop.f32.mrb[0].mxu0
      %v922 = vpop.f32.mrb[0].mxu0
      %v923 = vadd.f32 0.0, %v922
      %v924 = vpop.f32.mrb[0].mxu0
      %925 = vmatprep.mubr.bf16.mxu0 0
      %926 = vmatmul.mubr.bf16.gmra.mrb[0].mxu0 %v829
      %v927 = vpop.f32.mrb[0].mxu0
      %v928 = vadd.f32 0.0, %v927
      %v929 = vpop.f32.mrb[0].mxu0
      %v930 = vpop.f32.mrb[0].mxu0
      %v931 = vadd.f32 0.0, %v930
      %v932 = vpop.f32.mrb[0].mxu0
      %933 = vmatprep.mubr.bf16.mxu0 0
      %934 = vmatmul.mubr.bf16.gmra.mrb[0].mxu0 %v832
      %v935 = vpop.f32.mrb[0].mxu0
      %v936 = vadd.f32 0.0, %v935
      %v937 = vpop.f32.mrb[0].mxu0
      %v938 = vpop.f32.mrb[0].mxu0
      %v939 = vadd.f32 0.0, %v938
      %v940 = vpop.f32.mrb[0].mxu0
      %941 = vmatprep.mubr.bf16.mxu0 0
      %942 = vmatmul.mubr.bf16.gmra.mrb[0].mxu0 %v835
      %v943 = vpop.f32.mrb[0].mxu0
      %v944 = vadd.f32 0.0, %v943
      %v945 = vpop.f32.mrb[0].mxu0
      %v946 = vpop.f32.mrb[0].mxu0
      %v947 = vadd.f32 0.0, %v946
      %v948 = vpop.f32.mrb[0].mxu0
      %949 = vmatprep.mubr.bf16.mxu0 0
      %950 = vmatmul.mubr.bf16.gmra.mrb[0].mxu0 %v838
      %v951 = vpop.f32.mrb[0].mxu0
      %v952 = vadd.f32 0.0, %v951
      %v953 = vpop.f32.mrb[0].mxu0
      %v954 = vpop.f32.mrb[0].mxu0
      %v955 = vadd.f32 0.0, %v954
      %v956 = vpop.f32.mrb[0].mxu0
      %957 = vmatprep.mubr.bf16.mxu0 0
      %958 = vmatmul.mubr.bf16.gmra.mrb[0].mxu0 %v841
      %v959 = vpop.f32.mrb[0].mxu0
      %v960 = vadd.f32 0.0, %v959
      %v961 = vpop.f32.mrb[0].mxu0
      %v962 = vpop.f32.mrb[0].mxu0
      %v963 = vadd.f32 0.0, %v962
      %v964 = vpop.f32.mrb[0].mxu0
      %965 = vmatprep.mubr.bf16.mxu0 0
      %966 = vmatmul.mubr.bf16.gmra.mrb[0].mxu0 %v844
      %v967 = vpop.f32.mrb[0].mxu0
      %v968 = vadd.f32 0.0, %v967
      %v969 = vpop.f32.mrb[0].mxu0
      %v970 = vpop.f32.mrb[0].mxu0
      %v971 = vadd.f32 0.0, %v970
      %v972 = vpop.f32.mrb[0].mxu0
      %973 = vmatprep.mubr.bf16.mxu0 0
      %974 = vmatmul.mubr.bf16.gmra.mrb[0].mxu0 %v847
      %v975 = vpop.f32.mrb[0].mxu0
      %v976 = vadd.f32 0.0, %v975
      %v977 = vpop.f32.mrb[0].mxu0
      %v978 = vpop.f32.mrb[0].mxu0
      %v979 = vadd.f32 0.0, %v978
      %v980 = vpop.f32.mrb[0].mxu0
      %981 = vmatprep.mubr.bf16.mxu0 0
      %982 = vmatmul.mubr.bf16.gmra.mrb[0].mxu0 %v850
      %v983 = vpop.f32.mrb[0].mxu0
      %v984 = vadd.f32 0.0, %v983
      %v985 = vpop.f32.mrb[0].mxu0
      %v986 = vpop.f32.mrb[0].mxu0
      %v987 = vadd.f32 0.0, %v986
      %v988 = vpop.f32.mrb[0].mxu0
      %989 = vmatprep.mubr.bf16.mxu0 0
      %990 = vmatmul.mubr.bf16.gmra.mrb[0].mxu0 %v853
      %v991 = vpop.f32.mrb[0].mxu0
      %v992 = vadd.f32 0.0, %v991
      %v993 = vpop.f32.mrb[0].mxu0
      %v994 = vpop.f32.mrb[0].mxu0
      %v995 = vadd.f32 0.0, %v994
      %v996 = vpop.f32.mrb[0].mxu0
      %997 = vmatprep.mubr.bf16.mxu0 0
      %998 = vmatmul.mubr.bf16.gmra.mrb[0].mxu0 %v856
      %v999 = vpop.f32.mrb[0].mxu0
      %v1000 = vadd.f32 0.0, %v999
      %v1001 = vpop.f32.mrb[0].mxu0
      %v1002 = vpop.f32.mrb[0].mxu0
      %v1003 = vadd.f32 0.0, %v1002
      %v1004 = vpop.f32.mrb[0].mxu0
      %1005 = vmatprep.mubr.bf16.mxu0 0
      %1006 = vmatmul.mubr.bf16.gmra.mrb[0].mxu0 %v859
      %v1007 = vpop.f32.mrb[0].mxu0
      %v1008 = vadd.f32 0.0, %v1007
      %v1009 = vpop.f32.mrb[0].mxu0
      %v1010 = vpop.f32.mrb[0].mxu0
      %v1011 = vadd.f32 0.0, %v1010
      %v1012 = vpop.f32.mrb[0].mxu0
      %1013 = vmatprep.mubr.bf16.mxu0 0
      %1014 = vmatmul.mubr.bf16.gmra.mrb[0].mxu0 %v862
      %v1015 = vpop.f32.mrb[0].mxu0
      %v1016 = vadd.f32 0.0, %v1015
      %v1017 = vpop.f32.mrb[0].mxu0
      %v1018 = vpop.f32.mrb[0].mxu0
      %v1019 = vadd.f32 0.0, %v1018
      %v1020 = vpop.f32.mrb[0].mxu0
      %1021 = vmatprep.mubr.bf16.mxu0 0
      %1022 = vmatmul.mubr.bf16.gmra.mrb[0].mxu0 %v865
      %v1023 = vpop.f32.mrb[0].mxu0
      %v1024 = vadd.f32 0.0, %v1023
      %v1025 = vpop.f32.mrb[0].mxu0
      %v1026 = vpop.f32.mrb[0].mxu0
      %v1027 = vadd.f32 0.0, %v1026
      %v1028 = vpop.f32.mrb[0].mxu0
      %1029 = vmatprep.mubr.bf16.mxu0 0
      %1030 = vmatmul.mubr.bf16.gmra.mrb[0].mxu0 %v868
      %v1031 = vpop.f32.mrb[0].mxu0
      %v1032 = vadd.f32 0.0, %v1031
      %v1033 = vpop.f32.mrb[0].mxu0
      %v1034 = vpop.f32.mrb[0].mxu0
      %v1035 = vadd.f32 0.0, %v1034
      %v1036 = vpop.f32.mrb[0].mxu0
      %1037 = vdwg.mxu0
      %v1039 = vsel %vm494, %v755, 0
      %v1042 = vsel %vm494, %v756, 0
      %v1045 = vsel %vm494, %v757, 0
      %v1048 = vsel %vm494, %v758, 0
      %v1051 = vsel %vm494, %v759, 0
      %v1054 = vsel %vm494, %v760, 0
      %v1057 = vsel %vm494, %v761, 0
      %v1060 = vsel %vm494, %v762, 0
      %v1063 = vsel %vm494, %v763, 0
      %v1066 = vsel %vm494, %v764, 0
      %v1069 = vsel %vm494, %v765, 0
      %v1072 = vsel %vm494, %v766, 0
      %v1075 = vsel %vm494, %v767, 0
      %v1078 = vsel %vm494, %v768, 0
      %v1081 = vsel %vm494, %v769, 0
      %v1084 = vsel %vm494, %v770, 0
      %v1087 = vand.u32 %v771, %v873
      %1089 = vmatprep.subr.bf16.mxu0 0
      %1090 = vmatpush1.bf16.msra.mxu0 %v1087
      %1091 = vmatprep.subr.bf16.mxu0 0
      %1092 = vmatpush1.bf16.msra.mxu0 0
      %1093 = vmatprep.subr.bf16.mxu0 0
      %1094 = vmatpush1.bf16.msra.mxu0 0
      %1095 = vmatprep.subr.bf16.mxu0 0
      %1096 = vmatpush1.bf16.msra.mxu0 0
      %1097 = vmatprep.subr.bf16.mxu0 0
      %1098 = vmatpush1.bf16.msra.mxu0 0
      %1099 = vmatprep.subr.bf16.mxu0 0
      %1100 = vmatpush1.bf16.msra.mxu0 0
      %1101 = vmatprep.subr.bf16.mxu0 0
      %1102 = vmatpush1.bf16.msra.mxu0 0
      %1103 = vmatprep.subr.bf16.mxu0 0
      %1104 = vmatpush1.bf16.msra.mxu0 0
      %1105 = vmatprep.subr.bf16.mxu0 0
      %1106 = vmatpush1.bf16.msra.mxu0 0
      %1107 = vmatprep.subr.bf16.mxu0 0
      %1108 = vmatpush1.bf16.msra.mxu0 0
      %1109 = vmatprep.subr.bf16.mxu0 0
      %1110 = vmatpush1.bf16.msra.mxu0 0
      %1111 = vmatprep.subr.bf16.mxu0 0
      %1112 = vmatpush1.bf16.msra.mxu0 0
      %1113 = vmatprep.subr.bf16.mxu0 0
      %1114 = vmatpush1.bf16.msra.mxu0 0
      %1115 = vmatprep.subr.bf16.mxu0 0
      %1116 = vmatpush1.bf16.msra.mxu0 0
      %1117 = vmatprep.subr.bf16.mxu0 0
      %1118 = vmatpush1.bf16.msra.mxu0 0
      %1119 = vmatprep.subr.bf16.mxu0 0
      %1120 = vmatpush1.bf16.msra.mxu0 0
      %1121 = vmatprep.mubr.bf16.mxu0 0
      %1122 = vmatmul.mubr.bf16.gmra.mrb[0].mxu0 %v1039
      %v1123 = vpop.f32.mrb[0].mxu0
      %v1124 = vadd.f32 %v912, %v1123
      %v1125 = vpop.f32.mrb[0].mxu0
      %v1126 = vpop.f32.mrb[0].mxu0
      %v1127 = vadd.f32 %v915, %v1126
      %v1128 = vpop.f32.mrb[0].mxu0
      %1129 = vmatprep.mubr.bf16.mxu0 0
      %1130 = vmatmul.mubr.bf16.gmra.mrb[0].mxu0 %v1042
      %v1131 = vpop.f32.mrb[0].mxu0
      %v1132 = vadd.f32 %v920, %v1131
      %v1133 = vpop.f32.mrb[0].mxu0
      %v1134 = vpop.f32.mrb[0].mxu0
      %v1135 = vadd.f32 %v923, %v1134
      %v1136 = vpop.f32.mrb[0].mxu0
      %1137 = vmatprep.mubr.bf16.mxu0 0
      %1138 = vmatmul.mubr.bf16.gmra.mrb[0].mxu0 %v1045
      %v1139 = vpop.f32.mrb[0].mxu0
      %v1140 = vadd.f32 %v928, %v1139
      %v1141 = vpop.f32.mrb[0].mxu0
      %v1142 = vpop.f32.mrb[0].mxu0
      %v1143 = vadd.f32 %v931, %v1142
      %v1144 = vpop.f32.mrb[0].mxu0
      %1145 = vmatprep.mubr.bf16.mxu0 0
      %1146 = vmatmul.mubr.bf16.gmra.mrb[0].mxu0 %v1048
      %v1147 = vpop.f32.mrb[0].mxu0
      %v1148 = vadd.f32 %v936, %v1147
      %v1149 = vpop.f32.mrb[0].mxu0
      %v1150 = vpop.f32.mrb[0].mxu0
      %v1151 = vadd.f32 %v939, %v1150
      %v1152 = vpop.f32.mrb[0].mxu0
      %1153 = vmatprep.mubr.bf16.mxu0 0
      %1154 = vmatmul.mubr.bf16.gmra.mrb[0].mxu0 %v1051
      %v1155 = vpop.f32.mrb[0].mxu0
      %v1156 = vadd.f32 %v944, %v1155
      %v1157 = vpop.f32.mrb[0].mxu0
      %v1158 = vpop.f32.mrb[0].mxu0
      %v1159 = vadd.f32 %v947, %v1158
      %v1160 = vpop.f32.mrb[0].mxu0
      %1161 = vmatprep.mubr.bf16.mxu0 0
      %1162 = vmatmul.mubr.bf16.gmra.mrb[0].mxu0 %v1054
      %v1163 = vpop.f32.mrb[0].mxu0
      %v1164 = vadd.f32 %v952, %v1163
      %v1165 = vpop.f32.mrb[0].mxu0
      %v1166 = vpop.f32.mrb[0].mxu0
      %v1167 = vadd.f32 %v955, %v1166
      %v1168 = vpop.f32.mrb[0].mxu0
      %1169 = vmatprep.mubr.bf16.mxu0 0
      %1170 = vmatmul.mubr.bf16.gmra.mrb[0].mxu0 %v1057
      %v1171 = vpop.f32.mrb[0].mxu0
      %v1172 = vadd.f32 %v960, %v1171
      %v1173 = vpop.f32.mrb[0].mxu0
      %v1174 = vpop.f32.mrb[0].mxu0
      %v1175 = vadd.f32 %v963, %v1174
      %v1176 = vpop.f32.mrb[0].mxu0
      %1177 = vmatprep.mubr.bf16.mxu0 0
      %1178 = vmatmul.mubr.bf16.gmra.mrb[0].mxu0 %v1060
      %v1179 = vpop.f32.mrb[0].mxu0
      %v1180 = vadd.f32 %v968, %v1179
      %v1181 = vpop.f32.mrb[0].mxu0
      %v1182 = vpop.f32.mrb[0].mxu0
      %v1183 = vadd.f32 %v971, %v1182
      %v1184 = vpop.f32.mrb[0].mxu0
      %1185 = vmatprep.mubr.bf16.mxu0 0
      %1186 = vmatmul.mubr.bf16.gmra.mrb[0].mxu0 %v1063
      %v1187 = vpop.f32.mrb[0].mxu0
      %v1188 = vadd.f32 %v976, %v1187
      %v1189 = vpop.f32.mrb[0].mxu0
      %v1190 = vpop.f32.mrb[0].mxu0
      %v1191 = vadd.f32 %v979, %v1190
      %v1192 = vpop.f32.mrb[0].mxu0
      %1193 = vmatprep.mubr.bf16.mxu0 0
      %1194 = vmatmul.mubr.bf16.gmra.mrb[0].mxu0 %v1066
      %v1195 = vpop.f32.mrb[0].mxu0
      %v1196 = vadd.f32 %v984, %v1195
      %v1197 = vpop.f32.mrb[0].mxu0
      %v1198 = vpop.f32.mrb[0].mxu0
      %v1199 = vadd.f32 %v987, %v1198
      %v1200 = vpop.f32.mrb[0].mxu0
      %1201 = vmatprep.mubr.bf16.mxu0 0
      %1202 = vmatmul.mubr.bf16.gmra.mrb[0].mxu0 %v1069
      %v1203 = vpop.f32.mrb[0].mxu0
      %v1204 = vadd.f32 %v992, %v1203
      %v1205 = vpop.f32.mrb[0].mxu0
      %v1206 = vpop.f32.mrb[0].mxu0
      %v1207 = vadd.f32 %v995, %v1206
      %v1208 = vpop.f32.mrb[0].mxu0
      %1209 = vmatprep.mubr.bf16.mxu0 0
      %1210 = vmatmul.mubr.bf16.gmra.mrb[0].mxu0 %v1072
      %v1211 = vpop.f32.mrb[0].mxu0
      %v1212 = vadd.f32 %v1000, %v1211
      %v1213 = vpop.f32.mrb[0].mxu0
      %v1214 = vpop.f32.mrb[0].mxu0
      %v1215 = vadd.f32 %v1003, %v1214
      %v1216 = vpop.f32.mrb[0].mxu0
      %1217 = vmatprep.mubr.bf16.mxu0 0
      %1218 = vmatmul.mubr.bf16.gmra.mrb[0].mxu0 %v1075
      %v1219 = vpop.f32.mrb[0].mxu0
      %v1220 = vadd.f32 %v1008, %v1219
      %v1221 = vpop.f32.mrb[0].mxu0
      %v1222 = vpop.f32.mrb[0].mxu0
      %v1223 = vadd.f32 %v1011, %v1222
      %v1224 = vpop.f32.mrb[0].mxu0
      %1225 = vmatprep.mubr.bf16.mxu0 0
      %1226 = vmatmul.mubr.bf16.gmra.mrb[0].mxu0 %v1078
      %v1227 = vpop.f32.mrb[0].mxu0
      %v1228 = vadd.f32 %v1016, %v1227
      %v1229 = vpop.f32.mrb[0].mxu0
      %v1230 = vpop.f32.mrb[0].mxu0
      %v1231 = vadd.f32 %v1019, %v1230
      %v1232 = vpop.f32.mrb[0].mxu0
      %1233 = vmatprep.mubr.bf16.mxu0 0
      %1234 = vmatmul.mubr.bf16.gmra.mrb[0].mxu0 %v1081
      %v1235 = vpop.f32.mrb[0].mxu0
      %v1236 = vadd.f32 %v1024, %v1235
      %v1237 = vpop.f32.mrb[0].mxu0
      %v1238 = vpop.f32.mrb[0].mxu0
      %v1239 = vadd.f32 %v1027, %v1238
      %v1240 = vpop.f32.mrb[0].mxu0
      %1241 = vmatprep.mubr.bf16.mxu0 0
      %1242 = vmatmul.mubr.bf16.gmra.mrb[0].mxu0 %v1084
      %v1243 = vpop.f32.mrb[0].mxu0
      %v1244 = vadd.f32 %v1032, %v1243
      %v1245 = vpop.f32.mrb[0].mxu0
      %v1246 = vpop.f32.mrb[0].mxu0
      %v1247 = vadd.f32 %v1035, %v1246
      %v1248 = vpop.f32.mrb[0].mxu0
      %1249 = vdwg.mxu0
      %v1250 = vld [vmem:[#allocation2 + $0x2] sm:$0xff]
      %v1251 = vld [vmem:[#allocation2 + $0xa] sm:$0xff]
      %v1252 = vld [vmem:[#allocation2 + $0x1a] sm:$0xff]
      %v1253 = vld [vmem:[#allocation2 + $0x22] sm:$0xff]
      %v1254 = vld [vmem:[#allocation2 + $0x32] sm:$0xff]
      %v1255 = vld [vmem:[#allocation2 + $0x3a] sm:$0xff]
      %v1256 = vld [vmem:[#allocation2 + $0x4a] sm:$0xff]
      %v1257 = vld [vmem:[#allocation2 + $0x52] sm:$0xff]
      %v1258 = vld [vmem:[#allocation2 + $0x62] sm:$0xff]
      %v1259 = vld [vmem:[#allocation2 + $0x6a] sm:$0xff]
      %v1260 = vld [vmem:[#allocation2 + $0x7a] sm:$0xff]
      %v1261 = vld [vmem:[#allocation2 + $0x82] sm:$0xff]
      %v1262 = vld [vmem:[#allocation2 + $0x92] sm:$0xff]
      %v1263 = vld [vmem:[#allocation2 + $0x9a] sm:$0xff]
      %v1264 = vld [vmem:[#allocation2 + $0xaa] sm:$0xff]
      %v1265 = vld [vmem:[#allocation2 + $0xb2] sm:$0xff]
      %v1266 = vld [vmem:[#allocation2 + $0xc2] sm:$0xff]
      %v1267 = vld [vmem:[#allocation2 + $0xca] sm:$0xff]
      %v1268 = vld [vmem:[#allocation2 + $0xda] sm:$0xff]
      %v1269 = vld [vmem:[#allocation2 + $0xe2] sm:$0xff]
      %v1270 = vld [vmem:[#allocation2 + $0xf2] sm:$0xff]
      %v1271 = vld [vmem:[#allocation2 + $0xfa] sm:$0xff]
      %v1272 = vld [vmem:[#allocation2 + $0x10a] sm:$0xff]
      %v1273 = vld [vmem:[#allocation2 + $0x112] sm:$0xff]
      %v1274 = vld [vmem:[#allocation2 + $0x122] sm:$0xff]
      %v1275 = vld [vmem:[#allocation2 + $0x12a] sm:$0xff]
      %v1276 = vld [vmem:[#allocation2 + $0x13a] sm:$0xff]
      %v1277 = vld [vmem:[#allocation2 + $0x142] sm:$0xff]
      %v1278 = vld [vmem:[#allocation2 + $0x152] sm:$0xff]
      %v1279 = vld [vmem:[#allocation2 + $0x15a] sm:$0xff]
      %v1280 = vld [vmem:[#allocation2 + $0x16a] sm:$0xff]
      %v1281 = vld [vmem:[#allocation2 + $0x172] sm:$0xff]
      %v1282 = vpack.c.bf16 %v1251, %v1250
      %v1283 = vpack.c.bf16 %v1253, %v1252
      %v1284 = vpack.c.bf16 %v1255, %v1254
      %v1285 = vpack.c.bf16 %v1257, %v1256
      %v1286 = vpack.c.bf16 %v1259, %v1258
      %v1287 = vpack.c.bf16 %v1261, %v1260
      %v1288 = vpack.c.bf16 %v1263, %v1262
      %v1289 = vpack.c.bf16 %v1265, %v1264
      %v1290 = vpack.c.bf16 %v1267, %v1266
      %v1291 = vpack.c.bf16 %v1269, %v1268
      %v1292 = vpack.c.bf16 %v1271, %v1270
      %v1293 = vpack.c.bf16 %v1273, %v1272
      %v1294 = vpack.c.bf16 %v1275, %v1274
      %v1295 = vpack.c.bf16 %v1277, %v1276
      %v1296 = vpack.c.bf16 %v1279, %v1278
      %v1297 = vpack.c.bf16 %v1281, %v1280
      %s1298 = scalar_lea.vmem %s1, 4
      %v1299 = vld [vmem:[%s1298] sm:$0x3]
      %v1301 = vsel %vm494, %v1282, 0
      %v1304 = vsel %vm494, %v1283, 0
      %v1307 = vsel %vm494, %v1284, 0
      %v1310 = vsel %vm494, %v1285, 0
      %v1313 = vsel %vm494, %v1286, 0
      %v1316 = vsel %vm494, %v1287, 0
      %v1319 = vsel %vm494, %v1288, 0
      %v1322 = vsel %vm494, %v1289, 0
      %v1325 = vsel %vm494, %v1290, 0
      %v1328 = vsel %vm494, %v1291, 0
      %v1331 = vsel %vm494, %v1292, 0
      %v1334 = vsel %vm494, %v1293, 0
      %v1337 = vsel %vm494, %v1294, 0
      %v1340 = vsel %vm494, %v1295, 0
      %v1343 = vsel %vm494, %v1296, 0
      %v1346 = vsel %vm494, %v1297, 0
      %v1349 = vand.u32 %v1299, %v873
      %1351 = vmatprep.subr.bf16.mxu0 0
      %1352 = vmatpush1.bf16.msra.mxu0 %v1349
      %1353 = vmatprep.subr.bf16.mxu0 0
      %1354 = vmatpush1.bf16.msra.mxu0 0
      %1355 = vmatprep.subr.bf16.mxu0 0
      %1356 = vmatpush1.bf16.msra.mxu0 0
      %1357 = vmatprep.subr.bf16.mxu0 0
      %1358 = vmatpush1.bf16.msra.mxu0 0
      %1359 = vmatprep.subr.bf16.mxu0 0
      %1360 = vmatpush1.bf16.msra.mxu0 0
      %1361 = vmatprep.subr.bf16.mxu0 0
      %1362 = vmatpush1.bf16.msra.mxu0 0
      %1363 = vmatprep.subr.bf16.mxu0 0
      %1364 = vmatpush1.bf16.msra.mxu0 0
      %1365 = vmatprep.subr.bf16.mxu0 0
      %1366 = vmatpush1.bf16.msra.mxu0 0
      %1367 = vmatprep.subr.bf16.mxu0 0
      %1368 = vmatpush1.bf16.msra.mxu0 0
      %1369 = vmatprep.subr.bf16.mxu0 0
      %1370 = vmatpush1.bf16.msra.mxu0 0
      %1371 = vmatprep.subr.bf16.mxu0 0
      %1372 = vmatpush1.bf16.msra.mxu0 0
      %1373 = vmatprep.subr.bf16.mxu0 0
      %1374 = vmatpush1.bf16.msra.mxu0 0
      %1375 = vmatprep.subr.bf16.mxu0 0
      %1376 = vmatpush1.bf16.msra.mxu0 0
      %1377 = vmatprep.subr.bf16.mxu0 0
      %1378 = vmatpush1.bf16.msra.mxu0 0
      %1379 = vmatprep.subr.bf16.mxu0 0
      %1380 = vmatpush1.bf16.msra.mxu0 0
      %1381 = vmatprep.subr.bf16.mxu0 0
      %1382 = vmatpush1.bf16.msra.mxu0 0
      %1383 = vmatprep.mubr.bf16.mxu0 0
      %1384 = vmatmul.mubr.bf16.gmra.mrb[0].mxu0 %v1301
      %v1385 = vpop.f32.mrb[0].mxu0
      %v1386 = vadd.f32 0.0, %v1385
      %v1387 = vpop.f32.mrb[0].mxu0
      %v1388 = vpop.f32.mrb[0].mxu0
      %v1389 = vadd.f32 0.0, %v1388
      %v1390 = vpop.f32.mrb[0].mxu0
      %1391 = vmatprep.mubr.bf16.mxu0 0
      %1392 = vmatmul.mubr.bf16.gmra.mrb[0].mxu0 %v1304
      %v1393 = vpop.f32.mrb[0].mxu0
      %v1394 = vadd.f32 0.0, %v1393
      %v1395 = vpop.f32.mrb[0].mxu0
      %v1396 = vpop.f32.mrb[0].mxu0
      %v1397 = vadd.f32 0.0, %v1396
      %v1398 = vpop.f32.mrb[0].mxu0
      %1399 = vmatprep.mubr.bf16.mxu0 0
      %1400 = vmatmul.mubr.bf16.gmra.mrb[0].mxu0 %v1307
      %v1401 = vpop.f32.mrb[0].mxu0
      %v1402 = vadd.f32 0.0, %v1401
      %v1403 = vpop.f32.mrb[0].mxu0
      %v1404 = vpop.f32.mrb[0].mxu0
      %v1405 = vadd.f32 0.0, %v1404
      %v1406 = vpop.f32.mrb[0].mxu0
      %1407 = vmatprep.mubr.bf16.mxu0 0
      %1408 = vmatmul.mubr.bf16.gmra.mrb[0].mxu0 %v1310
      %v1409 = vpop.f32.mrb[0].mxu0
      %v1410 = vadd.f32 0.0, %v1409
      %v1411 = vpop.f32.mrb[0].mxu0
      %v1412 = vpop.f32.mrb[0].mxu0
      %v1413 = vadd.f32 0.0, %v1412
      %v1414 = vpop.f32.mrb[0].mxu0
      %1415 = vmatprep.mubr.bf16.mxu0 0
      %1416 = vmatmul.mubr.bf16.gmra.mrb[0].mxu0 %v1313
      %v1417 = vpop.f32.mrb[0].mxu0
      %v1418 = vadd.f32 0.0, %v1417
      %v1419 = vpop.f32.mrb[0].mxu0
      %v1420 = vpop.f32.mrb[0].mxu0
      %v1421 = vadd.f32 0.0, %v1420
      %v1422 = vpop.f32.mrb[0].mxu0
      %1423 = vmatprep.mubr.bf16.mxu0 0
      %1424 = vmatmul.mubr.bf16.gmra.mrb[0].mxu0 %v1316
      %v1425 = vpop.f32.mrb[0].mxu0
      %v1426 = vadd.f32 0.0, %v1425
      %v1427 = vpop.f32.mrb[0].mxu0
      %v1428 = vpop.f32.mrb[0].mxu0
      %v1429 = vadd.f32 0.0, %v1428
      %v1430 = vpop.f32.mrb[0].mxu0
      %1431 = vmatprep.mubr.bf16.mxu0 0
      %1432 = vmatmul.mubr.bf16.gmra.mrb[0].mxu0 %v1319
      %v1433 = vpop.f32.mrb[0].mxu0
      %v1434 = vadd.f32 0.0, %v1433
      %v1435 = vpop.f32.mrb[0].mxu0
      %v1436 = vpop.f32.mrb[0].mxu0
      %v1437 = vadd.f32 0.0, %v1436
      %v1438 = vpop.f32.mrb[0].mxu0
      %1439 = vmatprep.mubr.bf16.mxu0 0
      %1440 = vmatmul.mubr.bf16.gmra.mrb[0].mxu0 %v1322
      %v1441 = vpop.f32.mrb[0].mxu0
      %v1442 = vadd.f32 0.0, %v1441
      %v1443 = vpop.f32.mrb[0].mxu0
      %v1444 = vpop.f32.mrb[0].mxu0
      %v1445 = vadd.f32 0.0, %v1444
      %v1446 = vpop.f32.mrb[0].mxu0
      %1447 = vmatprep.mubr.bf16.mxu0 0
      %1448 = vmatmul.mubr.bf16.gmra.mrb[0].mxu0 %v1325
      %v1449 = vpop.f32.mrb[0].mxu0
      %v1450 = vadd.f32 0.0, %v1449
      %v1451 = vpop.f32.mrb[0].mxu0
      %v1452 = vpop.f32.mrb[0].mxu0
      %v1453 = vadd.f32 0.0, %v1452
      %v1454 = vpop.f32.mrb[0].mxu0
      %1455 = vmatprep.mubr.bf16.mxu0 0
      %1456 = vmatmul.mubr.bf16.gmra.mrb[0].mxu0 %v1328
      %v1457 = vpop.f32.mrb[0].mxu0
      %v1458 = vadd.f32 0.0, %v1457
      %v1459 = vpop.f32.mrb[0].mxu0
      %v1460 = vpop.f32.mrb[0].mxu0
      %v1461 = vadd.f32 0.0, %v1460
      %v1462 = vpop.f32.mrb[0].mxu0
      %1463 = vmatprep.mubr.bf16.mxu0 0
      %1464 = vmatmul.mubr.bf16.gmra.mrb[0].mxu0 %v1331
      %v1465 = vpop.f32.mrb[0].mxu0
      %v1466 = vadd.f32 0.0, %v1465
      %v1467 = vpop.f32.mrb[0].mxu0
      %v1468 = vpop.f32.mrb[0].mxu0
      %v1469 = vadd.f32 0.0, %v1468
      %v1470 = vpop.f32.mrb[0].mxu0
      %1471 = vmatprep.mubr.bf16.mxu0 0
      %1472 = vmatmul.mubr.bf16.gmra.mrb[0].mxu0 %v1334
      %v1473 = vpop.f32.mrb[0].mxu0
      %v1474 = vadd.f32 0.0, %v1473
      %v1475 = vpop.f32.mrb[0].mxu0
      %v1476 = vpop.f32.mrb[0].mxu0
      %v1477 = vadd.f32 0.0, %v1476
      %v1478 = vpop.f32.mrb[0].mxu0
      %1479 = vmatprep.mubr.bf16.mxu0 0
      %1480 = vmatmul.mubr.bf16.gmra.mrb[0].mxu0 %v1337
      %v1481 = vpop.f32.mrb[0].mxu0
      %v1482 = vadd.f32 0.0, %v1481
      %v1483 = vpop.f32.mrb[0].mxu0
      %v1484 = vpop.f32.mrb[0].mxu0
      %v1485 = vadd.f32 0.0, %v1484
      %v1486 = vpop.f32.mrb[0].mxu0
      %1487 = vmatprep.mubr.bf16.mxu0 0
      %1488 = vmatmul.mubr.bf16.gmra.mrb[0].mxu0 %v1340
      %v1489 = vpop.f32.mrb[0].mxu0
      %v1490 = vadd.f32 0.0, %v1489
      %v1491 = vpop.f32.mrb[0].mxu0
      %v1492 = vpop.f32.mrb[0].mxu0
      %v1493 = vadd.f32 0.0, %v1492
      %v1494 = vpop.f32.mrb[0].mxu0
      %1495 = vmatprep.mubr.bf16.mxu0 0
      %1496 = vmatmul.mubr.bf16.gmra.mrb[0].mxu0 %v1343
      %v1497 = vpop.f32.mrb[0].mxu0
      %v1498 = vadd.f32 0.0, %v1497
      %v1499 = vpop.f32.mrb[0].mxu0
      %v1500 = vpop.f32.mrb[0].mxu0
      %v1501 = vadd.f32 0.0, %v1500
      %v1502 = vpop.f32.mrb[0].mxu0
      %1503 = vmatprep.mubr.bf16.mxu0 0
      %1504 = vmatmul.mubr.bf16.gmra.mrb[0].mxu0 %v1346
      %v1505 = vpop.f32.mrb[0].mxu0
      %v1506 = vadd.f32 0.0, %v1505
      %v1507 = vpop.f32.mrb[0].mxu0
      %v1508 = vpop.f32.mrb[0].mxu0
      %v1509 = vadd.f32 0.0, %v1508
      %v1510 = vpop.f32.mrb[0].mxu0
      %1511 = vdwg.mxu0
      %v1512 = vadd.f32 %v1124, %v1386
      %v1513 = vadd.f32 %v1127, %v1389
      %v1514 = vadd.f32 %v1132, %v1394
      %v1515 = vadd.f32 %v1135, %v1397
      %v1516 = vadd.f32 %v1140, %v1402
      %v1517 = vadd.f32 %v1143, %v1405
      %v1518 = vadd.f32 %v1148, %v1410
      %v1519 = vadd.f32 %v1151, %v1413
      %v1520 = vadd.f32 %v1156, %v1418
      %v1521 = vadd.f32 %v1159, %v1421
      %v1522 = vadd.f32 %v1164, %v1426
      %v1523 = vadd.f32 %v1167, %v1429
      %v1524 = vadd.f32 %v1172, %v1434
      %v1525 = vadd.f32 %v1175, %v1437
      %v1526 = vadd.f32 %v1180, %v1442
      %v1527 = vadd.f32 %v1183, %v1445
      %v1528 = vadd.f32 %v1188, %v1450
      %v1529 = vadd.f32 %v1191, %v1453
      %v1530 = vadd.f32 %v1196, %v1458
      %v1531 = vadd.f32 %v1199, %v1461
      %v1532 = vadd.f32 %v1204, %v1466
      %v1533 = vadd.f32 %v1207, %v1469
      %v1534 = vadd.f32 %v1212, %v1474
      %v1535 = vadd.f32 %v1215, %v1477
      %v1536 = vadd.f32 %v1220, %v1482
      %v1537 = vadd.f32 %v1223, %v1485
      %v1538 = vadd.f32 %v1228, %v1490
      %v1539 = vadd.f32 %v1231, %v1493
      %v1540 = vadd.f32 %v1236, %v1498
      %v1541 = vadd.f32 %v1239, %v1501
      %v1542 = vadd.f32 %v1244, %v1506
      %v1543 = vadd.f32 %v1247, %v1509
      %v1544 = vld [vmem:[%s503] sm:$0xff]
      %v1545 = vld [vmem:[%s503 + $0x8] sm:$0xff]
      %v1546 = vld [vmem:[%s503 + $0x18] sm:$0xff]
      %v1547 = vld [vmem:[%s503 + $0x20] sm:$0xff]
      %v1548 = vld [vmem:[%s503 + $0x30] sm:$0xff]
      %v1549 = vld [vmem:[%s503 + $0x38] sm:$0xff]
      %v1550 = vld [vmem:[%s503 + $0x48] sm:$0xff]
      %v1551 = vld [vmem:[%s503 + $0x50] sm:$0xff]
      %v1552 = vld [vmem:[%s503 + $0x60] sm:$0xff]
      %v1553 = vld [vmem:[%s503 + $0x68] sm:$0xff]
      %v1554 = vld [vmem:[%s503 + $0x78] sm:$0xff]
      %v1555 = vld [vmem:[%s503 + $0x80] sm:$0xff]
      %v1556 = vld [vmem:[%s503 + $0x90] sm:$0xff]
      %v1557 = vld [vmem:[%s503 + $0x98] sm:$0xff]
      %v1558 = vld [vmem:[%s503 + $0xa8] sm:$0xff]
      %v1559 = vld [vmem:[%s503 + $0xb0] sm:$0xff]
      %v1560 = vld [vmem:[%s503 + $0xc0] sm:$0xff]
      %v1561 = vld [vmem:[%s503 + $0xc8] sm:$0xff]
      %v1562 = vld [vmem:[%s503 + $0xd8] sm:$0xff]
      %v1563 = vld [vmem:[%s503 + $0xe0] sm:$0xff]
      %v1564 = vld [vmem:[%s503 + $0xf0] sm:$0xff]
      %v1565 = vld [vmem:[%s503 + $0xf8] sm:$0xff]
      %v1566 = vld [vmem:[%s503 + $0x108] sm:$0xff]
      %v1567 = vld [vmem:[%s503 + $0x110] sm:$0xff]
      %v1568 = vld [vmem:[%s503 + $0x120] sm:$0xff]
      %v1569 = vld [vmem:[%s503 + $0x128] sm:$0xff]
      %v1570 = vld [vmem:[%s503 + $0x138] sm:$0xff]
      %v1571 = vld [vmem:[%s503 + $0x140] sm:$0xff]
      %v1572 = vld [vmem:[%s503 + $0x150] sm:$0xff]
      %v1573 = vld [vmem:[%s503 + $0x158] sm:$0xff]
      %v1574 = vld [vmem:[%s503 + $0x168] sm:$0xff]
      %v1575 = vld [vmem:[%s503 + $0x170] sm:$0xff]
      %v1576 = vpack.c.bf16 %v1545, %v1544
      %v1577 = vpack.c.bf16 %v1547, %v1546
      %v1578 = vpack.c.bf16 %v1549, %v1548
      %v1579 = vpack.c.bf16 %v1551, %v1550
      %v1580 = vpack.c.bf16 %v1553, %v1552
      %v1581 = vpack.c.bf16 %v1555, %v1554
      %v1582 = vpack.c.bf16 %v1557, %v1556
      %v1583 = vpack.c.bf16 %v1559, %v1558
      %v1584 = vpack.c.bf16 %v1561, %v1560
      %v1585 = vpack.c.bf16 %v1563, %v1562
      %v1586 = vpack.c.bf16 %v1565, %v1564
      %v1587 = vpack.c.bf16 %v1567, %v1566
      %v1588 = vpack.c.bf16 %v1569, %v1568
      %v1589 = vpack.c.bf16 %v1571, %v1570
      %v1590 = vpack.c.bf16 %v1573, %v1572
      %v1591 = vpack.c.bf16 %v1575, %v1574
      %s1592 = scalar_lea.vmem %s1, 6
      %v1593 = vld [vmem:[%s1592] sm:$0x3]
      %v1595 = vsel %vm494, %v1576, 0
      %v1598 = vsel %vm494, %v1577, 0
      %v1601 = vsel %vm494, %v1578, 0
      %v1604 = vsel %vm494, %v1579, 0
      %v1607 = vsel %vm494, %v1580, 0
      %v1610 = vsel %vm494, %v1581, 0
      %v1613 = vsel %vm494, %v1582, 0
      %v1616 = vsel %vm494, %v1583, 0
      %v1619 = vsel %vm494, %v1584, 0
      %v1622 = vsel %vm494, %v1585, 0
      %v1625 = vsel %vm494, %v1586, 0
      %v1628 = vsel %vm494, %v1587, 0
      %v1631 = vsel %vm494, %v1588, 0
      %v1634 = vsel %vm494, %v1589, 0
      %v1637 = vsel %vm494, %v1590, 0
      %v1640 = vsel %vm494, %v1591, 0
      %v1643 = vand.u32 %v1593, %v873
      %1645 = vmatprep.subr.bf16.mxu0 0
      %1646 = vmatpush1.bf16.msra.mxu0 %v1643
      %1647 = vmatprep.subr.bf16.mxu0 0
      %1648 = vmatpush1.bf16.msra.mxu0 0
      %1649 = vmatprep.subr.bf16.mxu0 0
      %1650 = vmatpush1.bf16.msra.mxu0 0
      %1651 = vmatprep.subr.bf16.mxu0 0
      %1652 = vmatpush1.bf16.msra.mxu0 0
      %1653 = vmatprep.subr.bf16.mxu0 0
      %1654 = vmatpush1.bf16.msra.mxu0 0
      %1655 = vmatprep.subr.bf16.mxu0 0
      %1656 = vmatpush1.bf16.msra.mxu0 0
      %1657 = vmatprep.subr.bf16.mxu0 0
      %1658 = vmatpush1.bf16.msra.mxu0 0
      %1659 = vmatprep.subr.bf16.mxu0 0
      %1660 = vmatpush1.bf16.msra.mxu0 0
      %1661 = vmatprep.subr.bf16.mxu0 0
      %1662 = vmatpush1.bf16.msra.mxu0 0
      %1663 = vmatprep.subr.bf16.mxu0 0
      %1664 = vmatpush1.bf16.msra.mxu0 0
      %1665 = vmatprep.subr.bf16.mxu0 0
      %1666 = vmatpush1.bf16.msra.mxu0 0
      %1667 = vmatprep.subr.bf16.mxu0 0
      %1668 = vmatpush1.bf16.msra.mxu0 0
      %1669 = vmatprep.subr.bf16.mxu0 0
      %1670 = vmatpush1.bf16.msra.mxu0 0
      %1671 = vmatprep.subr.bf16.mxu0 0
      %1672 = vmatpush1.bf16.msra.mxu0 0
      %1673 = vmatprep.subr.bf16.mxu0 0
      %1674 = vmatpush1.bf16.msra.mxu0 0
      %1675 = vmatprep.subr.bf16.mxu0 0
      %1676 = vmatpush1.bf16.msra.mxu0 0
      %1677 = vmatprep.mubr.bf16.mxu0 0
      %1678 = vmatmul.mubr.bf16.gmra.mrb[0].mxu0 %v1595
      %v1679 = vpop.f32.mrb[0].mxu0
      %v1680 = vadd.f32 0.0, %v1679
      %v1681 = vpop.f32.mrb[0].mxu0
      %v1682 = vpop.f32.mrb[0].mxu0
      %v1683 = vadd.f32 0.0, %v1682
      %v1684 = vpop.f32.mrb[0].mxu0
      %1685 = vmatprep.mubr.bf16.mxu0 0
      %1686 = vmatmul.mubr.bf16.gmra.mrb[0].mxu0 %v1598
      %v1687 = vpop.f32.mrb[0].mxu0
      %v1688 = vadd.f32 0.0, %v1687
      %v1689 = vpop.f32.mrb[0].mxu0
      %v1690 = vpop.f32.mrb[0].mxu0
      %v1691 = vadd.f32 0.0, %v1690
      %v1692 = vpop.f32.mrb[0].mxu0
      %1693 = vmatprep.mubr.bf16.mxu0 0
      %1694 = vmatmul.mubr.bf16.gmra.mrb[0].mxu0 %v1601
      %v1695 = vpop.f32.mrb[0].mxu0
      %v1696 = vadd.f32 0.0, %v1695
      %v1697 = vpop.f32.mrb[0].mxu0
      %v1698 = vpop.f32.mrb[0].mxu0
      %v1699 = vadd.f32 0.0, %v1698
      %v1700 = vpop.f32.mrb[0].mxu0
      %1701 = vmatprep.mubr.bf16.mxu0 0
      %1702 = vmatmul.mubr.bf16.gmra.mrb[0].mxu0 %v1604
      %v1703 = vpop.f32.mrb[0].mxu0
      %v1704 = vadd.f32 0.0, %v1703
      %v1705 = vpop.f32.mrb[0].mxu0
      %v1706 = vpop.f32.mrb[0].mxu0
      %v1707 = vadd.f32 0.0, %v1706
      %v1708 = vpop.f32.mrb[0].mxu0
      %1709 = vmatprep.mubr.bf16.mxu0 0
      %1710 = vmatmul.mubr.bf16.gmra.mrb[0].mxu0 %v1607
      %v1711 = vpop.f32.mrb[0].mxu0
      %v1712 = vadd.f32 0.0, %v1711
      %v1713 = vpop.f32.mrb[0].mxu0
      %v1714 = vpop.f32.mrb[0].mxu0
      %v1715 = vadd.f32 0.0, %v1714
      %v1716 = vpop.f32.mrb[0].mxu0
      %1717 = vmatprep.mubr.bf16.mxu0 0
      %1718 = vmatmul.mubr.bf16.gmra.mrb[0].mxu0 %v1610
      %v1719 = vpop.f32.mrb[0].mxu0
      %v1720 = vadd.f32 0.0, %v1719
      %v1721 = vpop.f32.mrb[0].mxu0
      %v1722 = vpop.f32.mrb[0].mxu0
      %v1723 = vadd.f32 0.0, %v1722
      %v1724 = vpop.f32.mrb[0].mxu0
      %1725 = vmatprep.mubr.bf16.mxu0 0
      %1726 = vmatmul.mubr.bf16.gmra.mrb[0].mxu0 %v1613
      %v1727 = vpop.f32.mrb[0].mxu0
      %v1728 = vadd.f32 0.0, %v1727
      %v1729 = vpop.f32.mrb[0].mxu0
      %v1730 = vpop.f32.mrb[0].mxu0
      %v1731 = vadd.f32 0.0, %v1730
      %v1732 = vpop.f32.mrb[0].mxu0
      %1733 = vmatprep.mubr.bf16.mxu0 0
      %1734 = vmatmul.mubr.bf16.gmra.mrb[0].mxu0 %v1616
      %v1735 = vpop.f32.mrb[0].mxu0
      %v1736 = vadd.f32 0.0, %v1735
      %v1737 = vpop.f32.mrb[0].mxu0
      %v1738 = vpop.f32.mrb[0].mxu0
      %v1739 = vadd.f32 0.0, %v1738
      %v1740 = vpop.f32.mrb[0].mxu0
      %1741 = vmatprep.mubr.bf16.mxu0 0
      %1742 = vmatmul.mubr.bf16.gmra.mrb[0].mxu0 %v1619
      %v1743 = vpop.f32.mrb[0].mxu0
      %v1744 = vadd.f32 0.0, %v1743
      %v1745 = vpop.f32.mrb[0].mxu0
      %v1746 = vpop.f32.mrb[0].mxu0
      %v1747 = vadd.f32 0.0, %v1746
      %v1748 = vpop.f32.mrb[0].mxu0
      %1749 = vmatprep.mubr.bf16.mxu0 0
      %1750 = vmatmul.mubr.bf16.gmra.mrb[0].mxu0 %v1622
      %v1751 = vpop.f32.mrb[0].mxu0
      %v1752 = vadd.f32 0.0, %v1751
      %v1753 = vpop.f32.mrb[0].mxu0
      %v1754 = vpop.f32.mrb[0].mxu0
      %v1755 = vadd.f32 0.0, %v1754
      %v1756 = vpop.f32.mrb[0].mxu0
      %1757 = vmatprep.mubr.bf16.mxu0 0
      %1758 = vmatmul.mubr.bf16.gmra.mrb[0].mxu0 %v1625
      %v1759 = vpop.f32.mrb[0].mxu0
      %v1760 = vadd.f32 0.0, %v1759
      %v1761 = vpop.f32.mrb[0].mxu0
      %v1762 = vpop.f32.mrb[0].mxu0
      %v1763 = vadd.f32 0.0, %v1762
      %v1764 = vpop.f32.mrb[0].mxu0
      %1765 = vmatprep.mubr.bf16.mxu0 0
      %1766 = vmatmul.mubr.bf16.gmra.mrb[0].mxu0 %v1628
      %v1767 = vpop.f32.mrb[0].mxu0
      %v1768 = vadd.f32 0.0, %v1767
      %v1769 = vpop.f32.mrb[0].mxu0
      %v1770 = vpop.f32.mrb[0].mxu0
      %v1771 = vadd.f32 0.0, %v1770
      %v1772 = vpop.f32.mrb[0].mxu0
      %1773 = vmatprep.mubr.bf16.mxu0 0
      %1774 = vmatmul.mubr.bf16.gmra.mrb[0].mxu0 %v1631
      %v1775 = vpop.f32.mrb[0].mxu0
      %v1776 = vadd.f32 0.0, %v1775
      %v1777 = vpop.f32.mrb[0].mxu0
      %v1778 = vpop.f32.mrb[0].mxu0
      %v1779 = vadd.f32 0.0, %v1778
      %v1780 = vpop.f32.mrb[0].mxu0
      %1781 = vmatprep.mubr.bf16.mxu0 0
      %1782 = vmatmul.mubr.bf16.gmra.mrb[0].mxu0 %v1634
      %v1783 = vpop.f32.mrb[0].mxu0
      %v1784 = vadd.f32 0.0, %v1783
      %v1785 = vpop.f32.mrb[0].mxu0
      %v1786 = vpop.f32.mrb[0].mxu0
      %v1787 = vadd.f32 0.0, %v1786
      %v1788 = vpop.f32.mrb[0].mxu0
      %1789 = vmatprep.mubr.bf16.mxu0 0
      %1790 = vmatmul.mubr.bf16.gmra.mrb[0].mxu0 %v1637
      %v1791 = vpop.f32.mrb[0].mxu0
      %v1792 = vadd.f32 0.0, %v1791
      %v1793 = vpop.f32.mrb[0].mxu0
      %v1794 = vpop.f32.mrb[0].mxu0
      %v1795 = vadd.f32 0.0, %v1794
      %v1796 = vpop.f32.mrb[0].mxu0
      %1797 = vmatprep.mubr.bf16.mxu0 0
      %1798 = vmatmul.mubr.bf16.gmra.mrb[0].mxu0 %v1640
      %v1799 = vpop.f32.mrb[0].mxu0
      %v1800 = vadd.f32 0.0, %v1799
      %v1801 = vpop.f32.mrb[0].mxu0
      %v1802 = vpop.f32.mrb[0].mxu0
      %v1803 = vadd.f32 0.0, %v1802
      %v1804 = vpop.f32.mrb[0].mxu0
      %1805 = vdwg.mxu0
      %v1806 = vadd.f32 %v1512, %v1680
      %v1807 = vadd.f32 %v1513, %v1683
      %v1808 = vadd.f32 %v1514, %v1688
      %v1809 = vadd.f32 %v1515, %v1691
      %v1810 = vadd.f32 %v1516, %v1696
      %v1811 = vadd.f32 %v1517, %v1699
      %v1812 = vadd.f32 %v1518, %v1704
      %v1813 = vadd.f32 %v1519, %v1707
      %v1814 = vadd.f32 %v1520, %v1712
      %v1815 = vadd.f32 %v1521, %v1715
      %v1816 = vadd.f32 %v1522, %v1720
      %v1817 = vadd.f32 %v1523, %v1723
      %v1818 = vadd.f32 %v1524, %v1728
      %v1819 = vadd.f32 %v1525, %v1731
      %v1820 = vadd.f32 %v1526, %v1736
      %v1821 = vadd.f32 %v1527, %v1739
      %v1822 = vadd.f32 %v1528, %v1744
      %v1823 = vadd.f32 %v1529, %v1747
      %v1824 = vadd.f32 %v1530, %v1752
      %v1825 = vadd.f32 %v1531, %v1755
      %v1826 = vadd.f32 %v1532, %v1760
      %v1827 = vadd.f32 %v1533, %v1763
      %v1828 = vadd.f32 %v1534, %v1768
      %v1829 = vadd.f32 %v1535, %v1771
      %v1830 = vadd.f32 %v1536, %v1776
      %v1831 = vadd.f32 %v1537, %v1779
      %v1832 = vadd.f32 %v1538, %v1784
      %v1833 = vadd.f32 %v1539, %v1787
      %v1834 = vadd.f32 %v1540, %v1792
      %v1835 = vadd.f32 %v1541, %v1795
      %v1836 = vadd.f32 %v1542, %v1800
      %v1837 = vadd.f32 %v1543, %v1803
      %v1838 = vld [vmem:[%s503 + $0x1] sm:$0xff]
      %v1839 = vld [vmem:[%s503 + $0x9] sm:$0xff]
      %v1840 = vld [vmem:[%s503 + $0x19] sm:$0xff]
      %v1841 = vld [vmem:[%s503 + $0x21] sm:$0xff]
      %v1842 = vld [vmem:[%s503 + $0x31] sm:$0xff]
      %v1843 = vld [vmem:[%s503 + $0x39] sm:$0xff]
      %v1844 = vld [vmem:[%s503 + $0x49] sm:$0xff]
      %v1845 = vld [vmem:[%s503 + $0x51] sm:$0xff]
      %v1846 = vld [vmem:[%s503 + $0x61] sm:$0xff]
      %v1847 = vld [vmem:[%s503 + $0x69] sm:$0xff]
      %v1848 = vld [vmem:[%s503 + $0x79] sm:$0xff]
      %v1849 = vld [vmem:[%s503 + $0x81] sm:$0xff]
      %v1850 = vld [vmem:[%s503 + $0x91] sm:$0xff]
      %v1851 = vld [vmem:[%s503 + $0x99] sm:$0xff]
      %v1852 = vld [vmem:[%s503 + $0xa9] sm:$0xff]
      %v1853 = vld [vmem:[%s503 + $0xb1] sm:$0xff]
      %v1854 = vld [vmem:[%s503 + $0xc1] sm:$0xff]
      %v1855 = vld [vmem:[%s503 + $0xc9] sm:$0xff]
      %v1856 = vld [vmem:[%s503 + $0xd9] sm:$0xff]
      %v1857 = vld [vmem:[%s503 + $0xe1] sm:$0xff]
      %v1858 = vld [vmem:[%s503 + $0xf1] sm:$0xff]
      %v1859 = vld [vmem:[%s503 + $0xf9] sm:$0xff]
      %v1860 = vld [vmem:[%s503 + $0x109] sm:$0xff]
      %v1861 = vld [vmem:[%s503 + $0x111] sm:$0xff]
      %v1862 = vld [vmem:[%s503 + $0x121] sm:$0xff]
      %v1863 = vld [vmem:[%s503 + $0x129] sm:$0xff]
      %v1864 = vld [vmem:[%s503 + $0x139] sm:$0xff]
      %v1865 = vld [vmem:[%s503 + $0x141] sm:$0xff]
      %v1866 = vld [vmem:[%s503 + $0x151] sm:$0xff]
      %v1867 = vld [vmem:[%s503 + $0x159] sm:$0xff]
      %v1868 = vld [vmem:[%s503 + $0x169] sm:$0xff]
      %v1869 = vld [vmem:[%s503 + $0x171] sm:$0xff]
      %v1870 = vpack.c.bf16 %v1839, %v1838
      %v1871 = vpack.c.bf16 %v1841, %v1840
      %v1872 = vpack.c.bf16 %v1843, %v1842
      %v1873 = vpack.c.bf16 %v1845, %v1844
      %v1874 = vpack.c.bf16 %v1847, %v1846
      %v1875 = vpack.c.bf16 %v1849, %v1848
      %v1876 = vpack.c.bf16 %v1851, %v1850
      %v1877 = vpack.c.bf16 %v1853, %v1852
      %v1878 = vpack.c.bf16 %v1855, %v1854
      %v1879 = vpack.c.bf16 %v1857, %v1856
      %v1880 = vpack.c.bf16 %v1859, %v1858
      %v1881 = vpack.c.bf16 %v1861, %v1860
      %v1882 = vpack.c.bf16 %v1863, %v1862
      %v1883 = vpack.c.bf16 %v1865, %v1864
      %v1884 = vpack.c.bf16 %v1867, %v1866
      %v1885 = vpack.c.bf16 %v1869, %v1868
      %s1886 = scalar_lea.vmem %s1, 8
      %v1887 = vld [vmem:[%s1886] sm:$0x3]
      %v1889 = vsel %vm494, %v1870, 0
      %v1892 = vsel %vm494, %v1871, 0
      %v1895 = vsel %vm494, %v1872, 0
      %v1898 = vsel %vm494, %v1873, 0
      %v1901 = vsel %vm494, %v1874, 0
      %v1904 = vsel %vm494, %v1875, 0
      %v1907 = vsel %vm494, %v1876, 0
      %v1910 = vsel %vm494, %v1877, 0
      %v1913 = vsel %vm494, %v1878, 0
      %v1916 = vsel %vm494, %v1879, 0
      %v1919 = vsel %vm494, %v1880, 0
      %v1922 = vsel %vm494, %v1881, 0
      %v1925 = vsel %vm494, %v1882, 0
      %v1928 = vsel %vm494, %v1883, 0
      %v1931 = vsel %vm494, %v1884, 0
      %v1934 = vsel %vm494, %v1885, 0
      %v1937 = vand.u32 %v1887, %v873
      %1939 = vmatprep.subr.bf16.mxu0 0
      %1940 = vmatpush1.bf16.msra.mxu0 %v1937
      %1941 = vmatprep.subr.bf16.mxu0 0
      %1942 = vmatpush1.bf16.msra.mxu0 0
      %1943 = vmatprep.subr.bf16.mxu0 0
      %1944 = vmatpush1.bf16.msra.mxu0 0
      %1945 = vmatprep.subr.bf16.mxu0 0
      %1946 = vmatpush1.bf16.msra.mxu0 0
      %1947 = vmatprep.subr.bf16.mxu0 0
      %1948 = vmatpush1.bf16.msra.mxu0 0
      %1949 = vmatprep.subr.bf16.mxu0 0
      %1950 = vmatpush1.bf16.msra.mxu0 0
      %1951 = vmatprep.subr.bf16.mxu0 0
      %1952 = vmatpush1.bf16.msra.mxu0 0
      %1953 = vmatprep.subr.bf16.mxu0 0
      %1954 = vmatpush1.bf16.msra.mxu0 0
      %1955 = vmatprep.subr.bf16.mxu0 0
      %1956 = vmatpush1.bf16.msra.mxu0 0
      %1957 = vmatprep.subr.bf16.mxu0 0
      %1958 = vmatpush1.bf16.msra.mxu0 0
      %1959 = vmatprep.subr.bf16.mxu0 0
      %1960 = vmatpush1.bf16.msra.mxu0 0
      %1961 = vmatprep.subr.bf16.mxu0 0
      %1962 = vmatpush1.bf16.msra.mxu0 0
      %1963 = vmatprep.subr.bf16.mxu0 0
      %1964 = vmatpush1.bf16.msra.mxu0 0
      %1965 = vmatprep.subr.bf16.mxu0 0
      %1966 = vmatpush1.bf16.msra.mxu0 0
      %1967 = vmatprep.subr.bf16.mxu0 0
      %1968 = vmatpush1.bf16.msra.mxu0 0
      %1969 = vmatprep.subr.bf16.mxu0 0
      %1970 = vmatpush1.bf16.msra.mxu0 0
      %1971 = vmatprep.mubr.bf16.mxu0 0
      %1972 = vmatmul.mubr.bf16.gmra.mrb[0].mxu0 %v1889
      %v1973 = vpop.f32.mrb[0].mxu0
      %v1974 = vadd.f32 0.0, %v1973
      %v1975 = vpop.f32.mrb[0].mxu0
      %v1976 = vpop.f32.mrb[0].mxu0
      %v1977 = vadd.f32 0.0, %v1976
      %v1978 = vpop.f32.mrb[0].mxu0
      %1979 = vmatprep.mubr.bf16.mxu0 0
      %1980 = vmatmul.mubr.bf16.gmra.mrb[0].mxu0 %v1892
      %v1981 = vpop.f32.mrb[0].mxu0
      %v1982 = vadd.f32 0.0, %v1981
      %v1983 = vpop.f32.mrb[0].mxu0
      %v1984 = vpop.f32.mrb[0].mxu0
      %v1985 = vadd.f32 0.0, %v1984
      %v1986 = vpop.f32.mrb[0].mxu0
      %1987 = vmatprep.mubr.bf16.mxu0 0
      %1988 = vmatmul.mubr.bf16.gmra.mrb[0].mxu0 %v1895
      %v1989 = vpop.f32.mrb[0].mxu0
      %v1990 = vadd.f32 0.0, %v1989
      %v1991 = vpop.f32.mrb[0].mxu0
      %v1992 = vpop.f32.mrb[0].mxu0
      %v1993 = vadd.f32 0.0, %v1992
      %v1994 = vpop.f32.mrb[0].mxu0
      %1995 = vmatprep.mubr.bf16.mxu0 0
      %1996 = vmatmul.mubr.bf16.gmra.mrb[0].mxu0 %v1898
      %v1997 = vpop.f32.mrb[0].mxu0
      %v1998 = vadd.f32 0.0, %v1997
      %v1999 = vpop.f32.mrb[0].mxu0
      %v2000 = vpop.f32.mrb[0].mxu0
      %v2001 = vadd.f32 0.0, %v2000
      %v2002 = vpop.f32.mrb[0].mxu0
      %2003 = vmatprep.mubr.bf16.mxu0 0
      %2004 = vmatmul.mubr.bf16.gmra.mrb[0].mxu0 %v1901
      %v2005 = vpop.f32.mrb[0].mxu0
      %v2006 = vadd.f32 0.0, %v2005
      %v2007 = vpop.f32.mrb[0].mxu0
      %v2008 = vpop.f32.mrb[0].mxu0
      %v2009 = vadd.f32 0.0, %v2008
      %v2010 = vpop.f32.mrb[0].mxu0
      %2011 = vmatprep.mubr.bf16.mxu0 0
      %2012 = vmatmul.mubr.bf16.gmra.mrb[0].mxu0 %v1904
      %v2013 = vpop.f32.mrb[0].mxu0
      %v2014 = vadd.f32 0.0, %v2013
      %v2015 = vpop.f32.mrb[0].mxu0
      %v2016 = vpop.f32.mrb[0].mxu0
      %v2017 = vadd.f32 0.0, %v2016
      %v2018 = vpop.f32.mrb[0].mxu0
      %2019 = vmatprep.mubr.bf16.mxu0 0
      %2020 = vmatmul.mubr.bf16.gmra.mrb[0].mxu0 %v1907
      %v2021 = vpop.f32.mrb[0].mxu0
      %v2022 = vadd.f32 0.0, %v2021
      %v2023 = vpop.f32.mrb[0].mxu0
      %v2024 = vpop.f32.mrb[0].mxu0
      %v2025 = vadd.f32 0.0, %v2024
      %v2026 = vpop.f32.mrb[0].mxu0
      %2027 = vmatprep.mubr.bf16.mxu0 0
      %2028 = vmatmul.mubr.bf16.gmra.mrb[0].mxu0 %v1910
      %v2029 = vpop.f32.mrb[0].mxu0
      %v2030 = vadd.f32 0.0, %v2029
      %v2031 = vpop.f32.mrb[0].mxu0
      %v2032 = vpop.f32.mrb[0].mxu0
      %v2033 = vadd.f32 0.0, %v2032
      %v2034 = vpop.f32.mrb[0].mxu0
      %2035 = vmatprep.mubr.bf16.mxu0 0
      %2036 = vmatmul.mubr.bf16.gmra.mrb[0].mxu0 %v1913
      %v2037 = vpop.f32.mrb[0].mxu0
      %v2038 = vadd.f32 0.0, %v2037
      %v2039 = vpop.f32.mrb[0].mxu0
      %v2040 = vpop.f32.mrb[0].mxu0
      %v2041 = vadd.f32 0.0, %v2040
      %v2042 = vpop.f32.mrb[0].mxu0
      %2043 = vmatprep.mubr.bf16.mxu0 0
      %2044 = vmatmul.mubr.bf16.gmra.mrb[0].mxu0 %v1916
      %v2045 = vpop.f32.mrb[0].mxu0
      %v2046 = vadd.f32 0.0, %v2045
      %v2047 = vpop.f32.mrb[0].mxu0
      %v2048 = vpop.f32.mrb[0].mxu0
      %v2049 = vadd.f32 0.0, %v2048
      %v2050 = vpop.f32.mrb[0].mxu0
      %2051 = vmatprep.mubr.bf16.mxu0 0
      %2052 = vmatmul.mubr.bf16.gmra.mrb[0].mxu0 %v1919
      %v2053 = vpop.f32.mrb[0].mxu0
      %v2054 = vadd.f32 0.0, %v2053
      %v2055 = vpop.f32.mrb[0].mxu0
      %v2056 = vpop.f32.mrb[0].mxu0
      %v2057 = vadd.f32 0.0, %v2056
      %v2058 = vpop.f32.mrb[0].mxu0
      %2059 = vmatprep.mubr.bf16.mxu0 0
      %2060 = vmatmul.mubr.bf16.gmra.mrb[0].mxu0 %v1922
      %v2061 = vpop.f32.mrb[0].mxu0
      %v2062 = vadd.f32 0.0, %v2061
      %v2063 = vpop.f32.mrb[0].mxu0
      %v2064 = vpop.f32.mrb[0].mxu0
      %v2065 = vadd.f32 0.0, %v2064
      %v2066 = vpop.f32.mrb[0].mxu0
      %2067 = vmatprep.mubr.bf16.mxu0 0
      %2068 = vmatmul.mubr.bf16.gmra.mrb[0].mxu0 %v1925
      %v2069 = vpop.f32.mrb[0].mxu0
      %v2070 = vadd.f32 0.0, %v2069
      %v2071 = vpop.f32.mrb[0].mxu0
      %v2072 = vpop.f32.mrb[0].mxu0
      %v2073 = vadd.f32 0.0, %v2072
      %v2074 = vpop.f32.mrb[0].mxu0
      %2075 = vmatprep.mubr.bf16.mxu0 0
      %2076 = vmatmul.mubr.bf16.gmra.mrb[0].mxu0 %v1928
      %v2077 = vpop.f32.mrb[0].mxu0
      %v2078 = vadd.f32 0.0, %v2077
      %v2079 = vpop.f32.mrb[0].mxu0
      %v2080 = vpop.f32.mrb[0].mxu0
      %v2081 = vadd.f32 0.0, %v2080
      %v2082 = vpop.f32.mrb[0].mxu0
      %2083 = vmatprep.mubr.bf16.mxu0 0
      %2084 = vmatmul.mubr.bf16.gmra.mrb[0].mxu0 %v1931
      %v2085 = vpop.f32.mrb[0].mxu0
      %v2086 = vadd.f32 0.0, %v2085
      %v2087 = vpop.f32.mrb[0].mxu0
      %v2088 = vpop.f32.mrb[0].mxu0
      %v2089 = vadd.f32 0.0, %v2088
      %v2090 = vpop.f32.mrb[0].mxu0
      %2091 = vmatprep.mubr.bf16.mxu0 0
      %2092 = vmatmul.mubr.bf16.gmra.mrb[0].mxu0 %v1934
      %v2093 = vpop.f32.mrb[0].mxu0
      %v2094 = vadd.f32 0.0, %v2093
      %v2095 = vpop.f32.mrb[0].mxu0
      %v2096 = vpop.f32.mrb[0].mxu0
      %v2097 = vadd.f32 0.0, %v2096
      %v2098 = vpop.f32.mrb[0].mxu0
      %2099 = vdwg.mxu0
      %v2100 = vadd.f32 %v1806, %v1974
      %v2101 = vadd.f32 %v1807, %v1977
      %v2102 = vadd.f32 %v1808, %v1982
      %v2103 = vadd.f32 %v1809, %v1985
      %v2104 = vadd.f32 %v1810, %v1990
      %v2105 = vadd.f32 %v1811, %v1993
      %v2106 = vadd.f32 %v1812, %v1998
      %v2107 = vadd.f32 %v1813, %v2001
      %v2108 = vadd.f32 %v1814, %v2006
      %v2109 = vadd.f32 %v1815, %v2009
      %v2110 = vadd.f32 %v1816, %v2014
      %v2111 = vadd.f32 %v1817, %v2017
      %v2112 = vadd.f32 %v1818, %v2022
      %v2113 = vadd.f32 %v1819, %v2025
      %v2114 = vadd.f32 %v1820, %v2030
      %v2115 = vadd.f32 %v1821, %v2033
      %v2116 = vadd.f32 %v1822, %v2038
      %v2117 = vadd.f32 %v1823, %v2041
      %v2118 = vadd.f32 %v1824, %v2046
      %v2119 = vadd.f32 %v1825, %v2049
      %v2120 = vadd.f32 %v1826, %v2054
      %v2121 = vadd.f32 %v1827, %v2057
      %v2122 = vadd.f32 %v1828, %v2062
      %v2123 = vadd.f32 %v1829, %v2065
      %v2124 = vadd.f32 %v1830, %v2070
      %v2125 = vadd.f32 %v1831, %v2073
      %v2126 = vadd.f32 %v1832, %v2078
      %v2127 = vadd.f32 %v1833, %v2081
      %v2128 = vadd.f32 %v1834, %v2086
      %v2129 = vadd.f32 %v1835, %v2089
      %v2130 = vadd.f32 %v1836, %v2094
      %v2131 = vadd.f32 %v1837, %v2097
      %v2132 = vld [vmem:[%s503 + $0x2] sm:$0xff]
      %v2133 = vld [vmem:[%s503 + $0xa] sm:$0xff]
      %v2134 = vld [vmem:[%s503 + $0x1a] sm:$0xff]
      %v2135 = vld [vmem:[%s503 + $0x22] sm:$0xff]
      %v2136 = vld [vmem:[%s503 + $0x32] sm:$0xff]
      %v2137 = vld [vmem:[%s503 + $0x3a] sm:$0xff]
      %v2138 = vld [vmem:[%s503 + $0x4a] sm:$0xff]
      %v2139 = vld [vmem:[%s503 + $0x52] sm:$0xff]
      %v2140 = vld [vmem:[%s503 + $0x62] sm:$0xff]
      %v2141 = vld [vmem:[%s503 + $0x6a] sm:$0xff]
      %v2142 = vld [vmem:[%s503 + $0x7a] sm:$0xff]
      %v2143 = vld [vmem:[%s503 + $0x82] sm:$0xff]
      %v2144 = vld [vmem:[%s503 + $0x92] sm:$0xff]
      %v2145 = vld [vmem:[%s503 + $0x9a] sm:$0xff]
      %v2146 = vld [vmem:[%s503 + $0xaa] sm:$0xff]
      %v2147 = vld [vmem:[%s503 + $0xb2] sm:$0xff]
      %v2148 = vld [vmem:[%s503 + $0xc2] sm:$0xff]
      %v2149 = vld [vmem:[%s503 + $0xca] sm:$0xff]
      %v2150 = vld [vmem:[%s503 + $0xda] sm:$0xff]
      %v2151 = vld [vmem:[%s503 + $0xe2] sm:$0xff]
      %v2152 = vld [vmem:[%s503 + $0xf2] sm:$0xff]
      %v2153 = vld [vmem:[%s503 + $0xfa] sm:$0xff]
      %v2154 = vld [vmem:[%s503 + $0x10a] sm:$0xff]
      %v2155 = vld [vmem:[%s503 + $0x112] sm:$0xff]
      %v2156 = vld [vmem:[%s503 + $0x122] sm:$0xff]
      %v2157 = vld [vmem:[%s503 + $0x12a] sm:$0xff]
      %v2158 = vld [vmem:[%s503 + $0x13a] sm:$0xff]
      %v2159 = vld [vmem:[%s503 + $0x142] sm:$0xff]
      %v2160 = vld [vmem:[%s503 + $0x152] sm:$0xff]
      %v2161 = vld [vmem:[%s503 + $0x15a] sm:$0xff]
      %v2162 = vld [vmem:[%s503 + $0x16a] sm:$0xff]
      %v2163 = vld [vmem:[%s503 + $0x172] sm:$0xff]
      %v2164 = vpack.c.bf16 %v2133, %v2132
      %v2165 = vpack.c.bf16 %v2135, %v2134
      %v2166 = vpack.c.bf16 %v2137, %v2136
      %v2167 = vpack.c.bf16 %v2139, %v2138
      %v2168 = vpack.c.bf16 %v2141, %v2140
      %v2169 = vpack.c.bf16 %v2143, %v2142
      %v2170 = vpack.c.bf16 %v2145, %v2144
      %v2171 = vpack.c.bf16 %v2147, %v2146
      %v2172 = vpack.c.bf16 %v2149, %v2148
      %v2173 = vpack.c.bf16 %v2151, %v2150
      %v2174 = vpack.c.bf16 %v2153, %v2152
      %v2175 = vpack.c.bf16 %v2155, %v2154
      %v2176 = vpack.c.bf16 %v2157, %v2156
      %v2177 = vpack.c.bf16 %v2159, %v2158
      %v2178 = vpack.c.bf16 %v2161, %v2160
      %v2179 = vpack.c.bf16 %v2163, %v2162
      %s2180 = scalar_lea.vmem %s1, 10
      %v2181 = vld [vmem:[%s2180] sm:$0x3]
      %v2183 = vsel %vm494, %v2164, 0
      %v2186 = vsel %vm494, %v2165, 0
      %v2189 = vsel %vm494, %v2166, 0
      %v2192 = vsel %vm494, %v2167, 0
      %v2195 = vsel %vm494, %v2168, 0
      %v2198 = vsel %vm494, %v2169, 0
      %v2201 = vsel %vm494, %v2170, 0
      %v2204 = vsel %vm494, %v2171, 0
      %v2207 = vsel %vm494, %v2172, 0
      %v2210 = vsel %vm494, %v2173, 0
      %v2213 = vsel %vm494, %v2174, 0
      %v2216 = vsel %vm494, %v2175, 0
      %v2219 = vsel %vm494, %v2176, 0
      %v2222 = vsel %vm494, %v2177, 0
      %v2225 = vsel %vm494, %v2178, 0
      %v2228 = vsel %vm494, %v2179, 0
      %v2231 = vand.u32 %v2181, %v873
      %2233 = vmatprep.subr.bf16.mxu0 0
      %2234 = vmatpush1.bf16.msra.mxu0 %v2231
      %2235 = vmatprep.subr.bf16.mxu0 0
      %2236 = vmatpush1.bf16.msra.mxu0 0
      %2237 = vmatprep.subr.bf16.mxu0 0
      %2238 = vmatpush1.bf16.msra.mxu0 0
      %2239 = vmatprep.subr.bf16.mxu0 0
      %2240 = vmatpush1.bf16.msra.mxu0 0
      %2241 = vmatprep.subr.bf16.mxu0 0
      %2242 = vmatpush1.bf16.msra.mxu0 0
      %2243 = vmatprep.subr.bf16.mxu0 0
      %2244 = vmatpush1.bf16.msra.mxu0 0
      %2245 = vmatprep.subr.bf16.mxu0 0
      %2246 = vmatpush1.bf16.msra.mxu0 0
      %2247 = vmatprep.subr.bf16.mxu0 0
      %2248 = vmatpush1.bf16.msra.mxu0 0
      %2249 = vmatprep.subr.bf16.mxu0 0
      %2250 = vmatpush1.bf16.msra.mxu0 0
      %2251 = vmatprep.subr.bf16.mxu0 0
      %2252 = vmatpush1.bf16.msra.mxu0 0
      %2253 = vmatprep.subr.bf16.mxu0 0
      %2254 = vmatpush1.bf16.msra.mxu0 0
      %2255 = vmatprep.subr.bf16.mxu0 0
      %2256 = vmatpush1.bf16.msra.mxu0 0
      %2257 = vmatprep.subr.bf16.mxu0 0
      %2258 = vmatpush1.bf16.msra.mxu0 0
      %2259 = vmatprep.subr.bf16.mxu0 0
      %2260 = vmatpush1.bf16.msra.mxu0 0
      %2261 = vmatprep.subr.bf16.mxu0 0
      %2262 = vmatpush1.bf16.msra.mxu0 0
      %2263 = vmatprep.subr.bf16.mxu0 0
      %2264 = vmatpush1.bf16.msra.mxu0 0
      %2265 = vmatprep.mubr.bf16.mxu0 0
      %2266 = vmatmul.mubr.bf16.gmra.mrb[0].mxu0 %v2183
      %v2267 = vpop.f32.mrb[0].mxu0
      %v2268 = vadd.f32 0.0, %v2267
      %v2269 = vpop.f32.mrb[0].mxu0
      %v2270 = vpop.f32.mrb[0].mxu0
      %v2271 = vadd.f32 0.0, %v2270
      %v2272 = vpop.f32.mrb[0].mxu0
      %2273 = vmatprep.mubr.bf16.mxu0 0
      %2274 = vmatmul.mubr.bf16.gmra.mrb[0].mxu0 %v2186
      %v2275 = vpop.f32.mrb[0].mxu0
      %v2276 = vadd.f32 0.0, %v2275
      %v2277 = vpop.f32.mrb[0].mxu0
      %v2278 = vpop.f32.mrb[0].mxu0
      %v2279 = vadd.f32 0.0, %v2278
      %v2280 = vpop.f32.mrb[0].mxu0
      %2281 = vmatprep.mubr.bf16.mxu0 0
      %2282 = vmatmul.mubr.bf16.gmra.mrb[0].mxu0 %v2189
      %v2283 = vpop.f32.mrb[0].mxu0
      %v2284 = vadd.f32 0.0, %v2283
      %v2285 = vpop.f32.mrb[0].mxu0
      %v2286 = vpop.f32.mrb[0].mxu0
      %v2287 = vadd.f32 0.0, %v2286
      %v2288 = vpop.f32.mrb[0].mxu0
      %2289 = vmatprep.mubr.bf16.mxu0 0
      %2290 = vmatmul.mubr.bf16.gmra.mrb[0].mxu0 %v2192
      %v2291 = vpop.f32.mrb[0].mxu0
      %v2292 = vadd.f32 0.0, %v2291
      %v2293 = vpop.f32.mrb[0].mxu0
      %v2294 = vpop.f32.mrb[0].mxu0
      %v2295 = vadd.f32 0.0, %v2294
      %v2296 = vpop.f32.mrb[0].mxu0
      %2297 = vmatprep.mubr.bf16.mxu0 0
      %2298 = vmatmul.mubr.bf16.gmra.mrb[0].mxu0 %v2195
      %v2299 = vpop.f32.mrb[0].mxu0
      %v2300 = vadd.f32 0.0, %v2299
      %v2301 = vpop.f32.mrb[0].mxu0
      %v2302 = vpop.f32.mrb[0].mxu0
      %v2303 = vadd.f32 0.0, %v2302
      %v2304 = vpop.f32.mrb[0].mxu0
      %2305 = vmatprep.mubr.bf16.mxu0 0
      %2306 = vmatmul.mubr.bf16.gmra.mrb[0].mxu0 %v2198
      %v2307 = vpop.f32.mrb[0].mxu0
      %v2308 = vadd.f32 0.0, %v2307
      %v2309 = vpop.f32.mrb[0].mxu0
      %v2310 = vpop.f32.mrb[0].mxu0
      %v2311 = vadd.f32 0.0, %v2310
      %v2312 = vpop.f32.mrb[0].mxu0
      %2313 = vmatprep.mubr.bf16.mxu0 0
      %2314 = vmatmul.mubr.bf16.gmra.mrb[0].mxu0 %v2201
      %v2315 = vpop.f32.mrb[0].mxu0
      %v2316 = vadd.f32 0.0, %v2315
      %v2317 = vpop.f32.mrb[0].mxu0
      %v2318 = vpop.f32.mrb[0].mxu0
      %v2319 = vadd.f32 0.0, %v2318
      %v2320 = vpop.f32.mrb[0].mxu0
      %2321 = vmatprep.mubr.bf16.mxu0 0
      %2322 = vmatmul.mubr.bf16.gmra.mrb[0].mxu0 %v2204
      %v2323 = vpop.f32.mrb[0].mxu0
      %v2324 = vadd.f32 0.0, %v2323
      %v2325 = vpop.f32.mrb[0].mxu0
      %v2326 = vpop.f32.mrb[0].mxu0
      %v2327 = vadd.f32 0.0, %v2326
      %v2328 = vpop.f32.mrb[0].mxu0
      %2329 = vmatprep.mubr.bf16.mxu0 0
      %2330 = vmatmul.mubr.bf16.gmra.mrb[0].mxu0 %v2207
      %v2331 = vpop.f32.mrb[0].mxu0
      %v2332 = vadd.f32 0.0, %v2331
      %v2333 = vpop.f32.mrb[0].mxu0
      %v2334 = vpop.f32.mrb[0].mxu0
      %v2335 = vadd.f32 0.0, %v2334
      %v2336 = vpop.f32.mrb[0].mxu0
      %2337 = vmatprep.mubr.bf16.mxu0 0
      %2338 = vmatmul.mubr.bf16.gmra.mrb[0].mxu0 %v2210
      %v2339 = vpop.f32.mrb[0].mxu0
      %v2340 = vadd.f32 0.0, %v2339
      %v2341 = vpop.f32.mrb[0].mxu0
      %v2342 = vpop.f32.mrb[0].mxu0
      %v2343 = vadd.f32 0.0, %v2342
      %v2344 = vpop.f32.mrb[0].mxu0
      %2345 = vmatprep.mubr.bf16.mxu0 0
      %2346 = vmatmul.mubr.bf16.gmra.mrb[0].mxu0 %v2213
      %v2347 = vpop.f32.mrb[0].mxu0
      %v2348 = vadd.f32 0.0, %v2347
      %v2349 = vpop.f32.mrb[0].mxu0
      %v2350 = vpop.f32.mrb[0].mxu0
      %v2351 = vadd.f32 0.0, %v2350
      %v2352 = vpop.f32.mrb[0].mxu0
      %2353 = vmatprep.mubr.bf16.mxu0 0
      %2354 = vmatmul.mubr.bf16.gmra.mrb[0].mxu0 %v2216
      %v2355 = vpop.f32.mrb[0].mxu0
      %v2356 = vadd.f32 0.0, %v2355
      %v2357 = vpop.f32.mrb[0].mxu0
      %v2358 = vpop.f32.mrb[0].mxu0
      %v2359 = vadd.f32 0.0, %v2358
      %v2360 = vpop.f32.mrb[0].mxu0
      %2361 = vmatprep.mubr.bf16.mxu0 0
      %2362 = vmatmul.mubr.bf16.gmra.mrb[0].mxu0 %v2219
      %v2363 = vpop.f32.mrb[0].mxu0
      %v2364 = vadd.f32 0.0, %v2363
      %v2365 = vpop.f32.mrb[0].mxu0
      %v2366 = vpop.f32.mrb[0].mxu0
      %v2367 = vadd.f32 0.0, %v2366
      %v2368 = vpop.f32.mrb[0].mxu0
      %2369 = vmatprep.mubr.bf16.mxu0 0
      %2370 = vmatmul.mubr.bf16.gmra.mrb[0].mxu0 %v2222
      %v2371 = vpop.f32.mrb[0].mxu0
      %v2372 = vadd.f32 0.0, %v2371
      %v2373 = vpop.f32.mrb[0].mxu0
      %v2374 = vpop.f32.mrb[0].mxu0
      %v2375 = vadd.f32 0.0, %v2374
      %v2376 = vpop.f32.mrb[0].mxu0
      %2377 = vmatprep.mubr.bf16.mxu0 0
      %2378 = vmatmul.mubr.bf16.gmra.mrb[0].mxu0 %v2225
      %v2379 = vpop.f32.mrb[0].mxu0
      %v2380 = vadd.f32 0.0, %v2379
      %v2381 = vpop.f32.mrb[0].mxu0
      %v2382 = vpop.f32.mrb[0].mxu0
      %v2383 = vadd.f32 0.0, %v2382
      %v2384 = vpop.f32.mrb[0].mxu0
      %2385 = vmatprep.mubr.bf16.mxu0 0
      %2386 = vmatmul.mubr.bf16.gmra.mrb[0].mxu0 %v2228
      %v2387 = vpop.f32.mrb[0].mxu0
      %v2388 = vadd.f32 0.0, %v2387
      %v2389 = vpop.f32.mrb[0].mxu0
      %v2390 = vpop.f32.mrb[0].mxu0
      %v2391 = vadd.f32 0.0, %v2390
      %v2392 = vpop.f32.mrb[0].mxu0
      %2393 = vdwg.mxu0
      %v2394 = vadd.f32 %v2100, %v2268
      %v2395 = vadd.f32 %v2101, %v2271
      %v2396 = vadd.f32 %v2102, %v2276
      %v2397 = vadd.f32 %v2103, %v2279
      %v2398 = vadd.f32 %v2104, %v2284
      %v2399 = vadd.f32 %v2105, %v2287
      %v2400 = vadd.f32 %v2106, %v2292
      %v2401 = vadd.f32 %v2107, %v2295
      %v2402 = vadd.f32 %v2108, %v2300
      %v2403 = vadd.f32 %v2109, %v2303
      %v2404 = vadd.f32 %v2110, %v2308
      %v2405 = vadd.f32 %v2111, %v2311
      %v2406 = vadd.f32 %v2112, %v2316
      %v2407 = vadd.f32 %v2113, %v2319
      %v2408 = vadd.f32 %v2114, %v2324
      %v2409 = vadd.f32 %v2115, %v2327
      %v2410 = vadd.f32 %v2116, %v2332
      %v2411 = vadd.f32 %v2117, %v2335
      %v2412 = vadd.f32 %v2118, %v2340
      %v2413 = vadd.f32 %v2119, %v2343
      %v2414 = vadd.f32 %v2120, %v2348
      %v2415 = vadd.f32 %v2121, %v2351
      %v2416 = vadd.f32 %v2122, %v2356
      %v2417 = vadd.f32 %v2123, %v2359
      %v2418 = vadd.f32 %v2124, %v2364
      %v2419 = vadd.f32 %v2125, %v2367
      %v2420 = vadd.f32 %v2126, %v2372
      %v2421 = vadd.f32 %v2127, %v2375
      %v2422 = vadd.f32 %v2128, %v2380
      %v2423 = vadd.f32 %v2129, %v2383
      %v2424 = vadd.f32 %v2130, %v2388
      %v2425 = vadd.f32 %v2131, %v2391
      %s2426 = scalar_lea.vmem [#allocation2], 48
      %v2427 = vld [vmem:[%s2426] sm:$0xff]
      %v2428 = vld [vmem:[%s2426 + $0x8] sm:$0xff]
      %v2429 = vld [vmem:[%s2426 + $0x18] sm:$0xff]
      %v2430 = vld [vmem:[%s2426 + $0x20] sm:$0xff]
      %v2431 = vld [vmem:[%s2426 + $0x30] sm:$0xff]
      %v2432 = vld [vmem:[%s2426 + $0x38] sm:$0xff]
      %v2433 = vld [vmem:[%s2426 + $0x48] sm:$0xff]
      %v2434 = vld [vmem:[%s2426 + $0x50] sm:$0xff]
      %v2435 = vld [vmem:[%s2426 + $0x60] sm:$0xff]
      %v2436 = vld [vmem:[%s2426 + $0x68] sm:$0xff]
      %v2437 = vld [vmem:[%s2426 + $0x78] sm:$0xff]
      %v2438 = vld [vmem:[%s2426 + $0x80] sm:$0xff]
      %v2439 = vld [vmem:[%s2426 + $0x90] sm:$0xff]
      %v2440 = vld [vmem:[%s2426 + $0x98] sm:$0xff]
      %v2441 = vld [vmem:[%s2426 + $0xa8] sm:$0xff]
      %v2442 = vld [vmem:[%s2426 + $0xb0] sm:$0xff]
      %v2443 = vld [vmem:[%s2426 + $0xc0] sm:$0xff]
      %v2444 = vld [vmem:[%s2426 + $0xc8] sm:$0xff]
      %v2445 = vld [vmem:[%s2426 + $0xd8] sm:$0xff]
      %v2446 = vld [vmem:[%s2426 + $0xe0] sm:$0xff]
      %v2447 = vld [vmem:[%s2426 + $0xf0] sm:$0xff]
      %v2448 = vld [vmem:[%s2426 + $0xf8] sm:$0xff]
      %v2449 = vld [vmem:[%s2426 + $0x108] sm:$0xff]
      %v2450 = vld [vmem:[%s2426 + $0x110] sm:$0xff]
      %v2451 = vld [vmem:[%s2426 + $0x120] sm:$0xff]
      %v2452 = vld [vmem:[%s2426 + $0x128] sm:$0xff]
      %v2453 = vld [vmem:[%s2426 + $0x138] sm:$0xff]
      %v2454 = vld [vmem:[%s2426 + $0x140] sm:$0xff]
      %v2455 = vld [vmem:[%s2426 + $0x150] sm:$0xff]
      %v2456 = vld [vmem:[%s2426 + $0x158] sm:$0xff]
      %v2457 = vld [vmem:[%s2426 + $0x168] sm:$0xff]
      %v2458 = vld [vmem:[%s2426 + $0x170] sm:$0xff]
      %v2459 = vpack.c.bf16 %v2428, %v2427
      %v2460 = vpack.c.bf16 %v2430, %v2429
      %v2461 = vpack.c.bf16 %v2432, %v2431
      %v2462 = vpack.c.bf16 %v2434, %v2433
      %v2463 = vpack.c.bf16 %v2436, %v2435
      %v2464 = vpack.c.bf16 %v2438, %v2437
      %v2465 = vpack.c.bf16 %v2440, %v2439
      %v2466 = vpack.c.bf16 %v2442, %v2441
      %v2467 = vpack.c.bf16 %v2444, %v2443
      %v2468 = vpack.c.bf16 %v2446, %v2445
      %v2469 = vpack.c.bf16 %v2448, %v2447
      %v2470 = vpack.c.bf16 %v2450, %v2449
      %v2471 = vpack.c.bf16 %v2452, %v2451
      %v2472 = vpack.c.bf16 %v2454, %v2453
      %v2473 = vpack.c.bf16 %v2456, %v2455
      %v2474 = vpack.c.bf16 %v2458, %v2457
      %s2475 = scalar_lea.vmem %s1, 12
      %v2476 = vld [vmem:[%s2475] sm:$0x3]
      %v2478 = vsel %vm494, %v2459, 0
      %v2481 = vsel %vm494, %v2460, 0
      %v2484 = vsel %vm494, %v2461, 0
      %v2487 = vsel %vm494, %v2462, 0
      %v2490 = vsel %vm494, %v2463, 0
      %v2493 = vsel %vm494, %v2464, 0
      %v2496 = vsel %vm494, %v2465, 0
      %v2499 = vsel %vm494, %v2466, 0
      %v2502 = vsel %vm494, %v2467, 0
      %v2505 = vsel %vm494, %v2468, 0
      %v2508 = vsel %vm494, %v2469, 0
      %v2511 = vsel %vm494, %v2470, 0
      %v2514 = vsel %vm494, %v2471, 0
      %v2517 = vsel %vm494, %v2472, 0
      %v2520 = vsel %vm494, %v2473, 0
      %v2523 = vsel %vm494, %v2474, 0
      %v2526 = vand.u32 %v2476, %v873
      %2528 = vmatprep.subr.bf16.mxu0 0
      %2529 = vmatpush1.bf16.msra.mxu0 %v2526
      %2530 = vmatprep.subr.bf16.mxu0 0
      %2531 = vmatpush1.bf16.msra.mxu0 0
      %2532 = vmatprep.subr.bf16.mxu0 0
      %2533 = vmatpush1.bf16.msra.mxu0 0
      %2534 = vmatprep.subr.bf16.mxu0 0
      %2535 = vmatpush1.bf16.msra.mxu0 0
      %2536 = vmatprep.subr.bf16.mxu0 0
      %2537 = vmatpush1.bf16.msra.mxu0 0
      %2538 = vmatprep.subr.bf16.mxu0 0
      %2539 = vmatpush1.bf16.msra.mxu0 0
      %2540 = vmatprep.subr.bf16.mxu0 0
      %2541 = vmatpush1.bf16.msra.mxu0 0
      %2542 = vmatprep.subr.bf16.mxu0 0
      %2543 = vmatpush1.bf16.msra.mxu0 0
      %2544 = vmatprep.subr.bf16.mxu0 0
      %2545 = vmatpush1.bf16.msra.mxu0 0
      %2546 = vmatprep.subr.bf16.mxu0 0
      %2547 = vmatpush1.bf16.msra.mxu0 0
      %2548 = vmatprep.subr.bf16.mxu0 0
      %2549 = vmatpush1.bf16.msra.mxu0 0
      %2550 = vmatprep.subr.bf16.mxu0 0
      %2551 = vmatpush1.bf16.msra.mxu0 0
      %2552 = vmatprep.subr.bf16.mxu0 0
      %2553 = vmatpush1.bf16.msra.mxu0 0
      %2554 = vmatprep.subr.bf16.mxu0 0
      %2555 = vmatpush1.bf16.msra.mxu0 0
      %2556 = vmatprep.subr.bf16.mxu0 0
      %2557 = vmatpush1.bf16.msra.mxu0 0
      %2558 = vmatprep.subr.bf16.mxu0 0
      %2559 = vmatpush1.bf16.msra.mxu0 0
      %2560 = vmatprep.mubr.bf16.mxu0 0
      %2561 = vmatmul.mubr.bf16.gmra.mrb[0].mxu0 %v2478
      %v2562 = vpop.f32.mrb[0].mxu0
      %v2563 = vadd.f32 0.0, %v2562
      %v2564 = vpop.f32.mrb[0].mxu0
      %v2565 = vpop.f32.mrb[0].mxu0
      %v2566 = vadd.f32 0.0, %v2565
      %v2567 = vpop.f32.mrb[0].mxu0
      %2568 = vmatprep.mubr.bf16.mxu0 0
      %2569 = vmatmul.mubr.bf16.gmra.mrb[0].mxu0 %v2481
      %v2570 = vpop.f32.mrb[0].mxu0
      %v2571 = vadd.f32 0.0, %v2570
      %v2572 = vpop.f32.mrb[0].mxu0
      %v2573 = vpop.f32.mrb[0].mxu0
      %v2574 = vadd.f32 0.0, %v2573
      %v2575 = vpop.f32.mrb[0].mxu0
      %2576 = vmatprep.mubr.bf16.mxu0 0
      %2577 = vmatmul.mubr.bf16.gmra.mrb[0].mxu0 %v2484
      %v2578 = vpop.f32.mrb[0].mxu0
      %v2579 = vadd.f32 0.0, %v2578
      %v2580 = vpop.f32.mrb[0].mxu0
      %v2581 = vpop.f32.mrb[0].mxu0
      %v2582 = vadd.f32 0.0, %v2581
      %v2583 = vpop.f32.mrb[0].mxu0
      %2584 = vmatprep.mubr.bf16.mxu0 0
      %2585 = vmatmul.mubr.bf16.gmra.mrb[0].mxu0 %v2487
      %v2586 = vpop.f32.mrb[0].mxu0
      %v2587 = vadd.f32 0.0, %v2586
      %v2588 = vpop.f32.mrb[0].mxu0
      %v2589 = vpop.f32.mrb[0].mxu0
      %v2590 = vadd.f32 0.0, %v2589
      %v2591 = vpop.f32.mrb[0].mxu0
      %2592 = vmatprep.mubr.bf16.mxu0 0
      %2593 = vmatmul.mubr.bf16.gmra.mrb[0].mxu0 %v2490
      %v2594 = vpop.f32.mrb[0].mxu0
      %v2595 = vadd.f32 0.0, %v2594
      %v2596 = vpop.f32.mrb[0].mxu0
      %v2597 = vpop.f32.mrb[0].mxu0
      %v2598 = vadd.f32 0.0, %v2597
      %v2599 = vpop.f32.mrb[0].mxu0
      %2600 = vmatprep.mubr.bf16.mxu0 0
      %2601 = vmatmul.mubr.bf16.gmra.mrb[0].mxu0 %v2493
      %v2602 = vpop.f32.mrb[0].mxu0
      %v2603 = vadd.f32 0.0, %v2602
      %v2604 = vpop.f32.mrb[0].mxu0
      %v2605 = vpop.f32.mrb[0].mxu0
      %v2606 = vadd.f32 0.0, %v2605
      %v2607 = vpop.f32.mrb[0].mxu0
      %2608 = vmatprep.mubr.bf16.mxu0 0
      %2609 = vmatmul.mubr.bf16.gmra.mrb[0].mxu0 %v2496
      %v2610 = vpop.f32.mrb[0].mxu0
      %v2611 = vadd.f32 0.0, %v2610
      %v2612 = vpop.f32.mrb[0].mxu0
      %v2613 = vpop.f32.mrb[0].mxu0
      %v2614 = vadd.f32 0.0, %v2613
      %v2615 = vpop.f32.mrb[0].mxu0
      %2616 = vmatprep.mubr.bf16.mxu0 0
      %2617 = vmatmul.mubr.bf16.gmra.mrb[0].mxu0 %v2499
      %v2618 = vpop.f32.mrb[0].mxu0
      %v2619 = vadd.f32 0.0, %v2618
      %v2620 = vpop.f32.mrb[0].mxu0
      %v2621 = vpop.f32.mrb[0].mxu0
      %v2622 = vadd.f32 0.0, %v2621
      %v2623 = vpop.f32.mrb[0].mxu0
      %2624 = vmatprep.mubr.bf16.mxu0 0
      %2625 = vmatmul.mubr.bf16.gmra.mrb[0].mxu0 %v2502
      %v2626 = vpop.f32.mrb[0].mxu0
      %v2627 = vadd.f32 0.0, %v2626
      %v2628 = vpop.f32.mrb[0].mxu0
      %v2629 = vpop.f32.mrb[0].mxu0
      %v2630 = vadd.f32 0.0, %v2629
      %v2631 = vpop.f32.mrb[0].mxu0
      %2632 = vmatprep.mubr.bf16.mxu0 0
      %2633 = vmatmul.mubr.bf16.gmra.mrb[0].mxu0 %v2505
      %v2634 = vpop.f32.mrb[0].mxu0
      %v2635 = vadd.f32 0.0, %v2634
      %v2636 = vpop.f32.mrb[0].mxu0
      %v2637 = vpop.f32.mrb[0].mxu0
      %v2638 = vadd.f32 0.0, %v2637
      %v2639 = vpop.f32.mrb[0].mxu0
      %2640 = vmatprep.mubr.bf16.mxu0 0
      %2641 = vmatmul.mubr.bf16.gmra.mrb[0].mxu0 %v2508
      %v2642 = vpop.f32.mrb[0].mxu0
      %v2643 = vadd.f32 0.0, %v2642
      %v2644 = vpop.f32.mrb[0].mxu0
      %v2645 = vpop.f32.mrb[0].mxu0
      %v2646 = vadd.f32 0.0, %v2645
      %v2647 = vpop.f32.mrb[0].mxu0
      %2648 = vmatprep.mubr.bf16.mxu0 0
      %2649 = vmatmul.mubr.bf16.gmra.mrb[0].mxu0 %v2511
      %v2650 = vpop.f32.mrb[0].mxu0
      %v2651 = vadd.f32 0.0, %v2650
      %v2652 = vpop.f32.mrb[0].mxu0
      %v2653 = vpop.f32.mrb[0].mxu0
      %v2654 = vadd.f32 0.0, %v2653
      %v2655 = vpop.f32.mrb[0].mxu0
      %2656 = vmatprep.mubr.bf16.mxu0 0
      %2657 = vmatmul.mubr.bf16.gmra.mrb[0].mxu0 %v2514
      %v2658 = vpop.f32.mrb[0].mxu0
      %v2659 = vadd.f32 0.0, %v2658
      %v2660 = vpop.f32.mrb[0].mxu0
      %v2661 = vpop.f32.mrb[0].mxu0
      %v2662 = vadd.f32 0.0, %v2661
      %v2663 = vpop.f32.mrb[0].mxu0
      %2664 = vmatprep.mubr.bf16.mxu0 0
      %2665 = vmatmul.mubr.bf16.gmra.mrb[0].mxu0 %v2517
      %v2666 = vpop.f32.mrb[0].mxu0
      %v2667 = vadd.f32 0.0, %v2666
      %v2668 = vpop.f32.mrb[0].mxu0
      %v2669 = vpop.f32.mrb[0].mxu0
      %v2670 = vadd.f32 0.0, %v2669
      %v2671 = vpop.f32.mrb[0].mxu0
      %2672 = vmatprep.mubr.bf16.mxu0 0
      %2673 = vmatmul.mubr.bf16.gmra.mrb[0].mxu0 %v2520
      %v2674 = vpop.f32.mrb[0].mxu0
      %v2675 = vadd.f32 0.0, %v2674
      %v2676 = vpop.f32.mrb[0].mxu0
      %v2677 = vpop.f32.mrb[0].mxu0
      %v2678 = vadd.f32 0.0, %v2677
      %v2679 = vpop.f32.mrb[0].mxu0
      %2680 = vmatprep.mubr.bf16.mxu0 0
      %2681 = vmatmul.mubr.bf16.gmra.mrb[0].mxu0 %v2523
      %v2682 = vpop.f32.mrb[0].mxu0
      %v2683 = vadd.f32 0.0, %v2682
      %v2684 = vpop.f32.mrb[0].mxu0
      %v2685 = vpop.f32.mrb[0].mxu0
      %v2686 = vadd.f32 0.0, %v2685
      %v2687 = vpop.f32.mrb[0].mxu0
      %2688 = vdwg.mxu0
      %v2689 = vadd.f32 %v2394, %v2563
      %v2690 = vadd.f32 %v2395, %v2566
      %v2691 = vadd.f32 %v2396, %v2571
      %v2692 = vadd.f32 %v2397, %v2574
      %v2693 = vadd.f32 %v2398, %v2579
      %v2694 = vadd.f32 %v2399, %v2582
      %v2695 = vadd.f32 %v2400, %v2587
      %v2696 = vadd.f32 %v2401, %v2590
      %v2697 = vadd.f32 %v2402, %v2595
      %v2698 = vadd.f32 %v2403, %v2598
      %v2699 = vadd.f32 %v2404, %v2603
      %v2700 = vadd.f32 %v2405, %v2606
      %v2701 = vadd.f32 %v2406, %v2611
      %v2702 = vadd.f32 %v2407, %v2614
      %v2703 = vadd.f32 %v2408, %v2619
      %v2704 = vadd.f32 %v2409, %v2622
      %v2705 = vadd.f32 %v2410, %v2627
      %v2706 = vadd.f32 %v2411, %v2630
      %v2707 = vadd.f32 %v2412, %v2635
      %v2708 = vadd.f32 %v2413, %v2638
      %v2709 = vadd.f32 %v2414, %v2643
      %v2710 = vadd.f32 %v2415, %v2646
      %v2711 = vadd.f32 %v2416, %v2651
      %v2712 = vadd.f32 %v2417, %v2654
      %v2713 = vadd.f32 %v2418, %v2659
      %v2714 = vadd.f32 %v2419, %v2662
      %v2715 = vadd.f32 %v2420, %v2667
      %v2716 = vadd.f32 %v2421, %v2670
      %v2717 = vadd.f32 %v2422, %v2675
      %v2718 = vadd.f32 %v2423, %v2678
      %v2719 = vadd.f32 %v2424, %v2683
      %v2720 = vadd.f32 %v2425, %v2686
      %v2721 = vld [vmem:[%s2426 + $0x1] sm:$0xff]
      %v2722 = vld [vmem:[%s2426 + $0x9] sm:$0xff]
      %v2723 = vld [vmem:[%s2426 + $0x19] sm:$0xff]
      %v2724 = vld [vmem:[%s2426 + $0x21] sm:$0xff]
      %v2725 = vld [vmem:[%s2426 + $0x31] sm:$0xff]
      %v2726 = vld [vmem:[%s2426 + $0x39] sm:$0xff]
      %v2727 = vld [vmem:[%s2426 + $0x49] sm:$0xff]
      %v2728 = vld [vmem:[%s2426 + $0x51] sm:$0xff]
      %v2729 = vld [vmem:[%s2426 + $0x61] sm:$0xff]
      %v2730 = vld [vmem:[%s2426 + $0x69] sm:$0xff]
      %v2731 = vld [vmem:[%s2426 + $0x79] sm:$0xff]
      %v2732 = vld [vmem:[%s2426 + $0x81] sm:$0xff]
      %v2733 = vld [vmem:[%s2426 + $0x91] sm:$0xff]
      %v2734 = vld [vmem:[%s2426 + $0x99] sm:$0xff]
      %v2735 = vld [vmem:[%s2426 + $0xa9] sm:$0xff]
      %v2736 = vld [vmem:[%s2426 + $0xb1] sm:$0xff]
      %v2737 = vld [vmem:[%s2426 + $0xc1] sm:$0xff]
      %v2738 = vld [vmem:[%s2426 + $0xc9] sm:$0xff]
      %v2739 = vld [vmem:[%s2426 + $0xd9] sm:$0xff]
      %v2740 = vld [vmem:[%s2426 + $0xe1] sm:$0xff]
      %v2741 = vld [vmem:[%s2426 + $0xf1] sm:$0xff]
      %v2742 = vld [vmem:[%s2426 + $0xf9] sm:$0xff]
      %v2743 = vld [vmem:[%s2426 + $0x109] sm:$0xff]
      %v2744 = vld [vmem:[%s2426 + $0x111] sm:$0xff]
      %v2745 = vld [vmem:[%s2426 + $0x121] sm:$0xff]
      %v2746 = vld [vmem:[%s2426 + $0x129] sm:$0xff]
      %v2747 = vld [vmem:[%s2426 + $0x139] sm:$0xff]
      %v2748 = vld [vmem:[%s2426 + $0x141] sm:$0xff]
      %v2749 = vld [vmem:[%s2426 + $0x151] sm:$0xff]
      %v2750 = vld [vmem:[%s2426 + $0x159] sm:$0xff]
      %v2751 = vld [vmem:[%s2426 + $0x169] sm:$0xff]
      %v2752 = vld [vmem:[%s2426 + $0x171] sm:$0xff]
      %v2753 = vpack.c.bf16 %v2722, %v2721
      %v2754 = vpack.c.bf16 %v2724, %v2723
      %v2755 = vpack.c.bf16 %v2726, %v2725
      %v2756 = vpack.c.bf16 %v2728, %v2727
      %v2757 = vpack.c.bf16 %v2730, %v2729
      %v2758 = vpack.c.bf16 %v2732, %v2731
      %v2759 = vpack.c.bf16 %v2734, %v2733
      %v2760 = vpack.c.bf16 %v2736, %v2735
      %v2761 = vpack.c.bf16 %v2738, %v2737
      %v2762 = vpack.c.bf16 %v2740, %v2739
      %v2763 = vpack.c.bf16 %v2742, %v2741
      %v2764 = vpack.c.bf16 %v2744, %v2743
      %v2765 = vpack.c.bf16 %v2746, %v2745
      %v2766 = vpack.c.bf16 %v2748, %v2747
      %v2767 = vpack.c.bf16 %v2750, %v2749
      %v2768 = vpack.c.bf16 %v2752, %v2751
      %s2769 = scalar_lea.vmem %s1, 14
      %v2770 = vld [vmem:[%s2769] sm:$0x3]
      %v2772 = vsel %vm494, %v2753, 0
      %v2775 = vsel %vm494, %v2754, 0
      %v2778 = vsel %vm494, %v2755, 0
      %v2781 = vsel %vm494, %v2756, 0
      %v2784 = vsel %vm494, %v2757, 0
      %v2787 = vsel %vm494, %v2758, 0
      %v2790 = vsel %vm494, %v2759, 0
      %v2793 = vsel %vm494, %v2760, 0
      %v2796 = vsel %vm494, %v2761, 0
      %v2799 = vsel %vm494, %v2762, 0
      %v2802 = vsel %vm494, %v2763, 0
      %v2805 = vsel %vm494, %v2764, 0
      %v2808 = vsel %vm494, %v2765, 0
      %v2811 = vsel %vm494, %v2766, 0
      %v2814 = vsel %vm494, %v2767, 0
      %v2817 = vsel %vm494, %v2768, 0
      %v2820 = vand.u32 %v2770, %v873
      %2822 = vmatprep.subr.bf16.mxu0 0
      %2823 = vmatpush1.bf16.msra.mxu0 %v2820
      %2824 = vmatprep.subr.bf16.mxu0 0
      %2825 = vmatpush1.bf16.msra.mxu0 0
      %2826 = vmatprep.subr.bf16.mxu0 0
      %2827 = vmatpush1.bf16.msra.mxu0 0
      %2828 = vmatprep.subr.bf16.mxu0 0
      %2829 = vmatpush1.bf16.msra.mxu0 0
      %2830 = vmatprep.subr.bf16.mxu0 0
      %2831 = vmatpush1.bf16.msra.mxu0 0
      %2832 = vmatprep.subr.bf16.mxu0 0
      %2833 = vmatpush1.bf16.msra.mxu0 0
      %2834 = vmatprep.subr.bf16.mxu0 0
      %2835 = vmatpush1.bf16.msra.mxu0 0
      %2836 = vmatprep.subr.bf16.mxu0 0
      %2837 = vmatpush1.bf16.msra.mxu0 0
      %2838 = vmatprep.subr.bf16.mxu0 0
      %2839 = vmatpush1.bf16.msra.mxu0 0
      %2840 = vmatprep.subr.bf16.mxu0 0
      %2841 = vmatpush1.bf16.msra.mxu0 0
      %2842 = vmatprep.subr.bf16.mxu0 0
      %2843 = vmatpush1.bf16.msra.mxu0 0
      %2844 = vmatprep.subr.bf16.mxu0 0
      %2845 = vmatpush1.bf16.msra.mxu0 0
      %2846 = vmatprep.subr.bf16.mxu0 0
      %2847 = vmatpush1.bf16.msra.mxu0 0
      %2848 = vmatprep.subr.bf16.mxu0 0
      %2849 = vmatpush1.bf16.msra.mxu0 0
      %2850 = vmatprep.subr.bf16.mxu0 0
      %2851 = vmatpush1.bf16.msra.mxu0 0
      %2852 = vmatprep.subr.bf16.mxu0 0
      %2853 = vmatpush1.bf16.msra.mxu0 0
      %2854 = vmatprep.mubr.bf16.mxu0 0
      %2855 = vmatmul.mubr.bf16.gmra.mrb[0].mxu0 %v2772
      %v2856 = vpop.f32.mrb[0].mxu0
      %v2857 = vadd.f32 0.0, %v2856
      %v2858 = vpop.f32.mrb[0].mxu0
      %v2859 = vpop.f32.mrb[0].mxu0
      %v2860 = vadd.f32 0.0, %v2859
      %v2861 = vpop.f32.mrb[0].mxu0
      %2862 = vmatprep.mubr.bf16.mxu0 0
      %2863 = vmatmul.mubr.bf16.gmra.mrb[0].mxu0 %v2775
      %v2864 = vpop.f32.mrb[0].mxu0
      %v2865 = vadd.f32 0.0, %v2864
      %v2866 = vpop.f32.mrb[0].mxu0
      %v2867 = vpop.f32.mrb[0].mxu0
      %v2868 = vadd.f32 0.0, %v2867
      %v2869 = vpop.f32.mrb[0].mxu0
      %2870 = vmatprep.mubr.bf16.mxu0 0
      %2871 = vmatmul.mubr.bf16.gmra.mrb[0].mxu0 %v2778
      %v2872 = vpop.f32.mrb[0].mxu0
      %v2873 = vadd.f32 0.0, %v2872
      %v2874 = vpop.f32.mrb[0].mxu0
      %v2875 = vpop.f32.mrb[0].mxu0
      %v2876 = vadd.f32 0.0, %v2875
      %v2877 = vpop.f32.mrb[0].mxu0
      %2878 = vmatprep.mubr.bf16.mxu0 0
      %2879 = vmatmul.mubr.bf16.gmra.mrb[0].mxu0 %v2781
      %v2880 = vpop.f32.mrb[0].mxu0
      %v2881 = vadd.f32 0.0, %v2880
      %v2882 = vpop.f32.mrb[0].mxu0
      %v2883 = vpop.f32.mrb[0].mxu0
      %v2884 = vadd.f32 0.0, %v2883
      %v2885 = vpop.f32.mrb[0].mxu0
      %2886 = vmatprep.mubr.bf16.mxu0 0
      %2887 = vmatmul.mubr.bf16.gmra.mrb[0].mxu0 %v2784
      %v2888 = vpop.f32.mrb[0].mxu0
      %v2889 = vadd.f32 0.0, %v2888
      %v2890 = vpop.f32.mrb[0].mxu0
      %v2891 = vpop.f32.mrb[0].mxu0
      %v2892 = vadd.f32 0.0, %v2891
      %v2893 = vpop.f32.mrb[0].mxu0
      %2894 = vmatprep.mubr.bf16.mxu0 0
      %2895 = vmatmul.mubr.bf16.gmra.mrb[0].mxu0 %v2787
      %v2896 = vpop.f32.mrb[0].mxu0
      %v2897 = vadd.f32 0.0, %v2896
      %v2898 = vpop.f32.mrb[0].mxu0
      %v2899 = vpop.f32.mrb[0].mxu0
      %v2900 = vadd.f32 0.0, %v2899
      %v2901 = vpop.f32.mrb[0].mxu0
      %2902 = vmatprep.mubr.bf16.mxu0 0
      %2903 = vmatmul.mubr.bf16.gmra.mrb[0].mxu0 %v2790
      %v2904 = vpop.f32.mrb[0].mxu0
      %v2905 = vadd.f32 0.0, %v2904
      %v2906 = vpop.f32.mrb[0].mxu0
      %v2907 = vpop.f32.mrb[0].mxu0
      %v2908 = vadd.f32 0.0, %v2907
      %v2909 = vpop.f32.mrb[0].mxu0
      %2910 = vmatprep.mubr.bf16.mxu0 0
      %2911 = vmatmul.mubr.bf16.gmra.mrb[0].mxu0 %v2793
      %v2912 = vpop.f32.mrb[0].mxu0
      %v2913 = vadd.f32 0.0, %v2912
      %v2914 = vpop.f32.mrb[0].mxu0
      %v2915 = vpop.f32.mrb[0].mxu0
      %v2916 = vadd.f32 0.0, %v2915
      %v2917 = vpop.f32.mrb[0].mxu0
      %2918 = vmatprep.mubr.bf16.mxu0 0
      %2919 = vmatmul.mubr.bf16.gmra.mrb[0].mxu0 %v2796
      %v2920 = vpop.f32.mrb[0].mxu0
      %v2921 = vadd.f32 0.0, %v2920
      %v2922 = vpop.f32.mrb[0].mxu0
      %v2923 = vpop.f32.mrb[0].mxu0
      %v2924 = vadd.f32 0.0, %v2923
      %v2925 = vpop.f32.mrb[0].mxu0
      %2926 = vmatprep.mubr.bf16.mxu0 0
      %2927 = vmatmul.mubr.bf16.gmra.mrb[0].mxu0 %v2799
      %v2928 = vpop.f32.mrb[0].mxu0
      %v2929 = vadd.f32 0.0, %v2928
      %v2930 = vpop.f32.mrb[0].mxu0
      %v2931 = vpop.f32.mrb[0].mxu0
      %v2932 = vadd.f32 0.0, %v2931
      %v2933 = vpop.f32.mrb[0].mxu0
      %2934 = vmatprep.mubr.bf16.mxu0 0
      %2935 = vmatmul.mubr.bf16.gmra.mrb[0].mxu0 %v2802
      %v2936 = vpop.f32.mrb[0].mxu0
      %v2937 = vadd.f32 0.0, %v2936
      %v2938 = vpop.f32.mrb[0].mxu0
      %v2939 = vpop.f32.mrb[0].mxu0
      %v2940 = vadd.f32 0.0, %v2939
      %v2941 = vpop.f32.mrb[0].mxu0
      %2942 = vmatprep.mubr.bf16.mxu0 0
      %2943 = vmatmul.mubr.bf16.gmra.mrb[0].mxu0 %v2805
      %v2944 = vpop.f32.mrb[0].mxu0
      %v2945 = vadd.f32 0.0, %v2944
      %v2946 = vpop.f32.mrb[0].mxu0
      %v2947 = vpop.f32.mrb[0].mxu0
      %v2948 = vadd.f32 0.0, %v2947
      %v2949 = vpop.f32.mrb[0].mxu0
      %2950 = vmatprep.mubr.bf16.mxu0 0
      %2951 = vmatmul.mubr.bf16.gmra.mrb[0].mxu0 %v2808
      %v2952 = vpop.f32.mrb[0].mxu0
      %v2953 = vadd.f32 0.0, %v2952
      %v2954 = vpop.f32.mrb[0].mxu0
      %v2955 = vpop.f32.mrb[0].mxu0
      %v2956 = vadd.f32 0.0, %v2955
      %v2957 = vpop.f32.mrb[0].mxu0
      %2958 = vmatprep.mubr.bf16.mxu0 0
      %2959 = vmatmul.mubr.bf16.gmra.mrb[0].mxu0 %v2811
      %v2960 = vpop.f32.mrb[0].mxu0
      %v2961 = vadd.f32 0.0, %v2960
      %v2962 = vpop.f32.mrb[0].mxu0
      %v2963 = vpop.f32.mrb[0].mxu0
      %v2964 = vadd.f32 0.0, %v2963
      %v2965 = vpop.f32.mrb[0].mxu0
      %2966 = vmatprep.mubr.bf16.mxu0 0
      %2967 = vmatmul.mubr.bf16.gmra.mrb[0].mxu0 %v2814
      %v2968 = vpop.f32.mrb[0].mxu0
      %v2969 = vadd.f32 0.0, %v2968
      %v2970 = vpop.f32.mrb[0].mxu0
      %v2971 = vpop.f32.mrb[0].mxu0
      %v2972 = vadd.f32 0.0, %v2971
      %v2973 = vpop.f32.mrb[0].mxu0
      %2974 = vmatprep.mubr.bf16.mxu0 0
      %2975 = vmatmul.mubr.bf16.gmra.mrb[0].mxu0 %v2817
      %v2976 = vpop.f32.mrb[0].mxu0
      %v2977 = vadd.f32 0.0, %v2976
      %v2978 = vpop.f32.mrb[0].mxu0
      %v2979 = vpop.f32.mrb[0].mxu0
      %v2980 = vadd.f32 0.0, %v2979
      %v2981 = vpop.f32.mrb[0].mxu0
      %2982 = vdwg.mxu0
      %v2983 = vadd.f32 %v2689, %v2857
      %v2984 = vadd.f32 %v2690, %v2860
      %v2985 = vadd.f32 %v2691, %v2865
      %v2986 = vadd.f32 %v2692, %v2868
      %v2987 = vadd.f32 %v2693, %v2873
      %v2988 = vadd.f32 %v2694, %v2876
      %v2989 = vadd.f32 %v2695, %v2881
      %v2990 = vadd.f32 %v2696, %v2884
      %v2991 = vadd.f32 %v2697, %v2889
      %v2992 = vadd.f32 %v2698, %v2892
      %v2993 = vadd.f32 %v2699, %v2897
      %v2994 = vadd.f32 %v2700, %v2900
      %v2995 = vadd.f32 %v2701, %v2905
      %v2996 = vadd.f32 %v2702, %v2908
      %v2997 = vadd.f32 %v2703, %v2913
      %v2998 = vadd.f32 %v2704, %v2916
      %v2999 = vadd.f32 %v2705, %v2921
      %v3000 = vadd.f32 %v2706, %v2924
      %v3001 = vadd.f32 %v2707, %v2929
      %v3002 = vadd.f32 %v2708, %v2932
      %v3003 = vadd.f32 %v2709, %v2937
      %v3004 = vadd.f32 %v2710, %v2940
      %v3005 = vadd.f32 %v2711, %v2945
      %v3006 = vadd.f32 %v2712, %v2948
      %v3007 = vadd.f32 %v2713, %v2953
      %v3008 = vadd.f32 %v2714, %v2956
      %v3009 = vadd.f32 %v2715, %v2961
      %v3010 = vadd.f32 %v2716, %v2964
      %v3011 = vadd.f32 %v2717, %v2969
      %v3012 = vadd.f32 %v2718, %v2972
      %v3013 = vadd.f32 %v2719, %v2977
      %v3014 = vadd.f32 %v2720, %v2980
      %v3015 = vld [vmem:[%s2426 + $0x2] sm:$0xff]
      %v3016 = vld [vmem:[%s2426 + $0xa] sm:$0xff]
      %v3017 = vld [vmem:[%s2426 + $0x1a] sm:$0xff]
      %v3018 = vld [vmem:[%s2426 + $0x22] sm:$0xff]
      %v3019 = vld [vmem:[%s2426 + $0x32] sm:$0xff]
      %v3020 = vld [vmem:[%s2426 + $0x3a] sm:$0xff]
      %v3021 = vld [vmem:[%s2426 + $0x4a] sm:$0xff]
      %v3022 = vld [vmem:[%s2426 + $0x52] sm:$0xff]
      %v3023 = vld [vmem:[%s2426 + $0x62] sm:$0xff]
      %v3024 = vld [vmem:[%s2426 + $0x6a] sm:$0xff]
      %v3025 = vld [vmem:[%s2426 + $0x7a] sm:$0xff]
      %v3026 = vld [vmem:[%s2426 + $0x82] sm:$0xff]
      %v3027 = vld [vmem:[%s2426 + $0x92] sm:$0xff]
      %v3028 = vld [vmem:[%s2426 + $0x9a] sm:$0xff]
      %v3029 = vld [vmem:[%s2426 + $0xaa] sm:$0xff]
      %v3030 = vld [vmem:[%s2426 + $0xb2] sm:$0xff]
      %v3031 = vld [vmem:[%s2426 + $0xc2] sm:$0xff]
      %v3032 = vld [vmem:[%s2426 + $0xca] sm:$0xff]
      %v3033 = vld [vmem:[%s2426 + $0xda] sm:$0xff]
      %v3034 = vld [vmem:[%s2426 + $0xe2] sm:$0xff]
      %v3035 = vld [vmem:[%s2426 + $0xf2] sm:$0xff]
      %v3036 = vld [vmem:[%s2426 + $0xfa] sm:$0xff]
      %v3037 = vld [vmem:[%s2426 + $0x10a] sm:$0xff]
      %v3038 = vld [vmem:[%s2426 + $0x112] sm:$0xff]
      %v3039 = vld [vmem:[%s2426 + $0x122] sm:$0xff]
      %v3040 = vld [vmem:[%s2426 + $0x12a] sm:$0xff]
      %v3041 = vld [vmem:[%s2426 + $0x13a] sm:$0xff]
      %v3042 = vld [vmem:[%s2426 + $0x142] sm:$0xff]
      %v3043 = vld [vmem:[%s2426 + $0x152] sm:$0xff]
      %v3044 = vld [vmem:[%s2426 + $0x15a] sm:$0xff]
      %v3045 = vld [vmem:[%s2426 + $0x16a] sm:$0xff]
      %v3046 = vld [vmem:[%s2426 + $0x172] sm:$0xff]
      %v3047 = vpack.c.bf16 %v3016, %v3015
      %v3048 = vpack.c.bf16 %v3018, %v3017
      %v3049 = vpack.c.bf16 %v3020, %v3019
      %v3050 = vpack.c.bf16 %v3022, %v3021
      %v3051 = vpack.c.bf16 %v3024, %v3023
      %v3052 = vpack.c.bf16 %v3026, %v3025
      %v3053 = vpack.c.bf16 %v3028, %v3027
      %v3054 = vpack.c.bf16 %v3030, %v3029
      %v3055 = vpack.c.bf16 %v3032, %v3031
      %v3056 = vpack.c.bf16 %v3034, %v3033
      %v3057 = vpack.c.bf16 %v3036, %v3035
      %v3058 = vpack.c.bf16 %v3038, %v3037
      %v3059 = vpack.c.bf16 %v3040, %v3039
      %v3060 = vpack.c.bf16 %v3042, %v3041
      %v3061 = vpack.c.bf16 %v3044, %v3043
      %v3062 = vpack.c.bf16 %v3046, %v3045
      %s3063 = scalar_lea.vmem %s1, 16
      %v3064 = vld [vmem:[%s3063] sm:$0x3]
      %v3066 = vsel %vm494, %v3047, 0
      %v3069 = vsel %vm494, %v3048, 0
      %v3072 = vsel %vm494, %v3049, 0
      %v3075 = vsel %vm494, %v3050, 0
      %v3078 = vsel %vm494, %v3051, 0
      %v3081 = vsel %vm494, %v3052, 0
      %v3084 = vsel %vm494, %v3053, 0
      %v3087 = vsel %vm494, %v3054, 0
      %v3090 = vsel %vm494, %v3055, 0
      %v3093 = vsel %vm494, %v3056, 0
      %v3096 = vsel %vm494, %v3057, 0
      %v3099 = vsel %vm494, %v3058, 0
      %v3102 = vsel %vm494, %v3059, 0
      %v3105 = vsel %vm494, %v3060, 0
      %v3108 = vsel %vm494, %v3061, 0
      %v3111 = vsel %vm494, %v3062, 0
      %v3114 = vand.u32 %v3064, %v873
      %3116 = vmatprep.subr.bf16.mxu0 0
      %3117 = vmatpush1.bf16.msra.mxu0 %v3114
      %3118 = vmatprep.subr.bf16.mxu0 0
      %3119 = vmatpush1.bf16.msra.mxu0 0
      %3120 = vmatprep.subr.bf16.mxu0 0
      %3121 = vmatpush1.bf16.msra.mxu0 0
      %3122 = vmatprep.subr.bf16.mxu0 0
      %3123 = vmatpush1.bf16.msra.mxu0 0
      %3124 = vmatprep.subr.bf16.mxu0 0
      %3125 = vmatpush1.bf16.msra.mxu0 0
      %3126 = vmatprep.subr.bf16.mxu0 0
      %3127 = vmatpush1.bf16.msra.mxu0 0
      %3128 = vmatprep.subr.bf16.mxu0 0
      %3129 = vmatpush1.bf16.msra.mxu0 0
      %3130 = vmatprep.subr.bf16.mxu0 0
      %3131 = vmatpush1.bf16.msra.mxu0 0
      %3132 = vmatprep.subr.bf16.mxu0 0
      %3133 = vmatpush1.bf16.msra.mxu0 0
      %3134 = vmatprep.subr.bf16.mxu0 0
      %3135 = vmatpush1.bf16.msra.mxu0 0
      %3136 = vmatprep.subr.bf16.mxu0 0
      %3137 = vmatpush1.bf16.msra.mxu0 0
      %3138 = vmatprep.subr.bf16.mxu0 0
      %3139 = vmatpush1.bf16.msra.mxu0 0
      %3140 = vmatprep.subr.bf16.mxu0 0
      %3141 = vmatpush1.bf16.msra.mxu0 0
      %3142 = vmatprep.subr.bf16.mxu0 0
      %3143 = vmatpush1.bf16.msra.mxu0 0
      %3144 = vmatprep.subr.bf16.mxu0 0
      %3145 = vmatpush1.bf16.msra.mxu0 0
      %3146 = vmatprep.subr.bf16.mxu0 0
      %3147 = vmatpush1.bf16.msra.mxu0 0
      %3148 = vmatprep.mubr.bf16.mxu0 0
      %3149 = vmatmul.mubr.bf16.gmra.mrb[0].mxu0 %v3066
      %v3150 = vpop.f32.mrb[0].mxu0
      %v3151 = vadd.f32 0.0, %v3150
      %v3152 = vpop.f32.mrb[0].mxu0
      %v3153 = vpop.f32.mrb[0].mxu0
      %v3154 = vadd.f32 0.0, %v3153
      %v3155 = vpop.f32.mrb[0].mxu0
      %3156 = vmatprep.mubr.bf16.mxu0 0
      %3157 = vmatmul.mubr.bf16.gmra.mrb[0].mxu0 %v3069
      %v3158 = vpop.f32.mrb[0].mxu0
      %v3159 = vadd.f32 0.0, %v3158
      %v3160 = vpop.f32.mrb[0].mxu0
      %v3161 = vpop.f32.mrb[0].mxu0
      %v3162 = vadd.f32 0.0, %v3161
      %v3163 = vpop.f32.mrb[0].mxu0
      %3164 = vmatprep.mubr.bf16.mxu0 0
      %3165 = vmatmul.mubr.bf16.gmra.mrb[0].mxu0 %v3072
      %v3166 = vpop.f32.mrb[0].mxu0
      %v3167 = vadd.f32 0.0, %v3166
      %v3168 = vpop.f32.mrb[0].mxu0
      %v3169 = vpop.f32.mrb[0].mxu0
      %v3170 = vadd.f32 0.0, %v3169
      %v3171 = vpop.f32.mrb[0].mxu0
      %3172 = vmatprep.mubr.bf16.mxu0 0
      %3173 = vmatmul.mubr.bf16.gmra.mrb[0].mxu0 %v3075
      %v3174 = vpop.f32.mrb[0].mxu0
      %v3175 = vadd.f32 0.0, %v3174
      %v3176 = vpop.f32.mrb[0].mxu0
      %v3177 = vpop.f32.mrb[0].mxu0
      %v3178 = vadd.f32 0.0, %v3177
      %v3179 = vpop.f32.mrb[0].mxu0
      %3180 = vmatprep.mubr.bf16.mxu0 0
      %3181 = vmatmul.mubr.bf16.gmra.mrb[0].mxu0 %v3078
      %v3182 = vpop.f32.mrb[0].mxu0
      %v3183 = vadd.f32 0.0, %v3182
      %v3184 = vpop.f32.mrb[0].mxu0
      %v3185 = vpop.f32.mrb[0].mxu0
      %v3186 = vadd.f32 0.0, %v3185
      %v3187 = vpop.f32.mrb[0].mxu0
      %3188 = vmatprep.mubr.bf16.mxu0 0
      %3189 = vmatmul.mubr.bf16.gmra.mrb[0].mxu0 %v3081
      %v3190 = vpop.f32.mrb[0].mxu0
      %v3191 = vadd.f32 0.0, %v3190
      %v3192 = vpop.f32.mrb[0].mxu0
      %v3193 = vpop.f32.mrb[0].mxu0
      %v3194 = vadd.f32 0.0, %v3193
      %v3195 = vpop.f32.mrb[0].mxu0
      %3196 = vmatprep.mubr.bf16.mxu0 0
      %3197 = vmatmul.mubr.bf16.gmra.mrb[0].mxu0 %v3084
      %v3198 = vpop.f32.mrb[0].mxu0
      %v3199 = vadd.f32 0.0, %v3198
      %v3200 = vpop.f32.mrb[0].mxu0
      %v3201 = vpop.f32.mrb[0].mxu0
      %v3202 = vadd.f32 0.0, %v3201
      %v3203 = vpop.f32.mrb[0].mxu0
      %3204 = vmatprep.mubr.bf16.mxu0 0
      %3205 = vmatmul.mubr.bf16.gmra.mrb[0].mxu0 %v3087
      %v3206 = vpop.f32.mrb[0].mxu0
      %v3207 = vadd.f32 0.0, %v3206
      %v3208 = vpop.f32.mrb[0].mxu0
      %v3209 = vpop.f32.mrb[0].mxu0
      %v3210 = vadd.f32 0.0, %v3209
      %v3211 = vpop.f32.mrb[0].mxu0
      %3212 = vmatprep.mubr.bf16.mxu0 0
      %3213 = vmatmul.mubr.bf16.gmra.mrb[0].mxu0 %v3090
      %v3214 = vpop.f32.mrb[0].mxu0
      %v3215 = vadd.f32 0.0, %v3214
      %v3216 = vpop.f32.mrb[0].mxu0
      %v3217 = vpop.f32.mrb[0].mxu0
      %v3218 = vadd.f32 0.0, %v3217
      %v3219 = vpop.f32.mrb[0].mxu0
      %3220 = vmatprep.mubr.bf16.mxu0 0
      %3221 = vmatmul.mubr.bf16.gmra.mrb[0].mxu0 %v3093
      %v3222 = vpop.f32.mrb[0].mxu0
      %v3223 = vadd.f32 0.0, %v3222
      %v3224 = vpop.f32.mrb[0].mxu0
      %v3225 = vpop.f32.mrb[0].mxu0
      %v3226 = vadd.f32 0.0, %v3225
      %v3227 = vpop.f32.mrb[0].mxu0
      %3228 = vmatprep.mubr.bf16.mxu0 0
      %3229 = vmatmul.mubr.bf16.gmra.mrb[0].mxu0 %v3096
      %v3230 = vpop.f32.mrb[0].mxu0
      %v3231 = vadd.f32 0.0, %v3230
      %v3232 = vpop.f32.mrb[0].mxu0
      %v3233 = vpop.f32.mrb[0].mxu0
      %v3234 = vadd.f32 0.0, %v3233
      %v3235 = vpop.f32.mrb[0].mxu0
      %3236 = vmatprep.mubr.bf16.mxu0 0
      %3237 = vmatmul.mubr.bf16.gmra.mrb[0].mxu0 %v3099
      %v3238 = vpop.f32.mrb[0].mxu0
      %v3239 = vadd.f32 0.0, %v3238
      %v3240 = vpop.f32.mrb[0].mxu0
      %v3241 = vpop.f32.mrb[0].mxu0
      %v3242 = vadd.f32 0.0, %v3241
      %v3243 = vpop.f32.mrb[0].mxu0
      %3244 = vmatprep.mubr.bf16.mxu0 0
      %3245 = vmatmul.mubr.bf16.gmra.mrb[0].mxu0 %v3102
      %v3246 = vpop.f32.mrb[0].mxu0
      %v3247 = vadd.f32 0.0, %v3246
      %v3248 = vpop.f32.mrb[0].mxu0
      %v3249 = vpop.f32.mrb[0].mxu0
      %v3250 = vadd.f32 0.0, %v3249
      %v3251 = vpop.f32.mrb[0].mxu0
      %3252 = vmatprep.mubr.bf16.mxu0 0
      %3253 = vmatmul.mubr.bf16.gmra.mrb[0].mxu0 %v3105
      %v3254 = vpop.f32.mrb[0].mxu0
      %v3255 = vadd.f32 0.0, %v3254
      %v3256 = vpop.f32.mrb[0].mxu0
      %v3257 = vpop.f32.mrb[0].mxu0
      %v3258 = vadd.f32 0.0, %v3257
      %v3259 = vpop.f32.mrb[0].mxu0
      %3260 = vmatprep.mubr.bf16.mxu0 0
      %3261 = vmatmul.mubr.bf16.gmra.mrb[0].mxu0 %v3108
      %v3262 = vpop.f32.mrb[0].mxu0
      %v3263 = vadd.f32 0.0, %v3262
      %v3264 = vpop.f32.mrb[0].mxu0
      %v3265 = vpop.f32.mrb[0].mxu0
      %v3266 = vadd.f32 0.0, %v3265
      %v3267 = vpop.f32.mrb[0].mxu0
      %3268 = vmatprep.mubr.bf16.mxu0 0
      %3269 = vmatmul.mubr.bf16.gmra.mrb[0].mxu0 %v3111
      %v3270 = vpop.f32.mrb[0].mxu0
      %v3271 = vadd.f32 0.0, %v3270
      %v3272 = vpop.f32.mrb[0].mxu0
      %v3273 = vpop.f32.mrb[0].mxu0
      %v3274 = vadd.f32 0.0, %v3273
      %v3275 = vpop.f32.mrb[0].mxu0
      %3276 = vdwg.mxu0
      %v3277 = vadd.f32 %v2983, %v3151
      %v3278 = vadd.f32 %v2984, %v3154
      %v3279 = vadd.f32 %v2985, %v3159
      %v3280 = vadd.f32 %v2986, %v3162
      %v3281 = vadd.f32 %v2987, %v3167
      %v3282 = vadd.f32 %v2988, %v3170
      %v3283 = vadd.f32 %v2989, %v3175
      %v3284 = vadd.f32 %v2990, %v3178
      %v3285 = vadd.f32 %v2991, %v3183
      %v3286 = vadd.f32 %v2992, %v3186
      %v3287 = vadd.f32 %v2993, %v3191
      %v3288 = vadd.f32 %v2994, %v3194
      %v3289 = vadd.f32 %v2995, %v3199
      %v3290 = vadd.f32 %v2996, %v3202
      %v3291 = vadd.f32 %v2997, %v3207
      %v3292 = vadd.f32 %v2998, %v3210
      %v3293 = vadd.f32 %v2999, %v3215
      %v3294 = vadd.f32 %v3000, %v3218
      %v3295 = vadd.f32 %v3001, %v3223
      %v3296 = vadd.f32 %v3002, %v3226
      %v3297 = vadd.f32 %v3003, %v3231
      %v3298 = vadd.f32 %v3004, %v3234
      %v3299 = vadd.f32 %v3005, %v3239
      %v3300 = vadd.f32 %v3006, %v3242
      %v3301 = vadd.f32 %v3007, %v3247
      %v3302 = vadd.f32 %v3008, %v3250
      %v3303 = vadd.f32 %v3009, %v3255
      %v3304 = vadd.f32 %v3010, %v3258
      %v3305 = vadd.f32 %v3011, %v3263
      %v3306 = vadd.f32 %v3012, %v3266
      %v3307 = vadd.f32 %v3013, %v3271
      %v3308 = vadd.f32 %v3014, %v3274
      %v3309 = vld [vmem:[%s2] sm:$0x1]
      %v3311 = vlaneseq
      %v3312 = vshrl.u32 %v3311, 7
      %v3313 = vsub.s32 0, %v3312
      %v3314 = vrot.slane %v3309, %v3313
      %v3316 = vadd.f32 %v3277, %v3314
      %v3317 = vadd.f32 %v3278, %v3314
      %v3318 = vadd.f32 %v3279, %v3314
      %v3319 = vadd.f32 %v3280, %v3314
      %v3320 = vadd.f32 %v3281, %v3314
      %v3321 = vadd.f32 %v3282, %v3314
      %v3322 = vadd.f32 %v3283, %v3314
      %v3323 = vadd.f32 %v3284, %v3314
      %v3324 = vadd.f32 %v3285, %v3314
      %v3325 = vadd.f32 %v3286, %v3314
      %v3326 = vadd.f32 %v3287, %v3314
      %v3327 = vadd.f32 %v3288, %v3314
      %v3328 = vadd.f32 %v3289, %v3314
      %v3329 = vadd.f32 %v3290, %v3314
      %v3330 = vadd.f32 %v3291, %v3314
      %v3331 = vadd.f32 %v3292, %v3314
      %v3332 = vadd.f32 %v3293, %v3314
      %v3333 = vadd.f32 %v3294, %v3314
      %v3334 = vadd.f32 %v3295, %v3314
      %v3335 = vadd.f32 %v3296, %v3314
      %v3336 = vadd.f32 %v3297, %v3314
      %v3337 = vadd.f32 %v3298, %v3314
      %v3338 = vadd.f32 %v3299, %v3314
      %v3339 = vadd.f32 %v3300, %v3314
      %v3340 = vadd.f32 %v3301, %v3314
      %v3341 = vadd.f32 %v3302, %v3314
      %v3342 = vadd.f32 %v3303, %v3314
      %v3343 = vadd.f32 %v3304, %v3314
      %v3344 = vadd.f32 %v3305, %v3314
      %v3345 = vadd.f32 %v3306, %v3314
      %v3346 = vadd.f32 %v3307, %v3314
      %v3347 = vadd.f32 %v3308, %v3314
      %v3348 = vmax.f32 %v3316, 0.0
      %v3349 = vmax.f32 %v3317, 0.0
      %v3350 = vmax.f32 %v3318, 0.0
      %v3351 = vmax.f32 %v3319, 0.0
      %v3352 = vmax.f32 %v3320, 0.0
      %v3353 = vmax.f32 %v3321, 0.0
      %v3354 = vmax.f32 %v3322, 0.0
      %v3355 = vmax.f32 %v3323, 0.0
      %v3356 = vmax.f32 %v3324, 0.0
      %v3357 = vmax.f32 %v3325, 0.0
      %v3358 = vmax.f32 %v3326, 0.0
      %v3359 = vmax.f32 %v3327, 0.0
      %v3360 = vmax.f32 %v3328, 0.0
      %v3361 = vmax.f32 %v3329, 0.0
      %v3362 = vmax.f32 %v3330, 0.0
      %v3363 = vmax.f32 %v3331, 0.0
      %v3364 = vmax.f32 %v3332, 0.0
      %v3365 = vmax.f32 %v3333, 0.0
      %v3366 = vmax.f32 %v3334, 0.0
      %v3367 = vmax.f32 %v3335, 0.0
      %v3368 = vmax.f32 %v3336, 0.0
      %v3369 = vmax.f32 %v3337, 0.0
      %v3370 = vmax.f32 %v3338, 0.0
      %v3371 = vmax.f32 %v3339, 0.0
      %v3372 = vmax.f32 %v3340, 0.0
      %v3373 = vmax.f32 %v3341, 0.0
      %v3374 = vmax.f32 %v3342, 0.0
      %v3375 = vmax.f32 %v3343, 0.0
      %v3376 = vmax.f32 %v3344, 0.0
      %v3377 = vmax.f32 %v3345, 0.0
      %v3378 = vmax.f32 %v3346, 0.0
      %v3379 = vmax.f32 %v3347, 0.0
      %3380 = vst.msk [vmem:[%s546 + $0x1] sm:$0xff] %vm537, %v3348
      %3381 = vst.msk [vmem:[%s546 + $0x9] sm:$0xff] %vm537, %v3349
      %3382 = vst.msk [vmem:[%s546 + $0x19] sm:$0xff] %vm537, %v3350
      %3383 = vst.msk [vmem:[%s546 + $0x21] sm:$0xff] %vm537, %v3351
      %3384 = vst.msk [vmem:[%s546 + $0x31] sm:$0xff] %vm537, %v3352
      %3385 = vst.msk [vmem:[%s546 + $0x39] sm:$0xff] %vm537, %v3353
      %3386 = vst.msk [vmem:[%s546 + $0x49] sm:$0xff] %vm537, %v3354
      %3387 = vst.msk [vmem:[%s546 + $0x51] sm:$0xff] %vm537, %v3355
      %3388 = vst.msk [vmem:[%s546 + $0x61] sm:$0xff] %vm537, %v3356
      %3389 = vst.msk [vmem:[%s546 + $0x69] sm:$0xff] %vm537, %v3357
      %3390 = vst.msk [vmem:[%s546 + $0x79] sm:$0xff] %vm537, %v3358
      %3391 = vst.msk [vmem:[%s546 + $0x81] sm:$0xff] %vm537, %v3359
      %3392 = vst.msk [vmem:[%s546 + $0x91] sm:$0xff] %vm537, %v3360
      %3393 = vst.msk [vmem:[%s546 + $0x99] sm:$0xff] %vm537, %v3361
      %3394 = vst.msk [vmem:[%s546 + $0xa9] sm:$0xff] %vm537, %v3362
      %3395 = vst.msk [vmem:[%s546 + $0xb1] sm:$0xff] %vm537, %v3363
      %3396 = vst.msk [vmem:[%s546 + $0xc1] sm:$0xff] %vm537, %v3364
      %3397 = vst.msk [vmem:[%s546 + $0xc9] sm:$0xff] %vm537, %v3365
      %3398 = vst.msk [vmem:[%s546 + $0xd9] sm:$0xff] %vm537, %v3366
      %3399 = vst.msk [vmem:[%s546 + $0xe1] sm:$0xff] %vm537, %v3367
      %3400 = vst.msk [vmem:[%s546 + $0xf1] sm:$0xff] %vm537, %v3368
      %3401 = vst.msk [vmem:[%s546 + $0xf9] sm:$0xff] %vm537, %v3369
      %3402 = vst.msk [vmem:[%s546 + $0x109] sm:$0xff] %vm537, %v3370
      %3403 = vst.msk [vmem:[%s546 + $0x111] sm:$0xff] %vm537, %v3371
      %3404 = vst.msk [vmem:[%s546 + $0x121] sm:$0xff] %vm537, %v3372
      %3405 = vst.msk [vmem:[%s546 + $0x129] sm:$0xff] %vm537, %v3373
      %3406 = vst.msk [vmem:[%s546 + $0x139] sm:$0xff] %vm537, %v3374
      %3407 = vst.msk [vmem:[%s546 + $0x141] sm:$0xff] %vm537, %v3375
      %3408 = vst.msk [vmem:[%s546 + $0x151] sm:$0xff] %vm537, %v3376
      %3409 = vst.msk [vmem:[%s546 + $0x159] sm:$0xff] %vm537, %v3377
      %3410 = vst.msk [vmem:[%s546 + $0x169] sm:$0xff] %vm537, %v3378
      %3411 = vst.msk [vmem:[%s546 + $0x171] sm:$0xff] %vm537, %v3379
      %v3412 = vld [vmem:[#allocation3] sm:$0xff]
      %v3413 = vld [vmem:[#allocation3 + $0x8] sm:$0xff]
      %v3414 = vld [vmem:[#allocation3 + $0x18] sm:$0xff]
      %v3415 = vld [vmem:[#allocation3 + $0x20] sm:$0xff]
      %v3416 = vld [vmem:[#allocation3 + $0x30] sm:$0xff]
      %v3417 = vld [vmem:[#allocation3 + $0x38] sm:$0xff]
      %v3418 = vld [vmem:[#allocation3 + $0x48] sm:$0xff]
      %v3419 = vld [vmem:[#allocation3 + $0x50] sm:$0xff]
      %v3420 = vld [vmem:[#allocation3 + $0x60] sm:$0xff]
      %v3421 = vld [vmem:[#allocation3 + $0x68] sm:$0xff]
      %v3422 = vld [vmem:[#allocation3 + $0x78] sm:$0xff]
      %v3423 = vld [vmem:[#allocation3 + $0x80] sm:$0xff]
      %v3424 = vld [vmem:[#allocation3 + $0x90] sm:$0xff]
      %v3425 = vld [vmem:[#allocation3 + $0x98] sm:$0xff]
      %v3426 = vld [vmem:[#allocation3 + $0xa8] sm:$0xff]
      %v3427 = vld [vmem:[#allocation3 + $0xb0] sm:$0xff]
      %v3428 = vld [vmem:[#allocation3 + $0xc0] sm:$0xff]
      %v3429 = vld [vmem:[#allocation3 + $0xc8] sm:$0xff]
      %v3430 = vld [vmem:[#allocation3 + $0xd8] sm:$0xff]
      %v3431 = vld [vmem:[#allocation3 + $0xe0] sm:$0xff]
      %v3432 = vld [vmem:[#allocation3 + $0xf0] sm:$0xff]
      %v3433 = vld [vmem:[#allocation3 + $0xf8] sm:$0xff]
      %v3434 = vld [vmem:[#allocation3 + $0x108] sm:$0xff]
      %v3435 = vld [vmem:[#allocation3 + $0x110] sm:$0xff]
      %v3436 = vld [vmem:[#allocation3 + $0x120] sm:$0xff]
      %v3437 = vld [vmem:[#allocation3 + $0x128] sm:$0xff]
      %v3438 = vld [vmem:[#allocation3 + $0x138] sm:$0xff]
      %v3439 = vld [vmem:[#allocation3 + $0x140] sm:$0xff]
      %v3440 = vld [vmem:[#allocation3 + $0x150] sm:$0xff]
      %v3441 = vld [vmem:[#allocation3 + $0x158] sm:$0xff]
      %v3442 = vld [vmem:[#allocation3 + $0x168] sm:$0xff]
      %v3443 = vld [vmem:[#allocation3 + $0x170] sm:$0xff]
      %v3444 = vpack.c.bf16 %v3413, %v3412
      %v3445 = vpack.c.bf16 %v3415, %v3414
      %v3446 = vpack.c.bf16 %v3417, %v3416
      %v3447 = vpack.c.bf16 %v3419, %v3418
      %v3448 = vpack.c.bf16 %v3421, %v3420
      %v3449 = vpack.c.bf16 %v3423, %v3422
      %v3450 = vpack.c.bf16 %v3425, %v3424
      %v3451 = vpack.c.bf16 %v3427, %v3426
      %v3452 = vpack.c.bf16 %v3429, %v3428
      %v3453 = vpack.c.bf16 %v3431, %v3430
      %v3454 = vpack.c.bf16 %v3433, %v3432
      %v3455 = vpack.c.bf16 %v3435, %v3434
      %v3456 = vpack.c.bf16 %v3437, %v3436
      %v3457 = vpack.c.bf16 %v3439, %v3438
      %v3458 = vpack.c.bf16 %v3441, %v3440
      %v3459 = vpack.c.bf16 %v3443, %v3442
      %v3460 = vld [vmem:[%s3] sm:$0xf]
      %v3461 = vld [vmem:[#allocation3 + $0x1] sm:$0xff]
      %v3462 = vld [vmem:[#allocation3 + $0x9] sm:$0xff]
      %v3463 = vld [vmem:[#allocation3 + $0x19] sm:$0xff]
      %v3464 = vld [vmem:[#allocation3 + $0x21] sm:$0xff]
      %v3465 = vld [vmem:[#allocation3 + $0x31] sm:$0xff]
      %v3466 = vld [vmem:[#allocation3 + $0x39] sm:$0xff]
      %v3467 = vld [vmem:[#allocation3 + $0x49] sm:$0xff]
      %v3468 = vld [vmem:[#allocation3 + $0x51] sm:$0xff]
      %v3469 = vld [vmem:[#allocation3 + $0x61] sm:$0xff]
      %v3470 = vld [vmem:[#allocation3 + $0x69] sm:$0xff]
      %v3471 = vld [vmem:[#allocation3 + $0x79] sm:$0xff]
      %v3472 = vld [vmem:[#allocation3 + $0x81] sm:$0xff]
      %v3473 = vld [vmem:[#allocation3 + $0x91] sm:$0xff]
      %v3474 = vld [vmem:[#allocation3 + $0x99] sm:$0xff]
      %v3475 = vld [vmem:[#allocation3 + $0xa9] sm:$0xff]
      %v3476 = vld [vmem:[#allocation3 + $0xb1] sm:$0xff]
      %v3477 = vld [vmem:[#allocation3 + $0xc1] sm:$0xff]
      %v3478 = vld [vmem:[#allocation3 + $0xc9] sm:$0xff]
      %v3479 = vld [vmem:[#allocation3 + $0xd9] sm:$0xff]
      %v3480 = vld [vmem:[#allocation3 + $0xe1] sm:$0xff]
      %v3481 = vld [vmem:[#allocation3 + $0xf1] sm:$0xff]
      %v3482 = vld [vmem:[#allocation3 + $0xf9] sm:$0xff]
      %v3483 = vld [vmem:[#allocation3 + $0x109] sm:$0xff]
      %v3484 = vld [vmem:[#allocation3 + $0x111] sm:$0xff]
      %v3485 = vld [vmem:[#allocation3 + $0x121] sm:$0xff]
      %v3486 = vld [vmem:[#allocation3 + $0x129] sm:$0xff]
      %v3487 = vld [vmem:[#allocation3 + $0x139] sm:$0xff]
      %v3488 = vld [vmem:[#allocation3 + $0x141] sm:$0xff]
      %v3489 = vld [vmem:[#allocation3 + $0x151] sm:$0xff]
      %v3490 = vld [vmem:[#allocation3 + $0x159] sm:$0xff]
      %v3491 = vld [vmem:[#allocation3 + $0x169] sm:$0xff]
      %v3492 = vld [vmem:[#allocation3 + $0x171] sm:$0xff]
      %v3493 = vpack.c.bf16 %v3462, %v3461
      %v3494 = vpack.c.bf16 %v3464, %v3463
      %v3495 = vpack.c.bf16 %v3466, %v3465
      %v3496 = vpack.c.bf16 %v3468, %v3467
      %v3497 = vpack.c.bf16 %v3470, %v3469
      %v3498 = vpack.c.bf16 %v3472, %v3471
      %v3499 = vpack.c.bf16 %v3474, %v3473
      %v3500 = vpack.c.bf16 %v3476, %v3475
      %v3501 = vpack.c.bf16 %v3478, %v3477
      %v3502 = vpack.c.bf16 %v3480, %v3479
      %v3503 = vpack.c.bf16 %v3482, %v3481
      %v3504 = vpack.c.bf16 %v3484, %v3483
      %v3505 = vpack.c.bf16 %v3486, %v3485
      %v3506 = vpack.c.bf16 %v3488, %v3487
      %v3507 = vpack.c.bf16 %v3490, %v3489
      %v3508 = vpack.c.bf16 %v3492, %v3491
      %s3509 = scalar_lea.vmem %s3, 4
      %v3510 = vld [vmem:[%s3509] sm:$0xf]
      %v3512 = vsel %vm537, %v3493, 0
      %v3515 = vsel %vm537, %v3494, 0
      %v3518 = vsel %vm537, %v3495, 0
      %v3521 = vsel %vm537, %v3496, 0
      %v3524 = vsel %vm537, %v3497, 0
      %v3527 = vsel %vm537, %v3498, 0
      %v3530 = vsel %vm537, %v3499, 0
      %v3533 = vsel %vm537, %v3500, 0
      %v3536 = vsel %vm537, %v3501, 0
      %v3539 = vsel %vm537, %v3502, 0
      %v3542 = vsel %vm537, %v3503, 0
      %v3545 = vsel %vm537, %v3504, 0
      %v3548 = vsel %vm537, %v3505, 0
      %v3551 = vsel %vm537, %v3506, 0
      %v3554 = vsel %vm537, %v3507, 0
      %v3557 = vsel %vm537, %v3508, 0
      %vm3559 = vcmask 1043456
      %v3561 = vsel %vm3559, %v3510, 0
      %3563 = vmatprep.subr.bf16.mxu0 0
      %3564 = vmatpush1.bf16.msra.mxu0 %v3561
      %3565 = vmatprep.subr.bf16.mxu0 0
      %3566 = vmatpush1.bf16.msra.mxu0 0
      %3567 = vmatprep.subr.bf16.mxu0 0
      %3568 = vmatpush1.bf16.msra.mxu0 0
      %3569 = vmatprep.subr.bf16.mxu0 0
      %3570 = vmatpush1.bf16.msra.mxu0 0
      %3571 = vmatprep.subr.bf16.mxu0 0
      %3572 = vmatpush1.bf16.msra.mxu0 0
      %3573 = vmatprep.subr.bf16.mxu0 0
      %3574 = vmatpush1.bf16.msra.mxu0 0
      %3575 = vmatprep.subr.bf16.mxu0 0
      %3576 = vmatpush1.bf16.msra.mxu0 0
      %3577 = vmatprep.subr.bf16.mxu0 0
      %3578 = vmatpush1.bf16.msra.mxu0 0
      %3579 = vmatprep.subr.bf16.mxu0 0
      %3580 = vmatpush1.bf16.msra.mxu0 0
      %3581 = vmatprep.subr.bf16.mxu0 0
      %3582 = vmatpush1.bf16.msra.mxu0 0
      %3583 = vmatprep.subr.bf16.mxu0 0
      %3584 = vmatpush1.bf16.msra.mxu0 0
      %3585 = vmatprep.subr.bf16.mxu0 0
      %3586 = vmatpush1.bf16.msra.mxu0 0
      %3587 = vmatprep.subr.bf16.mxu0 0
      %3588 = vmatpush1.bf16.msra.mxu0 0
      %3589 = vmatprep.subr.bf16.mxu0 0
      %3590 = vmatpush1.bf16.msra.mxu0 0
      %3591 = vmatprep.subr.bf16.mxu0 0
      %3592 = vmatpush1.bf16.msra.mxu0 0
      %3593 = vmatprep.subr.bf16.mxu0 0
      %3594 = vmatpush1.bf16.msra.mxu0 0
      %3595 = vmatprep.mubr.bf16.mxu0 0
      %3596 = vmatmul.mubr.bf16.gmra.mrb[0].mxu0 %v3512
      %v3597 = vpop.f32.mrb[0].mxu0
      %v3598 = vadd.f32 0.0, %v3597
      %v3599 = vpop.f32.mrb[0].mxu0
      %v3600 = vpop.f32.mrb[0].mxu0
      %v3601 = vadd.f32 0.0, %v3600
      %v3602 = vpop.f32.mrb[0].mxu0
      %3603 = vmatprep.mubr.bf16.mxu0 0
      %3604 = vmatmul.mubr.bf16.gmra.mrb[0].mxu0 %v3515
      %v3605 = vpop.f32.mrb[0].mxu0
      %v3606 = vpop.f32.mrb[0].mxu0
      %v3607 = vpop.f32.mrb[0].mxu0
      %v3608 = vpop.f32.mrb[0].mxu0
      %3609 = vmatprep.mubr.bf16.mxu0 0
      %3610 = vmatmul.mubr.bf16.gmra.mrb[0].mxu0 %v3518
      %v3611 = vpop.f32.mrb[0].mxu0
      %v3612 = vadd.f32 0.0, %v3611
      %v3613 = vpop.f32.mrb[0].mxu0
      %v3614 = vpop.f32.mrb[0].mxu0
      %v3615 = vadd.f32 0.0, %v3614
      %v3616 = vpop.f32.mrb[0].mxu0
      %3617 = vmatprep.mubr.bf16.mxu0 0
      %3618 = vmatmul.mubr.bf16.gmra.mrb[0].mxu0 %v3521
      %v3619 = vpop.f32.mrb[0].mxu0
      %v3620 = vpop.f32.mrb[0].mxu0
      %v3621 = vpop.f32.mrb[0].mxu0
      %v3622 = vpop.f32.mrb[0].mxu0
      %3623 = vmatprep.mubr.bf16.mxu0 0
      %3624 = vmatmul.mubr.bf16.gmra.mrb[0].mxu0 %v3524
      %v3625 = vpop.f32.mrb[0].mxu0
      %v3626 = vadd.f32 0.0, %v3625
      %v3627 = vpop.f32.mrb[0].mxu0
      %v3628 = vpop.f32.mrb[0].mxu0
      %v3629 = vadd.f32 0.0, %v3628
      %v3630 = vpop.f32.mrb[0].mxu0
      %3631 = vmatprep.mubr.bf16.mxu0 0
      %3632 = vmatmul.mubr.bf16.gmra.mrb[0].mxu0 %v3527
      %v3633 = vpop.f32.mrb[0].mxu0
      %v3634 = vpop.f32.mrb[0].mxu0
      %v3635 = vpop.f32.mrb[0].mxu0
      %v3636 = vpop.f32.mrb[0].mxu0
      %3637 = vmatprep.mubr.bf16.mxu0 0
      %3638 = vmatmul.mubr.bf16.gmra.mrb[0].mxu0 %v3530
      %v3639 = vpop.f32.mrb[0].mxu0
      %v3640 = vadd.f32 0.0, %v3639
      %v3641 = vpop.f32.mrb[0].mxu0
      %v3642 = vpop.f32.mrb[0].mxu0
      %v3643 = vadd.f32 0.0, %v3642
      %v3644 = vpop.f32.mrb[0].mxu0
      %3645 = vmatprep.mubr.bf16.mxu0 0
      %3646 = vmatmul.mubr.bf16.gmra.mrb[0].mxu0 %v3533
      %v3647 = vpop.f32.mrb[0].mxu0
      %v3648 = vpop.f32.mrb[0].mxu0
      %v3649 = vpop.f32.mrb[0].mxu0
      %v3650 = vpop.f32.mrb[0].mxu0
      %3651 = vmatprep.mubr.bf16.mxu0 0
      %3652 = vmatmul.mubr.bf16.gmra.mrb[0].mxu0 %v3536
      %v3653 = vpop.f32.mrb[0].mxu0
      %v3654 = vadd.f32 0.0, %v3653
      %v3655 = vpop.f32.mrb[0].mxu0
      %v3656 = vpop.f32.mrb[0].mxu0
      %v3657 = vadd.f32 0.0, %v3656
      %v3658 = vpop.f32.mrb[0].mxu0
      %3659 = vmatprep.mubr.bf16.mxu0 0
      %3660 = vmatmul.mubr.bf16.gmra.mrb[0].mxu0 %v3539
      %v3661 = vpop.f32.mrb[0].mxu0
      %v3662 = vpop.f32.mrb[0].mxu0
      %v3663 = vpop.f32.mrb[0].mxu0
      %v3664 = vpop.f32.mrb[0].mxu0
      %3665 = vmatprep.mubr.bf16.mxu0 0
      %3666 = vmatmul.mubr.bf16.gmra.mrb[0].mxu0 %v3542
      %v3667 = vpop.f32.mrb[0].mxu0
      %v3668 = vadd.f32 0.0, %v3667
      %v3669 = vpop.f32.mrb[0].mxu0
      %v3670 = vpop.f32.mrb[0].mxu0
      %v3671 = vadd.f32 0.0, %v3670
      %v3672 = vpop.f32.mrb[0].mxu0
      %3673 = vmatprep.mubr.bf16.mxu0 0
      %3674 = vmatmul.mubr.bf16.gmra.mrb[0].mxu0 %v3545
      %v3675 = vpop.f32.mrb[0].mxu0
      %v3676 = vpop.f32.mrb[0].mxu0
      %v3677 = vpop.f32.mrb[0].mxu0
      %v3678 = vpop.f32.mrb[0].mxu0
      %3679 = vmatprep.mubr.bf16.mxu0 0
      %3680 = vmatmul.mubr.bf16.gmra.mrb[0].mxu0 %v3548
      %v3681 = vpop.f32.mrb[0].mxu0
      %v3682 = vadd.f32 0.0, %v3681
      %v3683 = vpop.f32.mrb[0].mxu0
      %v3684 = vpop.f32.mrb[0].mxu0
      %v3685 = vadd.f32 0.0, %v3684
      %v3686 = vpop.f32.mrb[0].mxu0
      %3687 = vmatprep.mubr.bf16.mxu0 0
      %3688 = vmatmul.mubr.bf16.gmra.mrb[0].mxu0 %v3551
      %v3689 = vpop.f32.mrb[0].mxu0
      %v3690 = vpop.f32.mrb[0].mxu0
      %v3691 = vpop.f32.mrb[0].mxu0
      %v3692 = vpop.f32.mrb[0].mxu0
      %3693 = vmatprep.mubr.bf16.mxu0 0
      %3694 = vmatmul.mubr.bf16.gmra.mrb[0].mxu0 %v3554
      %v3695 = vpop.f32.mrb[0].mxu0
      %v3696 = vadd.f32 0.0, %v3695
      %v3697 = vpop.f32.mrb[0].mxu0
      %v3698 = vpop.f32.mrb[0].mxu0
      %v3699 = vadd.f32 0.0, %v3698
      %v3700 = vpop.f32.mrb[0].mxu0
      %3701 = vmatprep.mubr.bf16.mxu0 0
      %3702 = vmatmul.mubr.bf16.gmra.mrb[0].mxu0 %v3557
      %v3703 = vpop.f32.mrb[0].mxu0
      %v3704 = vpop.f32.mrb[0].mxu0
      %v3705 = vpop.f32.mrb[0].mxu0
      %v3706 = vpop.f32.mrb[0].mxu0
      %3707 = vdwg.mxu0
      %v3709 = vsel %vm537, %v3444, 0
      %v3712 = vsel %vm537, %v3445, 0
      %v3715 = vsel %vm537, %v3446, 0
      %v3718 = vsel %vm537, %v3447, 0
      %v3721 = vsel %vm537, %v3448, 0
      %v3724 = vsel %vm537, %v3449, 0
      %v3727 = vsel %vm537, %v3450, 0
      %v3730 = vsel %vm537, %v3451, 0
      %v3733 = vsel %vm537, %v3452, 0
      %v3736 = vsel %vm537, %v3453, 0
      %v3739 = vsel %vm537, %v3454, 0
      %v3742 = vsel %vm537, %v3455, 0
      %v3745 = vsel %vm537, %v3456, 0
      %v3748 = vsel %vm537, %v3457, 0
      %v3751 = vsel %vm537, %v3458, 0
      %v3754 = vsel %vm537, %v3459, 0
      %v3757 = vsel %vm3559, %v3460, 0
      %3759 = vmatprep.subr.bf16.mxu0 0
      %3760 = vmatpush1.bf16.msra.mxu0 %v3757
      %3761 = vmatprep.subr.bf16.mxu0 0
      %3762 = vmatpush1.bf16.msra.mxu0 0
      %3763 = vmatprep.subr.bf16.mxu0 0
      %3764 = vmatpush1.bf16.msra.mxu0 0
      %3765 = vmatprep.subr.bf16.mxu0 0
      %3766 = vmatpush1.bf16.msra.mxu0 0
      %3767 = vmatprep.subr.bf16.mxu0 0
      %3768 = vmatpush1.bf16.msra.mxu0 0
      %3769 = vmatprep.subr.bf16.mxu0 0
      %3770 = vmatpush1.bf16.msra.mxu0 0
      %3771 = vmatprep.subr.bf16.mxu0 0
      %3772 = vmatpush1.bf16.msra.mxu0 0
      %3773 = vmatprep.subr.bf16.mxu0 0
      %3774 = vmatpush1.bf16.msra.mxu0 0
      %3775 = vmatprep.subr.bf16.mxu0 0
      %3776 = vmatpush1.bf16.msra.mxu0 0
      %3777 = vmatprep.subr.bf16.mxu0 0
      %3778 = vmatpush1.bf16.msra.mxu0 0
      %3779 = vmatprep.subr.bf16.mxu0 0
      %3780 = vmatpush1.bf16.msra.mxu0 0
      %3781 = vmatprep.subr.bf16.mxu0 0
      %3782 = vmatpush1.bf16.msra.mxu0 0
      %3783 = vmatprep.subr.bf16.mxu0 0
      %3784 = vmatpush1.bf16.msra.mxu0 0
      %3785 = vmatprep.subr.bf16.mxu0 0
      %3786 = vmatpush1.bf16.msra.mxu0 0
      %3787 = vmatprep.subr.bf16.mxu0 0
      %3788 = vmatpush1.bf16.msra.mxu0 0
      %3789 = vmatprep.subr.bf16.mxu0 0
      %3790 = vmatpush1.bf16.msra.mxu0 0
      %3791 = vmatprep.mubr.bf16.mxu0 0
      %3792 = vmatmul.mubr.bf16.gmra.mrb[0].mxu0 %v3709
      %v3793 = vpop.f32.mrb[0].mxu0
      %v3794 = vadd.f32 %v3598, %v3793
      %v3795 = vpop.f32.mrb[0].mxu0
      %v3796 = vpop.f32.mrb[0].mxu0
      %v3797 = vadd.f32 %v3601, %v3796
      %v3798 = vpop.f32.mrb[0].mxu0
      %3799 = vmatprep.mubr.bf16.mxu0 0
      %3800 = vmatmul.mubr.bf16.gmra.mrb[0].mxu0 %v3712
      %v3801 = vpop.f32.mrb[0].mxu0
      %v3802 = vpop.f32.mrb[0].mxu0
      %v3803 = vpop.f32.mrb[0].mxu0
      %v3804 = vpop.f32.mrb[0].mxu0
      %3805 = vmatprep.mubr.bf16.mxu0 0
      %3806 = vmatmul.mubr.bf16.gmra.mrb[0].mxu0 %v3715
      %v3807 = vpop.f32.mrb[0].mxu0
      %v3808 = vadd.f32 %v3612, %v3807
      %v3809 = vpop.f32.mrb[0].mxu0
      %v3810 = vpop.f32.mrb[0].mxu0
      %v3811 = vadd.f32 %v3615, %v3810
      %v3812 = vpop.f32.mrb[0].mxu0
      %3813 = vmatprep.mubr.bf16.mxu0 0
      %3814 = vmatmul.mubr.bf16.gmra.mrb[0].mxu0 %v3718
      %v3815 = vpop.f32.mrb[0].mxu0
      %v3816 = vpop.f32.mrb[0].mxu0
      %v3817 = vpop.f32.mrb[0].mxu0
      %v3818 = vpop.f32.mrb[0].mxu0
      %3819 = vmatprep.mubr.bf16.mxu0 0
      %3820 = vmatmul.mubr.bf16.gmra.mrb[0].mxu0 %v3721
      %v3821 = vpop.f32.mrb[0].mxu0
      %v3822 = vadd.f32 %v3626, %v3821
      %v3823 = vpop.f32.mrb[0].mxu0
      %v3824 = vpop.f32.mrb[0].mxu0
      %v3825 = vadd.f32 %v3629, %v3824
      %v3826 = vpop.f32.mrb[0].mxu0
      %3827 = vmatprep.mubr.bf16.mxu0 0
      %3828 = vmatmul.mubr.bf16.gmra.mrb[0].mxu0 %v3724
      %v3829 = vpop.f32.mrb[0].mxu0
      %v3830 = vpop.f32.mrb[0].mxu0
      %v3831 = vpop.f32.mrb[0].mxu0
      %v3832 = vpop.f32.mrb[0].mxu0
      %3833 = vmatprep.mubr.bf16.mxu0 0
      %3834 = vmatmul.mubr.bf16.gmra.mrb[0].mxu0 %v3727
      %v3835 = vpop.f32.mrb[0].mxu0
      %v3836 = vadd.f32 %v3640, %v3835
      %v3837 = vpop.f32.mrb[0].mxu0
      %v3838 = vpop.f32.mrb[0].mxu0
      %v3839 = vadd.f32 %v3643, %v3838
      %v3840 = vpop.f32.mrb[0].mxu0
      %3841 = vmatprep.mubr.bf16.mxu0 0
      %3842 = vmatmul.mubr.bf16.gmra.mrb[0].mxu0 %v3730
      %v3843 = vpop.f32.mrb[0].mxu0
      %v3844 = vpop.f32.mrb[0].mxu0
      %v3845 = vpop.f32.mrb[0].mxu0
      %v3846 = vpop.f32.mrb[0].mxu0
      %3847 = vmatprep.mubr.bf16.mxu0 0
      %3848 = vmatmul.mubr.bf16.gmra.mrb[0].mxu0 %v3733
      %v3849 = vpop.f32.mrb[0].mxu0
      %v3850 = vadd.f32 %v3654, %v3849
      %v3851 = vpop.f32.mrb[0].mxu0
      %v3852 = vpop.f32.mrb[0].mxu0
      %v3853 = vadd.f32 %v3657, %v3852
      %v3854 = vpop.f32.mrb[0].mxu0
      %3855 = vmatprep.mubr.bf16.mxu0 0
      %3856 = vmatmul.mubr.bf16.gmra.mrb[0].mxu0 %v3736
      %v3857 = vpop.f32.mrb[0].mxu0
      %v3858 = vpop.f32.mrb[0].mxu0
      %v3859 = vpop.f32.mrb[0].mxu0
      %v3860 = vpop.f32.mrb[0].mxu0
      %3861 = vmatprep.mubr.bf16.mxu0 0
      %3862 = vmatmul.mubr.bf16.gmra.mrb[0].mxu0 %v3739
      %v3863 = vpop.f32.mrb[0].mxu0
      %v3864 = vadd.f32 %v3668, %v3863
      %v3865 = vpop.f32.mrb[0].mxu0
      %v3866 = vpop.f32.mrb[0].mxu0
      %v3867 = vadd.f32 %v3671, %v3866
      %v3868 = vpop.f32.mrb[0].mxu0
      %3869 = vmatprep.mubr.bf16.mxu0 0
      %3870 = vmatmul.mubr.bf16.gmra.mrb[0].mxu0 %v3742
      %v3871 = vpop.f32.mrb[0].mxu0
      %v3872 = vpop.f32.mrb[0].mxu0
      %v3873 = vpop.f32.mrb[0].mxu0
      %v3874 = vpop.f32.mrb[0].mxu0
      %3875 = vmatprep.mubr.bf16.mxu0 0
      %3876 = vmatmul.mubr.bf16.gmra.mrb[0].mxu0 %v3745
      %v3877 = vpop.f32.mrb[0].mxu0
      %v3878 = vadd.f32 %v3682, %v3877
      %v3879 = vpop.f32.mrb[0].mxu0
      %v3880 = vpop.f32.mrb[0].mxu0
      %v3881 = vadd.f32 %v3685, %v3880
      %v3882 = vpop.f32.mrb[0].mxu0
      %3883 = vmatprep.mubr.bf16.mxu0 0
      %3884 = vmatmul.mubr.bf16.gmra.mrb[0].mxu0 %v3748
      %v3885 = vpop.f32.mrb[0].mxu0
      %v3886 = vpop.f32.mrb[0].mxu0
      %v3887 = vpop.f32.mrb[0].mxu0
      %v3888 = vpop.f32.mrb[0].mxu0
      %3889 = vmatprep.mubr.bf16.mxu0 0
      %3890 = vmatmul.mubr.bf16.gmra.mrb[0].mxu0 %v3751
      %v3891 = vpop.f32.mrb[0].mxu0
      %v3892 = vadd.f32 %v3696, %v3891
      %v3893 = vpop.f32.mrb[0].mxu0
      %v3894 = vpop.f32.mrb[0].mxu0
      %v3895 = vadd.f32 %v3699, %v3894
      %v3896 = vpop.f32.mrb[0].mxu0
      %3897 = vmatprep.mubr.bf16.mxu0 0
      %3898 = vmatmul.mubr.bf16.gmra.mrb[0].mxu0 %v3754
      %v3899 = vpop.f32.mrb[0].mxu0
      %v3900 = vpop.f32.mrb[0].mxu0
      %v3901 = vpop.f32.mrb[0].mxu0
      %v3902 = vpop.f32.mrb[0].mxu0
      %3903 = vdwg.mxu0
      %v3904 = vld [vmem:[#allocation3 + $0x2] sm:$0xff]
      %v3905 = vld [vmem:[#allocation3 + $0xa] sm:$0xff]
      %v3906 = vld [vmem:[#allocation3 + $0x1a] sm:$0xff]
      %v3907 = vld [vmem:[#allocation3 + $0x22] sm:$0xff]
      %v3908 = vld [vmem:[#allocation3 + $0x32] sm:$0xff]
      %v3909 = vld [vmem:[#allocation3 + $0x3a] sm:$0xff]
      %v3910 = vld [vmem:[#allocation3 + $0x4a] sm:$0xff]
      %v3911 = vld [vmem:[#allocation3 + $0x52] sm:$0xff]
      %v3912 = vld [vmem:[#allocation3 + $0x62] sm:$0xff]
      %v3913 = vld [vmem:[#allocation3 + $0x6a] sm:$0xff]
      %v3914 = vld [vmem:[#allocation3 + $0x7a] sm:$0xff]
      %v3915 = vld [vmem:[#allocation3 + $0x82] sm:$0xff]
      %v3916 = vld [vmem:[#allocation3 + $0x92] sm:$0xff]
      %v3917 = vld [vmem:[#allocation3 + $0x9a] sm:$0xff]
      %v3918 = vld [vmem:[#allocation3 + $0xaa] sm:$0xff]
      %v3919 = vld [vmem:[#allocation3 + $0xb2] sm:$0xff]
      %v3920 = vld [vmem:[#allocation3 + $0xc2] sm:$0xff]
      %v3921 = vld [vmem:[#allocation3 + $0xca] sm:$0xff]
      %v3922 = vld [vmem:[#allocation3 + $0xda] sm:$0xff]
      %v3923 = vld [vmem:[#allocation3 + $0xe2] sm:$0xff]
      %v3924 = vld [vmem:[#allocation3 + $0xf2] sm:$0xff]
      %v3925 = vld [vmem:[#allocation3 + $0xfa] sm:$0xff]
      %v3926 = vld [vmem:[#allocation3 + $0x10a] sm:$0xff]
      %v3927 = vld [vmem:[#allocation3 + $0x112] sm:$0xff]
      %v3928 = vld [vmem:[#allocation3 + $0x122] sm:$0xff]
      %v3929 = vld [vmem:[#allocation3 + $0x12a] sm:$0xff]
      %v3930 = vld [vmem:[#allocation3 + $0x13a] sm:$0xff]
      %v3931 = vld [vmem:[#allocation3 + $0x142] sm:$0xff]
      %v3932 = vld [vmem:[#allocation3 + $0x152] sm:$0xff]
      %v3933 = vld [vmem:[#allocation3 + $0x15a] sm:$0xff]
      %v3934 = vld [vmem:[#allocation3 + $0x16a] sm:$0xff]
      %v3935 = vld [vmem:[#allocation3 + $0x172] sm:$0xff]
      %v3936 = vpack.c.bf16 %v3905, %v3904
      %v3937 = vpack.c.bf16 %v3907, %v3906
      %v3938 = vpack.c.bf16 %v3909, %v3908
      %v3939 = vpack.c.bf16 %v3911, %v3910
      %v3940 = vpack.c.bf16 %v3913, %v3912
      %v3941 = vpack.c.bf16 %v3915, %v3914
      %v3942 = vpack.c.bf16 %v3917, %v3916
      %v3943 = vpack.c.bf16 %v3919, %v3918
      %v3944 = vpack.c.bf16 %v3921, %v3920
      %v3945 = vpack.c.bf16 %v3923, %v3922
      %v3946 = vpack.c.bf16 %v3925, %v3924
      %v3947 = vpack.c.bf16 %v3927, %v3926
      %v3948 = vpack.c.bf16 %v3929, %v3928
      %v3949 = vpack.c.bf16 %v3931, %v3930
      %v3950 = vpack.c.bf16 %v3933, %v3932
      %v3951 = vpack.c.bf16 %v3935, %v3934
      %s3952 = scalar_lea.vmem %s3, 8
      %v3953 = vld [vmem:[%s3952] sm:$0xf]
      %v3955 = vsel %vm537, %v3936, 0
      %v3958 = vsel %vm537, %v3937, 0
      %v3961 = vsel %vm537, %v3938, 0
      %v3964 = vsel %vm537, %v3939, 0
      %v3967 = vsel %vm537, %v3940, 0
      %v3970 = vsel %vm537, %v3941, 0
      %v3973 = vsel %vm537, %v3942, 0
      %v3976 = vsel %vm537, %v3943, 0
      %v3979 = vsel %vm537, %v3944, 0
      %v3982 = vsel %vm537, %v3945, 0
      %v3985 = vsel %vm537, %v3946, 0
      %v3988 = vsel %vm537, %v3947, 0
      %v3991 = vsel %vm537, %v3948, 0
      %v3994 = vsel %vm537, %v3949, 0
      %v3997 = vsel %vm537, %v3950, 0
      %v4000 = vsel %vm537, %v3951, 0
      %v4003 = vsel %vm3559, %v3953, 0
      %4005 = vmatprep.subr.bf16.mxu0 0
      %4006 = vmatpush1.bf16.msra.mxu0 %v4003
      %4007 = vmatprep.subr.bf16.mxu0 0
      %4008 = vmatpush1.bf16.msra.mxu0 0
      %4009 = vmatprep.subr.bf16.mxu0 0
      %4010 = vmatpush1.bf16.msra.mxu0 0
      %4011 = vmatprep.subr.bf16.mxu0 0
      %4012 = vmatpush1.bf16.msra.mxu0 0
      %4013 = vmatprep.subr.bf16.mxu0 0
      %4014 = vmatpush1.bf16.msra.mxu0 0
      %4015 = vmatprep.subr.bf16.mxu0 0
      %4016 = vmatpush1.bf16.msra.mxu0 0
      %4017 = vmatprep.subr.bf16.mxu0 0
      %4018 = vmatpush1.bf16.msra.mxu0 0
      %4019 = vmatprep.subr.bf16.mxu0 0
      %4020 = vmatpush1.bf16.msra.mxu0 0
      %4021 = vmatprep.subr.bf16.mxu0 0
      %4022 = vmatpush1.bf16.msra.mxu0 0
      %4023 = vmatprep.subr.bf16.mxu0 0
      %4024 = vmatpush1.bf16.msra.mxu0 0
      %4025 = vmatprep.subr.bf16.mxu0 0
      %4026 = vmatpush1.bf16.msra.mxu0 0
      %4027 = vmatprep.subr.bf16.mxu0 0
      %4028 = vmatpush1.bf16.msra.mxu0 0
      %4029 = vmatprep.subr.bf16.mxu0 0
      %4030 = vmatpush1.bf16.msra.mxu0 0
      %4031 = vmatprep.subr.bf16.mxu0 0
      %4032 = vmatpush1.bf16.msra.mxu0 0
      %4033 = vmatprep.subr.bf16.mxu0 0
      %4034 = vmatpush1.bf16.msra.mxu0 0
      %4035 = vmatprep.subr.bf16.mxu0 0
      %4036 = vmatpush1.bf16.msra.mxu0 0
      %4037 = vmatprep.mubr.bf16.mxu0 0
      %4038 = vmatmul.mubr.bf16.gmra.mrb[0].mxu0 %v3955
      %v4039 = vpop.f32.mrb[0].mxu0
      %v4040 = vadd.f32 0.0, %v4039
      %v4041 = vpop.f32.mrb[0].mxu0
      %v4042 = vpop.f32.mrb[0].mxu0
      %v4043 = vadd.f32 0.0, %v4042
      %v4044 = vpop.f32.mrb[0].mxu0
      %4045 = vmatprep.mubr.bf16.mxu0 0
      %4046 = vmatmul.mubr.bf16.gmra.mrb[0].mxu0 %v3958
      %v4047 = vpop.f32.mrb[0].mxu0
      %v4048 = vpop.f32.mrb[0].mxu0
      %v4049 = vpop.f32.mrb[0].mxu0
      %v4050 = vpop.f32.mrb[0].mxu0
      %4051 = vmatprep.mubr.bf16.mxu0 0
      %4052 = vmatmul.mubr.bf16.gmra.mrb[0].mxu0 %v3961
      %v4053 = vpop.f32.mrb[0].mxu0
      %v4054 = vadd.f32 0.0, %v4053
      %v4055 = vpop.f32.mrb[0].mxu0
      %v4056 = vpop.f32.mrb[0].mxu0
      %v4057 = vadd.f32 0.0, %v4056
      %v4058 = vpop.f32.mrb[0].mxu0
      %4059 = vmatprep.mubr.bf16.mxu0 0
      %4060 = vmatmul.mubr.bf16.gmra.mrb[0].mxu0 %v3964
      %v4061 = vpop.f32.mrb[0].mxu0
      %v4062 = vpop.f32.mrb[0].mxu0
      %v4063 = vpop.f32.mrb[0].mxu0
      %v4064 = vpop.f32.mrb[0].mxu0
      %4065 = vmatprep.mubr.bf16.mxu0 0
      %4066 = vmatmul.mubr.bf16.gmra.mrb[0].mxu0 %v3967
      %v4067 = vpop.f32.mrb[0].mxu0
      %v4068 = vadd.f32 0.0, %v4067
      %v4069 = vpop.f32.mrb[0].mxu0
      %v4070 = vpop.f32.mrb[0].mxu0
      %v4071 = vadd.f32 0.0, %v4070
      %v4072 = vpop.f32.mrb[0].mxu0
      %4073 = vmatprep.mubr.bf16.mxu0 0
      %4074 = vmatmul.mubr.bf16.gmra.mrb[0].mxu0 %v3970
      %v4075 = vpop.f32.mrb[0].mxu0
      %v4076 = vpop.f32.mrb[0].mxu0
      %v4077 = vpop.f32.mrb[0].mxu0
      %v4078 = vpop.f32.mrb[0].mxu0
      %4079 = vmatprep.mubr.bf16.mxu0 0
      %4080 = vmatmul.mubr.bf16.gmra.mrb[0].mxu0 %v3973
      %v4081 = vpop.f32.mrb[0].mxu0
      %v4082 = vadd.f32 0.0, %v4081
      %v4083 = vpop.f32.mrb[0].mxu0
      %v4084 = vpop.f32.mrb[0].mxu0
      %v4085 = vadd.f32 0.0, %v4084
      %v4086 = vpop.f32.mrb[0].mxu0
      %4087 = vmatprep.mubr.bf16.mxu0 0
      %4088 = vmatmul.mubr.bf16.gmra.mrb[0].mxu0 %v3976
      %v4089 = vpop.f32.mrb[0].mxu0
      %v4090 = vpop.f32.mrb[0].mxu0
      %v4091 = vpop.f32.mrb[0].mxu0
      %v4092 = vpop.f32.mrb[0].mxu0
      %4093 = vmatprep.mubr.bf16.mxu0 0
      %4094 = vmatmul.mubr.bf16.gmra.mrb[0].mxu0 %v3979
      %v4095 = vpop.f32.mrb[0].mxu0
      %v4096 = vadd.f32 0.0, %v4095
      %v4097 = vpop.f32.mrb[0].mxu0
      %v4098 = vpop.f32.mrb[0].mxu0
      %v4099 = vadd.f32 0.0, %v4098
      %v4100 = vpop.f32.mrb[0].mxu0
      %4101 = vmatprep.mubr.bf16.mxu0 0
      %4102 = vmatmul.mubr.bf16.gmra.mrb[0].mxu0 %v3982
      %v4103 = vpop.f32.mrb[0].mxu0
      %v4104 = vpop.f32.mrb[0].mxu0
      %v4105 = vpop.f32.mrb[0].mxu0
      %v4106 = vpop.f32.mrb[0].mxu0
      %4107 = vmatprep.mubr.bf16.mxu0 0
      %4108 = vmatmul.mubr.bf16.gmra.mrb[0].mxu0 %v3985
      %v4109 = vpop.f32.mrb[0].mxu0
      %v4110 = vadd.f32 0.0, %v4109
      %v4111 = vpop.f32.mrb[0].mxu0
      %v4112 = vpop.f32.mrb[0].mxu0
      %v4113 = vadd.f32 0.0, %v4112
      %v4114 = vpop.f32.mrb[0].mxu0
      %4115 = vmatprep.mubr.bf16.mxu0 0
      %4116 = vmatmul.mubr.bf16.gmra.mrb[0].mxu0 %v3988
      %v4117 = vpop.f32.mrb[0].mxu0
      %v4118 = vpop.f32.mrb[0].mxu0
      %v4119 = vpop.f32.mrb[0].mxu0
      %v4120 = vpop.f32.mrb[0].mxu0
      %4121 = vmatprep.mubr.bf16.mxu0 0
      %4122 = vmatmul.mubr.bf16.gmra.mrb[0].mxu0 %v3991
      %v4123 = vpop.f32.mrb[0].mxu0
      %v4124 = vadd.f32 0.0, %v4123
      %v4125 = vpop.f32.mrb[0].mxu0
      %v4126 = vpop.f32.mrb[0].mxu0
      %v4127 = vadd.f32 0.0, %v4126
      %v4128 = vpop.f32.mrb[0].mxu0
      %4129 = vmatprep.mubr.bf16.mxu0 0
      %4130 = vmatmul.mubr.bf16.gmra.mrb[0].mxu0 %v3994
      %v4131 = vpop.f32.mrb[0].mxu0
      %v4132 = vpop.f32.mrb[0].mxu0
      %v4133 = vpop.f32.mrb[0].mxu0
      %v4134 = vpop.f32.mrb[0].mxu0
      %4135 = vmatprep.mubr.bf16.mxu0 0
      %4136 = vmatmul.mubr.bf16.gmra.mrb[0].mxu0 %v3997
      %v4137 = vpop.f32.mrb[0].mxu0
      %v4138 = vadd.f32 0.0, %v4137
      %v4139 = vpop.f32.mrb[0].mxu0
      %v4140 = vpop.f32.mrb[0].mxu0
      %v4141 = vadd.f32 0.0, %v4140
      %v4142 = vpop.f32.mrb[0].mxu0
      %4143 = vmatprep.mubr.bf16.mxu0 0
      %4144 = vmatmul.mubr.bf16.gmra.mrb[0].mxu0 %v4000
      %v4145 = vpop.f32.mrb[0].mxu0
      %v4146 = vpop.f32.mrb[0].mxu0
      %v4147 = vpop.f32.mrb[0].mxu0
      %v4148 = vpop.f32.mrb[0].mxu0
      %4149 = vdwg.mxu0
      %v4150 = vadd.f32 %v3794, %v4040
      %v4151 = vadd.f32 %v3797, %v4043
      %v4152 = vadd.f32 %v3808, %v4054
      %v4153 = vadd.f32 %v3811, %v4057
      %v4154 = vadd.f32 %v3822, %v4068
      %v4155 = vadd.f32 %v3825, %v4071
      %v4156 = vadd.f32 %v3836, %v4082
      %v4157 = vadd.f32 %v3839, %v4085
      %v4158 = vadd.f32 %v3850, %v4096
      %v4159 = vadd.f32 %v3853, %v4099
      %v4160 = vadd.f32 %v3864, %v4110
      %v4161 = vadd.f32 %v3867, %v4113
      %v4162 = vadd.f32 %v3878, %v4124
      %v4163 = vadd.f32 %v3881, %v4127
      %v4164 = vadd.f32 %v3892, %v4138
      %v4165 = vadd.f32 %v3895, %v4141
      %v4166 = vld [vmem:[%s546] sm:$0xff]
      %v4167 = vld [vmem:[%s546 + $0x8] sm:$0xff]
      %v4168 = vld [vmem:[%s546 + $0x18] sm:$0xff]
      %v4169 = vld [vmem:[%s546 + $0x20] sm:$0xff]
      %v4170 = vld [vmem:[%s546 + $0x30] sm:$0xff]
      %v4171 = vld [vmem:[%s546 + $0x38] sm:$0xff]
      %v4172 = vld [vmem:[%s546 + $0x48] sm:$0xff]
      %v4173 = vld [vmem:[%s546 + $0x50] sm:$0xff]
      %v4174 = vld [vmem:[%s546 + $0x60] sm:$0xff]
      %v4175 = vld [vmem:[%s546 + $0x68] sm:$0xff]
      %v4176 = vld [vmem:[%s546 + $0x78] sm:$0xff]
      %v4177 = vld [vmem:[%s546 + $0x80] sm:$0xff]
      %v4178 = vld [vmem:[%s546 + $0x90] sm:$0xff]
      %v4179 = vld [vmem:[%s546 + $0x98] sm:$0xff]
      %v4180 = vld [vmem:[%s546 + $0xa8] sm:$0xff]
      %v4181 = vld [vmem:[%s546 + $0xb0] sm:$0xff]
      %v4182 = vld [vmem:[%s546 + $0xc0] sm:$0xff]
      %v4183 = vld [vmem:[%s546 + $0xc8] sm:$0xff]
      %v4184 = vld [vmem:[%s546 + $0xd8] sm:$0xff]
      %v4185 = vld [vmem:[%s546 + $0xe0] sm:$0xff]
      %v4186 = vld [vmem:[%s546 + $0xf0] sm:$0xff]
      %v4187 = vld [vmem:[%s546 + $0xf8] sm:$0xff]
      %v4188 = vld [vmem:[%s546 + $0x108] sm:$0xff]
      %v4189 = vld [vmem:[%s546 + $0x110] sm:$0xff]
      %v4190 = vld [vmem:[%s546 + $0x120] sm:$0xff]
      %v4191 = vld [vmem:[%s546 + $0x128] sm:$0xff]
      %v4192 = vld [vmem:[%s546 + $0x138] sm:$0xff]
      %v4193 = vld [vmem:[%s546 + $0x140] sm:$0xff]
      %v4194 = vld [vmem:[%s546 + $0x150] sm:$0xff]
      %v4195 = vld [vmem:[%s546 + $0x158] sm:$0xff]
      %v4196 = vld [vmem:[%s546 + $0x168] sm:$0xff]
      %v4197 = vld [vmem:[%s546 + $0x170] sm:$0xff]
      %v4198 = vpack.c.bf16 %v4167, %v4166
      %v4199 = vpack.c.bf16 %v4169, %v4168
      %v4200 = vpack.c.bf16 %v4171, %v4170
      %v4201 = vpack.c.bf16 %v4173, %v4172
      %v4202 = vpack.c.bf16 %v4175, %v4174
      %v4203 = vpack.c.bf16 %v4177, %v4176
      %v4204 = vpack.c.bf16 %v4179, %v4178
      %v4205 = vpack.c.bf16 %v4181, %v4180
      %v4206 = vpack.c.bf16 %v4183, %v4182
      %v4207 = vpack.c.bf16 %v4185, %v4184
      %v4208 = vpack.c.bf16 %v4187, %v4186
      %v4209 = vpack.c.bf16 %v4189, %v4188
      %v4210 = vpack.c.bf16 %v4191, %v4190
      %v4211 = vpack.c.bf16 %v4193, %v4192
      %v4212 = vpack.c.bf16 %v4195, %v4194
      %v4213 = vpack.c.bf16 %v4197, %v4196
      %s4214 = scalar_lea.vmem %s3, 12
      %v4215 = vld [vmem:[%s4214] sm:$0xf]
      %v4217 = vsel %vm537, %v4198, 0
      %v4220 = vsel %vm537, %v4199, 0
      %v4223 = vsel %vm537, %v4200, 0
      %v4226 = vsel %vm537, %v4201, 0
      %v4229 = vsel %vm537, %v4202, 0
      %v4232 = vsel %vm537, %v4203, 0
      %v4235 = vsel %vm537, %v4204, 0
      %v4238 = vsel %vm537, %v4205, 0
      %v4241 = vsel %vm537, %v4206, 0
      %v4244 = vsel %vm537, %v4207, 0
      %v4247 = vsel %vm537, %v4208, 0
      %v4250 = vsel %vm537, %v4209, 0
      %v4253 = vsel %vm537, %v4210, 0
      %v4256 = vsel %vm537, %v4211, 0
      %v4259 = vsel %vm537, %v4212, 0
      %v4262 = vsel %vm537, %v4213, 0
      %v4265 = vsel %vm3559, %v4215, 0
      %4267 = vmatprep.subr.bf16.mxu0 0
      %4268 = vmatpush1.bf16.msra.mxu0 %v4265
      %4269 = vmatprep.subr.bf16.mxu0 0
      %4270 = vmatpush1.bf16.msra.mxu0 0
      %4271 = vmatprep.subr.bf16.mxu0 0
      %4272 = vmatpush1.bf16.msra.mxu0 0
      %4273 = vmatprep.subr.bf16.mxu0 0
      %4274 = vmatpush1.bf16.msra.mxu0 0
      %4275 = vmatprep.subr.bf16.mxu0 0
      %4276 = vmatpush1.bf16.msra.mxu0 0
      %4277 = vmatprep.subr.bf16.mxu0 0
      %4278 = vmatpush1.bf16.msra.mxu0 0
      %4279 = vmatprep.subr.bf16.mxu0 0
      %4280 = vmatpush1.bf16.msra.mxu0 0
      %4281 = vmatprep.subr.bf16.mxu0 0
      %4282 = vmatpush1.bf16.msra.mxu0 0
      %4283 = vmatprep.subr.bf16.mxu0 0
      %4284 = vmatpush1.bf16.msra.mxu0 0
      %4285 = vmatprep.subr.bf16.mxu0 0
      %4286 = vmatpush1.bf16.msra.mxu0 0
      %4287 = vmatprep.subr.bf16.mxu0 0
      %4288 = vmatpush1.bf16.msra.mxu0 0
      %4289 = vmatprep.subr.bf16.mxu0 0
      %4290 = vmatpush1.bf16.msra.mxu0 0
      %4291 = vmatprep.subr.bf16.mxu0 0
      %4292 = vmatpush1.bf16.msra.mxu0 0
      %4293 = vmatprep.subr.bf16.mxu0 0
      %4294 = vmatpush1.bf16.msra.mxu0 0
      %4295 = vmatprep.subr.bf16.mxu0 0
      %4296 = vmatpush1.bf16.msra.mxu0 0
      %4297 = vmatprep.subr.bf16.mxu0 0
      %4298 = vmatpush1.bf16.msra.mxu0 0
      %4299 = vmatprep.mubr.bf16.mxu0 0
      %4300 = vmatmul.mubr.bf16.gmra.mrb[0].mxu0 %v4217
      %v4301 = vpop.f32.mrb[0].mxu0
      %v4302 = vadd.f32 0.0, %v4301
      %v4303 = vpop.f32.mrb[0].mxu0
      %v4304 = vpop.f32.mrb[0].mxu0
      %v4305 = vadd.f32 0.0, %v4304
      %v4306 = vpop.f32.mrb[0].mxu0
      %4307 = vmatprep.mubr.bf16.mxu0 0
      %4308 = vmatmul.mubr.bf16.gmra.mrb[0].mxu0 %v4220
      %v4309 = vpop.f32.mrb[0].mxu0
      %v4310 = vpop.f32.mrb[0].mxu0
      %v4311 = vpop.f32.mrb[0].mxu0
      %v4312 = vpop.f32.mrb[0].mxu0
      %4313 = vmatprep.mubr.bf16.mxu0 0
      %4314 = vmatmul.mubr.bf16.gmra.mrb[0].mxu0 %v4223
      %v4315 = vpop.f32.mrb[0].mxu0
      %v4316 = vadd.f32 0.0, %v4315
      %v4317 = vpop.f32.mrb[0].mxu0
      %v4318 = vpop.f32.mrb[0].mxu0
      %v4319 = vadd.f32 0.0, %v4318
      %v4320 = vpop.f32.mrb[0].mxu0
      %4321 = vmatprep.mubr.bf16.mxu0 0
      %4322 = vmatmul.mubr.bf16.gmra.mrb[0].mxu0 %v4226
      %v4323 = vpop.f32.mrb[0].mxu0
      %v4324 = vpop.f32.mrb[0].mxu0
      %v4325 = vpop.f32.mrb[0].mxu0
      %v4326 = vpop.f32.mrb[0].mxu0
      %4327 = vmatprep.mubr.bf16.mxu0 0
      %4328 = vmatmul.mubr.bf16.gmra.mrb[0].mxu0 %v4229
      %v4329 = vpop.f32.mrb[0].mxu0
      %v4330 = vadd.f32 0.0, %v4329
      %v4331 = vpop.f32.mrb[0].mxu0
      %v4332 = vpop.f32.mrb[0].mxu0
      %v4333 = vadd.f32 0.0, %v4332
      %v4334 = vpop.f32.mrb[0].mxu0
      %4335 = vmatprep.mubr.bf16.mxu0 0
      %4336 = vmatmul.mubr.bf16.gmra.mrb[0].mxu0 %v4232
      %v4337 = vpop.f32.mrb[0].mxu0
      %v4338 = vpop.f32.mrb[0].mxu0
      %v4339 = vpop.f32.mrb[0].mxu0
      %v4340 = vpop.f32.mrb[0].mxu0
      %4341 = vmatprep.mubr.bf16.mxu0 0
      %4342 = vmatmul.mubr.bf16.gmra.mrb[0].mxu0 %v4235
      %v4343 = vpop.f32.mrb[0].mxu0
      %v4344 = vadd.f32 0.0, %v4343
      %v4345 = vpop.f32.mrb[0].mxu0
      %v4346 = vpop.f32.mrb[0].mxu0
      %v4347 = vadd.f32 0.0, %v4346
      %v4348 = vpop.f32.mrb[0].mxu0
      %4349 = vmatprep.mubr.bf16.mxu0 0
      %4350 = vmatmul.mubr.bf16.gmra.mrb[0].mxu0 %v4238
      %v4351 = vpop.f32.mrb[0].mxu0
      %v4352 = vpop.f32.mrb[0].mxu0
      %v4353 = vpop.f32.mrb[0].mxu0
      %v4354 = vpop.f32.mrb[0].mxu0
      %4355 = vmatprep.mubr.bf16.mxu0 0
      %4356 = vmatmul.mubr.bf16.gmra.mrb[0].mxu0 %v4241
      %v4357 = vpop.f32.mrb[0].mxu0
      %v4358 = vadd.f32 0.0, %v4357
      %v4359 = vpop.f32.mrb[0].mxu0
      %v4360 = vpop.f32.mrb[0].mxu0
      %v4361 = vadd.f32 0.0, %v4360
      %v4362 = vpop.f32.mrb[0].mxu0
      %4363 = vmatprep.mubr.bf16.mxu0 0
      %4364 = vmatmul.mubr.bf16.gmra.mrb[0].mxu0 %v4244
      %v4365 = vpop.f32.mrb[0].mxu0
      %v4366 = vpop.f32.mrb[0].mxu0
      %v4367 = vpop.f32.mrb[0].mxu0
      %v4368 = vpop.f32.mrb[0].mxu0
      %4369 = vmatprep.mubr.bf16.mxu0 0
      %4370 = vmatmul.mubr.bf16.gmra.mrb[0].mxu0 %v4247
      %v4371 = vpop.f32.mrb[0].mxu0
      %v4372 = vadd.f32 0.0, %v4371
      %v4373 = vpop.f32.mrb[0].mxu0
      %v4374 = vpop.f32.mrb[0].mxu0
      %v4375 = vadd.f32 0.0, %v4374
      %v4376 = vpop.f32.mrb[0].mxu0
      %4377 = vmatprep.mubr.bf16.mxu0 0
      %4378 = vmatmul.mubr.bf16.gmra.mrb[0].mxu0 %v4250
      %v4379 = vpop.f32.mrb[0].mxu0
      %v4380 = vpop.f32.mrb[0].mxu0
      %v4381 = vpop.f32.mrb[0].mxu0
      %v4382 = vpop.f32.mrb[0].mxu0
      %4383 = vmatprep.mubr.bf16.mxu0 0
      %4384 = vmatmul.mubr.bf16.gmra.mrb[0].mxu0 %v4253
      %v4385 = vpop.f32.mrb[0].mxu0
      %v4386 = vadd.f32 0.0, %v4385
      %v4387 = vpop.f32.mrb[0].mxu0
      %v4388 = vpop.f32.mrb[0].mxu0
      %v4389 = vadd.f32 0.0, %v4388
      %v4390 = vpop.f32.mrb[0].mxu0
      %4391 = vmatprep.mubr.bf16.mxu0 0
      %4392 = vmatmul.mubr.bf16.gmra.mrb[0].mxu0 %v4256
      %v4393 = vpop.f32.mrb[0].mxu0
      %v4394 = vpop.f32.mrb[0].mxu0
      %v4395 = vpop.f32.mrb[0].mxu0
      %v4396 = vpop.f32.mrb[0].mxu0
      %4397 = vmatprep.mubr.bf16.mxu0 0
      %4398 = vmatmul.mubr.bf16.gmra.mrb[0].mxu0 %v4259
      %v4399 = vpop.f32.mrb[0].mxu0
      %v4400 = vadd.f32 0.0, %v4399
      %v4401 = vpop.f32.mrb[0].mxu0
      %v4402 = vpop.f32.mrb[0].mxu0
      %v4403 = vadd.f32 0.0, %v4402
      %v4404 = vpop.f32.mrb[0].mxu0
      %4405 = vmatprep.mubr.bf16.mxu0 0
      %4406 = vmatmul.mubr.bf16.gmra.mrb[0].mxu0 %v4262
      %v4407 = vpop.f32.mrb[0].mxu0
      %v4408 = vpop.f32.mrb[0].mxu0
      %v4409 = vpop.f32.mrb[0].mxu0
      %v4410 = vpop.f32.mrb[0].mxu0
      %4411 = vdwg.mxu0
      %v4412 = vadd.f32 %v4150, %v4302
      %v4413 = vadd.f32 %v4151, %v4305
      %v4414 = vadd.f32 %v4152, %v4316
      %v4415 = vadd.f32 %v4153, %v4319
      %v4416 = vadd.f32 %v4154, %v4330
      %v4417 = vadd.f32 %v4155, %v4333
      %v4418 = vadd.f32 %v4156, %v4344
      %v4419 = vadd.f32 %v4157, %v4347
      %v4420 = vadd.f32 %v4158, %v4358
      %v4421 = vadd.f32 %v4159, %v4361
      %v4422 = vadd.f32 %v4160, %v4372
      %v4423 = vadd.f32 %v4161, %v4375
      %v4424 = vadd.f32 %v4162, %v4386
      %v4425 = vadd.f32 %v4163, %v4389
      %v4426 = vadd.f32 %v4164, %v4400
      %v4427 = vadd.f32 %v4165, %v4403
      %v4428 = vld [vmem:[%s546 + $0x1] sm:$0xff]
      %v4429 = vld [vmem:[%s546 + $0x9] sm:$0xff]
      %v4430 = vld [vmem:[%s546 + $0x19] sm:$0xff]
      %v4431 = vld [vmem:[%s546 + $0x21] sm:$0xff]
      %v4432 = vld [vmem:[%s546 + $0x31] sm:$0xff]
      %v4433 = vld [vmem:[%s546 + $0x39] sm:$0xff]
      %v4434 = vld [vmem:[%s546 + $0x49] sm:$0xff]
      %v4435 = vld [vmem:[%s546 + $0x51] sm:$0xff]
      %v4436 = vld [vmem:[%s546 + $0x61] sm:$0xff]
      %v4437 = vld [vmem:[%s546 + $0x69] sm:$0xff]
      %v4438 = vld [vmem:[%s546 + $0x79] sm:$0xff]
      %v4439 = vld [vmem:[%s546 + $0x81] sm:$0xff]
      %v4440 = vld [vmem:[%s546 + $0x91] sm:$0xff]
      %v4441 = vld [vmem:[%s546 + $0x99] sm:$0xff]
      %v4442 = vld [vmem:[%s546 + $0xa9] sm:$0xff]
      %v4443 = vld [vmem:[%s546 + $0xb1] sm:$0xff]
      %v4444 = vld [vmem:[%s546 + $0xc1] sm:$0xff]
      %v4445 = vld [vmem:[%s546 + $0xc9] sm:$0xff]
      %v4446 = vld [vmem:[%s546 + $0xd9] sm:$0xff]
      %v4447 = vld [vmem:[%s546 + $0xe1] sm:$0xff]
      %v4448 = vld [vmem:[%s546 + $0xf1] sm:$0xff]
      %v4449 = vld [vmem:[%s546 + $0xf9] sm:$0xff]
      %v4450 = vld [vmem:[%s546 + $0x109] sm:$0xff]
      %v4451 = vld [vmem:[%s546 + $0x111] sm:$0xff]
      %v4452 = vld [vmem:[%s546 + $0x121] sm:$0xff]
      %v4453 = vld [vmem:[%s546 + $0x129] sm:$0xff]
      %v4454 = vld [vmem:[%s546 + $0x139] sm:$0xff]
      %v4455 = vld [vmem:[%s546 + $0x141] sm:$0xff]
      %v4456 = vld [vmem:[%s546 + $0x151] sm:$0xff]
      %v4457 = vld [vmem:[%s546 + $0x159] sm:$0xff]
      %v4458 = vld [vmem:[%s546 + $0x169] sm:$0xff]
      %v4459 = vld [vmem:[%s546 + $0x171] sm:$0xff]
      %v4460 = vpack.c.bf16 %v4429, %v4428
      %v4461 = vpack.c.bf16 %v4431, %v4430
      %v4462 = vpack.c.bf16 %v4433, %v4432
      %v4463 = vpack.c.bf16 %v4435, %v4434
      %v4464 = vpack.c.bf16 %v4437, %v4436
      %v4465 = vpack.c.bf16 %v4439, %v4438
      %v4466 = vpack.c.bf16 %v4441, %v4440
      %v4467 = vpack.c.bf16 %v4443, %v4442
      %v4468 = vpack.c.bf16 %v4445, %v4444
      %v4469 = vpack.c.bf16 %v4447, %v4446
      %v4470 = vpack.c.bf16 %v4449, %v4448
      %v4471 = vpack.c.bf16 %v4451, %v4450
      %v4472 = vpack.c.bf16 %v4453, %v4452
      %v4473 = vpack.c.bf16 %v4455, %v4454
      %v4474 = vpack.c.bf16 %v4457, %v4456
      %v4475 = vpack.c.bf16 %v4459, %v4458
      %s4476 = scalar_lea.vmem %s3, 16
      %v4477 = vld [vmem:[%s4476] sm:$0xf]
      %v4479 = vsel %vm537, %v4460, 0
      %v4482 = vsel %vm537, %v4461, 0
      %v4485 = vsel %vm537, %v4462, 0
      %v4488 = vsel %vm537, %v4463, 0
      %v4491 = vsel %vm537, %v4464, 0
      %v4494 = vsel %vm537, %v4465, 0
      %v4497 = vsel %vm537, %v4466, 0
      %v4500 = vsel %vm537, %v4467, 0
      %v4503 = vsel %vm537, %v4468, 0
      %v4506 = vsel %vm537, %v4469, 0
      %v4509 = vsel %vm537, %v4470, 0
      %v4512 = vsel %vm537, %v4471, 0
      %v4515 = vsel %vm537, %v4472, 0
      %v4518 = vsel %vm537, %v4473, 0
      %v4521 = vsel %vm537, %v4474, 0
      %v4524 = vsel %vm537, %v4475, 0
      %v4527 = vsel %vm3559, %v4477, 0
      %4529 = vmatprep.subr.bf16.mxu0 0
      %4530 = vmatpush1.bf16.msra.mxu0 %v4527
      %4531 = vmatprep.subr.bf16.mxu0 0
      %4532 = vmatpush1.bf16.msra.mxu0 0
      %4533 = vmatprep.subr.bf16.mxu0 0
      %4534 = vmatpush1.bf16.msra.mxu0 0
      %4535 = vmatprep.subr.bf16.mxu0 0
      %4536 = vmatpush1.bf16.msra.mxu0 0
      %4537 = vmatprep.subr.bf16.mxu0 0
      %4538 = vmatpush1.bf16.msra.mxu0 0
      %4539 = vmatprep.subr.bf16.mxu0 0
      %4540 = vmatpush1.bf16.msra.mxu0 0
      %4541 = vmatprep.subr.bf16.mxu0 0
      %4542 = vmatpush1.bf16.msra.mxu0 0
      %4543 = vmatprep.subr.bf16.mxu0 0
      %4544 = vmatpush1.bf16.msra.mxu0 0
      %4545 = vmatprep.subr.bf16.mxu0 0
      %4546 = vmatpush1.bf16.msra.mxu0 0
      %4547 = vmatprep.subr.bf16.mxu0 0
      %4548 = vmatpush1.bf16.msra.mxu0 0
      %4549 = vmatprep.subr.bf16.mxu0 0
      %4550 = vmatpush1.bf16.msra.mxu0 0
      %4551 = vmatprep.subr.bf16.mxu0 0
      %4552 = vmatpush1.bf16.msra.mxu0 0
      %4553 = vmatprep.subr.bf16.mxu0 0
      %4554 = vmatpush1.bf16.msra.mxu0 0
      %4555 = vmatprep.subr.bf16.mxu0 0
      %4556 = vmatpush1.bf16.msra.mxu0 0
      %4557 = vmatprep.subr.bf16.mxu0 0
      %4558 = vmatpush1.bf16.msra.mxu0 0
      %4559 = vmatprep.subr.bf16.mxu0 0
      %4560 = vmatpush1.bf16.msra.mxu0 0
      %4561 = vmatprep.mubr.bf16.mxu0 0
      %4562 = vmatmul.mubr.bf16.gmra.mrb[0].mxu0 %v4479
      %v4563 = vpop.f32.mrb[0].mxu0
      %v4564 = vadd.f32 0.0, %v4563
      %v4565 = vpop.f32.mrb[0].mxu0
      %v4566 = vpop.f32.mrb[0].mxu0
      %v4567 = vadd.f32 0.0, %v4566
      %v4568 = vpop.f32.mrb[0].mxu0
      %4569 = vmatprep.mubr.bf16.mxu0 0
      %4570 = vmatmul.mubr.bf16.gmra.mrb[0].mxu0 %v4482
      %v4571 = vpop.f32.mrb[0].mxu0
      %v4572 = vpop.f32.mrb[0].mxu0
      %v4573 = vpop.f32.mrb[0].mxu0
      %v4574 = vpop.f32.mrb[0].mxu0
      %4575 = vmatprep.mubr.bf16.mxu0 0
      %4576 = vmatmul.mubr.bf16.gmra.mrb[0].mxu0 %v4485
      %v4577 = vpop.f32.mrb[0].mxu0
      %v4578 = vadd.f32 0.0, %v4577
      %v4579 = vpop.f32.mrb[0].mxu0
      %v4580 = vpop.f32.mrb[0].mxu0
      %v4581 = vadd.f32 0.0, %v4580
      %v4582 = vpop.f32.mrb[0].mxu0
      %4583 = vmatprep.mubr.bf16.mxu0 0
      %4584 = vmatmul.mubr.bf16.gmra.mrb[0].mxu0 %v4488
      %v4585 = vpop.f32.mrb[0].mxu0
      %v4586 = vpop.f32.mrb[0].mxu0
      %v4587 = vpop.f32.mrb[0].mxu0
      %v4588 = vpop.f32.mrb[0].mxu0
      %4589 = vmatprep.mubr.bf16.mxu0 0
      %4590 = vmatmul.mubr.bf16.gmra.mrb[0].mxu0 %v4491
      %v4591 = vpop.f32.mrb[0].mxu0
      %v4592 = vadd.f32 0.0, %v4591
      %v4593 = vpop.f32.mrb[0].mxu0
      %v4594 = vpop.f32.mrb[0].mxu0
      %v4595 = vadd.f32 0.0, %v4594
      %v4596 = vpop.f32.mrb[0].mxu0
      %4597 = vmatprep.mubr.bf16.mxu0 0
      %4598 = vmatmul.mubr.bf16.gmra.mrb[0].mxu0 %v4494
      %v4599 = vpop.f32.mrb[0].mxu0
      %v4600 = vpop.f32.mrb[0].mxu0
      %v4601 = vpop.f32.mrb[0].mxu0
      %v4602 = vpop.f32.mrb[0].mxu0
      %4603 = vmatprep.mubr.bf16.mxu0 0
      %4604 = vmatmul.mubr.bf16.gmra.mrb[0].mxu0 %v4497
      %v4605 = vpop.f32.mrb[0].mxu0
      %v4606 = vadd.f32 0.0, %v4605
      %v4607 = vpop.f32.mrb[0].mxu0
      %v4608 = vpop.f32.mrb[0].mxu0
      %v4609 = vadd.f32 0.0, %v4608
      %v4610 = vpop.f32.mrb[0].mxu0
      %4611 = vmatprep.mubr.bf16.mxu0 0
      %4612 = vmatmul.mubr.bf16.gmra.mrb[0].mxu0 %v4500
      %v4613 = vpop.f32.mrb[0].mxu0
      %v4614 = vpop.f32.mrb[0].mxu0
      %v4615 = vpop.f32.mrb[0].mxu0
      %v4616 = vpop.f32.mrb[0].mxu0
      %4617 = vmatprep.mubr.bf16.mxu0 0
      %4618 = vmatmul.mubr.bf16.gmra.mrb[0].mxu0 %v4503
      %v4619 = vpop.f32.mrb[0].mxu0
      %v4620 = vadd.f32 0.0, %v4619
      %v4621 = vpop.f32.mrb[0].mxu0
      %v4622 = vpop.f32.mrb[0].mxu0
      %v4623 = vadd.f32 0.0, %v4622
      %v4624 = vpop.f32.mrb[0].mxu0
      %4625 = vmatprep.mubr.bf16.mxu0 0
      %4626 = vmatmul.mubr.bf16.gmra.mrb[0].mxu0 %v4506
      %v4627 = vpop.f32.mrb[0].mxu0
      %v4628 = vpop.f32.mrb[0].mxu0
      %v4629 = vpop.f32.mrb[0].mxu0
      %v4630 = vpop.f32.mrb[0].mxu0
      %4631 = vmatprep.mubr.bf16.mxu0 0
      %4632 = vmatmul.mubr.bf16.gmra.mrb[0].mxu0 %v4509
      %v4633 = vpop.f32.mrb[0].mxu0
      %v4634 = vadd.f32 0.0, %v4633
      %v4635 = vpop.f32.mrb[0].mxu0
      %v4636 = vpop.f32.mrb[0].mxu0
      %v4637 = vadd.f32 0.0, %v4636
      %v4638 = vpop.f32.mrb[0].mxu0
      %4639 = vmatprep.mubr.bf16.mxu0 0
      %4640 = vmatmul.mubr.bf16.gmra.mrb[0].mxu0 %v4512
      %v4641 = vpop.f32.mrb[0].mxu0
      %v4642 = vpop.f32.mrb[0].mxu0
      %v4643 = vpop.f32.mrb[0].mxu0
      %v4644 = vpop.f32.mrb[0].mxu0
      %4645 = vmatprep.mubr.bf16.mxu0 0
      %4646 = vmatmul.mubr.bf16.gmra.mrb[0].mxu0 %v4515
      %v4647 = vpop.f32.mrb[0].mxu0
      %v4648 = vadd.f32 0.0, %v4647
      %v4649 = vpop.f32.mrb[0].mxu0
      %v4650 = vpop.f32.mrb[0].mxu0
      %v4651 = vadd.f32 0.0, %v4650
      %v4652 = vpop.f32.mrb[0].mxu0
      %4653 = vmatprep.mubr.bf16.mxu0 0
      %4654 = vmatmul.mubr.bf16.gmra.mrb[0].mxu0 %v4518
      %v4655 = vpop.f32.mrb[0].mxu0
      %v4656 = vpop.f32.mrb[0].mxu0
      %v4657 = vpop.f32.mrb[0].mxu0
      %v4658 = vpop.f32.mrb[0].mxu0
      %4659 = vmatprep.mubr.bf16.mxu0 0
      %4660 = vmatmul.mubr.bf16.gmra.mrb[0].mxu0 %v4521
      %v4661 = vpop.f32.mrb[0].mxu0
      %v4662 = vadd.f32 0.0, %v4661
      %v4663 = vpop.f32.mrb[0].mxu0
      %v4664 = vpop.f32.mrb[0].mxu0
      %v4665 = vadd.f32 0.0, %v4664
      %v4666 = vpop.f32.mrb[0].mxu0
      %4667 = vmatprep.mubr.bf16.mxu0 0
      %4668 = vmatmul.mubr.bf16.gmra.mrb[0].mxu0 %v4524
      %v4669 = vpop.f32.mrb[0].mxu0
      %v4670 = vpop.f32.mrb[0].mxu0
      %v4671 = vpop.f32.mrb[0].mxu0
      %v4672 = vpop.f32.mrb[0].mxu0
      %4673 = vdwg.mxu0
      %v4674 = vadd.f32 %v4412, %v4564
      %v4675 = vadd.f32 %v4413, %v4567
      %v4676 = vadd.f32 %v4414, %v4578
      %v4677 = vadd.f32 %v4415, %v4581
      %v4678 = vadd.f32 %v4416, %v4592
      %v4679 = vadd.f32 %v4417, %v4595
      %v4680 = vadd.f32 %v4418, %v4606
      %v4681 = vadd.f32 %v4419, %v4609
      %v4682 = vadd.f32 %v4420, %v4620
      %v4683 = vadd.f32 %v4421, %v4623
      %v4684 = vadd.f32 %v4422, %v4634
      %v4685 = vadd.f32 %v4423, %v4637
      %v4686 = vadd.f32 %v4424, %v4648
      %v4687 = vadd.f32 %v4425, %v4651
      %v4688 = vadd.f32 %v4426, %v4662
      %v4689 = vadd.f32 %v4427, %v4665
      %v4690 = vld [vmem:[%s546 + $0x2] sm:$0xff]
      %v4691 = vld [vmem:[%s546 + $0xa] sm:$0xff]
      %v4692 = vld [vmem:[%s546 + $0x1a] sm:$0xff]
      %v4693 = vld [vmem:[%s546 + $0x22] sm:$0xff]
      %v4694 = vld [vmem:[%s546 + $0x32] sm:$0xff]
      %v4695 = vld [vmem:[%s546 + $0x3a] sm:$0xff]
      %v4696 = vld [vmem:[%s546 + $0x4a] sm:$0xff]
      %v4697 = vld [vmem:[%s546 + $0x52] sm:$0xff]
      %v4698 = vld [vmem:[%s546 + $0x62] sm:$0xff]
      %v4699 = vld [vmem:[%s546 + $0x6a] sm:$0xff]
      %v4700 = vld [vmem:[%s546 + $0x7a] sm:$0xff]
      %v4701 = vld [vmem:[%s546 + $0x82] sm:$0xff]
      %v4702 = vld [vmem:[%s546 + $0x92] sm:$0xff]
      %v4703 = vld [vmem:[%s546 + $0x9a] sm:$0xff]
      %v4704 = vld [vmem:[%s546 + $0xaa] sm:$0xff]
      %v4705 = vld [vmem:[%s546 + $0xb2] sm:$0xff]
      %v4706 = vld [vmem:[%s546 + $0xc2] sm:$0xff]
      %v4707 = vld [vmem:[%s546 + $0xca] sm:$0xff]
      %v4708 = vld [vmem:[%s546 + $0xda] sm:$0xff]
      %v4709 = vld [vmem:[%s546 + $0xe2] sm:$0xff]
      %v4710 = vld [vmem:[%s546 + $0xf2] sm:$0xff]
      %v4711 = vld [vmem:[%s546 + $0xfa] sm:$0xff]
      %v4712 = vld [vmem:[%s546 + $0x10a] sm:$0xff]
      %v4713 = vld [vmem:[%s546 + $0x112] sm:$0xff]
      %v4714 = vld [vmem:[%s546 + $0x122] sm:$0xff]
      %v4715 = vld [vmem:[%s546 + $0x12a] sm:$0xff]
      %v4716 = vld [vmem:[%s546 + $0x13a] sm:$0xff]
      %v4717 = vld [vmem:[%s546 + $0x142] sm:$0xff]
      %v4718 = vld [vmem:[%s546 + $0x152] sm:$0xff]
      %v4719 = vld [vmem:[%s546 + $0x15a] sm:$0xff]
      %v4720 = vld [vmem:[%s546 + $0x16a] sm:$0xff]
      %v4721 = vld [vmem:[%s546 + $0x172] sm:$0xff]
      %v4722 = vpack.c.bf16 %v4691, %v4690
      %v4723 = vpack.c.bf16 %v4693, %v4692
      %v4724 = vpack.c.bf16 %v4695, %v4694
      %v4725 = vpack.c.bf16 %v4697, %v4696
      %v4726 = vpack.c.bf16 %v4699, %v4698
      %v4727 = vpack.c.bf16 %v4701, %v4700
      %v4728 = vpack.c.bf16 %v4703, %v4702
      %v4729 = vpack.c.bf16 %v4705, %v4704
      %v4730 = vpack.c.bf16 %v4707, %v4706
      %v4731 = vpack.c.bf16 %v4709, %v4708
      %v4732 = vpack.c.bf16 %v4711, %v4710
      %v4733 = vpack.c.bf16 %v4713, %v4712
      %v4734 = vpack.c.bf16 %v4715, %v4714
      %v4735 = vpack.c.bf16 %v4717, %v4716
      %v4736 = vpack.c.bf16 %v4719, %v4718
      %v4737 = vpack.c.bf16 %v4721, %v4720
      %s4738 = scalar_lea.vmem %s3, 20
      %v4739 = vld [vmem:[%s4738] sm:$0xf]
      %v4741 = vsel %vm537, %v4722, 0
      %v4744 = vsel %vm537, %v4723, 0
      %v4747 = vsel %vm537, %v4724, 0
      %v4750 = vsel %vm537, %v4725, 0
      %v4753 = vsel %vm537, %v4726, 0
      %v4756 = vsel %vm537, %v4727, 0
      %v4759 = vsel %vm537, %v4728, 0
      %v4762 = vsel %vm537, %v4729, 0
      %v4765 = vsel %vm537, %v4730, 0
      %v4768 = vsel %vm537, %v4731, 0
      %v4771 = vsel %vm537, %v4732, 0
      %v4774 = vsel %vm537, %v4733, 0
      %v4777 = vsel %vm537, %v4734, 0
      %v4780 = vsel %vm537, %v4735, 0
      %v4783 = vsel %vm537, %v4736, 0
      %v4786 = vsel %vm537, %v4737, 0
      %v4789 = vsel %vm3559, %v4739, 0
      %4791 = vmatprep.subr.bf16.mxu0 0
      %4792 = vmatpush1.bf16.msra.mxu0 %v4789
      %4793 = vmatprep.subr.bf16.mxu0 0
      %4794 = vmatpush1.bf16.msra.mxu0 0
      %4795 = vmatprep.subr.bf16.mxu0 0
      %4796 = vmatpush1.bf16.msra.mxu0 0
      %4797 = vmatprep.subr.bf16.mxu0 0
      %4798 = vmatpush1.bf16.msra.mxu0 0
      %4799 = vmatprep.subr.bf16.mxu0 0
      %4800 = vmatpush1.bf16.msra.mxu0 0
      %4801 = vmatprep.subr.bf16.mxu0 0
      %4802 = vmatpush1.bf16.msra.mxu0 0
      %4803 = vmatprep.subr.bf16.mxu0 0
      %4804 = vmatpush1.bf16.msra.mxu0 0
      %4805 = vmatprep.subr.bf16.mxu0 0
      %4806 = vmatpush1.bf16.msra.mxu0 0
      %4807 = vmatprep.subr.bf16.mxu0 0
      %4808 = vmatpush1.bf16.msra.mxu0 0
      %4809 = vmatprep.subr.bf16.mxu0 0
      %4810 = vmatpush1.bf16.msra.mxu0 0
      %4811 = vmatprep.subr.bf16.mxu0 0
      %4812 = vmatpush1.bf16.msra.mxu0 0
      %4813 = vmatprep.subr.bf16.mxu0 0
      %4814 = vmatpush1.bf16.msra.mxu0 0
      %4815 = vmatprep.subr.bf16.mxu0 0
      %4816 = vmatpush1.bf16.msra.mxu0 0
      %4817 = vmatprep.subr.bf16.mxu0 0
      %4818 = vmatpush1.bf16.msra.mxu0 0
      %4819 = vmatprep.subr.bf16.mxu0 0
      %4820 = vmatpush1.bf16.msra.mxu0 0
      %4821 = vmatprep.subr.bf16.mxu0 0
      %4822 = vmatpush1.bf16.msra.mxu0 0
      %4823 = vmatprep.mubr.bf16.mxu0 0
      %4824 = vmatmul.mubr.bf16.gmra.mrb[0].mxu0 %v4741
      %v4825 = vpop.f32.mrb[0].mxu0
      %v4826 = vadd.f32 0.0, %v4825
      %v4827 = vpop.f32.mrb[0].mxu0
      %v4828 = vpop.f32.mrb[0].mxu0
      %v4829 = vadd.f32 0.0, %v4828
      %v4830 = vpop.f32.mrb[0].mxu0
      %4831 = vmatprep.mubr.bf16.mxu0 0
      %4832 = vmatmul.mubr.bf16.gmra.mrb[0].mxu0 %v4744
      %v4833 = vpop.f32.mrb[0].mxu0
      %v4834 = vpop.f32.mrb[0].mxu0
      %v4835 = vpop.f32.mrb[0].mxu0
      %v4836 = vpop.f32.mrb[0].mxu0
      %4837 = vmatprep.mubr.bf16.mxu0 0
      %4838 = vmatmul.mubr.bf16.gmra.mrb[0].mxu0 %v4747
      %v4839 = vpop.f32.mrb[0].mxu0
      %v4840 = vadd.f32 0.0, %v4839
      %v4841 = vpop.f32.mrb[0].mxu0
      %v4842 = vpop.f32.mrb[0].mxu0
      %v4843 = vadd.f32 0.0, %v4842
      %v4844 = vpop.f32.mrb[0].mxu0
      %4845 = vmatprep.mubr.bf16.mxu0 0
      %4846 = vmatmul.mubr.bf16.gmra.mrb[0].mxu0 %v4750
      %v4847 = vpop.f32.mrb[0].mxu0
      %v4848 = vpop.f32.mrb[0].mxu0
      %v4849 = vpop.f32.mrb[0].mxu0
      %v4850 = vpop.f32.mrb[0].mxu0
      %4851 = vmatprep.mubr.bf16.mxu0 0
      %4852 = vmatmul.mubr.bf16.gmra.mrb[0].mxu0 %v4753
      %v4853 = vpop.f32.mrb[0].mxu0
      %v4854 = vadd.f32 0.0, %v4853
      %v4855 = vpop.f32.mrb[0].mxu0
      %v4856 = vpop.f32.mrb[0].mxu0
      %v4857 = vadd.f32 0.0, %v4856
      %v4858 = vpop.f32.mrb[0].mxu0
      %4859 = vmatprep.mubr.bf16.mxu0 0
      %4860 = vmatmul.mubr.bf16.gmra.mrb[0].mxu0 %v4756
      %v4861 = vpop.f32.mrb[0].mxu0
      %v4862 = vpop.f32.mrb[0].mxu0
      %v4863 = vpop.f32.mrb[0].mxu0
      %v4864 = vpop.f32.mrb[0].mxu0
      %4865 = vmatprep.mubr.bf16.mxu0 0
      %4866 = vmatmul.mubr.bf16.gmra.mrb[0].mxu0 %v4759
      %v4867 = vpop.f32.mrb[0].mxu0
      %v4868 = vadd.f32 0.0, %v4867
      %v4869 = vpop.f32.mrb[0].mxu0
      %v4870 = vpop.f32.mrb[0].mxu0
      %v4871 = vadd.f32 0.0, %v4870
      %v4872 = vpop.f32.mrb[0].mxu0
      %4873 = vmatprep.mubr.bf16.mxu0 0
      %4874 = vmatmul.mubr.bf16.gmra.mrb[0].mxu0 %v4762
      %v4875 = vpop.f32.mrb[0].mxu0
      %v4876 = vpop.f32.mrb[0].mxu0
      %v4877 = vpop.f32.mrb[0].mxu0
      %v4878 = vpop.f32.mrb[0].mxu0
      %4879 = vmatprep.mubr.bf16.mxu0 0
      %4880 = vmatmul.mubr.bf16.gmra.mrb[0].mxu0 %v4765
      %v4881 = vpop.f32.mrb[0].mxu0
      %v4882 = vadd.f32 0.0, %v4881
      %v4883 = vpop.f32.mrb[0].mxu0
      %v4884 = vpop.f32.mrb[0].mxu0
      %v4885 = vadd.f32 0.0, %v4884
      %v4886 = vpop.f32.mrb[0].mxu0
      %4887 = vmatprep.mubr.bf16.mxu0 0
      %4888 = vmatmul.mubr.bf16.gmra.mrb[0].mxu0 %v4768
      %v4889 = vpop.f32.mrb[0].mxu0
      %v4890 = vpop.f32.mrb[0].mxu0
      %v4891 = vpop.f32.mrb[0].mxu0
      %v4892 = vpop.f32.mrb[0].mxu0
      %4893 = vmatprep.mubr.bf16.mxu0 0
      %4894 = vmatmul.mubr.bf16.gmra.mrb[0].mxu0 %v4771
      %v4895 = vpop.f32.mrb[0].mxu0
      %v4896 = vadd.f32 0.0, %v4895
      %v4897 = vpop.f32.mrb[0].mxu0
      %v4898 = vpop.f32.mrb[0].mxu0
      %v4899 = vadd.f32 0.0, %v4898
      %v4900 = vpop.f32.mrb[0].mxu0
      %4901 = vmatprep.mubr.bf16.mxu0 0
      %4902 = vmatmul.mubr.bf16.gmra.mrb[0].mxu0 %v4774
      %v4903 = vpop.f32.mrb[0].mxu0
      %v4904 = vpop.f32.mrb[0].mxu0
      %v4905 = vpop.f32.mrb[0].mxu0
      %v4906 = vpop.f32.mrb[0].mxu0
      %4907 = vmatprep.mubr.bf16.mxu0 0
      %4908 = vmatmul.mubr.bf16.gmra.mrb[0].mxu0 %v4777
      %v4909 = vpop.f32.mrb[0].mxu0
      %v4910 = vadd.f32 0.0, %v4909
      %v4911 = vpop.f32.mrb[0].mxu0
      %v4912 = vpop.f32.mrb[0].mxu0
      %v4913 = vadd.f32 0.0, %v4912
      %v4914 = vpop.f32.mrb[0].mxu0
      %4915 = vmatprep.mubr.bf16.mxu0 0
      %4916 = vmatmul.mubr.bf16.gmra.mrb[0].mxu0 %v4780
      %v4917 = vpop.f32.mrb[0].mxu0
      %v4918 = vpop.f32.mrb[0].mxu0
      %v4919 = vpop.f32.mrb[0].mxu0
      %v4920 = vpop.f32.mrb[0].mxu0
      %4921 = vmatprep.mubr.bf16.mxu0 0
      %4922 = vmatmul.mubr.bf16.gmra.mrb[0].mxu0 %v4783
      %v4923 = vpop.f32.mrb[0].mxu0
      %v4924 = vadd.f32 0.0, %v4923
      %v4925 = vpop.f32.mrb[0].mxu0
      %v4926 = vpop.f32.mrb[0].mxu0
      %v4927 = vadd.f32 0.0, %v4926
      %v4928 = vpop.f32.mrb[0].mxu0
      %4929 = vmatprep.mubr.bf16.mxu0 0
      %4930 = vmatmul.mubr.bf16.gmra.mrb[0].mxu0 %v4786
      %v4931 = vpop.f32.mrb[0].mxu0
      %v4932 = vpop.f32.mrb[0].mxu0
      %v4933 = vpop.f32.mrb[0].mxu0
      %v4934 = vpop.f32.mrb[0].mxu0
      %4935 = vdwg.mxu0
      %v4936 = vadd.f32 %v4674, %v4826
      %v4937 = vadd.f32 %v4675, %v4829
      %v4938 = vadd.f32 %v4676, %v4840
      %v4939 = vadd.f32 %v4677, %v4843
      %v4940 = vadd.f32 %v4678, %v4854
      %v4941 = vadd.f32 %v4679, %v4857
      %v4942 = vadd.f32 %v4680, %v4868
      %v4943 = vadd.f32 %v4681, %v4871
      %v4944 = vadd.f32 %v4682, %v4882
      %v4945 = vadd.f32 %v4683, %v4885
      %v4946 = vadd.f32 %v4684, %v4896
      %v4947 = vadd.f32 %v4685, %v4899
      %v4948 = vadd.f32 %v4686, %v4910
      %v4949 = vadd.f32 %v4687, %v4913
      %v4950 = vadd.f32 %v4688, %v4924
      %v4951 = vadd.f32 %v4689, %v4927
      %s4952 = scalar_lea.vmem [#allocation3], 48
      %v4953 = vld [vmem:[%s4952] sm:$0xff]
      %v4954 = vld [vmem:[%s4952 + $0x8] sm:$0xff]
      %v4955 = vld [vmem:[%s4952 + $0x18] sm:$0xff]
      %v4956 = vld [vmem:[%s4952 + $0x20] sm:$0xff]
      %v4957 = vld [vmem:[%s4952 + $0x30] sm:$0xff]
      %v4958 = vld [vmem:[%s4952 + $0x38] sm:$0xff]
      %v4959 = vld [vmem:[%s4952 + $0x48] sm:$0xff]
      %v4960 = vld [vmem:[%s4952 + $0x50] sm:$0xff]
      %v4961 = vld [vmem:[%s4952 + $0x60] sm:$0xff]
      %v4962 = vld [vmem:[%s4952 + $0x68] sm:$0xff]
      %v4963 = vld [vmem:[%s4952 + $0x78] sm:$0xff]
      %v4964 = vld [vmem:[%s4952 + $0x80] sm:$0xff]
      %v4965 = vld [vmem:[%s4952 + $0x90] sm:$0xff]
      %v4966 = vld [vmem:[%s4952 + $0x98] sm:$0xff]
      %v4967 = vld [vmem:[%s4952 + $0xa8] sm:$0xff]
      %v4968 = vld [vmem:[%s4952 + $0xb0] sm:$0xff]
      %v4969 = vld [vmem:[%s4952 + $0xc0] sm:$0xff]
      %v4970 = vld [vmem:[%s4952 + $0xc8] sm:$0xff]
      %v4971 = vld [vmem:[%s4952 + $0xd8] sm:$0xff]
      %v4972 = vld [vmem:[%s4952 + $0xe0] sm:$0xff]
      %v4973 = vld [vmem:[%s4952 + $0xf0] sm:$0xff]
      %v4974 = vld [vmem:[%s4952 + $0xf8] sm:$0xff]
      %v4975 = vld [vmem:[%s4952 + $0x108] sm:$0xff]
      %v4976 = vld [vmem:[%s4952 + $0x110] sm:$0xff]
      %v4977 = vld [vmem:[%s4952 + $0x120] sm:$0xff]
      %v4978 = vld [vmem:[%s4952 + $0x128] sm:$0xff]
      %v4979 = vld [vmem:[%s4952 + $0x138] sm:$0xff]
      %v4980 = vld [vmem:[%s4952 + $0x140] sm:$0xff]
      %v4981 = vld [vmem:[%s4952 + $0x150] sm:$0xff]
      %v4982 = vld [vmem:[%s4952 + $0x158] sm:$0xff]
      %v4983 = vld [vmem:[%s4952 + $0x168] sm:$0xff]
      %v4984 = vld [vmem:[%s4952 + $0x170] sm:$0xff]
      %v4985 = vpack.c.bf16 %v4954, %v4953
      %v4986 = vpack.c.bf16 %v4956, %v4955
      %v4987 = vpack.c.bf16 %v4958, %v4957
      %v4988 = vpack.c.bf16 %v4960, %v4959
      %v4989 = vpack.c.bf16 %v4962, %v4961
      %v4990 = vpack.c.bf16 %v4964, %v4963
      %v4991 = vpack.c.bf16 %v4966, %v4965
      %v4992 = vpack.c.bf16 %v4968, %v4967
      %v4993 = vpack.c.bf16 %v4970, %v4969
      %v4994 = vpack.c.bf16 %v4972, %v4971
      %v4995 = vpack.c.bf16 %v4974, %v4973
      %v4996 = vpack.c.bf16 %v4976, %v4975
      %v4997 = vpack.c.bf16 %v4978, %v4977
      %v4998 = vpack.c.bf16 %v4980, %v4979
      %v4999 = vpack.c.bf16 %v4982, %v4981
      %v5000 = vpack.c.bf16 %v4984, %v4983
      %s5001 = scalar_lea.vmem %s3, 24
      %v5002 = vld [vmem:[%s5001] sm:$0xf]
      %v5004 = vsel %vm537, %v4985, 0
      %v5007 = vsel %vm537, %v4986, 0
      %v5010 = vsel %vm537, %v4987, 0
      %v5013 = vsel %vm537, %v4988, 0
      %v5016 = vsel %vm537, %v4989, 0
      %v5019 = vsel %vm537, %v4990, 0
      %v5022 = vsel %vm537, %v4991, 0
      %v5025 = vsel %vm537, %v4992, 0
      %v5028 = vsel %vm537, %v4993, 0
      %v5031 = vsel %vm537, %v4994, 0
      %v5034 = vsel %vm537, %v4995, 0
      %v5037 = vsel %vm537, %v4996, 0
      %v5040 = vsel %vm537, %v4997, 0
      %v5043 = vsel %vm537, %v4998, 0
      %v5046 = vsel %vm537, %v4999, 0
      %v5049 = vsel %vm537, %v5000, 0
      %v5052 = vsel %vm3559, %v5002, 0
      %5054 = vmatprep.subr.bf16.mxu0 0
      %5055 = vmatpush1.bf16.msra.mxu0 %v5052
      %5056 = vmatprep.subr.bf16.mxu0 0
      %5057 = vmatpush1.bf16.msra.mxu0 0
      %5058 = vmatprep.subr.bf16.mxu0 0
      %5059 = vmatpush1.bf16.msra.mxu0 0
      %5060 = vmatprep.subr.bf16.mxu0 0
      %5061 = vmatpush1.bf16.msra.mxu0 0
      %5062 = vmatprep.subr.bf16.mxu0 0
      %5063 = vmatpush1.bf16.msra.mxu0 0
      %5064 = vmatprep.subr.bf16.mxu0 0
      %5065 = vmatpush1.bf16.msra.mxu0 0
      %5066 = vmatprep.subr.bf16.mxu0 0
      %5067 = vmatpush1.bf16.msra.mxu0 0
      %5068 = vmatprep.subr.bf16.mxu0 0
      %5069 = vmatpush1.bf16.msra.mxu0 0
      %5070 = vmatprep.subr.bf16.mxu0 0
      %5071 = vmatpush1.bf16.msra.mxu0 0
      %5072 = vmatprep.subr.bf16.mxu0 0
      %5073 = vmatpush1.bf16.msra.mxu0 0
      %5074 = vmatprep.subr.bf16.mxu0 0
      %5075 = vmatpush1.bf16.msra.mxu0 0
      %5076 = vmatprep.subr.bf16.mxu0 0
      %5077 = vmatpush1.bf16.msra.mxu0 0
      %5078 = vmatprep.subr.bf16.mxu0 0
      %5079 = vmatpush1.bf16.msra.mxu0 0
      %5080 = vmatprep.subr.bf16.mxu0 0
      %5081 = vmatpush1.bf16.msra.mxu0 0
      %5082 = vmatprep.subr.bf16.mxu0 0
      %5083 = vmatpush1.bf16.msra.mxu0 0
      %5084 = vmatprep.subr.bf16.mxu0 0
      %5085 = vmatpush1.bf16.msra.mxu0 0
      %5086 = vmatprep.mubr.bf16.mxu0 0
      %5087 = vmatmul.mubr.bf16.gmra.mrb[0].mxu0 %v5004
      %v5088 = vpop.f32.mrb[0].mxu0
      %v5089 = vadd.f32 0.0, %v5088
      %v5090 = vpop.f32.mrb[0].mxu0
      %v5091 = vpop.f32.mrb[0].mxu0
      %v5092 = vadd.f32 0.0, %v5091
      %v5093 = vpop.f32.mrb[0].mxu0
      %5094 = vmatprep.mubr.bf16.mxu0 0
      %5095 = vmatmul.mubr.bf16.gmra.mrb[0].mxu0 %v5007
      %v5096 = vpop.f32.mrb[0].mxu0
      %v5097 = vpop.f32.mrb[0].mxu0
      %v5098 = vpop.f32.mrb[0].mxu0
      %v5099 = vpop.f32.mrb[0].mxu0
      %5100 = vmatprep.mubr.bf16.mxu0 0
      %5101 = vmatmul.mubr.bf16.gmra.mrb[0].mxu0 %v5010
      %v5102 = vpop.f32.mrb[0].mxu0
      %v5103 = vadd.f32 0.0, %v5102
      %v5104 = vpop.f32.mrb[0].mxu0
      %v5105 = vpop.f32.mrb[0].mxu0
      %v5106 = vadd.f32 0.0, %v5105
      %v5107 = vpop.f32.mrb[0].mxu0
      %5108 = vmatprep.mubr.bf16.mxu0 0
      %5109 = vmatmul.mubr.bf16.gmra.mrb[0].mxu0 %v5013
      %v5110 = vpop.f32.mrb[0].mxu0
      %v5111 = vpop.f32.mrb[0].mxu0
      %v5112 = vpop.f32.mrb[0].mxu0
      %v5113 = vpop.f32.mrb[0].mxu0
      %5114 = vmatprep.mubr.bf16.mxu0 0
      %5115 = vmatmul.mubr.bf16.gmra.mrb[0].mxu0 %v5016
      %v5116 = vpop.f32.mrb[0].mxu0
      %v5117 = vadd.f32 0.0, %v5116
      %v5118 = vpop.f32.mrb[0].mxu0
      %v5119 = vpop.f32.mrb[0].mxu0
      %v5120 = vadd.f32 0.0, %v5119
      %v5121 = vpop.f32.mrb[0].mxu0
      %5122 = vmatprep.mubr.bf16.mxu0 0
      %5123 = vmatmul.mubr.bf16.gmra.mrb[0].mxu0 %v5019
      %v5124 = vpop.f32.mrb[0].mxu0
      %v5125 = vpop.f32.mrb[0].mxu0
      %v5126 = vpop.f32.mrb[0].mxu0
      %v5127 = vpop.f32.mrb[0].mxu0
      %5128 = vmatprep.mubr.bf16.mxu0 0
      %5129 = vmatmul.mubr.bf16.gmra.mrb[0].mxu0 %v5022
      %v5130 = vpop.f32.mrb[0].mxu0
      %v5131 = vadd.f32 0.0, %v5130
      %v5132 = vpop.f32.mrb[0].mxu0
      %v5133 = vpop.f32.mrb[0].mxu0
      %v5134 = vadd.f32 0.0, %v5133
      %v5135 = vpop.f32.mrb[0].mxu0
      %5136 = vmatprep.mubr.bf16.mxu0 0
      %5137 = vmatmul.mubr.bf16.gmra.mrb[0].mxu0 %v5025
      %v5138 = vpop.f32.mrb[0].mxu0
      %v5139 = vpop.f32.mrb[0].mxu0
      %v5140 = vpop.f32.mrb[0].mxu0
      %v5141 = vpop.f32.mrb[0].mxu0
      %5142 = vmatprep.mubr.bf16.mxu0 0
      %5143 = vmatmul.mubr.bf16.gmra.mrb[0].mxu0 %v5028
      %v5144 = vpop.f32.mrb[0].mxu0
      %v5145 = vadd.f32 0.0, %v5144
      %v5146 = vpop.f32.mrb[0].mxu0
      %v5147 = vpop.f32.mrb[0].mxu0
      %v5148 = vadd.f32 0.0, %v5147
      %v5149 = vpop.f32.mrb[0].mxu0
      %5150 = vmatprep.mubr.bf16.mxu0 0
      %5151 = vmatmul.mubr.bf16.gmra.mrb[0].mxu0 %v5031
      %v5152 = vpop.f32.mrb[0].mxu0
      %v5153 = vpop.f32.mrb[0].mxu0
      %v5154 = vpop.f32.mrb[0].mxu0
      %v5155 = vpop.f32.mrb[0].mxu0
      %5156 = vmatprep.mubr.bf16.mxu0 0
      %5157 = vmatmul.mubr.bf16.gmra.mrb[0].mxu0 %v5034
      %v5158 = vpop.f32.mrb[0].mxu0
      %v5159 = vadd.f32 0.0, %v5158
      %v5160 = vpop.f32.mrb[0].mxu0
      %v5161 = vpop.f32.mrb[0].mxu0
      %v5162 = vadd.f32 0.0, %v5161
      %v5163 = vpop.f32.mrb[0].mxu0
      %5164 = vmatprep.mubr.bf16.mxu0 0
      %5165 = vmatmul.mubr.bf16.gmra.mrb[0].mxu0 %v5037
      %v5166 = vpop.f32.mrb[0].mxu0
      %v5167 = vpop.f32.mrb[0].mxu0
      %v5168 = vpop.f32.mrb[0].mxu0
      %v5169 = vpop.f32.mrb[0].mxu0
      %5170 = vmatprep.mubr.bf16.mxu0 0
      %5171 = vmatmul.mubr.bf16.gmra.mrb[0].mxu0 %v5040
      %v5172 = vpop.f32.mrb[0].mxu0
      %v5173 = vadd.f32 0.0, %v5172
      %v5174 = vpop.f32.mrb[0].mxu0
      %v5175 = vpop.f32.mrb[0].mxu0
      %v5176 = vadd.f32 0.0, %v5175
      %v5177 = vpop.f32.mrb[0].mxu0
      %5178 = vmatprep.mubr.bf16.mxu0 0
      %5179 = vmatmul.mubr.bf16.gmra.mrb[0].mxu0 %v5043
      %v5180 = vpop.f32.mrb[0].mxu0
      %v5181 = vpop.f32.mrb[0].mxu0
      %v5182 = vpop.f32.mrb[0].mxu0
      %v5183 = vpop.f32.mrb[0].mxu0
      %5184 = vmatprep.mubr.bf16.mxu0 0
      %5185 = vmatmul.mubr.bf16.gmra.mrb[0].mxu0 %v5046
      %v5186 = vpop.f32.mrb[0].mxu0
      %v5187 = vadd.f32 0.0, %v5186
      %v5188 = vpop.f32.mrb[0].mxu0
      %v5189 = vpop.f32.mrb[0].mxu0
      %v5190 = vadd.f32 0.0, %v5189
      %v5191 = vpop.f32.mrb[0].mxu0
      %5192 = vmatprep.mubr.bf16.mxu0 0
      %5193 = vmatmul.mubr.bf16.gmra.mrb[0].mxu0 %v5049
      %v5194 = vpop.f32.mrb[0].mxu0
      %v5195 = vpop.f32.mrb[0].mxu0
      %v5196 = vpop.f32.mrb[0].mxu0
      %v5197 = vpop.f32.mrb[0].mxu0
      %5198 = vdwg.mxu0
      %v5199 = vadd.f32 %v4936, %v5089
      %v5200 = vadd.f32 %v4937, %v5092
      %v5201 = vadd.f32 %v4938, %v5103
      %v5202 = vadd.f32 %v4939, %v5106
      %v5203 = vadd.f32 %v4940, %v5117
      %v5204 = vadd.f32 %v4941, %v5120
      %v5205 = vadd.f32 %v4942, %v5131
      %v5206 = vadd.f32 %v4943, %v5134
      %v5207 = vadd.f32 %v4944, %v5145
      %v5208 = vadd.f32 %v4945, %v5148
      %v5209 = vadd.f32 %v4946, %v5159
      %v5210 = vadd.f32 %v4947, %v5162
      %v5211 = vadd.f32 %v4948, %v5173
      %v5212 = vadd.f32 %v4949, %v5176
      %v5213 = vadd.f32 %v4950, %v5187
      %v5214 = vadd.f32 %v4951, %v5190
      %v5215 = vld [vmem:[%s4952 + $0x1] sm:$0xff]
      %v5216 = vld [vmem:[%s4952 + $0x9] sm:$0xff]
      %v5217 = vld [vmem:[%s4952 + $0x19] sm:$0xff]
      %v5218 = vld [vmem:[%s4952 + $0x21] sm:$0xff]
      %v5219 = vld [vmem:[%s4952 + $0x31] sm:$0xff]
      %v5220 = vld [vmem:[%s4952 + $0x39] sm:$0xff]
      %v5221 = vld [vmem:[%s4952 + $0x49] sm:$0xff]
      %v5222 = vld [vmem:[%s4952 + $0x51] sm:$0xff]
      %v5223 = vld [vmem:[%s4952 + $0x61] sm:$0xff]
      %v5224 = vld [vmem:[%s4952 + $0x69] sm:$0xff]
      %v5225 = vld [vmem:[%s4952 + $0x79] sm:$0xff]
      %v5226 = vld [vmem:[%s4952 + $0x81] sm:$0xff]
      %v5227 = vld [vmem:[%s4952 + $0x91] sm:$0xff]
      %v5228 = vld [vmem:[%s4952 + $0x99] sm:$0xff]
      %v5229 = vld [vmem:[%s4952 + $0xa9] sm:$0xff]
      %v5230 = vld [vmem:[%s4952 + $0xb1] sm:$0xff]
      %v5231 = vld [vmem:[%s4952 + $0xc1] sm:$0xff]
      %v5232 = vld [vmem:[%s4952 + $0xc9] sm:$0xff]
      %v5233 = vld [vmem:[%s4952 + $0xd9] sm:$0xff]
      %v5234 = vld [vmem:[%s4952 + $0xe1] sm:$0xff]
      %v5235 = vld [vmem:[%s4952 + $0xf1] sm:$0xff]
      %v5236 = vld [vmem:[%s4952 + $0xf9] sm:$0xff]
      %v5237 = vld [vmem:[%s4952 + $0x109] sm:$0xff]
      %v5238 = vld [vmem:[%s4952 + $0x111] sm:$0xff]
      %v5239 = vld [vmem:[%s4952 + $0x121] sm:$0xff]
      %v5240 = vld [vmem:[%s4952 + $0x129] sm:$0xff]
      %v5241 = vld [vmem:[%s4952 + $0x139] sm:$0xff]
      %v5242 = vld [vmem:[%s4952 + $0x141] sm:$0xff]
      %v5243 = vld [vmem:[%s4952 + $0x151] sm:$0xff]
      %v5244 = vld [vmem:[%s4952 + $0x159] sm:$0xff]
      %v5245 = vld [vmem:[%s4952 + $0x169] sm:$0xff]
      %v5246 = vld [vmem:[%s4952 + $0x171] sm:$0xff]
      %v5247 = vpack.c.bf16 %v5216, %v5215
      %v5248 = vpack.c.bf16 %v5218, %v5217
      %v5249 = vpack.c.bf16 %v5220, %v5219
      %v5250 = vpack.c.bf16 %v5222, %v5221
      %v5251 = vpack.c.bf16 %v5224, %v5223
      %v5252 = vpack.c.bf16 %v5226, %v5225
      %v5253 = vpack.c.bf16 %v5228, %v5227
      %v5254 = vpack.c.bf16 %v5230, %v5229
      %v5255 = vpack.c.bf16 %v5232, %v5231
      %v5256 = vpack.c.bf16 %v5234, %v5233
      %v5257 = vpack.c.bf16 %v5236, %v5235
      %v5258 = vpack.c.bf16 %v5238, %v5237
      %v5259 = vpack.c.bf16 %v5240, %v5239
      %v5260 = vpack.c.bf16 %v5242, %v5241
      %v5261 = vpack.c.bf16 %v5244, %v5243
      %v5262 = vpack.c.bf16 %v5246, %v5245
      %s5263 = scalar_lea.vmem %s3, 28
      %v5264 = vld [vmem:[%s5263] sm:$0xf]
      %v5266 = vsel %vm537, %v5247, 0
      %v5269 = vsel %vm537, %v5248, 0
      %v5272 = vsel %vm537, %v5249, 0
      %v5275 = vsel %vm537, %v5250, 0
      %v5278 = vsel %vm537, %v5251, 0
      %v5281 = vsel %vm537, %v5252, 0
      %v5284 = vsel %vm537, %v5253, 0
      %v5287 = vsel %vm537, %v5254, 0
      %v5290 = vsel %vm537, %v5255, 0
      %v5293 = vsel %vm537, %v5256, 0
      %v5296 = vsel %vm537, %v5257, 0
      %v5299 = vsel %vm537, %v5258, 0
      %v5302 = vsel %vm537, %v5259, 0
      %v5305 = vsel %vm537, %v5260, 0
      %v5308 = vsel %vm537, %v5261, 0
      %v5311 = vsel %vm537, %v5262, 0
      %v5314 = vsel %vm3559, %v5264, 0
      %5316 = vmatprep.subr.bf16.mxu0 0
      %5317 = vmatpush1.bf16.msra.mxu0 %v5314
      %5318 = vmatprep.subr.bf16.mxu0 0
      %5319 = vmatpush1.bf16.msra.mxu0 0
      %5320 = vmatprep.subr.bf16.mxu0 0
      %5321 = vmatpush1.bf16.msra.mxu0 0
      %5322 = vmatprep.subr.bf16.mxu0 0
      %5323 = vmatpush1.bf16.msra.mxu0 0
      %5324 = vmatprep.subr.bf16.mxu0 0
      %5325 = vmatpush1.bf16.msra.mxu0 0
      %5326 = vmatprep.subr.bf16.mxu0 0
      %5327 = vmatpush1.bf16.msra.mxu0 0
      %5328 = vmatprep.subr.bf16.mxu0 0
      %5329 = vmatpush1.bf16.msra.mxu0 0
      %5330 = vmatprep.subr.bf16.mxu0 0
      %5331 = vmatpush1.bf16.msra.mxu0 0
      %5332 = vmatprep.subr.bf16.mxu0 0
      %5333 = vmatpush1.bf16.msra.mxu0 0
      %5334 = vmatprep.subr.bf16.mxu0 0
      %5335 = vmatpush1.bf16.msra.mxu0 0
      %5336 = vmatprep.subr.bf16.mxu0 0
      %5337 = vmatpush1.bf16.msra.mxu0 0
      %5338 = vmatprep.subr.bf16.mxu0 0
      %5339 = vmatpush1.bf16.msra.mxu0 0
      %5340 = vmatprep.subr.bf16.mxu0 0
      %5341 = vmatpush1.bf16.msra.mxu0 0
      %5342 = vmatprep.subr.bf16.mxu0 0
      %5343 = vmatpush1.bf16.msra.mxu0 0
      %5344 = vmatprep.subr.bf16.mxu0 0
      %5345 = vmatpush1.bf16.msra.mxu0 0
      %5346 = vmatprep.subr.bf16.mxu0 0
      %5347 = vmatpush1.bf16.msra.mxu0 0
      %5348 = vmatprep.mubr.bf16.mxu0 0
      %5349 = vmatmul.mubr.bf16.gmra.mrb[0].mxu0 %v5266
      %v5350 = vpop.f32.mrb[0].mxu0
      %v5351 = vadd.f32 0.0, %v5350
      %v5352 = vpop.f32.mrb[0].mxu0
      %v5353 = vpop.f32.mrb[0].mxu0
      %v5354 = vadd.f32 0.0, %v5353
      %v5355 = vpop.f32.mrb[0].mxu0
      %5356 = vmatprep.mubr.bf16.mxu0 0
      %5357 = vmatmul.mubr.bf16.gmra.mrb[0].mxu0 %v5269
      %v5358 = vpop.f32.mrb[0].mxu0
      %v5359 = vpop.f32.mrb[0].mxu0
      %v5360 = vpop.f32.mrb[0].mxu0
      %v5361 = vpop.f32.mrb[0].mxu0
      %5362 = vmatprep.mubr.bf16.mxu0 0
      %5363 = vmatmul.mubr.bf16.gmra.mrb[0].mxu0 %v5272
      %v5364 = vpop.f32.mrb[0].mxu0
      %v5365 = vadd.f32 0.0, %v5364
      %v5366 = vpop.f32.mrb[0].mxu0
      %v5367 = vpop.f32.mrb[0].mxu0
      %v5368 = vadd.f32 0.0, %v5367
      %v5369 = vpop.f32.mrb[0].mxu0
      %5370 = vmatprep.mubr.bf16.mxu0 0
      %5371 = vmatmul.mubr.bf16.gmra.mrb[0].mxu0 %v5275
      %v5372 = vpop.f32.mrb[0].mxu0
      %v5373 = vpop.f32.mrb[0].mxu0
      %v5374 = vpop.f32.mrb[0].mxu0
      %v5375 = vpop.f32.mrb[0].mxu0
      %5376 = vmatprep.mubr.bf16.mxu0 0
      %5377 = vmatmul.mubr.bf16.gmra.mrb[0].mxu0 %v5278
      %v5378 = vpop.f32.mrb[0].mxu0
      %v5379 = vadd.f32 0.0, %v5378
      %v5380 = vpop.f32.mrb[0].mxu0
      %v5381 = vpop.f32.mrb[0].mxu0
      %v5382 = vadd.f32 0.0, %v5381
      %v5383 = vpop.f32.mrb[0].mxu0
      %5384 = vmatprep.mubr.bf16.mxu0 0
      %5385 = vmatmul.mubr.bf16.gmra.mrb[0].mxu0 %v5281
      %v5386 = vpop.f32.mrb[0].mxu0
      %v5387 = vpop.f32.mrb[0].mxu0
      %v5388 = vpop.f32.mrb[0].mxu0
      %v5389 = vpop.f32.mrb[0].mxu0
      %5390 = vmatprep.mubr.bf16.mxu0 0
      %5391 = vmatmul.mubr.bf16.gmra.mrb[0].mxu0 %v5284
      %v5392 = vpop.f32.mrb[0].mxu0
      %v5393 = vadd.f32 0.0, %v5392
      %v5394 = vpop.f32.mrb[0].mxu0
      %v5395 = vpop.f32.mrb[0].mxu0
      %v5396 = vadd.f32 0.0, %v5395
      %v5397 = vpop.f32.mrb[0].mxu0
      %5398 = vmatprep.mubr.bf16.mxu0 0
      %5399 = vmatmul.mubr.bf16.gmra.mrb[0].mxu0 %v5287
      %v5400 = vpop.f32.mrb[0].mxu0
      %v5401 = vpop.f32.mrb[0].mxu0
      %v5402 = vpop.f32.mrb[0].mxu0
      %v5403 = vpop.f32.mrb[0].mxu0
      %5404 = vmatprep.mubr.bf16.mxu0 0
      %5405 = vmatmul.mubr.bf16.gmra.mrb[0].mxu0 %v5290
      %v5406 = vpop.f32.mrb[0].mxu0
      %v5407 = vadd.f32 0.0, %v5406
      %v5408 = vpop.f32.mrb[0].mxu0
      %v5409 = vpop.f32.mrb[0].mxu0
      %v5410 = vadd.f32 0.0, %v5409
      %v5411 = vpop.f32.mrb[0].mxu0
      %5412 = vmatprep.mubr.bf16.mxu0 0
      %5413 = vmatmul.mubr.bf16.gmra.mrb[0].mxu0 %v5293
      %v5414 = vpop.f32.mrb[0].mxu0
      %v5415 = vpop.f32.mrb[0].mxu0
      %v5416 = vpop.f32.mrb[0].mxu0
      %v5417 = vpop.f32.mrb[0].mxu0
      %5418 = vmatprep.mubr.bf16.mxu0 0
      %5419 = vmatmul.mubr.bf16.gmra.mrb[0].mxu0 %v5296
      %v5420 = vpop.f32.mrb[0].mxu0
      %v5421 = vadd.f32 0.0, %v5420
      %v5422 = vpop.f32.mrb[0].mxu0
      %v5423 = vpop.f32.mrb[0].mxu0
      %v5424 = vadd.f32 0.0, %v5423
      %v5425 = vpop.f32.mrb[0].mxu0
      %5426 = vmatprep.mubr.bf16.mxu0 0
      %5427 = vmatmul.mubr.bf16.gmra.mrb[0].mxu0 %v5299
      %v5428 = vpop.f32.mrb[0].mxu0
      %v5429 = vpop.f32.mrb[0].mxu0
      %v5430 = vpop.f32.mrb[0].mxu0
      %v5431 = vpop.f32.mrb[0].mxu0
      %5432 = vmatprep.mubr.bf16.mxu0 0
      %5433 = vmatmul.mubr.bf16.gmra.mrb[0].mxu0 %v5302
      %v5434 = vpop.f32.mrb[0].mxu0
      %v5435 = vadd.f32 0.0, %v5434
      %v5436 = vpop.f32.mrb[0].mxu0
      %v5437 = vpop.f32.mrb[0].mxu0
      %v5438 = vadd.f32 0.0, %v5437
      %v5439 = vpop.f32.mrb[0].mxu0
      %5440 = vmatprep.mubr.bf16.mxu0 0
      %5441 = vmatmul.mubr.bf16.gmra.mrb[0].mxu0 %v5305
      %v5442 = vpop.f32.mrb[0].mxu0
      %v5443 = vpop.f32.mrb[0].mxu0
      %v5444 = vpop.f32.mrb[0].mxu0
      %v5445 = vpop.f32.mrb[0].mxu0
      %5446 = vmatprep.mubr.bf16.mxu0 0
      %5447 = vmatmul.mubr.bf16.gmra.mrb[0].mxu0 %v5308
      %v5448 = vpop.f32.mrb[0].mxu0
      %v5449 = vadd.f32 0.0, %v5448
      %v5450 = vpop.f32.mrb[0].mxu0
      %v5451 = vpop.f32.mrb[0].mxu0
      %v5452 = vadd.f32 0.0, %v5451
      %v5453 = vpop.f32.mrb[0].mxu0
      %5454 = vmatprep.mubr.bf16.mxu0 0
      %5455 = vmatmul.mubr.bf16.gmra.mrb[0].mxu0 %v5311
      %v5456 = vpop.f32.mrb[0].mxu0
      %v5457 = vpop.f32.mrb[0].mxu0
      %v5458 = vpop.f32.mrb[0].mxu0
      %v5459 = vpop.f32.mrb[0].mxu0
      %5460 = vdwg.mxu0
      %v5461 = vadd.f32 %v5199, %v5351
      %v5462 = vadd.f32 %v5200, %v5354
      %v5463 = vadd.f32 %v5201, %v5365
      %v5464 = vadd.f32 %v5202, %v5368
      %v5465 = vadd.f32 %v5203, %v5379
      %v5466 = vadd.f32 %v5204, %v5382
      %v5467 = vadd.f32 %v5205, %v5393
      %v5468 = vadd.f32 %v5206, %v5396
      %v5469 = vadd.f32 %v5207, %v5407
      %v5470 = vadd.f32 %v5208, %v5410
      %v5471 = vadd.f32 %v5209, %v5421
      %v5472 = vadd.f32 %v5210, %v5424
      %v5473 = vadd.f32 %v5211, %v5435
      %v5474 = vadd.f32 %v5212, %v5438
      %v5475 = vadd.f32 %v5213, %v5449
      %v5476 = vadd.f32 %v5214, %v5452
      %v5477 = vld [vmem:[%s4952 + $0x2] sm:$0xff]
      %v5478 = vld [vmem:[%s4952 + $0xa] sm:$0xff]
      %v5479 = vld [vmem:[%s4952 + $0x1a] sm:$0xff]
      %v5480 = vld [vmem:[%s4952 + $0x22] sm:$0xff]
      %v5481 = vld [vmem:[%s4952 + $0x32] sm:$0xff]
      %v5482 = vld [vmem:[%s4952 + $0x3a] sm:$0xff]
      %v5483 = vld [vmem:[%s4952 + $0x4a] sm:$0xff]
      %v5484 = vld [vmem:[%s4952 + $0x52] sm:$0xff]
      %v5485 = vld [vmem:[%s4952 + $0x62] sm:$0xff]
      %v5486 = vld [vmem:[%s4952 + $0x6a] sm:$0xff]
      %v5487 = vld [vmem:[%s4952 + $0x7a] sm:$0xff]
      %v5488 = vld [vmem:[%s4952 + $0x82] sm:$0xff]
      %v5489 = vld [vmem:[%s4952 + $0x92] sm:$0xff]
      %v5490 = vld [vmem:[%s4952 + $0x9a] sm:$0xff]
      %v5491 = vld [vmem:[%s4952 + $0xaa] sm:$0xff]
      %v5492 = vld [vmem:[%s4952 + $0xb2] sm:$0xff]
      %v5493 = vld [vmem:[%s4952 + $0xc2] sm:$0xff]
      %v5494 = vld [vmem:[%s4952 + $0xca] sm:$0xff]
      %v5495 = vld [vmem:[%s4952 + $0xda] sm:$0xff]
      %v5496 = vld [vmem:[%s4952 + $0xe2] sm:$0xff]
      %v5497 = vld [vmem:[%s4952 + $0xf2] sm:$0xff]
      %v5498 = vld [vmem:[%s4952 + $0xfa] sm:$0xff]
      %v5499 = vld [vmem:[%s4952 + $0x10a] sm:$0xff]
      %v5500 = vld [vmem:[%s4952 + $0x112] sm:$0xff]
      %v5501 = vld [vmem:[%s4952 + $0x122] sm:$0xff]
      %v5502 = vld [vmem:[%s4952 + $0x12a] sm:$0xff]
      %v5503 = vld [vmem:[%s4952 + $0x13a] sm:$0xff]
      %v5504 = vld [vmem:[%s4952 + $0x142] sm:$0xff]
      %v5505 = vld [vmem:[%s4952 + $0x152] sm:$0xff]
      %v5506 = vld [vmem:[%s4952 + $0x15a] sm:$0xff]
      %v5507 = vld [vmem:[%s4952 + $0x16a] sm:$0xff]
      %v5508 = vld [vmem:[%s4952 + $0x172] sm:$0xff]
      %v5509 = vpack.c.bf16 %v5478, %v5477
      %v5510 = vpack.c.bf16 %v5480, %v5479
      %v5511 = vpack.c.bf16 %v5482, %v5481
      %v5512 = vpack.c.bf16 %v5484, %v5483
      %v5513 = vpack.c.bf16 %v5486, %v5485
      %v5514 = vpack.c.bf16 %v5488, %v5487
      %v5515 = vpack.c.bf16 %v5490, %v5489
      %v5516 = vpack.c.bf16 %v5492, %v5491
      %v5517 = vpack.c.bf16 %v5494, %v5493
      %v5518 = vpack.c.bf16 %v5496, %v5495
      %v5519 = vpack.c.bf16 %v5498, %v5497
      %v5520 = vpack.c.bf16 %v5500, %v5499
      %v5521 = vpack.c.bf16 %v5502, %v5501
      %v5522 = vpack.c.bf16 %v5504, %v5503
      %v5523 = vpack.c.bf16 %v5506, %v5505
      %v5524 = vpack.c.bf16 %v5508, %v5507
      %s5525 = scalar_lea.vmem %s3, 32
      %v5526 = vld [vmem:[%s5525] sm:$0xf]
      %v5528 = vsel %vm537, %v5509, 0
      %v5531 = vsel %vm537, %v5510, 0
      %v5534 = vsel %vm537, %v5511, 0
      %v5537 = vsel %vm537, %v5512, 0
      %v5540 = vsel %vm537, %v5513, 0
      %v5543 = vsel %vm537, %v5514, 0
      %v5546 = vsel %vm537, %v5515, 0
      %v5549 = vsel %vm537, %v5516, 0
      %v5552 = vsel %vm537, %v5517, 0
      %v5555 = vsel %vm537, %v5518, 0
      %v5558 = vsel %vm537, %v5519, 0
      %v5561 = vsel %vm537, %v5520, 0
      %v5564 = vsel %vm537, %v5521, 0
      %v5567 = vsel %vm537, %v5522, 0
      %v5570 = vsel %vm537, %v5523, 0
      %v5573 = vsel %vm537, %v5524, 0
      %v5576 = vsel %vm3559, %v5526, 0
      %5578 = vmatprep.subr.bf16.mxu0 0
      %5579 = vmatpush1.bf16.msra.mxu0 %v5576
      %5580 = vmatprep.subr.bf16.mxu0 0
      %5581 = vmatpush1.bf16.msra.mxu0 0
      %5582 = vmatprep.subr.bf16.mxu0 0
      %5583 = vmatpush1.bf16.msra.mxu0 0
      %5584 = vmatprep.subr.bf16.mxu0 0
      %5585 = vmatpush1.bf16.msra.mxu0 0
      %5586 = vmatprep.subr.bf16.mxu0 0
      %5587 = vmatpush1.bf16.msra.mxu0 0
      %5588 = vmatprep.subr.bf16.mxu0 0
      %5589 = vmatpush1.bf16.msra.mxu0 0
      %5590 = vmatprep.subr.bf16.mxu0 0
      %5591 = vmatpush1.bf16.msra.mxu0 0
      %5592 = vmatprep.subr.bf16.mxu0 0
      %5593 = vmatpush1.bf16.msra.mxu0 0
      %5594 = vmatprep.subr.bf16.mxu0 0
      %5595 = vmatpush1.bf16.msra.mxu0 0
      %5596 = vmatprep.subr.bf16.mxu0 0
      %5597 = vmatpush1.bf16.msra.mxu0 0
      %5598 = vmatprep.subr.bf16.mxu0 0
      %5599 = vmatpush1.bf16.msra.mxu0 0
      %5600 = vmatprep.subr.bf16.mxu0 0
      %5601 = vmatpush1.bf16.msra.mxu0 0
      %5602 = vmatprep.subr.bf16.mxu0 0
      %5603 = vmatpush1.bf16.msra.mxu0 0
      %5604 = vmatprep.subr.bf16.mxu0 0
      %5605 = vmatpush1.bf16.msra.mxu0 0
      %5606 = vmatprep.subr.bf16.mxu0 0
      %5607 = vmatpush1.bf16.msra.mxu0 0
      %5608 = vmatprep.subr.bf16.mxu0 0
      %5609 = vmatpush1.bf16.msra.mxu0 0
      %5610 = vmatprep.mubr.bf16.mxu0 0
      %5611 = vmatmul.mubr.bf16.gmra.mrb[0].mxu0 %v5528
      %v5612 = vpop.f32.mrb[0].mxu0
      %v5613 = vadd.f32 0.0, %v5612
      %v5614 = vpop.f32.mrb[0].mxu0
      %v5615 = vpop.f32.mrb[0].mxu0
      %v5616 = vadd.f32 0.0, %v5615
      %v5617 = vpop.f32.mrb[0].mxu0
      %5618 = vmatprep.mubr.bf16.mxu0 0
      %5619 = vmatmul.mubr.bf16.gmra.mrb[0].mxu0 %v5531
      %v5620 = vpop.f32.mrb[0].mxu0
      %v5621 = vpop.f32.mrb[0].mxu0
      %v5622 = vpop.f32.mrb[0].mxu0
      %v5623 = vpop.f32.mrb[0].mxu0
      %5624 = vmatprep.mubr.bf16.mxu0 0
      %5625 = vmatmul.mubr.bf16.gmra.mrb[0].mxu0 %v5534
      %v5626 = vpop.f32.mrb[0].mxu0
      %v5627 = vadd.f32 0.0, %v5626
      %v5628 = vpop.f32.mrb[0].mxu0
      %v5629 = vpop.f32.mrb[0].mxu0
      %v5630 = vadd.f32 0.0, %v5629
      %v5631 = vpop.f32.mrb[0].mxu0
      %5632 = vmatprep.mubr.bf16.mxu0 0
      %5633 = vmatmul.mubr.bf16.gmra.mrb[0].mxu0 %v5537
      %v5634 = vpop.f32.mrb[0].mxu0
      %v5635 = vpop.f32.mrb[0].mxu0
      %v5636 = vpop.f32.mrb[0].mxu0
      %v5637 = vpop.f32.mrb[0].mxu0
      %5638 = vmatprep.mubr.bf16.mxu0 0
      %5639 = vmatmul.mubr.bf16.gmra.mrb[0].mxu0 %v5540
      %v5640 = vpop.f32.mrb[0].mxu0
      %v5641 = vadd.f32 0.0, %v5640
      %v5642 = vpop.f32.mrb[0].mxu0
      %v5643 = vpop.f32.mrb[0].mxu0
      %v5644 = vadd.f32 0.0, %v5643
      %v5645 = vpop.f32.mrb[0].mxu0
      %5646 = vmatprep.mubr.bf16.mxu0 0
      %5647 = vmatmul.mubr.bf16.gmra.mrb[0].mxu0 %v5543
      %v5648 = vpop.f32.mrb[0].mxu0
      %v5649 = vpop.f32.mrb[0].mxu0
      %v5650 = vpop.f32.mrb[0].mxu0
      %v5651 = vpop.f32.mrb[0].mxu0
      %5652 = vmatprep.mubr.bf16.mxu0 0
      %5653 = vmatmul.mubr.bf16.gmra.mrb[0].mxu0 %v5546
      %v5654 = vpop.f32.mrb[0].mxu0
      %v5655 = vadd.f32 0.0, %v5654
      %v5656 = vpop.f32.mrb[0].mxu0
      %v5657 = vpop.f32.mrb[0].mxu0
      %v5658 = vadd.f32 0.0, %v5657
      %v5659 = vpop.f32.mrb[0].mxu0
      %5660 = vmatprep.mubr.bf16.mxu0 0
      %5661 = vmatmul.mubr.bf16.gmra.mrb[0].mxu0 %v5549
      %v5662 = vpop.f32.mrb[0].mxu0
      %v5663 = vpop.f32.mrb[0].mxu0
      %v5664 = vpop.f32.mrb[0].mxu0
      %v5665 = vpop.f32.mrb[0].mxu0
      %5666 = vmatprep.mubr.bf16.mxu0 0
      %5667 = vmatmul.mubr.bf16.gmra.mrb[0].mxu0 %v5552
      %v5668 = vpop.f32.mrb[0].mxu0
      %v5669 = vadd.f32 0.0, %v5668
      %v5670 = vpop.f32.mrb[0].mxu0
      %v5671 = vpop.f32.mrb[0].mxu0
      %v5672 = vadd.f32 0.0, %v5671
      %v5673 = vpop.f32.mrb[0].mxu0
      %5674 = vmatprep.mubr.bf16.mxu0 0
      %5675 = vmatmul.mubr.bf16.gmra.mrb[0].mxu0 %v5555
      %v5676 = vpop.f32.mrb[0].mxu0
      %v5677 = vpop.f32.mrb[0].mxu0
      %v5678 = vpop.f32.mrb[0].mxu0
      %v5679 = vpop.f32.mrb[0].mxu0
      %5680 = vmatprep.mubr.bf16.mxu0 0
      %5681 = vmatmul.mubr.bf16.gmra.mrb[0].mxu0 %v5558
      %v5682 = vpop.f32.mrb[0].mxu0
      %v5683 = vadd.f32 0.0, %v5682
      %v5684 = vpop.f32.mrb[0].mxu0
      %v5685 = vpop.f32.mrb[0].mxu0
      %v5686 = vadd.f32 0.0, %v5685
      %v5687 = vpop.f32.mrb[0].mxu0
      %5688 = vmatprep.mubr.bf16.mxu0 0
      %5689 = vmatmul.mubr.bf16.gmra.mrb[0].mxu0 %v5561
      %v5690 = vpop.f32.mrb[0].mxu0
      %v5691 = vpop.f32.mrb[0].mxu0
      %v5692 = vpop.f32.mrb[0].mxu0
      %v5693 = vpop.f32.mrb[0].mxu0
      %5694 = vmatprep.mubr.bf16.mxu0 0
      %5695 = vmatmul.mubr.bf16.gmra.mrb[0].mxu0 %v5564
      %v5696 = vpop.f32.mrb[0].mxu0
      %v5697 = vadd.f32 0.0, %v5696
      %v5698 = vpop.f32.mrb[0].mxu0
      %v5699 = vpop.f32.mrb[0].mxu0
      %v5700 = vadd.f32 0.0, %v5699
      %v5701 = vpop.f32.mrb[0].mxu0
      %5702 = vmatprep.mubr.bf16.mxu0 0
      %5703 = vmatmul.mubr.bf16.gmra.mrb[0].mxu0 %v5567
      %v5704 = vpop.f32.mrb[0].mxu0
      %v5705 = vpop.f32.mrb[0].mxu0
      %v5706 = vpop.f32.mrb[0].mxu0
      %v5707 = vpop.f32.mrb[0].mxu0
      %5708 = vmatprep.mubr.bf16.mxu0 0
      %5709 = vmatmul.mubr.bf16.gmra.mrb[0].mxu0 %v5570
      %v5710 = vpop.f32.mrb[0].mxu0
      %v5711 = vadd.f32 0.0, %v5710
      %v5712 = vpop.f32.mrb[0].mxu0
      %v5713 = vpop.f32.mrb[0].mxu0
      %v5714 = vadd.f32 0.0, %v5713
      %v5715 = vpop.f32.mrb[0].mxu0
      %5716 = vmatprep.mubr.bf16.mxu0 0
      %5717 = vmatmul.mubr.bf16.gmra.mrb[0].mxu0 %v5573
      %v5718 = vpop.f32.mrb[0].mxu0
      %v5719 = vpop.f32.mrb[0].mxu0
      %v5720 = vpop.f32.mrb[0].mxu0
      %v5721 = vpop.f32.mrb[0].mxu0
      %5722 = vdwg.mxu0
      %v5723 = vadd.f32 %v5461, %v5613
      %v5724 = vadd.f32 %v5462, %v5616
      %v5725 = vadd.f32 %v5463, %v5627
      %v5726 = vadd.f32 %v5464, %v5630
      %v5727 = vadd.f32 %v5465, %v5641
      %v5728 = vadd.f32 %v5466, %v5644
      %v5729 = vadd.f32 %v5467, %v5655
      %v5730 = vadd.f32 %v5468, %v5658
      %v5731 = vadd.f32 %v5469, %v5669
      %v5732 = vadd.f32 %v5470, %v5672
      %v5733 = vadd.f32 %v5471, %v5683
      %v5734 = vadd.f32 %v5472, %v5686
      %v5735 = vadd.f32 %v5473, %v5697
      %v5736 = vadd.f32 %v5474, %v5700
      %v5737 = vadd.f32 %v5475, %v5711
      %v5738 = vadd.f32 %v5476, %v5714
      %v5739 = vld [vmem:[%s4] sm:$0x1]
      %v5741 = vlaneseq
      %v5742 = vshrl.u32 %v5741, 7
      %v5743 = vsub.s32 0, %v5742
      %v5744 = vrot.slane %v5739, %v5743
      %v5746 = vadd.f32 %v5723, %v5744
      %v5747 = vadd.f32 %v5724, %v5744
      %v5748 = vadd.f32 %v5725, %v5744
      %v5749 = vadd.f32 %v5726, %v5744
      %v5750 = vadd.f32 %v5727, %v5744
      %v5751 = vadd.f32 %v5728, %v5744
      %v5752 = vadd.f32 %v5729, %v5744
      %v5753 = vadd.f32 %v5730, %v5744
      %v5754 = vadd.f32 %v5731, %v5744
      %v5755 = vadd.f32 %v5732, %v5744
      %v5756 = vadd.f32 %v5733, %v5744
      %v5757 = vadd.f32 %v5734, %v5744
      %v5758 = vadd.f32 %v5735, %v5744
      %v5759 = vadd.f32 %v5736, %v5744
      %v5760 = vadd.f32 %v5737, %v5744
      %v5761 = vadd.f32 %v5738, %v5744
      %v5762 = vpack.c.bf16 %v628, %v627
      %v5763 = vpack.c.bf16 %v630, %v629
      %v5764 = vpack.c.bf16 %v632, %v631
      %v5765 = vpack.c.bf16 %v634, %v633
      %v5766 = vpack.c.bf16 %v636, %v635
      %v5767 = vpack.c.bf16 %v638, %v637
      %v5768 = vpack.c.bf16 %v640, %v639
      %v5769 = vpack.c.bf16 %v642, %v641
      %v5770 = vpack.c.bf16 %v644, %v643
      %v5771 = vpack.c.bf16 %v646, %v645
      %v5772 = vpack.c.bf16 %v648, %v647
      %v5773 = vpack.c.bf16 %v650, %v649
      %v5774 = vpack.c.bf16 %v652, %v651
      %v5775 = vpack.c.bf16 %v654, %v653
      %v5776 = vpack.c.bf16 %v656, %v655
      %v5777 = vpack.c.bf16 %v658, %v657
      %v5778 = vld [vmem:[%s5] sm:$0x3]
      %v5779 = vld [vmem:[%s6] sm:$0x1]
      %v5781 = vlaneseq
      %v5782 = vshrl.u32 %v5781, 7
      %v5783 = vsub.s32 0, %v5782
      %v5784 = vrot.slane %v5779, %v5783
      %v5787 = vsel %vm494, %v5762, 0
      %v5790 = vsel %vm494, %v5763, 0
      %v5793 = vsel %vm494, %v5764, 0
      %v5796 = vsel %vm494, %v5765, 0
      %v5799 = vsel %vm494, %v5766, 0
      %v5802 = vsel %vm494, %v5767, 0
      %v5805 = vsel %vm494, %v5768, 0
      %v5808 = vsel %vm494, %v5769, 0
      %v5811 = vsel %vm494, %v5770, 0
      %v5814 = vsel %vm494, %v5771, 0
      %v5817 = vsel %vm494, %v5772, 0
      %v5820 = vsel %vm494, %v5773, 0
      %v5823 = vsel %vm494, %v5774, 0
      %v5826 = vsel %vm494, %v5775, 0
      %v5829 = vsel %vm494, %v5776, 0
      %v5832 = vsel %vm494, %v5777, 0
      %v5835 = vand.u32 %v5778, %v873
      %5837 = vmatprep.subr.bf16.mxu0 0
      %5838 = vmatpush1.bf16.msra.mxu0 %v5835
      %5839 = vmatprep.subr.bf16.mxu0 0
      %5840 = vmatpush1.bf16.msra.mxu0 0
      %5841 = vmatprep.subr.bf16.mxu0 0
      %5842 = vmatpush1.bf16.msra.mxu0 0
      %5843 = vmatprep.subr.bf16.mxu0 0
      %5844 = vmatpush1.bf16.msra.mxu0 0
      %5845 = vmatprep.subr.bf16.mxu0 0
      %5846 = vmatpush1.bf16.msra.mxu0 0
      %5847 = vmatprep.subr.bf16.mxu0 0
      %5848 = vmatpush1.bf16.msra.mxu0 0
      %5849 = vmatprep.subr.bf16.mxu0 0
      %5850 = vmatpush1.bf16.msra.mxu0 0
      %5851 = vmatprep.subr.bf16.mxu0 0
      %5852 = vmatpush1.bf16.msra.mxu0 0
      %5853 = vmatprep.subr.bf16.mxu0 0
      %5854 = vmatpush1.bf16.msra.mxu0 0
      %5855 = vmatprep.subr.bf16.mxu0 0
      %5856 = vmatpush1.bf16.msra.mxu0 0
      %5857 = vmatprep.subr.bf16.mxu0 0
      %5858 = vmatpush1.bf16.msra.mxu0 0
      %5859 = vmatprep.subr.bf16.mxu0 0
      %5860 = vmatpush1.bf16.msra.mxu0 0
      %5861 = vmatprep.subr.bf16.mxu0 0
      %5862 = vmatpush1.bf16.msra.mxu0 0
      %5863 = vmatprep.subr.bf16.mxu0 0
      %5864 = vmatpush1.bf16.msra.mxu0 0
      %5865 = vmatprep.subr.bf16.mxu0 0
      %5866 = vmatpush1.bf16.msra.mxu0 0
      %5867 = vmatprep.subr.bf16.mxu0 0
      %5868 = vmatpush1.bf16.msra.mxu0 0
      %5869 = vmatprep.mubr.bf16.mxu0 0
      %5870 = vmatmul.mubr.bf16.gmra.mrb[0].mxu0 %v5787
      %v5871 = vpop.f32.mrb[0].mxu0
      %v5872 = vadd.f32 %v5784, %v5871
      %v5873 = vpop.f32.mrb[0].mxu0
      %v5874 = vpop.f32.mrb[0].mxu0
      %v5875 = vadd.f32 %v5784, %v5874
      %v5876 = vpop.f32.mrb[0].mxu0
      %5877 = vmatprep.mubr.bf16.mxu0 0
      %5878 = vmatmul.mubr.bf16.gmra.mrb[0].mxu0 %v5790
      %v5879 = vpop.f32.mrb[0].mxu0
      %v5880 = vpop.f32.mrb[0].mxu0
      %v5881 = vpop.f32.mrb[0].mxu0
      %v5882 = vpop.f32.mrb[0].mxu0
      %5883 = vmatprep.mubr.bf16.mxu0 0
      %5884 = vmatmul.mubr.bf16.gmra.mrb[0].mxu0 %v5793
      %v5885 = vpop.f32.mrb[0].mxu0
      %v5886 = vadd.f32 %v5784, %v5885
      %v5887 = vpop.f32.mrb[0].mxu0
      %v5888 = vpop.f32.mrb[0].mxu0
      %v5889 = vadd.f32 %v5784, %v5888
      %v5890 = vpop.f32.mrb[0].mxu0
      %5891 = vmatprep.mubr.bf16.mxu0 0
      %5892 = vmatmul.mubr.bf16.gmra.mrb[0].mxu0 %v5796
      %v5893 = vpop.f32.mrb[0].mxu0
      %v5894 = vpop.f32.mrb[0].mxu0
      %v5895 = vpop.f32.mrb[0].mxu0
      %v5896 = vpop.f32.mrb[0].mxu0
      %5897 = vmatprep.mubr.bf16.mxu0 0
      %5898 = vmatmul.mubr.bf16.gmra.mrb[0].mxu0 %v5799
      %v5899 = vpop.f32.mrb[0].mxu0
      %v5900 = vadd.f32 %v5784, %v5899
      %v5901 = vpop.f32.mrb[0].mxu0
      %v5902 = vpop.f32.mrb[0].mxu0
      %v5903 = vadd.f32 %v5784, %v5902
      %v5904 = vpop.f32.mrb[0].mxu0
      %5905 = vmatprep.mubr.bf16.mxu0 0
      %5906 = vmatmul.mubr.bf16.gmra.mrb[0].mxu0 %v5802
      %v5907 = vpop.f32.mrb[0].mxu0
      %v5908 = vpop.f32.mrb[0].mxu0
      %v5909 = vpop.f32.mrb[0].mxu0
      %v5910 = vpop.f32.mrb[0].mxu0
      %5911 = vmatprep.mubr.bf16.mxu0 0
      %5912 = vmatmul.mubr.bf16.gmra.mrb[0].mxu0 %v5805
      %v5913 = vpop.f32.mrb[0].mxu0
      %v5914 = vadd.f32 %v5784, %v5913
      %v5915 = vpop.f32.mrb[0].mxu0
      %v5916 = vpop.f32.mrb[0].mxu0
      %v5917 = vadd.f32 %v5784, %v5916
      %v5918 = vpop.f32.mrb[0].mxu0
      %5919 = vmatprep.mubr.bf16.mxu0 0
      %5920 = vmatmul.mubr.bf16.gmra.mrb[0].mxu0 %v5808
      %v5921 = vpop.f32.mrb[0].mxu0
      %v5922 = vpop.f32.mrb[0].mxu0
      %v5923 = vpop.f32.mrb[0].mxu0
      %v5924 = vpop.f32.mrb[0].mxu0
      %5925 = vmatprep.mubr.bf16.mxu0 0
      %5926 = vmatmul.mubr.bf16.gmra.mrb[0].mxu0 %v5811
      %v5927 = vpop.f32.mrb[0].mxu0
      %v5928 = vadd.f32 %v5784, %v5927
      %v5929 = vpop.f32.mrb[0].mxu0
      %v5930 = vpop.f32.mrb[0].mxu0
      %v5931 = vadd.f32 %v5784, %v5930
      %v5932 = vpop.f32.mrb[0].mxu0
      %5933 = vmatprep.mubr.bf16.mxu0 0
      %5934 = vmatmul.mubr.bf16.gmra.mrb[0].mxu0 %v5814
      %v5935 = vpop.f32.mrb[0].mxu0
      %v5936 = vpop.f32.mrb[0].mxu0
      %v5937 = vpop.f32.mrb[0].mxu0
      %v5938 = vpop.f32.mrb[0].mxu0
      %5939 = vmatprep.mubr.bf16.mxu0 0
      %5940 = vmatmul.mubr.bf16.gmra.mrb[0].mxu0 %v5817
      %v5941 = vpop.f32.mrb[0].mxu0
      %v5942 = vadd.f32 %v5784, %v5941
      %v5943 = vpop.f32.mrb[0].mxu0
      %v5944 = vpop.f32.mrb[0].mxu0
      %v5945 = vadd.f32 %v5784, %v5944
      %v5946 = vpop.f32.mrb[0].mxu0
      %5947 = vmatprep.mubr.bf16.mxu0 0
      %5948 = vmatmul.mubr.bf16.gmra.mrb[0].mxu0 %v5820
      %v5949 = vpop.f32.mrb[0].mxu0
      %v5950 = vpop.f32.mrb[0].mxu0
      %v5951 = vpop.f32.mrb[0].mxu0
      %v5952 = vpop.f32.mrb[0].mxu0
      %5953 = vmatprep.mubr.bf16.mxu0 0
      %5954 = vmatmul.mubr.bf16.gmra.mrb[0].mxu0 %v5823
      %v5955 = vpop.f32.mrb[0].mxu0
      %v5956 = vadd.f32 %v5784, %v5955
      %v5957 = vpop.f32.mrb[0].mxu0
      %v5958 = vpop.f32.mrb[0].mxu0
      %v5959 = vadd.f32 %v5784, %v5958
      %v5960 = vpop.f32.mrb[0].mxu0
      %5961 = vmatprep.mubr.bf16.mxu0 0
      %5962 = vmatmul.mubr.bf16.gmra.mrb[0].mxu0 %v5826
      %v5963 = vpop.f32.mrb[0].mxu0
      %v5964 = vpop.f32.mrb[0].mxu0
      %v5965 = vpop.f32.mrb[0].mxu0
      %v5966 = vpop.f32.mrb[0].mxu0
      %5967 = vmatprep.mubr.bf16.mxu0 0
      %5968 = vmatmul.mubr.bf16.gmra.mrb[0].mxu0 %v5829
      %v5969 = vpop.f32.mrb[0].mxu0
      %v5970 = vadd.f32 %v5784, %v5969
      %v5971 = vpop.f32.mrb[0].mxu0
      %v5972 = vpop.f32.mrb[0].mxu0
      %v5973 = vadd.f32 %v5784, %v5972
      %v5974 = vpop.f32.mrb[0].mxu0
      %5975 = vmatprep.mubr.bf16.mxu0 0
      %5976 = vmatmul.mubr.bf16.gmra.mrb[0].mxu0 %v5832
      %v5977 = vpop.f32.mrb[0].mxu0
      %v5978 = vpop.f32.mrb[0].mxu0
      %v5979 = vpop.f32.mrb[0].mxu0
      %v5980 = vpop.f32.mrb[0].mxu0
      %5981 = vdwg.mxu0
      %v5982 = vadd.f32 %v5746, %v5872
      %v5983 = vadd.f32 %v5747, %v5875
      %v5984 = vadd.f32 %v5748, %v5886
      %v5985 = vadd.f32 %v5749, %v5889
      %v5986 = vadd.f32 %v5750, %v5900
      %v5987 = vadd.f32 %v5751, %v5903
      %v5988 = vadd.f32 %v5752, %v5914
      %v5989 = vadd.f32 %v5753, %v5917
      %v5990 = vadd.f32 %v5754, %v5928
      %v5991 = vadd.f32 %v5755, %v5931
      %v5992 = vadd.f32 %v5756, %v5942
      %v5993 = vadd.f32 %v5757, %v5945
      %v5994 = vadd.f32 %v5758, %v5956
      %v5995 = vadd.f32 %v5759, %v5959
      %v5996 = vadd.f32 %v5760, %v5970
      %v5997 = vadd.f32 %v5761, %v5973
      %v6014 = vcombine.high %v5982, %v5982
      %v6016 = vunpack.c.l.s4 1983009808
      %v6017 = vunpack.c.0.s8 %v6016
      %v6018 = vlaneseq
      %v6019 = vshrl.u32 %v6018, 7
      %v6020 = vsub.s32 %v6017, %v6019
      %v6021 = vrot.slane %v5982, %v6020
      %v6023 = vunpack.c.l.s4 1983009808
      %v6024 = vunpack.c.0.s8 %v6023
      %v6025 = vlaneseq
      %v6026 = vshrl.u32 %v6025, 7
      %v6027 = vsub.s32 %v6024, %v6026
      %v6028 = vrot.slane %v6014, %v6027
      %v6029 = vcombine.high %v6021, %v6021
      %v6030 = vcombine.high %v6028, %v6028
      %v6031 = vcombine.high %v5983, %v5983
      %v6033 = vunpack.c.l.s4 1983009808
      %v6034 = vunpack.c.0.s8 %v6033
      %v6035 = vlaneseq
      %v6036 = vshrl.u32 %v6035, 7
      %v6037 = vsub.s32 %v6034, %v6036
      %v6038 = vrot.slane %v5983, %v6037
      %v6040 = vunpack.c.l.s4 1983009808
      %v6041 = vunpack.c.0.s8 %v6040
      %v6042 = vlaneseq
      %v6043 = vshrl.u32 %v6042, 7
      %v6044 = vsub.s32 %v6041, %v6043
      %v6045 = vrot.slane %v6031, %v6044
      %v6046 = vcombine.high %v6038, %v6038
      %v6047 = vcombine.high %v6045, %v6045
      %v6048 = vcombine.high %v5984, %v5984
      %v6050 = vunpack.c.l.s4 1983009808
      %v6051 = vunpack.c.0.s8 %v6050
      %v6052 = vlaneseq
      %v6053 = vshrl.u32 %v6052, 7
      %v6054 = vsub.s32 %v6051, %v6053
      %v6055 = vrot.slane %v5984, %v6054
      %v6057 = vunpack.c.l.s4 1983009808
      %v6058 = vunpack.c.0.s8 %v6057
      %v6059 = vlaneseq
      %v6060 = vshrl.u32 %v6059, 7
      %v6061 = vsub.s32 %v6058, %v6060
      %v6062 = vrot.slane %v6048, %v6061
      %v6063 = vcombine.high %v6055, %v6055
      %v6064 = vcombine.high %v6062, %v6062
      %v6065 = vcombine.high %v5985, %v5985
      %v6067 = vunpack.c.l.s4 1983009808
      %v6068 = vunpack.c.0.s8 %v6067
      %v6069 = vlaneseq
      %v6070 = vshrl.u32 %v6069, 7
      %v6071 = vsub.s32 %v6068, %v6070
      %v6072 = vrot.slane %v5985, %v6071
      %v6074 = vunpack.c.l.s4 1983009808
      %v6075 = vunpack.c.0.s8 %v6074
      %v6076 = vlaneseq
      %v6077 = vshrl.u32 %v6076, 7
      %v6078 = vsub.s32 %v6075, %v6077
      %v6079 = vrot.slane %v6065, %v6078
      %v6080 = vcombine.high %v6072, %v6072
      %v6081 = vcombine.high %v6079, %v6079
      %v6082 = vcombine.high %v5986, %v5986
      %v6084 = vunpack.c.l.s4 1983009808
      %v6085 = vunpack.c.0.s8 %v6084
      %v6086 = vlaneseq
      %v6087 = vshrl.u32 %v6086, 7
      %v6088 = vsub.s32 %v6085, %v6087
      %v6089 = vrot.slane %v5986, %v6088
      %v6091 = vunpack.c.l.s4 1983009808
      %v6092 = vunpack.c.0.s8 %v6091
      %v6093 = vlaneseq
      %v6094 = vshrl.u32 %v6093, 7
      %v6095 = vsub.s32 %v6092, %v6094
      %v6096 = vrot.slane %v6082, %v6095
      %v6097 = vcombine.high %v6089, %v6089
      %v6098 = vcombine.high %v6096, %v6096
      %v6099 = vcombine.high %v5987, %v5987
      %v6101 = vunpack.c.l.s4 1983009808
      %v6102 = vunpack.c.0.s8 %v6101
      %v6103 = vlaneseq
      %v6104 = vshrl.u32 %v6103, 7
      %v6105 = vsub.s32 %v6102, %v6104
      %v6106 = vrot.slane %v5987, %v6105
      %v6108 = vunpack.c.l.s4 1983009808
      %v6109 = vunpack.c.0.s8 %v6108
      %v6110 = vlaneseq
      %v6111 = vshrl.u32 %v6110, 7
      %v6112 = vsub.s32 %v6109, %v6111
      %v6113 = vrot.slane %v6099, %v6112
      %v6114 = vcombine.high %v6106, %v6106
      %v6115 = vcombine.high %v6113, %v6113
      %v6116 = vcombine.high %v5988, %v5988
      %v6118 = vunpack.c.l.s4 1983009808
      %v6119 = vunpack.c.0.s8 %v6118
      %v6120 = vlaneseq
      %v6121 = vshrl.u32 %v6120, 7
      %v6122 = vsub.s32 %v6119, %v6121
      %v6123 = vrot.slane %v5988, %v6122
      %v6125 = vunpack.c.l.s4 1983009808
      %v6126 = vunpack.c.0.s8 %v6125
      %v6127 = vlaneseq
      %v6128 = vshrl.u32 %v6127, 7
      %v6129 = vsub.s32 %v6126, %v6128
      %v6130 = vrot.slane %v6116, %v6129
      %v6131 = vcombine.high %v6123, %v6123
      %v6132 = vcombine.high %v6130, %v6130
      %v6133 = vcombine.high %v5989, %v5989
      %v6135 = vunpack.c.l.s4 1983009808
      %v6136 = vunpack.c.0.s8 %v6135
      %v6137 = vlaneseq
      %v6138 = vshrl.u32 %v6137, 7
      %v6139 = vsub.s32 %v6136, %v6138
      %v6140 = vrot.slane %v5989, %v6139
      %v6142 = vunpack.c.l.s4 1983009808
      %v6143 = vunpack.c.0.s8 %v6142
      %v6144 = vlaneseq
      %v6145 = vshrl.u32 %v6144, 7
      %v6146 = vsub.s32 %v6143, %v6145
      %v6147 = vrot.slane %v6133, %v6146
      %v6148 = vcombine.high %v6140, %v6140
      %v6149 = vcombine.high %v6147, %v6147
      %v6150 = vcombine.high %v5990, %v5990
      %v6152 = vunpack.c.l.s4 1983009808
      %v6153 = vunpack.c.0.s8 %v6152
      %v6154 = vlaneseq
      %v6155 = vshrl.u32 %v6154, 7
      %v6156 = vsub.s32 %v6153, %v6155
      %v6157 = vrot.slane %v5990, %v6156
      %v6159 = vunpack.c.l.s4 1983009808
      %v6160 = vunpack.c.0.s8 %v6159
      %v6161 = vlaneseq
      %v6162 = vshrl.u32 %v6161, 7
      %v6163 = vsub.s32 %v6160, %v6162
      %v6164 = vrot.slane %v6150, %v6163
      %v6165 = vcombine.high %v6157, %v6157
      %v6166 = vcombine.high %v6164, %v6164
      %v6167 = vcombine.high %v5991, %v5991
      %v6169 = vunpack.c.l.s4 1983009808
      %v6170 = vunpack.c.0.s8 %v6169
      %v6171 = vlaneseq
      %v6172 = vshrl.u32 %v6171, 7
      %v6173 = vsub.s32 %v6170, %v6172
      %v6174 = vrot.slane %v5991, %v6173
      %v6176 = vunpack.c.l.s4 1983009808
      %v6177 = vunpack.c.0.s8 %v6176
      %v6178 = vlaneseq
      %v6179 = vshrl.u32 %v6178, 7
      %v6180 = vsub.s32 %v6177, %v6179
      %v6181 = vrot.slane %v6167, %v6180
      %v6182 = vcombine.high %v6174, %v6174
      %v6183 = vcombine.high %v6181, %v6181
      %v6184 = vcombine.high %v5992, %v5992
      %v6186 = vunpack.c.l.s4 1983009808
      %v6187 = vunpack.c.0.s8 %v6186
      %v6188 = vlaneseq
      %v6189 = vshrl.u32 %v6188, 7
      %v6190 = vsub.s32 %v6187, %v6189
      %v6191 = vrot.slane %v5992, %v6190
      %v6193 = vunpack.c.l.s4 1983009808
      %v6194 = vunpack.c.0.s8 %v6193
      %v6195 = vlaneseq
      %v6196 = vshrl.u32 %v6195, 7
      %v6197 = vsub.s32 %v6194, %v6196
      %v6198 = vrot.slane %v6184, %v6197
      %v6199 = vcombine.high %v6191, %v6191
      %v6200 = vcombine.high %v6198, %v6198
      %v6201 = vcombine.high %v5993, %v5993
      %v6203 = vunpack.c.l.s4 1983009808
      %v6204 = vunpack.c.0.s8 %v6203
      %v6205 = vlaneseq
      %v6206 = vshrl.u32 %v6205, 7
      %v6207 = vsub.s32 %v6204, %v6206
      %v6208 = vrot.slane %v5993, %v6207
      %v6210 = vunpack.c.l.s4 1983009808
      %v6211 = vunpack.c.0.s8 %v6210
      %v6212 = vlaneseq
      %v6213 = vshrl.u32 %v6212, 7
      %v6214 = vsub.s32 %v6211, %v6213
      %v6215 = vrot.slane %v6201, %v6214
      %v6216 = vcombine.high %v6208, %v6208
      %v6217 = vcombine.high %v6215, %v6215
      %v6218 = vcombine.high %v5994, %v5994
      %v6220 = vunpack.c.l.s4 1983009808
      %v6221 = vunpack.c.0.s8 %v6220
      %v6222 = vlaneseq
      %v6223 = vshrl.u32 %v6222, 7
      %v6224 = vsub.s32 %v6221, %v6223
      %v6225 = vrot.slane %v5994, %v6224
      %v6227 = vunpack.c.l.s4 1983009808
      %v6228 = vunpack.c.0.s8 %v6227
      %v6229 = vlaneseq
      %v6230 = vshrl.u32 %v6229, 7
      %v6231 = vsub.s32 %v6228, %v6230
      %v6232 = vrot.slane %v6218, %v6231
      %v6233 = vcombine.high %v6225, %v6225
      %v6234 = vcombine.high %v6232, %v6232
      %v6235 = vcombine.high %v5995, %v5995
      %v6237 = vunpack.c.l.s4 1983009808
      %v6238 = vunpack.c.0.s8 %v6237
      %v6239 = vlaneseq
      %v6240 = vshrl.u32 %v6239, 7
      %v6241 = vsub.s32 %v6238, %v6240
      %v6242 = vrot.slane %v5995, %v6241
      %v6244 = vunpack.c.l.s4 1983009808
      %v6245 = vunpack.c.0.s8 %v6244
      %v6246 = vlaneseq
      %v6247 = vshrl.u32 %v6246, 7
      %v6248 = vsub.s32 %v6245, %v6247
      %v6249 = vrot.slane %v6235, %v6248
      %v6250 = vcombine.high %v6242, %v6242
      %v6251 = vcombine.high %v6249, %v6249
      %v6252 = vcombine.high %v5996, %v5996
      %v6254 = vunpack.c.l.s4 1983009808
      %v6255 = vunpack.c.0.s8 %v6254
      %v6256 = vlaneseq
      %v6257 = vshrl.u32 %v6256, 7
      %v6258 = vsub.s32 %v6255, %v6257
      %v6259 = vrot.slane %v5996, %v6258
      %v6261 = vunpack.c.l.s4 1983009808
      %v6262 = vunpack.c.0.s8 %v6261
      %v6263 = vlaneseq
      %v6264 = vshrl.u32 %v6263, 7
      %v6265 = vsub.s32 %v6262, %v6264
      %v6266 = vrot.slane %v6252, %v6265
      %v6267 = vcombine.high %v6259, %v6259
      %v6268 = vcombine.high %v6266, %v6266
      %v6269 = vcombine.high %v5997, %v5997
      %v6271 = vunpack.c.l.s4 1983009808
      %v6272 = vunpack.c.0.s8 %v6271
      %v6273 = vlaneseq
      %v6274 = vshrl.u32 %v6273, 7
      %v6275 = vsub.s32 %v6272, %v6274
      %v6276 = vrot.slane %v5997, %v6275
      %v6278 = vunpack.c.l.s4 1983009808
      %v6279 = vunpack.c.0.s8 %v6278
      %v6280 = vlaneseq
      %v6281 = vshrl.u32 %v6280, 7
      %v6282 = vsub.s32 %v6279, %v6281
      %v6283 = vrot.slane %v6269, %v6282
      %v6284 = vcombine.high %v6276, %v6276
      %v6285 = vcombine.high %v6283, %v6283
      %v6350 = vmax.f32 %v6021, 0.0
      %v6351 = vmax.f32 %v6029, 0.0
      %v6352 = vmax.f32 %v6028, 0.0
      %v6353 = vmax.f32 %v6030, 0.0
      %v6354 = vmax.f32 %v6038, 0.0
      %v6355 = vmax.f32 %v6046, 0.0
      %v6356 = vmax.f32 %v6045, 0.0
      %v6357 = vmax.f32 %v6047, 0.0
      %v6358 = vmax.f32 %v6055, 0.0
      %v6359 = vmax.f32 %v6063, 0.0
      %v6360 = vmax.f32 %v6062, 0.0
      %v6361 = vmax.f32 %v6064, 0.0
      %v6362 = vmax.f32 %v6072, 0.0
      %v6363 = vmax.f32 %v6080, 0.0
      %v6364 = vmax.f32 %v6079, 0.0
      %v6365 = vmax.f32 %v6081, 0.0
      %v6366 = vmax.f32 %v6089, 0.0
      %v6367 = vmax.f32 %v6097, 0.0
      %v6368 = vmax.f32 %v6096, 0.0
      %v6369 = vmax.f32 %v6098, 0.0
      %v6370 = vmax.f32 %v6106, 0.0
      %v6371 = vmax.f32 %v6114, 0.0
      %v6372 = vmax.f32 %v6113, 0.0
      %v6373 = vmax.f32 %v6115, 0.0
      %v6374 = vmax.f32 %v6123, 0.0
      %v6375 = vmax.f32 %v6131, 0.0
      %v6376 = vmax.f32 %v6130, 0.0
      %v6377 = vmax.f32 %v6132, 0.0
      %v6378 = vmax.f32 %v6140, 0.0
      %v6379 = vmax.f32 %v6148, 0.0
      %v6380 = vmax.f32 %v6147, 0.0
      %v6381 = vmax.f32 %v6149, 0.0
      %v6382 = vmax.f32 %v6157, 0.0
      %v6383 = vmax.f32 %v6165, 0.0
      %v6384 = vmax.f32 %v6164, 0.0
      %v6385 = vmax.f32 %v6166, 0.0
      %v6386 = vmax.f32 %v6174, 0.0
      %v6387 = vmax.f32 %v6182, 0.0
      %v6388 = vmax.f32 %v6181, 0.0
      %v6389 = vmax.f32 %v6183, 0.0
      %v6390 = vmax.f32 %v6191, 0.0
      %v6391 = vmax.f32 %v6199, 0.0
      %v6392 = vmax.f32 %v6198, 0.0
      %v6393 = vmax.f32 %v6200, 0.0
      %v6394 = vmax.f32 %v6208, 0.0
      %v6395 = vmax.f32 %v6216, 0.0
      %v6396 = vmax.f32 %v6215, 0.0
      %v6397 = vmax.f32 %v6217, 0.0
      %v6398 = vmax.f32 %v6225, 0.0
      %v6399 = vmax.f32 %v6233, 0.0
      %v6400 = vmax.f32 %v6232, 0.0
      %v6401 = vmax.f32 %v6234, 0.0
      %v6402 = vmax.f32 %v6242, 0.0
      %v6403 = vmax.f32 %v6250, 0.0
      %v6404 = vmax.f32 %v6249, 0.0
      %v6405 = vmax.f32 %v6251, 0.0
      %v6406 = vmax.f32 %v6259, 0.0
      %v6407 = vmax.f32 %v6267, 0.0
      %v6408 = vmax.f32 %v6266, 0.0
      %v6409 = vmax.f32 %v6268, 0.0
      %v6410 = vmax.f32 %v6276, 0.0
      %v6411 = vmax.f32 %v6284, 0.0
      %v6412 = vmax.f32 %v6283, 0.0
      %v6413 = vmax.f32 %v6285, 0.0
      %v6478 = vlaneseq
      %v6479 = vshrl.u32 %v6478, 7
      %v6480 = vsub.s32 0, %v6479
      %v6481 = vrot.slane %v6350, %v6480
      %v6482 = vlaneseq
      %v6483 = vshrl.u32 %v6482, 7
      %v6484 = vsub.s32 0, %v6483
      %v6485 = vrot.slane %v6351, %v6484
      %v6486 = vlaneseq
      %v6487 = vshrl.u32 %v6486, 7
      %v6488 = vsub.s32 0, %v6487
      %v6489 = vrot.slane %v6352, %v6488
      %v6490 = vlaneseq
      %v6491 = vshrl.u32 %v6490, 7
      %v6492 = vsub.s32 0, %v6491
      %v6493 = vrot.slane %v6353, %v6492
      %v6494 = vlaneseq
      %v6495 = vshrl.u32 %v6494, 7
      %v6496 = vsub.s32 0, %v6495
      %v6497 = vrot.slane %v6354, %v6496
      %v6498 = vlaneseq
      %v6499 = vshrl.u32 %v6498, 7
      %v6500 = vsub.s32 0, %v6499
      %v6501 = vrot.slane %v6355, %v6500
      %v6502 = vlaneseq
      %v6503 = vshrl.u32 %v6502, 7
      %v6504 = vsub.s32 0, %v6503
      %v6505 = vrot.slane %v6356, %v6504
      %v6506 = vlaneseq
      %v6507 = vshrl.u32 %v6506, 7
      %v6508 = vsub.s32 0, %v6507
      %v6509 = vrot.slane %v6357, %v6508
      %v6510 = vlaneseq
      %v6511 = vshrl.u32 %v6510, 7
      %v6512 = vsub.s32 0, %v6511
      %v6513 = vrot.slane %v6358, %v6512
      %v6514 = vlaneseq
      %v6515 = vshrl.u32 %v6514, 7
      %v6516 = vsub.s32 0, %v6515
      %v6517 = vrot.slane %v6359, %v6516
      %v6518 = vlaneseq
      %v6519 = vshrl.u32 %v6518, 7
      %v6520 = vsub.s32 0, %v6519
      %v6521 = vrot.slane %v6360, %v6520
      %v6522 = vlaneseq
      %v6523 = vshrl.u32 %v6522, 7
      %v6524 = vsub.s32 0, %v6523
      %v6525 = vrot.slane %v6361, %v6524
      %v6526 = vlaneseq
      %v6527 = vshrl.u32 %v6526, 7
      %v6528 = vsub.s32 0, %v6527
      %v6529 = vrot.slane %v6362, %v6528
      %v6530 = vlaneseq
      %v6531 = vshrl.u32 %v6530, 7
      %v6532 = vsub.s32 0, %v6531
      %v6533 = vrot.slane %v6363, %v6532
      %v6534 = vlaneseq
      %v6535 = vshrl.u32 %v6534, 7
      %v6536 = vsub.s32 0, %v6535
      %v6537 = vrot.slane %v6364, %v6536
      %v6538 = vlaneseq
      %v6539 = vshrl.u32 %v6538, 7
      %v6540 = vsub.s32 0, %v6539
      %v6541 = vrot.slane %v6365, %v6540
      %v6542 = vlaneseq
      %v6543 = vshrl.u32 %v6542, 7
      %v6544 = vsub.s32 0, %v6543
      %v6545 = vrot.slane %v6366, %v6544
      %v6546 = vlaneseq
      %v6547 = vshrl.u32 %v6546, 7
      %v6548 = vsub.s32 0, %v6547
      %v6549 = vrot.slane %v6367, %v6548
      %v6550 = vlaneseq
      %v6551 = vshrl.u32 %v6550, 7
      %v6552 = vsub.s32 0, %v6551
      %v6553 = vrot.slane %v6368, %v6552
      %v6554 = vlaneseq
      %v6555 = vshrl.u32 %v6554, 7
      %v6556 = vsub.s32 0, %v6555
      %v6557 = vrot.slane %v6369, %v6556
      %v6558 = vlaneseq
      %v6559 = vshrl.u32 %v6558, 7
      %v6560 = vsub.s32 0, %v6559
      %v6561 = vrot.slane %v6370, %v6560
      %v6562 = vlaneseq
      %v6563 = vshrl.u32 %v6562, 7
      %v6564 = vsub.s32 0, %v6563
      %v6565 = vrot.slane %v6371, %v6564
      %v6566 = vlaneseq
      %v6567 = vshrl.u32 %v6566, 7
      %v6568 = vsub.s32 0, %v6567
      %v6569 = vrot.slane %v6372, %v6568
      %v6570 = vlaneseq
      %v6571 = vshrl.u32 %v6570, 7
      %v6572 = vsub.s32 0, %v6571
      %v6573 = vrot.slane %v6373, %v6572
      %v6574 = vlaneseq
      %v6575 = vshrl.u32 %v6574, 7
      %v6576 = vsub.s32 0, %v6575
      %v6577 = vrot.slane %v6374, %v6576
      %v6578 = vlaneseq
      %v6579 = vshrl.u32 %v6578, 7
      %v6580 = vsub.s32 0, %v6579
      %v6581 = vrot.slane %v6375, %v6580
      %v6582 = vlaneseq
      %v6583 = vshrl.u32 %v6582, 7
      %v6584 = vsub.s32 0, %v6583
      %v6585 = vrot.slane %v6376, %v6584
      %v6586 = vlaneseq
      %v6587 = vshrl.u32 %v6586, 7
      %v6588 = vsub.s32 0, %v6587
      %v6589 = vrot.slane %v6377, %v6588
      %v6590 = vlaneseq
      %v6591 = vshrl.u32 %v6590, 7
      %v6592 = vsub.s32 0, %v6591
      %v6593 = vrot.slane %v6378, %v6592
      %v6594 = vlaneseq
      %v6595 = vshrl.u32 %v6594, 7
      %v6596 = vsub.s32 0, %v6595
      %v6597 = vrot.slane %v6379, %v6596
      %v6598 = vlaneseq
      %v6599 = vshrl.u32 %v6598, 7
      %v6600 = vsub.s32 0, %v6599
      %v6601 = vrot.slane %v6380, %v6600
      %v6602 = vlaneseq
      %v6603 = vshrl.u32 %v6602, 7
      %v6604 = vsub.s32 0, %v6603
      %v6605 = vrot.slane %v6381, %v6604
      %v6606 = vlaneseq
      %v6607 = vshrl.u32 %v6606, 7
      %v6608 = vsub.s32 0, %v6607
      %v6609 = vrot.slane %v6382, %v6608
      %v6610 = vlaneseq
      %v6611 = vshrl.u32 %v6610, 7
      %v6612 = vsub.s32 0, %v6611
      %v6613 = vrot.slane %v6383, %v6612
      %v6614 = vlaneseq
      %v6615 = vshrl.u32 %v6614, 7
      %v6616 = vsub.s32 0, %v6615
      %v6617 = vrot.slane %v6384, %v6616
      %v6618 = vlaneseq
      %v6619 = vshrl.u32 %v6618, 7
      %v6620 = vsub.s32 0, %v6619
      %v6621 = vrot.slane %v6385, %v6620
      %v6622 = vlaneseq
      %v6623 = vshrl.u32 %v6622, 7
      %v6624 = vsub.s32 0, %v6623
      %v6625 = vrot.slane %v6386, %v6624
      %v6626 = vlaneseq
      %v6627 = vshrl.u32 %v6626, 7
      %v6628 = vsub.s32 0, %v6627
      %v6629 = vrot.slane %v6387, %v6628
      %v6630 = vlaneseq
      %v6631 = vshrl.u32 %v6630, 7
      %v6632 = vsub.s32 0, %v6631
      %v6633 = vrot.slane %v6388, %v6632
      %v6634 = vlaneseq
      %v6635 = vshrl.u32 %v6634, 7
      %v6636 = vsub.s32 0, %v6635
      %v6637 = vrot.slane %v6389, %v6636
      %v6638 = vlaneseq
      %v6639 = vshrl.u32 %v6638, 7
      %v6640 = vsub.s32 0, %v6639
      %v6641 = vrot.slane %v6390, %v6640
      %v6642 = vlaneseq
      %v6643 = vshrl.u32 %v6642, 7
      %v6644 = vsub.s32 0, %v6643
      %v6645 = vrot.slane %v6391, %v6644
      %v6646 = vlaneseq
      %v6647 = vshrl.u32 %v6646, 7
      %v6648 = vsub.s32 0, %v6647
      %v6649 = vrot.slane %v6392, %v6648
      %v6650 = vlaneseq
      %v6651 = vshrl.u32 %v6650, 7
      %v6652 = vsub.s32 0, %v6651
      %v6653 = vrot.slane %v6393, %v6652
      %v6654 = vlaneseq
      %v6655 = vshrl.u32 %v6654, 7
      %v6656 = vsub.s32 0, %v6655
      %v6657 = vrot.slane %v6394, %v6656
      %v6658 = vlaneseq
      %v6659 = vshrl.u32 %v6658, 7
      %v6660 = vsub.s32 0, %v6659
      %v6661 = vrot.slane %v6395, %v6660
      %v6662 = vlaneseq
      %v6663 = vshrl.u32 %v6662, 7
      %v6664 = vsub.s32 0, %v6663
      %v6665 = vrot.slane %v6396, %v6664
      %v6666 = vlaneseq
      %v6667 = vshrl.u32 %v6666, 7
      %v6668 = vsub.s32 0, %v6667
      %v6669 = vrot.slane %v6397, %v6668
      %v6670 = vlaneseq
      %v6671 = vshrl.u32 %v6670, 7
      %v6672 = vsub.s32 0, %v6671
      %v6673 = vrot.slane %v6398, %v6672
      %v6674 = vlaneseq
      %v6675 = vshrl.u32 %v6674, 7
      %v6676 = vsub.s32 0, %v6675
      %v6677 = vrot.slane %v6399, %v6676
      %v6678 = vlaneseq
      %v6679 = vshrl.u32 %v6678, 7
      %v6680 = vsub.s32 0, %v6679
      %v6681 = vrot.slane %v6400, %v6680
      %v6682 = vlaneseq
      %v6683 = vshrl.u32 %v6682, 7
      %v6684 = vsub.s32 0, %v6683
      %v6685 = vrot.slane %v6401, %v6684
      %v6686 = vlaneseq
      %v6687 = vshrl.u32 %v6686, 7
      %v6688 = vsub.s32 0, %v6687
      %v6689 = vrot.slane %v6402, %v6688
      %v6690 = vlaneseq
      %v6691 = vshrl.u32 %v6690, 7
      %v6692 = vsub.s32 0, %v6691
      %v6693 = vrot.slane %v6403, %v6692
      %v6694 = vlaneseq
      %v6695 = vshrl.u32 %v6694, 7
      %v6696 = vsub.s32 0, %v6695
      %v6697 = vrot.slane %v6404, %v6696
      %v6698 = vlaneseq
      %v6699 = vshrl.u32 %v6698, 7
      %v6700 = vsub.s32 0, %v6699
      %v6701 = vrot.slane %v6405, %v6700
      %v6702 = vlaneseq
      %v6703 = vshrl.u32 %v6702, 7
      %v6704 = vsub.s32 0, %v6703
      %v6705 = vrot.slane %v6406, %v6704
      %v6706 = vlaneseq
      %v6707 = vshrl.u32 %v6706, 7
      %v6708 = vsub.s32 0, %v6707
      %v6709 = vrot.slane %v6407, %v6708
      %v6710 = vlaneseq
      %v6711 = vshrl.u32 %v6710, 7
      %v6712 = vsub.s32 0, %v6711
      %v6713 = vrot.slane %v6408, %v6712
      %v6714 = vlaneseq
      %v6715 = vshrl.u32 %v6714, 7
      %v6716 = vsub.s32 0, %v6715
      %v6717 = vrot.slane %v6409, %v6716
      %v6718 = vlaneseq
      %v6719 = vshrl.u32 %v6718, 7
      %v6720 = vsub.s32 0, %v6719
      %v6721 = vrot.slane %v6410, %v6720
      %v6722 = vlaneseq
      %v6723 = vshrl.u32 %v6722, 7
      %v6724 = vsub.s32 0, %v6723
      %v6725 = vrot.slane %v6411, %v6724
      %v6726 = vlaneseq
      %v6727 = vshrl.u32 %v6726, 7
      %v6728 = vsub.s32 0, %v6727
      %v6729 = vrot.slane %v6412, %v6728
      %v6730 = vlaneseq
      %v6731 = vshrl.u32 %v6730, 7
      %v6732 = vsub.s32 0, %v6731
      %v6733 = vrot.slane %v6413, %v6732
      %vm6734 = vcmask 1041409
      %v6735 = vsel %vm6734, %v6485, %v6481
      %vm6736 = vcmask 1042434
      %v6737 = vsel %vm6736, %v6489, %v6735
      %vm6738 = vcmask 1043459
      %v6739 = vsel %vm6738, %v6493, %v6737
      %vm6740 = vcmask 1044484
      %v6741 = vsel %vm6740, %v6497, %v6739
      %vm6742 = vcmask 1045509
      %v6743 = vsel %vm6742, %v6501, %v6741
      %vm6744 = vcmask 1046534
      %v6745 = vsel %vm6744, %v6505, %v6743
      %vm6746 = vcmask 1047559
      %v6747 = vsel %vm6746, %v6509, %v6745
      %v6748 = vsel %vm6734, %v6517, %v6513
      %v6749 = vsel %vm6736, %v6521, %v6748
      %v6750 = vsel %vm6738, %v6525, %v6749
      %v6751 = vsel %vm6740, %v6529, %v6750
      %v6752 = vsel %vm6742, %v6533, %v6751
      %v6753 = vsel %vm6744, %v6537, %v6752
      %v6754 = vsel %vm6746, %v6541, %v6753
      %v6755 = vsel %vm6734, %v6549, %v6545
      %v6756 = vsel %vm6736, %v6553, %v6755
      %v6757 = vsel %vm6738, %v6557, %v6756
      %v6758 = vsel %vm6740, %v6561, %v6757
      %v6759 = vsel %vm6742, %v6565, %v6758
      %v6760 = vsel %vm6744, %v6569, %v6759
      %v6761 = vsel %vm6746, %v6573, %v6760
      %v6762 = vsel %vm6734, %v6581, %v6577
      %v6763 = vsel %vm6736, %v6585, %v6762
      %v6764 = vsel %vm6738, %v6589, %v6763
      %v6765 = vsel %vm6740, %v6593, %v6764
      %v6766 = vsel %vm6742, %v6597, %v6765
      %v6767 = vsel %vm6744, %v6601, %v6766
      %v6768 = vsel %vm6746, %v6605, %v6767
      %v6769 = vsel %vm6734, %v6613, %v6609
      %v6770 = vsel %vm6736, %v6617, %v6769
      %v6771 = vsel %vm6738, %v6621, %v6770
      %v6772 = vsel %vm6740, %v6625, %v6771
      %v6773 = vsel %vm6742, %v6629, %v6772
      %v6774 = vsel %vm6744, %v6633, %v6773
      %v6775 = vsel %vm6746, %v6637, %v6774
      %v6776 = vsel %vm6734, %v6645, %v6641
      %v6777 = vsel %vm6736, %v6649, %v6776
      %v6778 = vsel %vm6738, %v6653, %v6777
      %v6779 = vsel %vm6740, %v6657, %v6778
      %v6780 = vsel %vm6742, %v6661, %v6779
      %v6781 = vsel %vm6744, %v6665, %v6780
      %v6782 = vsel %vm6746, %v6669, %v6781
      %v6783 = vsel %vm6734, %v6677, %v6673
      %v6784 = vsel %vm6736, %v6681, %v6783
      %v6785 = vsel %vm6738, %v6685, %v6784
      %v6786 = vsel %vm6740, %v6689, %v6785
      %v6787 = vsel %vm6742, %v6693, %v6786
      %v6788 = vsel %vm6744, %v6697, %v6787
      %v6789 = vsel %vm6746, %v6701, %v6788
      %v6790 = vsel %vm6734, %v6709, %v6705
      %v6791 = vsel %vm6736, %v6713, %v6790
      %v6792 = vsel %vm6738, %v6717, %v6791
      %v6793 = vsel %vm6740, %v6721, %v6792
      %v6794 = vsel %vm6742, %v6725, %v6793
      %v6795 = vsel %vm6744, %v6729, %v6794
      %v6796 = vsel %vm6746, %v6733, %v6795
      %6805 = vst.msk [vmem:[%s585 + $0x1] sm:$0xff] %vm537, %v6747
      %6806 = vst.msk [vmem:[%s585 + $0x11] sm:$0xff] %vm537, %v6754
      %6807 = vst.msk [vmem:[%s585 + $0x21] sm:$0xff] %vm537, %v6761
      %6808 = vst.msk [vmem:[%s585 + $0x31] sm:$0xff] %vm537, %v6768
      %6809 = vst.msk [vmem:[%s585 + $0x41] sm:$0xff] %vm537, %v6775
      %6810 = vst.msk [vmem:[%s585 + $0x51] sm:$0xff] %vm537, %v6782
      %6811 = vst.msk [vmem:[%s585 + $0x61] sm:$0xff] %vm537, %v6789
      %6812 = vst.msk [vmem:[%s585 + $0x71] sm:$0xff] %vm537, %v6796
      %v6813 = vld [vmem:[#allocation4] sm:$0xff]
      %v6814 = vld [vmem:[#allocation4 + $0x10] sm:$0xff]
      %v6815 = vld [vmem:[#allocation4 + $0x20] sm:$0xff]
      %v6816 = vld [vmem:[#allocation4 + $0x30] sm:$0xff]
      %v6817 = vld [vmem:[#allocation4 + $0x40] sm:$0xff]
      %v6818 = vld [vmem:[#allocation4 + $0x50] sm:$0xff]
      %v6819 = vld [vmem:[#allocation4 + $0x60] sm:$0xff]
      %v6820 = vld [vmem:[#allocation4 + $0x70] sm:$0xff]
      %v6821 = vpack.c.bf16 %v6814, %v6813
      %v6822 = vpack.c.bf16 %v6816, %v6815
      %v6823 = vpack.c.bf16 %v6818, %v6817
      %v6824 = vpack.c.bf16 %v6820, %v6819
      %v6825 = vld [vmem:[%s7] sm:$0xf]
      %v6826 = vld [vmem:[#allocation4 + $0x1] sm:$0xff]
      %v6827 = vld [vmem:[#allocation4 + $0x11] sm:$0xff]
      %v6828 = vld [vmem:[#allocation4 + $0x21] sm:$0xff]
      %v6829 = vld [vmem:[#allocation4 + $0x31] sm:$0xff]
      %v6830 = vld [vmem:[#allocation4 + $0x41] sm:$0xff]
      %v6831 = vld [vmem:[#allocation4 + $0x51] sm:$0xff]
      %v6832 = vld [vmem:[#allocation4 + $0x61] sm:$0xff]
      %v6833 = vld [vmem:[#allocation4 + $0x71] sm:$0xff]
      %v6834 = vpack.c.bf16 %v6827, %v6826
      %v6835 = vpack.c.bf16 %v6829, %v6828
      %v6836 = vpack.c.bf16 %v6831, %v6830
      %v6837 = vpack.c.bf16 %v6833, %v6832
      %s6838 = scalar_lea.vmem %s7, 4
      %v6839 = vld [vmem:[%s6838] sm:$0xf]
      %v6841 = vsel %vm537, %v6834, 0
      %v6844 = vsel %vm537, %v6835, 0
      %v6847 = vsel %vm537, %v6836, 0
      %v6850 = vsel %vm537, %v6837, 0
      %v6853 = vsel %vm3559, %v6839, 0
      %6855 = vmatprep.subr.bf16.mxu0 0
      %6856 = vmatpush1.bf16.msra.mxu0 %v6853
      %6857 = vmatprep.subr.bf16.mxu0 0
      %6858 = vmatpush1.bf16.msra.mxu0 0
      %6859 = vmatprep.subr.bf16.mxu0 0
      %6860 = vmatpush1.bf16.msra.mxu0 0
      %6861 = vmatprep.subr.bf16.mxu0 0
      %6862 = vmatpush1.bf16.msra.mxu0 0
      %6863 = vmatprep.subr.bf16.mxu0 0
      %6864 = vmatpush1.bf16.msra.mxu0 0
      %6865 = vmatprep.subr.bf16.mxu0 0
      %6866 = vmatpush1.bf16.msra.mxu0 0
      %6867 = vmatprep.subr.bf16.mxu0 0
      %6868 = vmatpush1.bf16.msra.mxu0 0
      %6869 = vmatprep.subr.bf16.mxu0 0
      %6870 = vmatpush1.bf16.msra.mxu0 0
      %6871 = vmatprep.subr.bf16.mxu0 0
      %6872 = vmatpush1.bf16.msra.mxu0 0
      %6873 = vmatprep.subr.bf16.mxu0 0
      %6874 = vmatpush1.bf16.msra.mxu0 0
      %6875 = vmatprep.subr.bf16.mxu0 0
      %6876 = vmatpush1.bf16.msra.mxu0 0
      %6877 = vmatprep.subr.bf16.mxu0 0
      %6878 = vmatpush1.bf16.msra.mxu0 0
      %6879 = vmatprep.subr.bf16.mxu0 0
      %6880 = vmatpush1.bf16.msra.mxu0 0
      %6881 = vmatprep.subr.bf16.mxu0 0
      %6882 = vmatpush1.bf16.msra.mxu0 0
      %6883 = vmatprep.subr.bf16.mxu0 0
      %6884 = vmatpush1.bf16.msra.mxu0 0
      %6885 = vmatprep.subr.bf16.mxu0 0
      %6886 = vmatpush1.bf16.msra.mxu0 0
      %6887 = vmatprep.mubr.bf16.mxu0 0
      %6888 = vmatmul.mubr.bf16.gmra.mrb[0].mxu0 %v6841
      %v6889 = vpop.f32.mrb[0].mxu0
      %v6890 = vadd.f32 0.0, %v6889
      %v6891 = vpop.f32.mrb[0].mxu0
      %v6892 = vpop.f32.mrb[0].mxu0
      %v6893 = vadd.f32 0.0, %v6892
      %v6894 = vpop.f32.mrb[0].mxu0
      %6895 = vmatprep.mubr.bf16.mxu0 0
      %6896 = vmatmul.mubr.bf16.gmra.mrb[0].mxu0 %v6844
      %v6897 = vpop.f32.mrb[0].mxu0
      %v6898 = vadd.f32 0.0, %v6897
      %v6899 = vpop.f32.mrb[0].mxu0
      %v6900 = vpop.f32.mrb[0].mxu0
      %v6901 = vadd.f32 0.0, %v6900
      %v6902 = vpop.f32.mrb[0].mxu0
      %6903 = vmatprep.mubr.bf16.mxu0 0
      %6904 = vmatmul.mubr.bf16.gmra.mrb[0].mxu0 %v6847
      %v6905 = vpop.f32.mrb[0].mxu0
      %v6906 = vadd.f32 0.0, %v6905
      %v6907 = vpop.f32.mrb[0].mxu0
      %v6908 = vpop.f32.mrb[0].mxu0
      %v6909 = vadd.f32 0.0, %v6908
      %v6910 = vpop.f32.mrb[0].mxu0
      %6911 = vmatprep.mubr.bf16.mxu0 0
      %6912 = vmatmul.mubr.bf16.gmra.mrb[0].mxu0 %v6850
      %v6913 = vpop.f32.mrb[0].mxu0
      %v6914 = vadd.f32 0.0, %v6913
      %v6915 = vpop.f32.mrb[0].mxu0
      %v6916 = vpop.f32.mrb[0].mxu0
      %v6917 = vadd.f32 0.0, %v6916
      %v6918 = vpop.f32.mrb[0].mxu0
      %6919 = vdwg.mxu0
      %v6921 = vsel %vm537, %v6821, 0
      %v6924 = vsel %vm537, %v6822, 0
      %v6927 = vsel %vm537, %v6823, 0
      %v6930 = vsel %vm537, %v6824, 0
      %v6933 = vsel %vm3559, %v6825, 0
      %6935 = vmatprep.subr.bf16.mxu0 0
      %6936 = vmatpush1.bf16.msra.mxu0 %v6933
      %6937 = vmatprep.subr.bf16.mxu0 0
      %6938 = vmatpush1.bf16.msra.mxu0 0
      %6939 = vmatprep.subr.bf16.mxu0 0
      %6940 = vmatpush1.bf16.msra.mxu0 0
      %6941 = vmatprep.subr.bf16.mxu0 0
      %6942 = vmatpush1.bf16.msra.mxu0 0
      %6943 = vmatprep.subr.bf16.mxu0 0
      %6944 = vmatpush1.bf16.msra.mxu0 0
      %6945 = vmatprep.subr.bf16.mxu0 0
      %6946 = vmatpush1.bf16.msra.mxu0 0
      %6947 = vmatprep.subr.bf16.mxu0 0
      %6948 = vmatpush1.bf16.msra.mxu0 0
      %6949 = vmatprep.subr.bf16.mxu0 0
      %6950 = vmatpush1.bf16.msra.mxu0 0
      %6951 = vmatprep.subr.bf16.mxu0 0
      %6952 = vmatpush1.bf16.msra.mxu0 0
      %6953 = vmatprep.subr.bf16.mxu0 0
      %6954 = vmatpush1.bf16.msra.mxu0 0
      %6955 = vmatprep.subr.bf16.mxu0 0
      %6956 = vmatpush1.bf16.msra.mxu0 0
      %6957 = vmatprep.subr.bf16.mxu0 0
      %6958 = vmatpush1.bf16.msra.mxu0 0
      %6959 = vmatprep.subr.bf16.mxu0 0
      %6960 = vmatpush1.bf16.msra.mxu0 0
      %6961 = vmatprep.subr.bf16.mxu0 0
      %6962 = vmatpush1.bf16.msra.mxu0 0
      %6963 = vmatprep.subr.bf16.mxu0 0
      %6964 = vmatpush1.bf16.msra.mxu0 0
      %6965 = vmatprep.subr.bf16.mxu0 0
      %6966 = vmatpush1.bf16.msra.mxu0 0
      %6967 = vmatprep.mubr.bf16.mxu0 0
      %6968 = vmatmul.mubr.bf16.gmra.mrb[0].mxu0 %v6921
      %v6969 = vpop.f32.mrb[0].mxu0
      %v6970 = vadd.f32 %v6890, %v6969
      %v6971 = vpop.f32.mrb[0].mxu0
      %v6972 = vpop.f32.mrb[0].mxu0
      %v6973 = vadd.f32 %v6893, %v6972
      %v6974 = vpop.f32.mrb[0].mxu0
      %6975 = vmatprep.mubr.bf16.mxu0 0
      %6976 = vmatmul.mubr.bf16.gmra.mrb[0].mxu0 %v6924
      %v6977 = vpop.f32.mrb[0].mxu0
      %v6978 = vadd.f32 %v6898, %v6977
      %v6979 = vpop.f32.mrb[0].mxu0
      %v6980 = vpop.f32.mrb[0].mxu0
      %v6981 = vadd.f32 %v6901, %v6980
      %v6982 = vpop.f32.mrb[0].mxu0
      %6983 = vmatprep.mubr.bf16.mxu0 0
      %6984 = vmatmul.mubr.bf16.gmra.mrb[0].mxu0 %v6927
      %v6985 = vpop.f32.mrb[0].mxu0
      %v6986 = vadd.f32 %v6906, %v6985
      %v6987 = vpop.f32.mrb[0].mxu0
      %v6988 = vpop.f32.mrb[0].mxu0
      %v6989 = vadd.f32 %v6909, %v6988
      %v6990 = vpop.f32.mrb[0].mxu0
      %6991 = vmatprep.mubr.bf16.mxu0 0
      %6992 = vmatmul.mubr.bf16.gmra.mrb[0].mxu0 %v6930
      %v6993 = vpop.f32.mrb[0].mxu0
      %v6994 = vadd.f32 %v6914, %v6993
      %v6995 = vpop.f32.mrb[0].mxu0
      %v6996 = vpop.f32.mrb[0].mxu0
      %v6997 = vadd.f32 %v6917, %v6996
      %v6998 = vpop.f32.mrb[0].mxu0
      %6999 = vdwg.mxu0
      %v7000 = vld [vmem:[#allocation4 + $0x2] sm:$0xff]
      %v7001 = vld [vmem:[#allocation4 + $0x12] sm:$0xff]
      %v7002 = vld [vmem:[#allocation4 + $0x22] sm:$0xff]
      %v7003 = vld [vmem:[#allocation4 + $0x32] sm:$0xff]
      %v7004 = vld [vmem:[#allocation4 + $0x42] sm:$0xff]
      %v7005 = vld [vmem:[#allocation4 + $0x52] sm:$0xff]
      %v7006 = vld [vmem:[#allocation4 + $0x62] sm:$0xff]
      %v7007 = vld [vmem:[#allocation4 + $0x72] sm:$0xff]
      %v7008 = vpack.c.bf16 %v7001, %v7000
      %v7009 = vpack.c.bf16 %v7003, %v7002
      %v7010 = vpack.c.bf16 %v7005, %v7004
      %v7011 = vpack.c.bf16 %v7007, %v7006
      %s7012 = scalar_lea.vmem %s7, 8
      %v7013 = vld [vmem:[%s7012] sm:$0xf]
      %v7015 = vsel %vm537, %v7008, 0
      %v7018 = vsel %vm537, %v7009, 0
      %v7021 = vsel %vm537, %v7010, 0
      %v7024 = vsel %vm537, %v7011, 0
      %v7027 = vsel %vm3559, %v7013, 0
      %7029 = vmatprep.subr.bf16.mxu0 0
      %7030 = vmatpush1.bf16.msra.mxu0 %v7027
      %7031 = vmatprep.subr.bf16.mxu0 0
      %7032 = vmatpush1.bf16.msra.mxu0 0
      %7033 = vmatprep.subr.bf16.mxu0 0
      %7034 = vmatpush1.bf16.msra.mxu0 0
      %7035 = vmatprep.subr.bf16.mxu0 0
      %7036 = vmatpush1.bf16.msra.mxu0 0
      %7037 = vmatprep.subr.bf16.mxu0 0
      %7038 = vmatpush1.bf16.msra.mxu0 0
      %7039 = vmatprep.subr.bf16.mxu0 0
      %7040 = vmatpush1.bf16.msra.mxu0 0
      %7041 = vmatprep.subr.bf16.mxu0 0
      %7042 = vmatpush1.bf16.msra.mxu0 0
      %7043 = vmatprep.subr.bf16.mxu0 0
      %7044 = vmatpush1.bf16.msra.mxu0 0
      %7045 = vmatprep.subr.bf16.mxu0 0
      %7046 = vmatpush1.bf16.msra.mxu0 0
      %7047 = vmatprep.subr.bf16.mxu0 0
      %7048 = vmatpush1.bf16.msra.mxu0 0
      %7049 = vmatprep.subr.bf16.mxu0 0
      %7050 = vmatpush1.bf16.msra.mxu0 0
      %7051 = vmatprep.subr.bf16.mxu0 0
      %7052 = vmatpush1.bf16.msra.mxu0 0
      %7053 = vmatprep.subr.bf16.mxu0 0
      %7054 = vmatpush1.bf16.msra.mxu0 0
      %7055 = vmatprep.subr.bf16.mxu0 0
      %7056 = vmatpush1.bf16.msra.mxu0 0
      %7057 = vmatprep.subr.bf16.mxu0 0
      %7058 = vmatpush1.bf16.msra.mxu0 0
      %7059 = vmatprep.subr.bf16.mxu0 0
      %7060 = vmatpush1.bf16.msra.mxu0 0
      %7061 = vmatprep.mubr.bf16.mxu0 0
      %7062 = vmatmul.mubr.bf16.gmra.mrb[0].mxu0 %v7015
      %v7063 = vpop.f32.mrb[0].mxu0
      %v7064 = vadd.f32 0.0, %v7063
      %v7065 = vpop.f32.mrb[0].mxu0
      %v7066 = vpop.f32.mrb[0].mxu0
      %v7067 = vadd.f32 0.0, %v7066
      %v7068 = vpop.f32.mrb[0].mxu0
      %7069 = vmatprep.mubr.bf16.mxu0 0
      %7070 = vmatmul.mubr.bf16.gmra.mrb[0].mxu0 %v7018
      %v7071 = vpop.f32.mrb[0].mxu0
      %v7072 = vadd.f32 0.0, %v7071
      %v7073 = vpop.f32.mrb[0].mxu0
      %v7074 = vpop.f32.mrb[0].mxu0
      %v7075 = vadd.f32 0.0, %v7074
      %v7076 = vpop.f32.mrb[0].mxu0
      %7077 = vmatprep.mubr.bf16.mxu0 0
      %7078 = vmatmul.mubr.bf16.gmra.mrb[0].mxu0 %v7021
      %v7079 = vpop.f32.mrb[0].mxu0
      %v7080 = vadd.f32 0.0, %v7079
      %v7081 = vpop.f32.mrb[0].mxu0
      %v7082 = vpop.f32.mrb[0].mxu0
      %v7083 = vadd.f32 0.0, %v7082
      %v7084 = vpop.f32.mrb[0].mxu0
      %7085 = vmatprep.mubr.bf16.mxu0 0
      %7086 = vmatmul.mubr.bf16.gmra.mrb[0].mxu0 %v7024
      %v7087 = vpop.f32.mrb[0].mxu0
      %v7088 = vadd.f32 0.0, %v7087
      %v7089 = vpop.f32.mrb[0].mxu0
      %v7090 = vpop.f32.mrb[0].mxu0
      %v7091 = vadd.f32 0.0, %v7090
      %v7092 = vpop.f32.mrb[0].mxu0
      %7093 = vdwg.mxu0
      %v7094 = vadd.f32 %v6970, %v7064
      %v7095 = vadd.f32 %v6973, %v7067
      %v7096 = vadd.f32 %v6978, %v7072
      %v7097 = vadd.f32 %v6981, %v7075
      %v7098 = vadd.f32 %v6986, %v7080
      %v7099 = vadd.f32 %v6989, %v7083
      %v7100 = vadd.f32 %v6994, %v7088
      %v7101 = vadd.f32 %v6997, %v7091
      %v7102 = vld [vmem:[%s585] sm:$0xff]
      %v7103 = vld [vmem:[%s585 + $0x10] sm:$0xff]
      %v7104 = vld [vmem:[%s585 + $0x20] sm:$0xff]
      %v7105 = vld [vmem:[%s585 + $0x30] sm:$0xff]
      %v7106 = vld [vmem:[%s585 + $0x40] sm:$0xff]
      %v7107 = vld [vmem:[%s585 + $0x50] sm:$0xff]
      %v7108 = vld [vmem:[%s585 + $0x60] sm:$0xff]
      %v7109 = vld [vmem:[%s585 + $0x70] sm:$0xff]
      %v7110 = vpack.c.bf16 %v7103, %v7102
      %v7111 = vpack.c.bf16 %v7105, %v7104
      %v7112 = vpack.c.bf16 %v7107, %v7106
      %v7113 = vpack.c.bf16 %v7109, %v7108
      %s7114 = scalar_lea.vmem %s7, 12
      %v7115 = vld [vmem:[%s7114] sm:$0xf]
      %v7117 = vsel %vm537, %v7110, 0
      %v7120 = vsel %vm537, %v7111, 0
      %v7123 = vsel %vm537, %v7112, 0
      %v7126 = vsel %vm537, %v7113, 0
      %v7129 = vsel %vm3559, %v7115, 0
      %7131 = vmatprep.subr.bf16.mxu0 0
      %7132 = vmatpush1.bf16.msra.mxu0 %v7129
      %7133 = vmatprep.subr.bf16.mxu0 0
      %7134 = vmatpush1.bf16.msra.mxu0 0
      %7135 = vmatprep.subr.bf16.mxu0 0
      %7136 = vmatpush1.bf16.msra.mxu0 0
      %7137 = vmatprep.subr.bf16.mxu0 0
      %7138 = vmatpush1.bf16.msra.mxu0 0
      %7139 = vmatprep.subr.bf16.mxu0 0
      %7140 = vmatpush1.bf16.msra.mxu0 0
      %7141 = vmatprep.subr.bf16.mxu0 0
      %7142 = vmatpush1.bf16.msra.mxu0 0
      %7143 = vmatprep.subr.bf16.mxu0 0
      %7144 = vmatpush1.bf16.msra.mxu0 0
      %7145 = vmatprep.subr.bf16.mxu0 0
      %7146 = vmatpush1.bf16.msra.mxu0 0
      %7147 = vmatprep.subr.bf16.mxu0 0
      %7148 = vmatpush1.bf16.msra.mxu0 0
      %7149 = vmatprep.subr.bf16.mxu0 0
      %7150 = vmatpush1.bf16.msra.mxu0 0
      %7151 = vmatprep.subr.bf16.mxu0 0
      %7152 = vmatpush1.bf16.msra.mxu0 0
      %7153 = vmatprep.subr.bf16.mxu0 0
      %7154 = vmatpush1.bf16.msra.mxu0 0
      %7155 = vmatprep.subr.bf16.mxu0 0
      %7156 = vmatpush1.bf16.msra.mxu0 0
      %7157 = vmatprep.subr.bf16.mxu0 0
      %7158 = vmatpush1.bf16.msra.mxu0 0
      %7159 = vmatprep.subr.bf16.mxu0 0
      %7160 = vmatpush1.bf16.msra.mxu0 0
      %7161 = vmatprep.subr.bf16.mxu0 0
      %7162 = vmatpush1.bf16.msra.mxu0 0
      %7163 = vmatprep.mubr.bf16.mxu0 0
      %7164 = vmatmul.mubr.bf16.gmra.mrb[0].mxu0 %v7117
      %v7165 = vpop.f32.mrb[0].mxu0
      %v7166 = vadd.f32 0.0, %v7165
      %v7167 = vpop.f32.mrb[0].mxu0
      %v7168 = vpop.f32.mrb[0].mxu0
      %v7169 = vadd.f32 0.0, %v7168
      %v7170 = vpop.f32.mrb[0].mxu0
      %7171 = vmatprep.mubr.bf16.mxu0 0
      %7172 = vmatmul.mubr.bf16.gmra.mrb[0].mxu0 %v7120
      %v7173 = vpop.f32.mrb[0].mxu0
      %v7174 = vadd.f32 0.0, %v7173
      %v7175 = vpop.f32.mrb[0].mxu0
      %v7176 = vpop.f32.mrb[0].mxu0
      %v7177 = vadd.f32 0.0, %v7176
      %v7178 = vpop.f32.mrb[0].mxu0
      %7179 = vmatprep.mubr.bf16.mxu0 0
      %7180 = vmatmul.mubr.bf16.gmra.mrb[0].mxu0 %v7123
      %v7181 = vpop.f32.mrb[0].mxu0
      %v7182 = vadd.f32 0.0, %v7181
      %v7183 = vpop.f32.mrb[0].mxu0
      %v7184 = vpop.f32.mrb[0].mxu0
      %v7185 = vadd.f32 0.0, %v7184
      %v7186 = vpop.f32.mrb[0].mxu0
      %7187 = vmatprep.mubr.bf16.mxu0 0
      %7188 = vmatmul.mubr.bf16.gmra.mrb[0].mxu0 %v7126
      %v7189 = vpop.f32.mrb[0].mxu0
      %v7190 = vadd.f32 0.0, %v7189
      %v7191 = vpop.f32.mrb[0].mxu0
      %v7192 = vpop.f32.mrb[0].mxu0
      %v7193 = vadd.f32 0.0, %v7192
      %v7194 = vpop.f32.mrb[0].mxu0
      %7195 = vdwg.mxu0
      %v7196 = vadd.f32 %v7094, %v7166
      %v7197 = vadd.f32 %v7095, %v7169
      %v7198 = vadd.f32 %v7096, %v7174
      %v7199 = vadd.f32 %v7097, %v7177
      %v7200 = vadd.f32 %v7098, %v7182
      %v7201 = vadd.f32 %v7099, %v7185
      %v7202 = vadd.f32 %v7100, %v7190
      %v7203 = vadd.f32 %v7101, %v7193
      %v7204 = vld [vmem:[%s585 + $0x1] sm:$0xff]
      %v7205 = vld [vmem:[%s585 + $0x11] sm:$0xff]
      %v7206 = vld [vmem:[%s585 + $0x21] sm:$0xff]
      %v7207 = vld [vmem:[%s585 + $0x31] sm:$0xff]
      %v7208 = vld [vmem:[%s585 + $0x41] sm:$0xff]
      %v7209 = vld [vmem:[%s585 + $0x51] sm:$0xff]
      %v7210 = vld [vmem:[%s585 + $0x61] sm:$0xff]
      %v7211 = vld [vmem:[%s585 + $0x71] sm:$0xff]
      %v7212 = vpack.c.bf16 %v7205, %v7204
      %v7213 = vpack.c.bf16 %v7207, %v7206
      %v7214 = vpack.c.bf16 %v7209, %v7208
      %v7215 = vpack.c.bf16 %v7211, %v7210
      %s7216 = scalar_lea.vmem %s7, 16
      %v7217 = vld [vmem:[%s7216] sm:$0xf]
      %v7219 = vsel %vm537, %v7212, 0
      %v7222 = vsel %vm537, %v7213, 0
      %v7225 = vsel %vm537, %v7214, 0
      %v7228 = vsel %vm537, %v7215, 0
      %v7231 = vsel %vm3559, %v7217, 0
      %7233 = vmatprep.subr.bf16.mxu0 0
      %7234 = vmatpush1.bf16.msra.mxu0 %v7231
      %7235 = vmatprep.subr.bf16.mxu0 0
      %7236 = vmatpush1.bf16.msra.mxu0 0
      %7237 = vmatprep.subr.bf16.mxu0 0
      %7238 = vmatpush1.bf16.msra.mxu0 0
      %7239 = vmatprep.subr.bf16.mxu0 0
      %7240 = vmatpush1.bf16.msra.mxu0 0
      %7241 = vmatprep.subr.bf16.mxu0 0
      %7242 = vmatpush1.bf16.msra.mxu0 0
      %7243 = vmatprep.subr.bf16.mxu0 0
      %7244 = vmatpush1.bf16.msra.mxu0 0
      %7245 = vmatprep.subr.bf16.mxu0 0
      %7246 = vmatpush1.bf16.msra.mxu0 0
      %7247 = vmatprep.subr.bf16.mxu0 0
      %7248 = vmatpush1.bf16.msra.mxu0 0
      %7249 = vmatprep.subr.bf16.mxu0 0
      %7250 = vmatpush1.bf16.msra.mxu0 0
      %7251 = vmatprep.subr.bf16.mxu0 0
      %7252 = vmatpush1.bf16.msra.mxu0 0
      %7253 = vmatprep.subr.bf16.mxu0 0
      %7254 = vmatpush1.bf16.msra.mxu0 0
      %7255 = vmatprep.subr.bf16.mxu0 0
      %7256 = vmatpush1.bf16.msra.mxu0 0
      %7257 = vmatprep.subr.bf16.mxu0 0
      %7258 = vmatpush1.bf16.msra.mxu0 0
      %7259 = vmatprep.subr.bf16.mxu0 0
      %7260 = vmatpush1.bf16.msra.mxu0 0
      %7261 = vmatprep.subr.bf16.mxu0 0
      %7262 = vmatpush1.bf16.msra.mxu0 0
      %7263 = vmatprep.subr.bf16.mxu0 0
      %7264 = vmatpush1.bf16.msra.mxu0 0
      %7265 = vmatprep.mubr.bf16.mxu0 0
      %7266 = vmatmul.mubr.bf16.gmra.mrb[0].mxu0 %v7219
      %v7267 = vpop.f32.mrb[0].mxu0
      %v7268 = vadd.f32 0.0, %v7267
      %v7269 = vpop.f32.mrb[0].mxu0
      %v7270 = vpop.f32.mrb[0].mxu0
      %v7271 = vadd.f32 0.0, %v7270
      %v7272 = vpop.f32.mrb[0].mxu0
      %7273 = vmatprep.mubr.bf16.mxu0 0
      %7274 = vmatmul.mubr.bf16.gmra.mrb[0].mxu0 %v7222
      %v7275 = vpop.f32.mrb[0].mxu0
      %v7276 = vadd.f32 0.0, %v7275
      %v7277 = vpop.f32.mrb[0].mxu0
      %v7278 = vpop.f32.mrb[0].mxu0
      %v7279 = vadd.f32 0.0, %v7278
      %v7280 = vpop.f32.mrb[0].mxu0
      %7281 = vmatprep.mubr.bf16.mxu0 0
      %7282 = vmatmul.mubr.bf16.gmra.mrb[0].mxu0 %v7225
      %v7283 = vpop.f32.mrb[0].mxu0
      %v7284 = vadd.f32 0.0, %v7283
      %v7285 = vpop.f32.mrb[0].mxu0
      %v7286 = vpop.f32.mrb[0].mxu0
      %v7287 = vadd.f32 0.0, %v7286
      %v7288 = vpop.f32.mrb[0].mxu0
      %7289 = vmatprep.mubr.bf16.mxu0 0
      %7290 = vmatmul.mubr.bf16.gmra.mrb[0].mxu0 %v7228
      %v7291 = vpop.f32.mrb[0].mxu0
      %v7292 = vadd.f32 0.0, %v7291
      %v7293 = vpop.f32.mrb[0].mxu0
      %v7294 = vpop.f32.mrb[0].mxu0
      %v7295 = vadd.f32 0.0, %v7294
      %v7296 = vpop.f32.mrb[0].mxu0
      %7297 = vdwg.mxu0
      %v7298 = vadd.f32 %v7196, %v7268
      %v7299 = vadd.f32 %v7197, %v7271
      %v7300 = vadd.f32 %v7198, %v7276
      %v7301 = vadd.f32 %v7199, %v7279
      %v7302 = vadd.f32 %v7200, %v7284
      %v7303 = vadd.f32 %v7201, %v7287
      %v7304 = vadd.f32 %v7202, %v7292
      %v7305 = vadd.f32 %v7203, %v7295
      %v7306 = vld [vmem:[%s585 + $0x2] sm:$0xff]
      %v7307 = vld [vmem:[%s585 + $0x12] sm:$0xff]
      %v7308 = vld [vmem:[%s585 + $0x22] sm:$0xff]
      %v7309 = vld [vmem:[%s585 + $0x32] sm:$0xff]
      %v7310 = vld [vmem:[%s585 + $0x42] sm:$0xff]
      %v7311 = vld [vmem:[%s585 + $0x52] sm:$0xff]
      %v7312 = vld [vmem:[%s585 + $0x62] sm:$0xff]
      %v7313 = vld [vmem:[%s585 + $0x72] sm:$0xff]
      %v7314 = vpack.c.bf16 %v7307, %v7306
      %v7315 = vpack.c.bf16 %v7309, %v7308
      %v7316 = vpack.c.bf16 %v7311, %v7310
      %v7317 = vpack.c.bf16 %v7313, %v7312
      %s7318 = scalar_lea.vmem %s7, 20
      %v7319 = vld [vmem:[%s7318] sm:$0xf]
      %v7321 = vsel %vm537, %v7314, 0
      %v7324 = vsel %vm537, %v7315, 0
      %v7327 = vsel %vm537, %v7316, 0
      %v7330 = vsel %vm537, %v7317, 0
      %v7333 = vsel %vm3559, %v7319, 0
      %7335 = vmatprep.subr.bf16.mxu0 0
      %7336 = vmatpush1.bf16.msra.mxu0 %v7333
      %7337 = vmatprep.subr.bf16.mxu0 0
      %7338 = vmatpush1.bf16.msra.mxu0 0
      %7339 = vmatprep.subr.bf16.mxu0 0
      %7340 = vmatpush1.bf16.msra.mxu0 0
      %7341 = vmatprep.subr.bf16.mxu0 0
      %7342 = vmatpush1.bf16.msra.mxu0 0
      %7343 = vmatprep.subr.bf16.mxu0 0
      %7344 = vmatpush1.bf16.msra.mxu0 0
      %7345 = vmatprep.subr.bf16.mxu0 0
      %7346 = vmatpush1.bf16.msra.mxu0 0
      %7347 = vmatprep.subr.bf16.mxu0 0
      %7348 = vmatpush1.bf16.msra.mxu0 0
      %7349 = vmatprep.subr.bf16.mxu0 0
      %7350 = vmatpush1.bf16.msra.mxu0 0
      %7351 = vmatprep.subr.bf16.mxu0 0
      %7352 = vmatpush1.bf16.msra.mxu0 0
      %7353 = vmatprep.subr.bf16.mxu0 0
      %7354 = vmatpush1.bf16.msra.mxu0 0
      %7355 = vmatprep.subr.bf16.mxu0 0
      %7356 = vmatpush1.bf16.msra.mxu0 0
      %7357 = vmatprep.subr.bf16.mxu0 0
      %7358 = vmatpush1.bf16.msra.mxu0 0
      %7359 = vmatprep.subr.bf16.mxu0 0
      %7360 = vmatpush1.bf16.msra.mxu0 0
      %7361 = vmatprep.subr.bf16.mxu0 0
      %7362 = vmatpush1.bf16.msra.mxu0 0
      %7363 = vmatprep.subr.bf16.mxu0 0
      %7364 = vmatpush1.bf16.msra.mxu0 0
      %7365 = vmatprep.subr.bf16.mxu0 0
      %7366 = vmatpush1.bf16.msra.mxu0 0
      %7367 = vmatprep.mubr.bf16.mxu0 0
      %7368 = vmatmul.mubr.bf16.gmra.mrb[0].mxu0 %v7321
      %v7369 = vpop.f32.mrb[0].mxu0
      %v7370 = vadd.f32 0.0, %v7369
      %v7371 = vpop.f32.mrb[0].mxu0
      %v7372 = vpop.f32.mrb[0].mxu0
      %v7373 = vadd.f32 0.0, %v7372
      %v7374 = vpop.f32.mrb[0].mxu0
      %7375 = vmatprep.mubr.bf16.mxu0 0
      %7376 = vmatmul.mubr.bf16.gmra.mrb[0].mxu0 %v7324
      %v7377 = vpop.f32.mrb[0].mxu0
      %v7378 = vadd.f32 0.0, %v7377
      %v7379 = vpop.f32.mrb[0].mxu0
      %v7380 = vpop.f32.mrb[0].mxu0
      %v7381 = vadd.f32 0.0, %v7380
      %v7382 = vpop.f32.mrb[0].mxu0
      %7383 = vmatprep.mubr.bf16.mxu0 0
      %7384 = vmatmul.mubr.bf16.gmra.mrb[0].mxu0 %v7327
      %v7385 = vpop.f32.mrb[0].mxu0
      %v7386 = vadd.f32 0.0, %v7385
      %v7387 = vpop.f32.mrb[0].mxu0
      %v7388 = vpop.f32.mrb[0].mxu0
      %v7389 = vadd.f32 0.0, %v7388
      %v7390 = vpop.f32.mrb[0].mxu0
      %7391 = vmatprep.mubr.bf16.mxu0 0
      %7392 = vmatmul.mubr.bf16.gmra.mrb[0].mxu0 %v7330
      %v7393 = vpop.f32.mrb[0].mxu0
      %v7394 = vadd.f32 0.0, %v7393
      %v7395 = vpop.f32.mrb[0].mxu0
      %v7396 = vpop.f32.mrb[0].mxu0
      %v7397 = vadd.f32 0.0, %v7396
      %v7398 = vpop.f32.mrb[0].mxu0
      %7399 = vdwg.mxu0
      %v7400 = vadd.f32 %v7298, %v7370
      %v7401 = vadd.f32 %v7299, %v7373
      %v7402 = vadd.f32 %v7300, %v7378
      %v7403 = vadd.f32 %v7301, %v7381
      %v7404 = vadd.f32 %v7302, %v7386
      %v7405 = vadd.f32 %v7303, %v7389
      %v7406 = vadd.f32 %v7304, %v7394
      %v7407 = vadd.f32 %v7305, %v7397
      %s7408 = scalar_lea.vmem [#allocation4], 32
      %v7409 = vld [vmem:[%s7408] sm:$0xff]
      %v7410 = vld [vmem:[%s7408 + $0x10] sm:$0xff]
      %v7411 = vld [vmem:[%s7408 + $0x20] sm:$0xff]
      %v7412 = vld [vmem:[%s7408 + $0x30] sm:$0xff]
      %v7413 = vld [vmem:[%s7408 + $0x40] sm:$0xff]
      %v7414 = vld [vmem:[%s7408 + $0x50] sm:$0xff]
      %v7415 = vld [vmem:[%s7408 + $0x60] sm:$0xff]
      %v7416 = vld [vmem:[%s7408 + $0x70] sm:$0xff]
      %v7417 = vpack.c.bf16 %v7410, %v7409
      %v7418 = vpack.c.bf16 %v7412, %v7411
      %v7419 = vpack.c.bf16 %v7414, %v7413
      %v7420 = vpack.c.bf16 %v7416, %v7415
      %s7421 = scalar_lea.vmem %s7, 24
      %v7422 = vld [vmem:[%s7421] sm:$0xf]
      %v7424 = vsel %vm537, %v7417, 0
      %v7427 = vsel %vm537, %v7418, 0
      %v7430 = vsel %vm537, %v7419, 0
      %v7433 = vsel %vm537, %v7420, 0
      %v7436 = vsel %vm3559, %v7422, 0
      %7438 = vmatprep.subr.bf16.mxu0 0
      %7439 = vmatpush1.bf16.msra.mxu0 %v7436
      %7440 = vmatprep.subr.bf16.mxu0 0
      %7441 = vmatpush1.bf16.msra.mxu0 0
      %7442 = vmatprep.subr.bf16.mxu0 0
      %7443 = vmatpush1.bf16.msra.mxu0 0
      %7444 = vmatprep.subr.bf16.mxu0 0
      %7445 = vmatpush1.bf16.msra.mxu0 0
      %7446 = vmatprep.subr.bf16.mxu0 0
      %7447 = vmatpush1.bf16.msra.mxu0 0
      %7448 = vmatprep.subr.bf16.mxu0 0
      %7449 = vmatpush1.bf16.msra.mxu0 0
      %7450 = vmatprep.subr.bf16.mxu0 0
      %7451 = vmatpush1.bf16.msra.mxu0 0
      %7452 = vmatprep.subr.bf16.mxu0 0
      %7453 = vmatpush1.bf16.msra.mxu0 0
      %7454 = vmatprep.subr.bf16.mxu0 0
      %7455 = vmatpush1.bf16.msra.mxu0 0
      %7456 = vmatprep.subr.bf16.mxu0 0
      %7457 = vmatpush1.bf16.msra.mxu0 0
      %7458 = vmatprep.subr.bf16.mxu0 0
      %7459 = vmatpush1.bf16.msra.mxu0 0
      %7460 = vmatprep.subr.bf16.mxu0 0
      %7461 = vmatpush1.bf16.msra.mxu0 0
      %7462 = vmatprep.subr.bf16.mxu0 0
      %7463 = vmatpush1.bf16.msra.mxu0 0
      %7464 = vmatprep.subr.bf16.mxu0 0
      %7465 = vmatpush1.bf16.msra.mxu0 0
      %7466 = vmatprep.subr.bf16.mxu0 0
      %7467 = vmatpush1.bf16.msra.mxu0 0
      %7468 = vmatprep.subr.bf16.mxu0 0
      %7469 = vmatpush1.bf16.msra.mxu0 0
      %7470 = vmatprep.mubr.bf16.mxu0 0
      %7471 = vmatmul.mubr.bf16.gmra.mrb[0].mxu0 %v7424
      %v7472 = vpop.f32.mrb[0].mxu0
      %v7473 = vadd.f32 0.0, %v7472
      %v7474 = vpop.f32.mrb[0].mxu0
      %v7475 = vpop.f32.mrb[0].mxu0
      %v7476 = vadd.f32 0.0, %v7475
      %v7477 = vpop.f32.mrb[0].mxu0
      %7478 = vmatprep.mubr.bf16.mxu0 0
      %7479 = vmatmul.mubr.bf16.gmra.mrb[0].mxu0 %v7427
      %v7480 = vpop.f32.mrb[0].mxu0
      %v7481 = vadd.f32 0.0, %v7480
      %v7482 = vpop.f32.mrb[0].mxu0
      %v7483 = vpop.f32.mrb[0].mxu0
      %v7484 = vadd.f32 0.0, %v7483
      %v7485 = vpop.f32.mrb[0].mxu0
      %7486 = vmatprep.mubr.bf16.mxu0 0
      %7487 = vmatmul.mubr.bf16.gmra.mrb[0].mxu0 %v7430
      %v7488 = vpop.f32.mrb[0].mxu0
      %v7489 = vadd.f32 0.0, %v7488
      %v7490 = vpop.f32.mrb[0].mxu0
      %v7491 = vpop.f32.mrb[0].mxu0
      %v7492 = vadd.f32 0.0, %v7491
      %v7493 = vpop.f32.mrb[0].mxu0
      %7494 = vmatprep.mubr.bf16.mxu0 0
      %7495 = vmatmul.mubr.bf16.gmra.mrb[0].mxu0 %v7433
      %v7496 = vpop.f32.mrb[0].mxu0
      %v7497 = vadd.f32 0.0, %v7496
      %v7498 = vpop.f32.mrb[0].mxu0
      %v7499 = vpop.f32.mrb[0].mxu0
      %v7500 = vadd.f32 0.0, %v7499
      %v7501 = vpop.f32.mrb[0].mxu0
      %7502 = vdwg.mxu0
      %v7503 = vadd.f32 %v7400, %v7473
      %v7504 = vadd.f32 %v7401, %v7476
      %v7505 = vadd.f32 %v7402, %v7481
      %v7506 = vadd.f32 %v7403, %v7484
      %v7507 = vadd.f32 %v7404, %v7489
      %v7508 = vadd.f32 %v7405, %v7492
      %v7509 = vadd.f32 %v7406, %v7497
      %v7510 = vadd.f32 %v7407, %v7500
      %v7511 = vld [vmem:[%s7408 + $0x1] sm:$0xff]
      %v7512 = vld [vmem:[%s7408 + $0x11] sm:$0xff]
      %v7513 = vld [vmem:[%s7408 + $0x21] sm:$0xff]
      %v7514 = vld [vmem:[%s7408 + $0x31] sm:$0xff]
      %v7515 = vld [vmem:[%s7408 + $0x41] sm:$0xff]
      %v7516 = vld [vmem:[%s7408 + $0x51] sm:$0xff]
      %v7517 = vld [vmem:[%s7408 + $0x61] sm:$0xff]
      %v7518 = vld [vmem:[%s7408 + $0x71] sm:$0xff]
      %v7519 = vpack.c.bf16 %v7512, %v7511
      %v7520 = vpack.c.bf16 %v7514, %v7513
      %v7521 = vpack.c.bf16 %v7516, %v7515
      %v7522 = vpack.c.bf16 %v7518, %v7517
      %s7523 = scalar_lea.vmem %s7, 28
      %v7524 = vld [vmem:[%s7523] sm:$0xf]
      %v7526 = vsel %vm537, %v7519, 0
      %v7529 = vsel %vm537, %v7520, 0
      %v7532 = vsel %vm537, %v7521, 0
      %v7535 = vsel %vm537, %v7522, 0
      %v7538 = vsel %vm3559, %v7524, 0
      %7540 = vmatprep.subr.bf16.mxu0 0
      %7541 = vmatpush1.bf16.msra.mxu0 %v7538
      %7542 = vmatprep.subr.bf16.mxu0 0
      %7543 = vmatpush1.bf16.msra.mxu0 0
      %7544 = vmatprep.subr.bf16.mxu0 0
      %7545 = vmatpush1.bf16.msra.mxu0 0
      %7546 = vmatprep.subr.bf16.mxu0 0
      %7547 = vmatpush1.bf16.msra.mxu0 0
      %7548 = vmatprep.subr.bf16.mxu0 0
      %7549 = vmatpush1.bf16.msra.mxu0 0
      %7550 = vmatprep.subr.bf16.mxu0 0
      %7551 = vmatpush1.bf16.msra.mxu0 0
      %7552 = vmatprep.subr.bf16.mxu0 0
      %7553 = vmatpush1.bf16.msra.mxu0 0
      %7554 = vmatprep.subr.bf16.mxu0 0
      %7555 = vmatpush1.bf16.msra.mxu0 0
      %7556 = vmatprep.subr.bf16.mxu0 0
      %7557 = vmatpush1.bf16.msra.mxu0 0
      %7558 = vmatprep.subr.bf16.mxu0 0
      %7559 = vmatpush1.bf16.msra.mxu0 0
      %7560 = vmatprep.subr.bf16.mxu0 0
      %7561 = vmatpush1.bf16.msra.mxu0 0
      %7562 = vmatprep.subr.bf16.mxu0 0
      %7563 = vmatpush1.bf16.msra.mxu0 0
      %7564 = vmatprep.subr.bf16.mxu0 0
      %7565 = vmatpush1.bf16.msra.mxu0 0
      %7566 = vmatprep.subr.bf16.mxu0 0
      %7567 = vmatpush1.bf16.msra.mxu0 0
      %7568 = vmatprep.subr.bf16.mxu0 0
      %7569 = vmatpush1.bf16.msra.mxu0 0
      %7570 = vmatprep.subr.bf16.mxu0 0
      %7571 = vmatpush1.bf16.msra.mxu0 0
      %7572 = vmatprep.mubr.bf16.mxu0 0
      %7573 = vmatmul.mubr.bf16.gmra.mrb[0].mxu0 %v7526
      %v7574 = vpop.f32.mrb[0].mxu0
      %v7575 = vadd.f32 0.0, %v7574
      %v7576 = vpop.f32.mrb[0].mxu0
      %v7577 = vpop.f32.mrb[0].mxu0
      %v7578 = vadd.f32 0.0, %v7577
      %v7579 = vpop.f32.mrb[0].mxu0
      %7580 = vmatprep.mubr.bf16.mxu0 0
      %7581 = vmatmul.mubr.bf16.gmra.mrb[0].mxu0 %v7529
      %v7582 = vpop.f32.mrb[0].mxu0
      %v7583 = vadd.f32 0.0, %v7582
      %v7584 = vpop.f32.mrb[0].mxu0
      %v7585 = vpop.f32.mrb[0].mxu0
      %v7586 = vadd.f32 0.0, %v7585
      %v7587 = vpop.f32.mrb[0].mxu0
      %7588 = vmatprep.mubr.bf16.mxu0 0
      %7589 = vmatmul.mubr.bf16.gmra.mrb[0].mxu0 %v7532
      %v7590 = vpop.f32.mrb[0].mxu0
      %v7591 = vadd.f32 0.0, %v7590
      %v7592 = vpop.f32.mrb[0].mxu0
      %v7593 = vpop.f32.mrb[0].mxu0
      %v7594 = vadd.f32 0.0, %v7593
      %v7595 = vpop.f32.mrb[0].mxu0
      %7596 = vmatprep.mubr.bf16.mxu0 0
      %7597 = vmatmul.mubr.bf16.gmra.mrb[0].mxu0 %v7535
      %v7598 = vpop.f32.mrb[0].mxu0
      %v7599 = vadd.f32 0.0, %v7598
      %v7600 = vpop.f32.mrb[0].mxu0
      %v7601 = vpop.f32.mrb[0].mxu0
      %v7602 = vadd.f32 0.0, %v7601
      %v7603 = vpop.f32.mrb[0].mxu0
      %7604 = vdwg.mxu0
      %v7605 = vadd.f32 %v7503, %v7575
      %v7606 = vadd.f32 %v7504, %v7578
      %v7607 = vadd.f32 %v7505, %v7583
      %v7608 = vadd.f32 %v7506, %v7586
      %v7609 = vadd.f32 %v7507, %v7591
      %v7610 = vadd.f32 %v7508, %v7594
      %v7611 = vadd.f32 %v7509, %v7599
      %v7612 = vadd.f32 %v7510, %v7602
      %v7613 = vld [vmem:[%s7408 + $0x2] sm:$0xff]
      %v7614 = vld [vmem:[%s7408 + $0x12] sm:$0xff]
      %v7615 = vld [vmem:[%s7408 + $0x22] sm:$0xff]
      %v7616 = vld [vmem:[%s7408 + $0x32] sm:$0xff]
      %v7617 = vld [vmem:[%s7408 + $0x42] sm:$0xff]
      %v7618 = vld [vmem:[%s7408 + $0x52] sm:$0xff]
      %v7619 = vld [vmem:[%s7408 + $0x62] sm:$0xff]
      %v7620 = vld [vmem:[%s7408 + $0x72] sm:$0xff]
      %v7621 = vpack.c.bf16 %v7614, %v7613
      %v7622 = vpack.c.bf16 %v7616, %v7615
      %v7623 = vpack.c.bf16 %v7618, %v7617
      %v7624 = vpack.c.bf16 %v7620, %v7619
      %s7625 = scalar_lea.vmem %s7, 32
      %v7626 = vld [vmem:[%s7625] sm:$0xf]
      %v7628 = vsel %vm537, %v7621, 0
      %v7631 = vsel %vm537, %v7622, 0
      %v7634 = vsel %vm537, %v7623, 0
      %v7637 = vsel %vm537, %v7624, 0
      %v7640 = vsel %vm3559, %v7626, 0
      %7642 = vmatprep.subr.bf16.mxu0 0
      %7643 = vmatpush1.bf16.msra.mxu0 %v7640
      %7644 = vmatprep.subr.bf16.mxu0 0
      %7645 = vmatpush1.bf16.msra.mxu0 0
      %7646 = vmatprep.subr.bf16.mxu0 0
      %7647 = vmatpush1.bf16.msra.mxu0 0
      %7648 = vmatprep.subr.bf16.mxu0 0
      %7649 = vmatpush1.bf16.msra.mxu0 0
      %7650 = vmatprep.subr.bf16.mxu0 0
      %7651 = vmatpush1.bf16.msra.mxu0 0
      %7652 = vmatprep.subr.bf16.mxu0 0
      %7653 = vmatpush1.bf16.msra.mxu0 0
      %7654 = vmatprep.subr.bf16.mxu0 0
      %7655 = vmatpush1.bf16.msra.mxu0 0
      %7656 = vmatprep.subr.bf16.mxu0 0
      %7657 = vmatpush1.bf16.msra.mxu0 0
      %7658 = vmatprep.subr.bf16.mxu0 0
      %7659 = vmatpush1.bf16.msra.mxu0 0
      %7660 = vmatprep.subr.bf16.mxu0 0
      %7661 = vmatpush1.bf16.msra.mxu0 0
      %7662 = vmatprep.subr.bf16.mxu0 0
      %7663 = vmatpush1.bf16.msra.mxu0 0
      %7664 = vmatprep.subr.bf16.mxu0 0
      %7665 = vmatpush1.bf16.msra.mxu0 0
      %7666 = vmatprep.subr.bf16.mxu0 0
      %7667 = vmatpush1.bf16.msra.mxu0 0
      %7668 = vmatprep.subr.bf16.mxu0 0
      %7669 = vmatpush1.bf16.msra.mxu0 0
      %7670 = vmatprep.subr.bf16.mxu0 0
      %7671 = vmatpush1.bf16.msra.mxu0 0
      %7672 = vmatprep.subr.bf16.mxu0 0
      %7673 = vmatpush1.bf16.msra.mxu0 0
      %7674 = vmatprep.mubr.bf16.mxu0 0
      %7675 = vmatmul.mubr.bf16.gmra.mrb[0].mxu0 %v7628
      %v7676 = vpop.f32.mrb[0].mxu0
      %v7677 = vadd.f32 0.0, %v7676
      %v7678 = vpop.f32.mrb[0].mxu0
      %v7679 = vpop.f32.mrb[0].mxu0
      %v7680 = vadd.f32 0.0, %v7679
      %v7681 = vpop.f32.mrb[0].mxu0
      %7682 = vmatprep.mubr.bf16.mxu0 0
      %7683 = vmatmul.mubr.bf16.gmra.mrb[0].mxu0 %v7631
      %v7684 = vpop.f32.mrb[0].mxu0
      %v7685 = vadd.f32 0.0, %v7684
      %v7686 = vpop.f32.mrb[0].mxu0
      %v7687 = vpop.f32.mrb[0].mxu0
      %v7688 = vadd.f32 0.0, %v7687
      %v7689 = vpop.f32.mrb[0].mxu0
      %7690 = vmatprep.mubr.bf16.mxu0 0
      %7691 = vmatmul.mubr.bf16.gmra.mrb[0].mxu0 %v7634
      %v7692 = vpop.f32.mrb[0].mxu0
      %v7693 = vadd.f32 0.0, %v7692
      %v7694 = vpop.f32.mrb[0].mxu0
      %v7695 = vpop.f32.mrb[0].mxu0
      %v7696 = vadd.f32 0.0, %v7695
      %v7697 = vpop.f32.mrb[0].mxu0
      %7698 = vmatprep.mubr.bf16.mxu0 0
      %7699 = vmatmul.mubr.bf16.gmra.mrb[0].mxu0 %v7637
      %v7700 = vpop.f32.mrb[0].mxu0
      %v7701 = vadd.f32 0.0, %v7700
      %v7702 = vpop.f32.mrb[0].mxu0
      %v7703 = vpop.f32.mrb[0].mxu0
      %v7704 = vadd.f32 0.0, %v7703
      %v7705 = vpop.f32.mrb[0].mxu0
      %7706 = vdwg.mxu0
      %v7707 = vadd.f32 %v7605, %v7677
      %v7708 = vadd.f32 %v7606, %v7680
      %v7709 = vadd.f32 %v7607, %v7685
      %v7710 = vadd.f32 %v7608, %v7688
      %v7711 = vadd.f32 %v7609, %v7693
      %v7712 = vadd.f32 %v7610, %v7696
      %v7713 = vadd.f32 %v7611, %v7701
      %v7714 = vadd.f32 %v7612, %v7704
      %v7715 = vld [vmem:[%s8] sm:$0x1]
      %v7717 = vlaneseq
      %v7718 = vshrl.u32 %v7717, 7
      %v7719 = vsub.s32 0, %v7718
      %v7720 = vrot.slane %v7715, %v7719
      %v7722 = vadd.f32 %v7707, %v7720
      %v7723 = vadd.f32 %v7708, %v7720
      %v7724 = vadd.f32 %v7709, %v7720
      %v7725 = vadd.f32 %v7710, %v7720
      %v7726 = vadd.f32 %v7711, %v7720
      %v7727 = vadd.f32 %v7712, %v7720
      %v7728 = vadd.f32 %v7713, %v7720
      %v7729 = vadd.f32 %v7714, %v7720
      %v7730 = vmax.f32 %v7722, 0.0
      %v7731 = vmax.f32 %v7723, 0.0
      %v7732 = vmax.f32 %v7724, 0.0
      %v7733 = vmax.f32 %v7725, 0.0
      %v7734 = vmax.f32 %v7726, 0.0
      %v7735 = vmax.f32 %v7727, 0.0
      %v7736 = vmax.f32 %v7728, 0.0
      %v7737 = vmax.f32 %v7729, 0.0
      %7738 = vst.msk [vmem:[%s609 + $0x1] sm:$0xff] %vm602, %v7730
      %7739 = vst.msk [vmem:[%s609 + $0x11] sm:$0xff] %vm602, %v7731
      %7740 = vst.msk [vmem:[%s609 + $0x21] sm:$0xff] %vm602, %v7732
      %7741 = vst.msk [vmem:[%s609 + $0x31] sm:$0xff] %vm602, %v7733
      %7742 = vst.msk [vmem:[%s609 + $0x41] sm:$0xff] %vm602, %v7734
      %7743 = vst.msk [vmem:[%s609 + $0x51] sm:$0xff] %vm602, %v7735
      %7744 = vst.msk [vmem:[%s609 + $0x61] sm:$0xff] %vm602, %v7736
      %7745 = vst.msk [vmem:[%s609 + $0x71] sm:$0xff] %vm602, %v7737
      %v7746 = vld [vmem:[#allocation5] sm:$0xff]
      %v7747 = vld [vmem:[#allocation5 + $0x10] sm:$0xff]
      %v7748 = vld [vmem:[#allocation5 + $0x20] sm:$0xff]
      %v7749 = vld [vmem:[#allocation5 + $0x30] sm:$0xff]
      %v7750 = vld [vmem:[#allocation5 + $0x40] sm:$0xff]
      %v7751 = vld [vmem:[#allocation5 + $0x50] sm:$0xff]
      %v7752 = vld [vmem:[#allocation5 + $0x60] sm:$0xff]
      %v7753 = vld [vmem:[#allocation5 + $0x70] sm:$0xff]
      %v7754 = vpack.c.bf16 %v7747, %v7746
      %v7755 = vpack.c.bf16 %v7749, %v7748
      %v7756 = vpack.c.bf16 %v7751, %v7750
      %v7757 = vpack.c.bf16 %v7753, %v7752
      %v7758 = vld [vmem:[%s9] sm:$0xf]
      %v7759 = vld [vmem:[%s9 + $0x4] sm:$0xf]
      %v7760 = vld [vmem:[#allocation5 + $0x1] sm:$0xff]
      %v7761 = vld [vmem:[#allocation5 + $0x11] sm:$0xff]
      %v7762 = vld [vmem:[#allocation5 + $0x21] sm:$0xff]
      %v7763 = vld [vmem:[#allocation5 + $0x31] sm:$0xff]
      %v7764 = vld [vmem:[#allocation5 + $0x41] sm:$0xff]
      %v7765 = vld [vmem:[#allocation5 + $0x51] sm:$0xff]
      %v7766 = vld [vmem:[#allocation5 + $0x61] sm:$0xff]
      %v7767 = vld [vmem:[#allocation5 + $0x71] sm:$0xff]
      %v7768 = vpack.c.bf16 %v7761, %v7760
      %v7769 = vpack.c.bf16 %v7763, %v7762
      %v7770 = vpack.c.bf16 %v7765, %v7764
      %v7771 = vpack.c.bf16 %v7767, %v7766
      %s7772 = scalar_lea.vmem %s9, 8
      %v7773 = vld [vmem:[%s7772] sm:$0xf]
      %v7774 = vld [vmem:[%s7772 + $0x4] sm:$0xf]
      %v7777 = vunpack.c.l.b16 %v7773
      %v7778 = vunpack.c.l.b16 %v7774
      %v7779 = vpack.c.b16 %v7778, %v7777
      %v7782 = vsel %vm602, %v7768, 0
      %v7785 = vsel %vm602, %v7769, 0
      %v7788 = vsel %vm602, %v7770, 0
      %v7791 = vsel %vm602, %v7771, 0
      %7793 = vmatprep.subr.bf16.mxu0 0
      %7794 = vmatpush1.bf16.msra.mxu0 %v7779
      %7795 = vmatprep.subr.bf16.mxu0 0
      %7796 = vmatpush1.bf16.msra.mxu0 0
      %7797 = vmatprep.subr.bf16.mxu0 0
      %7798 = vmatpush1.bf16.msra.mxu0 0
      %7799 = vmatprep.subr.bf16.mxu0 0
      %7800 = vmatpush1.bf16.msra.mxu0 0
      %7801 = vmatprep.subr.bf16.mxu0 0
      %7802 = vmatpush1.bf16.msra.mxu0 0
      %7803 = vmatprep.subr.bf16.mxu0 0
      %7804 = vmatpush1.bf16.msra.mxu0 0
      %7805 = vmatprep.subr.bf16.mxu0 0
      %7806 = vmatpush1.bf16.msra.mxu0 0
      %7807 = vmatprep.subr.bf16.mxu0 0
      %7808 = vmatpush1.bf16.msra.mxu0 0
      %7809 = vmatprep.subr.bf16.mxu0 0
      %7810 = vmatpush1.bf16.msra.mxu0 0
      %7811 = vmatprep.subr.bf16.mxu0 0
      %7812 = vmatpush1.bf16.msra.mxu0 0
      %7813 = vmatprep.subr.bf16.mxu0 0
      %7814 = vmatpush1.bf16.msra.mxu0 0
      %7815 = vmatprep.subr.bf16.mxu0 0
      %7816 = vmatpush1.bf16.msra.mxu0 0
      %7817 = vmatprep.subr.bf16.mxu0 0
      %7818 = vmatpush1.bf16.msra.mxu0 0
      %7819 = vmatprep.subr.bf16.mxu0 0
      %7820 = vmatpush1.bf16.msra.mxu0 0
      %7821 = vmatprep.subr.bf16.mxu0 0
      %7822 = vmatpush1.bf16.msra.mxu0 0
      %7823 = vmatprep.subr.bf16.mxu0 0
      %7824 = vmatpush1.bf16.msra.mxu0 0
      %7825 = vmatprep.mubr.bf16.mxu0 0
      %7826 = vmatmul.mubr.bf16.gmra.mrb[0].mxu0 %v7782
      %v7827 = vpop.f32.mrb[0].mxu0
      %v7828 = vadd.f32 0.0, %v7827
      %v7829 = vpop.f32.mrb[0].mxu0
      %v7830 = vpop.f32.mrb[0].mxu0
      %v7831 = vpop.f32.mrb[0].mxu0
      %7832 = vmatprep.mubr.bf16.mxu0 0
      %7833 = vmatmul.mubr.bf16.gmra.mrb[0].mxu0 %v7785
      %v7834 = vpop.f32.mrb[0].mxu0
      %v7835 = vadd.f32 0.0, %v7834
      %v7836 = vpop.f32.mrb[0].mxu0
      %v7837 = vpop.f32.mrb[0].mxu0
      %v7838 = vpop.f32.mrb[0].mxu0
      %7839 = vmatprep.mubr.bf16.mxu0 0
      %7840 = vmatmul.mubr.bf16.gmra.mrb[0].mxu0 %v7788
      %v7841 = vpop.f32.mrb[0].mxu0
      %v7842 = vadd.f32 0.0, %v7841
      %v7843 = vpop.f32.mrb[0].mxu0
      %v7844 = vpop.f32.mrb[0].mxu0
      %v7845 = vpop.f32.mrb[0].mxu0
      %7846 = vmatprep.mubr.bf16.mxu0 0
      %7847 = vmatmul.mubr.bf16.gmra.mrb[0].mxu0 %v7791
      %v7848 = vpop.f32.mrb[0].mxu0
      %v7849 = vadd.f32 0.0, %v7848
      %v7850 = vpop.f32.mrb[0].mxu0
      %v7851 = vpop.f32.mrb[0].mxu0
      %v7852 = vpop.f32.mrb[0].mxu0
      %7853 = vdwg.mxu0
      %v7856 = vunpack.c.l.b16 %v7758
      %v7857 = vunpack.c.l.b16 %v7759
      %v7858 = vpack.c.b16 %v7857, %v7856
      %v7861 = vsel %vm602, %v7754, 0
      %v7864 = vsel %vm602, %v7755, 0
      %v7867 = vsel %vm602, %v7756, 0
      %v7870 = vsel %vm602, %v7757, 0
      %7872 = vmatprep.subr.bf16.mxu0 0
      %7873 = vmatpush1.bf16.msra.mxu0 %v7858
      %7874 = vmatprep.subr.bf16.mxu0 0
      %7875 = vmatpush1.bf16.msra.mxu0 0
      %7876 = vmatprep.subr.bf16.mxu0 0
      %7877 = vmatpush1.bf16.msra.mxu0 0
      %7878 = vmatprep.subr.bf16.mxu0 0
      %7879 = vmatpush1.bf16.msra.mxu0 0
      %7880 = vmatprep.subr.bf16.mxu0 0
      %7881 = vmatpush1.bf16.msra.mxu0 0
      %7882 = vmatprep.subr.bf16.mxu0 0
      %7883 = vmatpush1.bf16.msra.mxu0 0
      %7884 = vmatprep.subr.bf16.mxu0 0
      %7885 = vmatpush1.bf16.msra.mxu0 0
      %7886 = vmatprep.subr.bf16.mxu0 0
      %7887 = vmatpush1.bf16.msra.mxu0 0
      %7888 = vmatprep.subr.bf16.mxu0 0
      %7889 = vmatpush1.bf16.msra.mxu0 0
      %7890 = vmatprep.subr.bf16.mxu0 0
      %7891 = vmatpush1.bf16.msra.mxu0 0
      %7892 = vmatprep.subr.bf16.mxu0 0
      %7893 = vmatpush1.bf16.msra.mxu0 0
      %7894 = vmatprep.subr.bf16.mxu0 0
      %7895 = vmatpush1.bf16.msra.mxu0 0
      %7896 = vmatprep.subr.bf16.mxu0 0
      %7897 = vmatpush1.bf16.msra.mxu0 0
      %7898 = vmatprep.subr.bf16.mxu0 0
      %7899 = vmatpush1.bf16.msra.mxu0 0
      %7900 = vmatprep.subr.bf16.mxu0 0
      %7901 = vmatpush1.bf16.msra.mxu0 0
      %7902 = vmatprep.subr.bf16.mxu0 0
      %7903 = vmatpush1.bf16.msra.mxu0 0
      %7904 = vmatprep.mubr.bf16.mxu0 0
      %7905 = vmatmul.mubr.bf16.gmra.mrb[0].mxu0 %v7861
      %v7906 = vpop.f32.mrb[0].mxu0
      %v7907 = vadd.f32 %v7828, %v7906
      %v7908 = vpop.f32.mrb[0].mxu0
      %v7909 = vpop.f32.mrb[0].mxu0
      %v7910 = vpop.f32.mrb[0].mxu0
      %7911 = vmatprep.mubr.bf16.mxu0 0
      %7912 = vmatmul.mubr.bf16.gmra.mrb[0].mxu0 %v7864
      %v7913 = vpop.f32.mrb[0].mxu0
      %v7914 = vadd.f32 %v7835, %v7913
      %v7915 = vpop.f32.mrb[0].mxu0
      %v7916 = vpop.f32.mrb[0].mxu0
      %v7917 = vpop.f32.mrb[0].mxu0
      %7918 = vmatprep.mubr.bf16.mxu0 0
      %7919 = vmatmul.mubr.bf16.gmra.mrb[0].mxu0 %v7867
      %v7920 = vpop.f32.mrb[0].mxu0
      %v7921 = vadd.f32 %v7842, %v7920
      %v7922 = vpop.f32.mrb[0].mxu0
      %v7923 = vpop.f32.mrb[0].mxu0
      %v7924 = vpop.f32.mrb[0].mxu0
      %7925 = vmatprep.mubr.bf16.mxu0 0
      %7926 = vmatmul.mubr.bf16.gmra.mrb[0].mxu0 %v7870
      %v7927 = vpop.f32.mrb[0].mxu0
      %v7928 = vadd.f32 %v7849, %v7927
      %v7929 = vpop.f32.mrb[0].mxu0
      %v7930 = vpop.f32.mrb[0].mxu0
      %v7931 = vpop.f32.mrb[0].mxu0
      %7932 = vdwg.mxu0
      %v7933 = vld [vmem:[#allocation5 + $0x2] sm:$0xff]
      %v7934 = vld [vmem:[#allocation5 + $0x12] sm:$0xff]
      %v7935 = vld [vmem:[#allocation5 + $0x22] sm:$0xff]
      %v7936 = vld [vmem:[#allocation5 + $0x32] sm:$0xff]
      %v7937 = vld [vmem:[#allocation5 + $0x42] sm:$0xff]
      %v7938 = vld [vmem:[#allocation5 + $0x52] sm:$0xff]
      %v7939 = vld [vmem:[#allocation5 + $0x62] sm:$0xff]
      %v7940 = vld [vmem:[#allocation5 + $0x72] sm:$0xff]
      %v7941 = vpack.c.bf16 %v7934, %v7933
      %v7942 = vpack.c.bf16 %v7936, %v7935
      %v7943 = vpack.c.bf16 %v7938, %v7937
      %v7944 = vpack.c.bf16 %v7940, %v7939
      %s7945 = scalar_lea.vmem %s9, 16
      %v7946 = vld [vmem:[%s7945] sm:$0xf]
      %v7947 = vld [vmem:[%s7945 + $0x4] sm:$0xf]
      %v7950 = vunpack.c.l.b16 %v7946
      %v7951 = vunpack.c.l.b16 %v7947
      %v7952 = vpack.c.b16 %v7951, %v7950
      %v7955 = vsel %vm602, %v7941, 0
      %v7958 = vsel %vm602, %v7942, 0
      %v7961 = vsel %vm602, %v7943, 0
      %v7964 = vsel %vm602, %v7944, 0
      %7966 = vmatprep.subr.bf16.mxu0 0
      %7967 = vmatpush1.bf16.msra.mxu0 %v7952
      %7968 = vmatprep.subr.bf16.mxu0 0
      %7969 = vmatpush1.bf16.msra.mxu0 0
      %7970 = vmatprep.subr.bf16.mxu0 0
      %7971 = vmatpush1.bf16.msra.mxu0 0
      %7972 = vmatprep.subr.bf16.mxu0 0
      %7973 = vmatpush1.bf16.msra.mxu0 0
      %7974 = vmatprep.subr.bf16.mxu0 0
      %7975 = vmatpush1.bf16.msra.mxu0 0
      %7976 = vmatprep.subr.bf16.mxu0 0
      %7977 = vmatpush1.bf16.msra.mxu0 0
      %7978 = vmatprep.subr.bf16.mxu0 0
      %7979 = vmatpush1.bf16.msra.mxu0 0
      %7980 = vmatprep.subr.bf16.mxu0 0
      %7981 = vmatpush1.bf16.msra.mxu0 0
      %7982 = vmatprep.subr.bf16.mxu0 0
      %7983 = vmatpush1.bf16.msra.mxu0 0
      %7984 = vmatprep.subr.bf16.mxu0 0
      %7985 = vmatpush1.bf16.msra.mxu0 0
      %7986 = vmatprep.subr.bf16.mxu0 0
      %7987 = vmatpush1.bf16.msra.mxu0 0
      %7988 = vmatprep.subr.bf16.mxu0 0
      %7989 = vmatpush1.bf16.msra.mxu0 0
      %7990 = vmatprep.subr.bf16.mxu0 0
      %7991 = vmatpush1.bf16.msra.mxu0 0
      %7992 = vmatprep.subr.bf16.mxu0 0
      %7993 = vmatpush1.bf16.msra.mxu0 0
      %7994 = vmatprep.subr.bf16.mxu0 0
      %7995 = vmatpush1.bf16.msra.mxu0 0
      %7996 = vmatprep.subr.bf16.mxu0 0
      %7997 = vmatpush1.bf16.msra.mxu0 0
      %7998 = vmatprep.mubr.bf16.mxu0 0
      %7999 = vmatmul.mubr.bf16.gmra.mrb[0].mxu0 %v7955
      %v8000 = vpop.f32.mrb[0].mxu0
      %v8001 = vadd.f32 0.0, %v8000
      %v8002 = vpop.f32.mrb[0].mxu0
      %v8003 = vpop.f32.mrb[0].mxu0
      %v8004 = vpop.f32.mrb[0].mxu0
      %8005 = vmatprep.mubr.bf16.mxu0 0
      %8006 = vmatmul.mubr.bf16.gmra.mrb[0].mxu0 %v7958
      %v8007 = vpop.f32.mrb[0].mxu0
      %v8008 = vadd.f32 0.0, %v8007
      %v8009 = vpop.f32.mrb[0].mxu0
      %v8010 = vpop.f32.mrb[0].mxu0
      %v8011 = vpop.f32.mrb[0].mxu0
      %8012 = vmatprep.mubr.bf16.mxu0 0
      %8013 = vmatmul.mubr.bf16.gmra.mrb[0].mxu0 %v7961
      %v8014 = vpop.f32.mrb[0].mxu0
      %v8015 = vadd.f32 0.0, %v8014
      %v8016 = vpop.f32.mrb[0].mxu0
      %v8017 = vpop.f32.mrb[0].mxu0
      %v8018 = vpop.f32.mrb[0].mxu0
      %8019 = vmatprep.mubr.bf16.mxu0 0
      %8020 = vmatmul.mubr.bf16.gmra.mrb[0].mxu0 %v7964
      %v8021 = vpop.f32.mrb[0].mxu0
      %v8022 = vadd.f32 0.0, %v8021
      %v8023 = vpop.f32.mrb[0].mxu0
      %v8024 = vpop.f32.mrb[0].mxu0
      %v8025 = vpop.f32.mrb[0].mxu0
      %8026 = vdwg.mxu0
      %v8027 = vadd.f32 %v7907, %v8001
      %v8028 = vadd.f32 %v7914, %v8008
      %v8029 = vadd.f32 %v7921, %v8015
      %v8030 = vadd.f32 %v7928, %v8022
      %v8031 = vld [vmem:[%s609] sm:$0xff]
      %v8032 = vld [vmem:[%s609 + $0x10] sm:$0xff]
      %v8033 = vld [vmem:[%s609 + $0x20] sm:$0xff]
      %v8034 = vld [vmem:[%s609 + $0x30] sm:$0xff]
      %v8035 = vld [vmem:[%s609 + $0x40] sm:$0xff]
      %v8036 = vld [vmem:[%s609 + $0x50] sm:$0xff]
      %v8037 = vld [vmem:[%s609 + $0x60] sm:$0xff]
      %v8038 = vld [vmem:[%s609 + $0x70] sm:$0xff]
      %v8039 = vpack.c.bf16 %v8032, %v8031
      %v8040 = vpack.c.bf16 %v8034, %v8033
      %v8041 = vpack.c.bf16 %v8036, %v8035
      %v8042 = vpack.c.bf16 %v8038, %v8037
      %s8043 = scalar_lea.vmem %s9, 24
      %v8044 = vld [vmem:[%s8043] sm:$0xf]
      %v8045 = vld [vmem:[%s8043 + $0x4] sm:$0xf]
      %v8048 = vunpack.c.l.b16 %v8044
      %v8049 = vunpack.c.l.b16 %v8045
      %v8050 = vpack.c.b16 %v8049, %v8048
      %v8053 = vsel %vm602, %v8039, 0
      %v8056 = vsel %vm602, %v8040, 0
      %v8059 = vsel %vm602, %v8041, 0
      %v8062 = vsel %vm602, %v8042, 0
      %8064 = vmatprep.subr.bf16.mxu0 0
      %8065 = vmatpush1.bf16.msra.mxu0 %v8050
      %8066 = vmatprep.subr.bf16.mxu0 0
      %8067 = vmatpush1.bf16.msra.mxu0 0
      %8068 = vmatprep.subr.bf16.mxu0 0
      %8069 = vmatpush1.bf16.msra.mxu0 0
      %8070 = vmatprep.subr.bf16.mxu0 0
      %8071 = vmatpush1.bf16.msra.mxu0 0
      %8072 = vmatprep.subr.bf16.mxu0 0
      %8073 = vmatpush1.bf16.msra.mxu0 0
      %8074 = vmatprep.subr.bf16.mxu0 0
      %8075 = vmatpush1.bf16.msra.mxu0 0
      %8076 = vmatprep.subr.bf16.mxu0 0
      %8077 = vmatpush1.bf16.msra.mxu0 0
      %8078 = vmatprep.subr.bf16.mxu0 0
      %8079 = vmatpush1.bf16.msra.mxu0 0
      %8080 = vmatprep.subr.bf16.mxu0 0
      %8081 = vmatpush1.bf16.msra.mxu0 0
      %8082 = vmatprep.subr.bf16.mxu0 0
      %8083 = vmatpush1.bf16.msra.mxu0 0
      %8084 = vmatprep.subr.bf16.mxu0 0
      %8085 = vmatpush1.bf16.msra.mxu0 0
      %8086 = vmatprep.subr.bf16.mxu0 0
      %8087 = vmatpush1.bf16.msra.mxu0 0
      %8088 = vmatprep.subr.bf16.mxu0 0
      %8089 = vmatpush1.bf16.msra.mxu0 0
      %8090 = vmatprep.subr.bf16.mxu0 0
      %8091 = vmatpush1.bf16.msra.mxu0 0
      %8092 = vmatprep.subr.bf16.mxu0 0
      %8093 = vmatpush1.bf16.msra.mxu0 0
      %8094 = vmatprep.subr.bf16.mxu0 0
      %8095 = vmatpush1.bf16.msra.mxu0 0
      %8096 = vmatprep.mubr.bf16.mxu0 0
      %8097 = vmatmul.mubr.bf16.gmra.mrb[0].mxu0 %v8053
      %v8098 = vpop.f32.mrb[0].mxu0
      %v8099 = vadd.f32 0.0, %v8098
      %v8100 = vpop.f32.mrb[0].mxu0
      %v8101 = vpop.f32.mrb[0].mxu0
      %v8102 = vpop.f32.mrb[0].mxu0
      %8103 = vmatprep.mubr.bf16.mxu0 0
      %8104 = vmatmul.mubr.bf16.gmra.mrb[0].mxu0 %v8056
      %v8105 = vpop.f32.mrb[0].mxu0
      %v8106 = vadd.f32 0.0, %v8105
      %v8107 = vpop.f32.mrb[0].mxu0
      %v8108 = vpop.f32.mrb[0].mxu0
      %v8109 = vpop.f32.mrb[0].mxu0
      %8110 = vmatprep.mubr.bf16.mxu0 0
      %8111 = vmatmul.mubr.bf16.gmra.mrb[0].mxu0 %v8059
      %v8112 = vpop.f32.mrb[0].mxu0
      %v8113 = vadd.f32 0.0, %v8112
      %v8114 = vpop.f32.mrb[0].mxu0
      %v8115 = vpop.f32.mrb[0].mxu0
      %v8116 = vpop.f32.mrb[0].mxu0
      %8117 = vmatprep.mubr.bf16.mxu0 0
      %8118 = vmatmul.mubr.bf16.gmra.mrb[0].mxu0 %v8062
      %v8119 = vpop.f32.mrb[0].mxu0
      %v8120 = vadd.f32 0.0, %v8119
      %v8121 = vpop.f32.mrb[0].mxu0
      %v8122 = vpop.f32.mrb[0].mxu0
      %v8123 = vpop.f32.mrb[0].mxu0
      %8124 = vdwg.mxu0
      %v8125 = vadd.f32 %v8027, %v8099
      %v8126 = vadd.f32 %v8028, %v8106
      %v8127 = vadd.f32 %v8029, %v8113
      %v8128 = vadd.f32 %v8030, %v8120
      %v8129 = vld [vmem:[%s609 + $0x1] sm:$0xff]
      %v8130 = vld [vmem:[%s609 + $0x11] sm:$0xff]
      %v8131 = vld [vmem:[%s609 + $0x21] sm:$0xff]
      %v8132 = vld [vmem:[%s609 + $0x31] sm:$0xff]
      %v8133 = vld [vmem:[%s609 + $0x41] sm:$0xff]
      %v8134 = vld [vmem:[%s609 + $0x51] sm:$0xff]
      %v8135 = vld [vmem:[%s609 + $0x61] sm:$0xff]
      %v8136 = vld [vmem:[%s609 + $0x71] sm:$0xff]
      %v8137 = vpack.c.bf16 %v8130, %v8129
      %v8138 = vpack.c.bf16 %v8132, %v8131
      %v8139 = vpack.c.bf16 %v8134, %v8133
      %v8140 = vpack.c.bf16 %v8136, %v8135
      %s8141 = scalar_lea.vmem %s9, 32
      %v8142 = vld [vmem:[%s8141] sm:$0xf]
      %v8143 = vld [vmem:[%s8141 + $0x4] sm:$0xf]
      %v8146 = vunpack.c.l.b16 %v8142
      %v8147 = vunpack.c.l.b16 %v8143
      %v8148 = vpack.c.b16 %v8147, %v8146
      %v8151 = vsel %vm602, %v8137, 0
      %v8154 = vsel %vm602, %v8138, 0
      %v8157 = vsel %vm602, %v8139, 0
      %v8160 = vsel %vm602, %v8140, 0
      %8162 = vmatprep.subr.bf16.mxu0 0
      %8163 = vmatpush1.bf16.msra.mxu0 %v8148
      %8164 = vmatprep.subr.bf16.mxu0 0
      %8165 = vmatpush1.bf16.msra.mxu0 0
      %8166 = vmatprep.subr.bf16.mxu0 0
      %8167 = vmatpush1.bf16.msra.mxu0 0
      %8168 = vmatprep.subr.bf16.mxu0 0
      %8169 = vmatpush1.bf16.msra.mxu0 0
      %8170 = vmatprep.subr.bf16.mxu0 0
      %8171 = vmatpush1.bf16.msra.mxu0 0
      %8172 = vmatprep.subr.bf16.mxu0 0
      %8173 = vmatpush1.bf16.msra.mxu0 0
      %8174 = vmatprep.subr.bf16.mxu0 0
      %8175 = vmatpush1.bf16.msra.mxu0 0
      %8176 = vmatprep.subr.bf16.mxu0 0
      %8177 = vmatpush1.bf16.msra.mxu0 0
      %8178 = vmatprep.subr.bf16.mxu0 0
      %8179 = vmatpush1.bf16.msra.mxu0 0
      %8180 = vmatprep.subr.bf16.mxu0 0
      %8181 = vmatpush1.bf16.msra.mxu0 0
      %8182 = vmatprep.subr.bf16.mxu0 0
      %8183 = vmatpush1.bf16.msra.mxu0 0
      %8184 = vmatprep.subr.bf16.mxu0 0
      %8185 = vmatpush1.bf16.msra.mxu0 0
      %8186 = vmatprep.subr.bf16.mxu0 0
      %8187 = vmatpush1.bf16.msra.mxu0 0
      %8188 = vmatprep.subr.bf16.mxu0 0
      %8189 = vmatpush1.bf16.msra.mxu0 0
      %8190 = vmatprep.subr.bf16.mxu0 0
      %8191 = vmatpush1.bf16.msra.mxu0 0
      %8192 = vmatprep.subr.bf16.mxu0 0
      %8193 = vmatpush1.bf16.msra.mxu0 0
      %8194 = vmatprep.mubr.bf16.mxu0 0
      %8195 = vmatmul.mubr.bf16.gmra.mrb[0].mxu0 %v8151
      %v8196 = vpop.f32.mrb[0].mxu0
      %v8197 = vadd.f32 0.0, %v8196
      %v8198 = vpop.f32.mrb[0].mxu0
      %v8199 = vpop.f32.mrb[0].mxu0
      %v8200 = vpop.f32.mrb[0].mxu0
      %8201 = vmatprep.mubr.bf16.mxu0 0
      %8202 = vmatmul.mubr.bf16.gmra.mrb[0].mxu0 %v8154
      %v8203 = vpop.f32.mrb[0].mxu0
      %v8204 = vadd.f32 0.0, %v8203
      %v8205 = vpop.f32.mrb[0].mxu0
      %v8206 = vpop.f32.mrb[0].mxu0
      %v8207 = vpop.f32.mrb[0].mxu0
      %8208 = vmatprep.mubr.bf16.mxu0 0
      %8209 = vmatmul.mubr.bf16.gmra.mrb[0].mxu0 %v8157
      %v8210 = vpop.f32.mrb[0].mxu0
      %v8211 = vadd.f32 0.0, %v8210
      %v8212 = vpop.f32.mrb[0].mxu0
      %v8213 = vpop.f32.mrb[0].mxu0
      %v8214 = vpop.f32.mrb[0].mxu0
      %8215 = vmatprep.mubr.bf16.mxu0 0
      %8216 = vmatmul.mubr.bf16.gmra.mrb[0].mxu0 %v8160
      %v8217 = vpop.f32.mrb[0].mxu0
      %v8218 = vadd.f32 0.0, %v8217
      %v8219 = vpop.f32.mrb[0].mxu0
      %v8220 = vpop.f32.mrb[0].mxu0
      %v8221 = vpop.f32.mrb[0].mxu0
      %8222 = vdwg.mxu0
      %v8223 = vadd.f32 %v8125, %v8197
      %v8224 = vadd.f32 %v8126, %v8204
      %v8225 = vadd.f32 %v8127, %v8211
      %v8226 = vadd.f32 %v8128, %v8218
      %v8227 = vld [vmem:[%s609 + $0x2] sm:$0xff]
      %v8228 = vld [vmem:[%s609 + $0x12] sm:$0xff]
      %v8229 = vld [vmem:[%s609 + $0x22] sm:$0xff]
      %v8230 = vld [vmem:[%s609 + $0x32] sm:$0xff]
      %v8231 = vld [vmem:[%s609 + $0x42] sm:$0xff]
      %v8232 = vld [vmem:[%s609 + $0x52] sm:$0xff]
      %v8233 = vld [vmem:[%s609 + $0x62] sm:$0xff]
      %v8234 = vld [vmem:[%s609 + $0x72] sm:$0xff]
      %v8235 = vpack.c.bf16 %v8228, %v8227
      %v8236 = vpack.c.bf16 %v8230, %v8229
      %v8237 = vpack.c.bf16 %v8232, %v8231
      %v8238 = vpack.c.bf16 %v8234, %v8233
      %s8239 = scalar_lea.vmem %s9, 40
      %v8240 = vld [vmem:[%s8239] sm:$0xf]
      %v8241 = vld [vmem:[%s8239 + $0x4] sm:$0xf]
      %v8244 = vunpack.c.l.b16 %v8240
      %v8245 = vunpack.c.l.b16 %v8241
      %v8246 = vpack.c.b16 %v8245, %v8244
      %v8249 = vsel %vm602, %v8235, 0
      %v8252 = vsel %vm602, %v8236, 0
      %v8255 = vsel %vm602, %v8237, 0
      %v8258 = vsel %vm602, %v8238, 0
      %8260 = vmatprep.subr.bf16.mxu0 0
      %8261 = vmatpush1.bf16.msra.mxu0 %v8246
      %8262 = vmatprep.subr.bf16.mxu0 0
      %8263 = vmatpush1.bf16.msra.mxu0 0
      %8264 = vmatprep.subr.bf16.mxu0 0
      %8265 = vmatpush1.bf16.msra.mxu0 0
      %8266 = vmatprep.subr.bf16.mxu0 0
      %8267 = vmatpush1.bf16.msra.mxu0 0
      %8268 = vmatprep.subr.bf16.mxu0 0
      %8269 = vmatpush1.bf16.msra.mxu0 0
      %8270 = vmatprep.subr.bf16.mxu0 0
      %8271 = vmatpush1.bf16.msra.mxu0 0
      %8272 = vmatprep.subr.bf16.mxu0 0
      %8273 = vmatpush1.bf16.msra.mxu0 0
      %8274 = vmatprep.subr.bf16.mxu0 0
      %8275 = vmatpush1.bf16.msra.mxu0 0
      %8276 = vmatprep.subr.bf16.mxu0 0
      %8277 = vmatpush1.bf16.msra.mxu0 0
      %8278 = vmatprep.subr.bf16.mxu0 0
      %8279 = vmatpush1.bf16.msra.mxu0 0
      %8280 = vmatprep.subr.bf16.mxu0 0
      %8281 = vmatpush1.bf16.msra.mxu0 0
      %8282 = vmatprep.subr.bf16.mxu0 0
      %8283 = vmatpush1.bf16.msra.mxu0 0
      %8284 = vmatprep.subr.bf16.mxu0 0
      %8285 = vmatpush1.bf16.msra.mxu0 0
      %8286 = vmatprep.subr.bf16.mxu0 0
      %8287 = vmatpush1.bf16.msra.mxu0 0
      %8288 = vmatprep.subr.bf16.mxu0 0
      %8289 = vmatpush1.bf16.msra.mxu0 0
      %8290 = vmatprep.subr.bf16.mxu0 0
      %8291 = vmatpush1.bf16.msra.mxu0 0
      %8292 = vmatprep.mubr.bf16.mxu0 0
      %8293 = vmatmul.mubr.bf16.gmra.mrb[0].mxu0 %v8249
      %v8294 = vpop.f32.mrb[0].mxu0
      %v8295 = vadd.f32 0.0, %v8294
      %v8296 = vpop.f32.mrb[0].mxu0
      %v8297 = vpop.f32.mrb[0].mxu0
      %v8298 = vpop.f32.mrb[0].mxu0
      %8299 = vmatprep.mubr.bf16.mxu0 0
      %8300 = vmatmul.mubr.bf16.gmra.mrb[0].mxu0 %v8252
      %v8301 = vpop.f32.mrb[0].mxu0
      %v8302 = vadd.f32 0.0, %v8301
      %v8303 = vpop.f32.mrb[0].mxu0
      %v8304 = vpop.f32.mrb[0].mxu0
      %v8305 = vpop.f32.mrb[0].mxu0
      %8306 = vmatprep.mubr.bf16.mxu0 0
      %8307 = vmatmul.mubr.bf16.gmra.mrb[0].mxu0 %v8255
      %v8308 = vpop.f32.mrb[0].mxu0
      %v8309 = vadd.f32 0.0, %v8308
      %v8310 = vpop.f32.mrb[0].mxu0
      %v8311 = vpop.f32.mrb[0].mxu0
      %v8312 = vpop.f32.mrb[0].mxu0
      %8313 = vmatprep.mubr.bf16.mxu0 0
      %8314 = vmatmul.mubr.bf16.gmra.mrb[0].mxu0 %v8258
      %v8315 = vpop.f32.mrb[0].mxu0
      %v8316 = vadd.f32 0.0, %v8315
      %v8317 = vpop.f32.mrb[0].mxu0
      %v8318 = vpop.f32.mrb[0].mxu0
      %v8319 = vpop.f32.mrb[0].mxu0
      %8320 = vdwg.mxu0
      %v8321 = vadd.f32 %v8223, %v8295
      %v8322 = vadd.f32 %v8224, %v8302
      %v8323 = vadd.f32 %v8225, %v8309
      %v8324 = vadd.f32 %v8226, %v8316
      %s8325 = scalar_lea.vmem [#allocation5], 32
      %v8326 = vld [vmem:[%s8325] sm:$0xff]
      %v8327 = vld [vmem:[%s8325 + $0x10] sm:$0xff]
      %v8328 = vld [vmem:[%s8325 + $0x20] sm:$0xff]
      %v8329 = vld [vmem:[%s8325 + $0x30] sm:$0xff]
      %v8330 = vld [vmem:[%s8325 + $0x40] sm:$0xff]
      %v8331 = vld [vmem:[%s8325 + $0x50] sm:$0xff]
      %v8332 = vld [vmem:[%s8325 + $0x60] sm:$0xff]
      %v8333 = vld [vmem:[%s8325 + $0x70] sm:$0xff]
      %v8334 = vpack.c.bf16 %v8327, %v8326
      %v8335 = vpack.c.bf16 %v8329, %v8328
      %v8336 = vpack.c.bf16 %v8331, %v8330
      %v8337 = vpack.c.bf16 %v8333, %v8332
      %s8338 = scalar_lea.vmem %s9, 48
      %v8339 = vld [vmem:[%s8338] sm:$0xf]
      %v8340 = vld [vmem:[%s8338 + $0x4] sm:$0xf]
      %v8343 = vunpack.c.l.b16 %v8339
      %v8344 = vunpack.c.l.b16 %v8340
      %v8345 = vpack.c.b16 %v8344, %v8343
      %v8348 = vsel %vm602, %v8334, 0
      %v8351 = vsel %vm602, %v8335, 0
      %v8354 = vsel %vm602, %v8336, 0
      %v8357 = vsel %vm602, %v8337, 0
      %8359 = vmatprep.subr.bf16.mxu0 0
      %8360 = vmatpush1.bf16.msra.mxu0 %v8345
      %8361 = vmatprep.subr.bf16.mxu0 0
      %8362 = vmatpush1.bf16.msra.mxu0 0
      %8363 = vmatprep.subr.bf16.mxu0 0
      %8364 = vmatpush1.bf16.msra.mxu0 0
      %8365 = vmatprep.subr.bf16.mxu0 0
      %8366 = vmatpush1.bf16.msra.mxu0 0
      %8367 = vmatprep.subr.bf16.mxu0 0
      %8368 = vmatpush1.bf16.msra.mxu0 0
      %8369 = vmatprep.subr.bf16.mxu0 0
      %8370 = vmatpush1.bf16.msra.mxu0 0
      %8371 = vmatprep.subr.bf16.mxu0 0
      %8372 = vmatpush1.bf16.msra.mxu0 0
      %8373 = vmatprep.subr.bf16.mxu0 0
      %8374 = vmatpush1.bf16.msra.mxu0 0
      %8375 = vmatprep.subr.bf16.mxu0 0
      %8376 = vmatpush1.bf16.msra.mxu0 0
      %8377 = vmatprep.subr.bf16.mxu0 0
      %8378 = vmatpush1.bf16.msra.mxu0 0
      %8379 = vmatprep.subr.bf16.mxu0 0
      %8380 = vmatpush1.bf16.msra.mxu0 0
      %8381 = vmatprep.subr.bf16.mxu0 0
      %8382 = vmatpush1.bf16.msra.mxu0 0
      %8383 = vmatprep.subr.bf16.mxu0 0
      %8384 = vmatpush1.bf16.msra.mxu0 0
      %8385 = vmatprep.subr.bf16.mxu0 0
      %8386 = vmatpush1.bf16.msra.mxu0 0
      %8387 = vmatprep.subr.bf16.mxu0 0
      %8388 = vmatpush1.bf16.msra.mxu0 0
      %8389 = vmatprep.subr.bf16.mxu0 0
      %8390 = vmatpush1.bf16.msra.mxu0 0
      %8391 = vmatprep.mubr.bf16.mxu0 0
      %8392 = vmatmul.mubr.bf16.gmra.mrb[0].mxu0 %v8348
      %v8393 = vpop.f32.mrb[0].mxu0
      %v8394 = vadd.f32 0.0, %v8393
      %v8395 = vpop.f32.mrb[0].mxu0
      %v8396 = vpop.f32.mrb[0].mxu0
      %v8397 = vpop.f32.mrb[0].mxu0
      %8398 = vmatprep.mubr.bf16.mxu0 0
      %8399 = vmatmul.mubr.bf16.gmra.mrb[0].mxu0 %v8351
      %v8400 = vpop.f32.mrb[0].mxu0
      %v8401 = vadd.f32 0.0, %v8400
      %v8402 = vpop.f32.mrb[0].mxu0
      %v8403 = vpop.f32.mrb[0].mxu0
      %v8404 = vpop.f32.mrb[0].mxu0
      %8405 = vmatprep.mubr.bf16.mxu0 0
      %8406 = vmatmul.mubr.bf16.gmra.mrb[0].mxu0 %v8354
      %v8407 = vpop.f32.mrb[0].mxu0
      %v8408 = vadd.f32 0.0, %v8407
      %v8409 = vpop.f32.mrb[0].mxu0
      %v8410 = vpop.f32.mrb[0].mxu0
      %v8411 = vpop.f32.mrb[0].mxu0
      %8412 = vmatprep.mubr.bf16.mxu0 0
      %8413 = vmatmul.mubr.bf16.gmra.mrb[0].mxu0 %v8357
      %v8414 = vpop.f32.mrb[0].mxu0
      %v8415 = vadd.f32 0.0, %v8414
      %v8416 = vpop.f32.mrb[0].mxu0
      %v8417 = vpop.f32.mrb[0].mxu0
      %v8418 = vpop.f32.mrb[0].mxu0
      %8419 = vdwg.mxu0
      %v8420 = vadd.f32 %v8321, %v8394
      %v8421 = vadd.f32 %v8322, %v8401
      %v8422 = vadd.f32 %v8323, %v8408
      %v8423 = vadd.f32 %v8324, %v8415
      %v8424 = vld [vmem:[%s8325 + $0x1] sm:$0xff]
      %v8425 = vld [vmem:[%s8325 + $0x11] sm:$0xff]
      %v8426 = vld [vmem:[%s8325 + $0x21] sm:$0xff]
      %v8427 = vld [vmem:[%s8325 + $0x31] sm:$0xff]
      %v8428 = vld [vmem:[%s8325 + $0x41] sm:$0xff]
      %v8429 = vld [vmem:[%s8325 + $0x51] sm:$0xff]
      %v8430 = vld [vmem:[%s8325 + $0x61] sm:$0xff]
      %v8431 = vld [vmem:[%s8325 + $0x71] sm:$0xff]
      %v8432 = vpack.c.bf16 %v8425, %v8424
      %v8433 = vpack.c.bf16 %v8427, %v8426
      %v8434 = vpack.c.bf16 %v8429, %v8428
      %v8435 = vpack.c.bf16 %v8431, %v8430
      %s8436 = scalar_lea.vmem %s9, 56
      %v8437 = vld [vmem:[%s8436] sm:$0xf]
      %v8438 = vld [vmem:[%s8436 + $0x4] sm:$0xf]
      %v8441 = vunpack.c.l.b16 %v8437
      %v8442 = vunpack.c.l.b16 %v8438
      %v8443 = vpack.c.b16 %v8442, %v8441
      %v8446 = vsel %vm602, %v8432, 0
      %v8449 = vsel %vm602, %v8433, 0
      %v8452 = vsel %vm602, %v8434, 0
      %v8455 = vsel %vm602, %v8435, 0
      %8457 = vmatprep.subr.bf16.mxu0 0
      %8458 = vmatpush1.bf16.msra.mxu0 %v8443
      %8459 = vmatprep.subr.bf16.mxu0 0
      %8460 = vmatpush1.bf16.msra.mxu0 0
      %8461 = vmatprep.subr.bf16.mxu0 0
      %8462 = vmatpush1.bf16.msra.mxu0 0
      %8463 = vmatprep.subr.bf16.mxu0 0
      %8464 = vmatpush1.bf16.msra.mxu0 0
      %8465 = vmatprep.subr.bf16.mxu0 0
      %8466 = vmatpush1.bf16.msra.mxu0 0
      %8467 = vmatprep.subr.bf16.mxu0 0
      %8468 = vmatpush1.bf16.msra.mxu0 0
      %8469 = vmatprep.subr.bf16.mxu0 0
      %8470 = vmatpush1.bf16.msra.mxu0 0
      %8471 = vmatprep.subr.bf16.mxu0 0
      %8472 = vmatpush1.bf16.msra.mxu0 0
      %8473 = vmatprep.subr.bf16.mxu0 0
      %8474 = vmatpush1.bf16.msra.mxu0 0
      %8475 = vmatprep.subr.bf16.mxu0 0
      %8476 = vmatpush1.bf16.msra.mxu0 0
      %8477 = vmatprep.subr.bf16.mxu0 0
      %8478 = vmatpush1.bf16.msra.mxu0 0
      %8479 = vmatprep.subr.bf16.mxu0 0
      %8480 = vmatpush1.bf16.msra.mxu0 0
      %8481 = vmatprep.subr.bf16.mxu0 0
      %8482 = vmatpush1.bf16.msra.mxu0 0
      %8483 = vmatprep.subr.bf16.mxu0 0
      %8484 = vmatpush1.bf16.msra.mxu0 0
      %8485 = vmatprep.subr.bf16.mxu0 0
      %8486 = vmatpush1.bf16.msra.mxu0 0
      %8487 = vmatprep.subr.bf16.mxu0 0
      %8488 = vmatpush1.bf16.msra.mxu0 0
      %8489 = vmatprep.mubr.bf16.mxu0 0
      %8490 = vmatmul.mubr.bf16.gmra.mrb[0].mxu0 %v8446
      %v8491 = vpop.f32.mrb[0].mxu0
      %v8492 = vadd.f32 0.0, %v8491
      %v8493 = vpop.f32.mrb[0].mxu0
      %v8494 = vpop.f32.mrb[0].mxu0
      %v8495 = vpop.f32.mrb[0].mxu0
      %8496 = vmatprep.mubr.bf16.mxu0 0
      %8497 = vmatmul.mubr.bf16.gmra.mrb[0].mxu0 %v8449
      %v8498 = vpop.f32.mrb[0].mxu0
      %v8499 = vadd.f32 0.0, %v8498
      %v8500 = vpop.f32.mrb[0].mxu0
      %v8501 = vpop.f32.mrb[0].mxu0
      %v8502 = vpop.f32.mrb[0].mxu0
      %8503 = vmatprep.mubr.bf16.mxu0 0
      %8504 = vmatmul.mubr.bf16.gmra.mrb[0].mxu0 %v8452
      %v8505 = vpop.f32.mrb[0].mxu0
      %v8506 = vadd.f32 0.0, %v8505
      %v8507 = vpop.f32.mrb[0].mxu0
      %v8508 = vpop.f32.mrb[0].mxu0
      %v8509 = vpop.f32.mrb[0].mxu0
      %8510 = vmatprep.mubr.bf16.mxu0 0
      %8511 = vmatmul.mubr.bf16.gmra.mrb[0].mxu0 %v8455
      %v8512 = vpop.f32.mrb[0].mxu0
      %v8513 = vadd.f32 0.0, %v8512
      %v8514 = vpop.f32.mrb[0].mxu0
      %v8515 = vpop.f32.mrb[0].mxu0
      %v8516 = vpop.f32.mrb[0].mxu0
      %8517 = vdwg.mxu0
      %v8518 = vadd.f32 %v8420, %v8492
      %v8519 = vadd.f32 %v8421, %v8499
      %v8520 = vadd.f32 %v8422, %v8506
      %v8521 = vadd.f32 %v8423, %v8513
      %v8522 = vld [vmem:[%s8325 + $0x2] sm:$0xff]
      %v8523 = vld [vmem:[%s8325 + $0x12] sm:$0xff]
      %v8524 = vld [vmem:[%s8325 + $0x22] sm:$0xff]
      %v8525 = vld [vmem:[%s8325 + $0x32] sm:$0xff]
      %v8526 = vld [vmem:[%s8325 + $0x42] sm:$0xff]
      %v8527 = vld [vmem:[%s8325 + $0x52] sm:$0xff]
      %v8528 = vld [vmem:[%s8325 + $0x62] sm:$0xff]
      %v8529 = vld [vmem:[%s8325 + $0x72] sm:$0xff]
      %v8530 = vpack.c.bf16 %v8523, %v8522
      %v8531 = vpack.c.bf16 %v8525, %v8524
      %v8532 = vpack.c.bf16 %v8527, %v8526
      %v8533 = vpack.c.bf16 %v8529, %v8528
      %s8534 = scalar_lea.vmem %s9, 64
      %v8535 = vld [vmem:[%s8534] sm:$0xf]
      %v8536 = vld [vmem:[%s8534 + $0x4] sm:$0xf]
      %v8539 = vunpack.c.l.b16 %v8535
      %v8540 = vunpack.c.l.b16 %v8536
      %v8541 = vpack.c.b16 %v8540, %v8539
      %v8544 = vsel %vm602, %v8530, 0
      %v8547 = vsel %vm602, %v8531, 0
      %v8550 = vsel %vm602, %v8532, 0
      %v8553 = vsel %vm602, %v8533, 0
      %8555 = vmatprep.subr.bf16.mxu0 0
      %8556 = vmatpush1.bf16.msra.mxu0 %v8541
      %8557 = vmatprep.subr.bf16.mxu0 0
      %8558 = vmatpush1.bf16.msra.mxu0 0
      %8559 = vmatprep.subr.bf16.mxu0 0
      %8560 = vmatpush1.bf16.msra.mxu0 0
      %8561 = vmatprep.subr.bf16.mxu0 0
      %8562 = vmatpush1.bf16.msra.mxu0 0
      %8563 = vmatprep.subr.bf16.mxu0 0
      %8564 = vmatpush1.bf16.msra.mxu0 0
      %8565 = vmatprep.subr.bf16.mxu0 0
      %8566 = vmatpush1.bf16.msra.mxu0 0
      %8567 = vmatprep.subr.bf16.mxu0 0
      %8568 = vmatpush1.bf16.msra.mxu0 0
      %8569 = vmatprep.subr.bf16.mxu0 0
      %8570 = vmatpush1.bf16.msra.mxu0 0
      %8571 = vmatprep.subr.bf16.mxu0 0
      %8572 = vmatpush1.bf16.msra.mxu0 0
      %8573 = vmatprep.subr.bf16.mxu0 0
      %8574 = vmatpush1.bf16.msra.mxu0 0
      %8575 = vmatprep.subr.bf16.mxu0 0
      %8576 = vmatpush1.bf16.msra.mxu0 0
      %8577 = vmatprep.subr.bf16.mxu0 0
      %8578 = vmatpush1.bf16.msra.mxu0 0
      %8579 = vmatprep.subr.bf16.mxu0 0
      %8580 = vmatpush1.bf16.msra.mxu0 0
      %8581 = vmatprep.subr.bf16.mxu0 0
      %8582 = vmatpush1.bf16.msra.mxu0 0
      %8583 = vmatprep.subr.bf16.mxu0 0
      %8584 = vmatpush1.bf16.msra.mxu0 0
      %8585 = vmatprep.subr.bf16.mxu0 0
      %8586 = vmatpush1.bf16.msra.mxu0 0
      %8587 = vmatprep.mubr.bf16.mxu0 0
      %8588 = vmatmul.mubr.bf16.gmra.mrb[0].mxu0 %v8544
      %v8589 = vpop.f32.mrb[0].mxu0
      %v8590 = vadd.f32 0.0, %v8589
      %v8591 = vpop.f32.mrb[0].mxu0
      %v8592 = vpop.f32.mrb[0].mxu0
      %v8593 = vpop.f32.mrb[0].mxu0
      %8594 = vmatprep.mubr.bf16.mxu0 0
      %8595 = vmatmul.mubr.bf16.gmra.mrb[0].mxu0 %v8547
      %v8596 = vpop.f32.mrb[0].mxu0
      %v8597 = vadd.f32 0.0, %v8596
      %v8598 = vpop.f32.mrb[0].mxu0
      %v8599 = vpop.f32.mrb[0].mxu0
      %v8600 = vpop.f32.mrb[0].mxu0
      %8601 = vmatprep.mubr.bf16.mxu0 0
      %8602 = vmatmul.mubr.bf16.gmra.mrb[0].mxu0 %v8550
      %v8603 = vpop.f32.mrb[0].mxu0
      %v8604 = vadd.f32 0.0, %v8603
      %v8605 = vpop.f32.mrb[0].mxu0
      %v8606 = vpop.f32.mrb[0].mxu0
      %v8607 = vpop.f32.mrb[0].mxu0
      %8608 = vmatprep.mubr.bf16.mxu0 0
      %8609 = vmatmul.mubr.bf16.gmra.mrb[0].mxu0 %v8553
      %v8610 = vpop.f32.mrb[0].mxu0
      %v8611 = vadd.f32 0.0, %v8610
      %v8612 = vpop.f32.mrb[0].mxu0
      %v8613 = vpop.f32.mrb[0].mxu0
      %v8614 = vpop.f32.mrb[0].mxu0
      %8615 = vdwg.mxu0
      %v8616 = vadd.f32 %v8518, %v8590
      %v8617 = vadd.f32 %v8519, %v8597
      %v8618 = vadd.f32 %v8520, %v8604
      %v8619 = vadd.f32 %v8521, %v8611
      %v8620 = vld [vmem:[%s10] sm:$0x1]
      %v8622 = vlaneseq
      %v8623 = vshrl.u32 %v8622, 7
      %v8624 = vsub.s32 0, %v8623
      %v8625 = vrot.slane %v8620, %v8624
      %v8627 = vadd.f32 %v8616, %v8625
      %v8628 = vadd.f32 %v8617, %v8625
      %v8629 = vadd.f32 %v8618, %v8625
      %v8630 = vadd.f32 %v8619, %v8625
      %v8631 = vpack.c.bf16 %v6021, %v6021
      %v8632 = vpack.c.bf16 %v6029, %v6029
      %v8633 = vpack.c.bf16 %v6028, %v6028
      %v8634 = vpack.c.bf16 %v6030, %v6030
      %v8635 = vpack.c.bf16 %v6038, %v6038
      %v8636 = vpack.c.bf16 %v6046, %v6046
      %v8637 = vpack.c.bf16 %v6045, %v6045
      %v8638 = vpack.c.bf16 %v6047, %v6047
      %v8639 = vpack.c.bf16 %v6055, %v6055
      %v8640 = vpack.c.bf16 %v6063, %v6063
      %v8641 = vpack.c.bf16 %v6062, %v6062
      %v8642 = vpack.c.bf16 %v6064, %v6064
      %v8643 = vpack.c.bf16 %v6072, %v6072
      %v8644 = vpack.c.bf16 %v6080, %v6080
      %v8645 = vpack.c.bf16 %v6079, %v6079
      %v8646 = vpack.c.bf16 %v6081, %v6081
      %v8647 = vpack.c.bf16 %v6089, %v6089
      %v8648 = vpack.c.bf16 %v6097, %v6097
      %v8649 = vpack.c.bf16 %v6096, %v6096
      %v8650 = vpack.c.bf16 %v6098, %v6098
      %v8651 = vpack.c.bf16 %v6106, %v6106
      %v8652 = vpack.c.bf16 %v6114, %v6114
      %v8653 = vpack.c.bf16 %v6113, %v6113
      %v8654 = vpack.c.bf16 %v6115, %v6115
      %v8655 = vpack.c.bf16 %v6123, %v6123
      %v8656 = vpack.c.bf16 %v6131, %v6131
      %v8657 = vpack.c.bf16 %v6130, %v6130
      %v8658 = vpack.c.bf16 %v6132, %v6132
      %v8659 = vpack.c.bf16 %v6140, %v6140
      %v8660 = vpack.c.bf16 %v6148, %v6148
      %v8661 = vpack.c.bf16 %v6147, %v6147
      %v8662 = vpack.c.bf16 %v6149, %v6149
      %v8663 = vpack.c.bf16 %v6157, %v6157
      %v8664 = vpack.c.bf16 %v6165, %v6165
      %v8665 = vpack.c.bf16 %v6164, %v6164
      %v8666 = vpack.c.bf16 %v6166, %v6166
      %v8667 = vpack.c.bf16 %v6174, %v6174
      %v8668 = vpack.c.bf16 %v6182, %v6182
      %v8669 = vpack.c.bf16 %v6181, %v6181
      %v8670 = vpack.c.bf16 %v6183, %v6183
      %v8671 = vpack.c.bf16 %v6191, %v6191
      %v8672 = vpack.c.bf16 %v6199, %v6199
      %v8673 = vpack.c.bf16 %v6198, %v6198
      %v8674 = vpack.c.bf16 %v6200, %v6200
      %v8675 = vpack.c.bf16 %v6208, %v6208
      %v8676 = vpack.c.bf16 %v6216, %v6216
      %v8677 = vpack.c.bf16 %v6215, %v6215
      %v8678 = vpack.c.bf16 %v6217, %v6217
      %v8679 = vpack.c.bf16 %v6225, %v6225
      %v8680 = vpack.c.bf16 %v6233, %v6233
      %v8681 = vpack.c.bf16 %v6232, %v6232
      %v8682 = vpack.c.bf16 %v6234, %v6234
      %v8683 = vpack.c.bf16 %v6242, %v6242
      %v8684 = vpack.c.bf16 %v6250, %v6250
      %v8685 = vpack.c.bf16 %v6249, %v6249
      %v8686 = vpack.c.bf16 %v6251, %v6251
      %v8687 = vpack.c.bf16 %v6259, %v6259
      %v8688 = vpack.c.bf16 %v6267, %v6267
      %v8689 = vpack.c.bf16 %v6266, %v6266
      %v8690 = vpack.c.bf16 %v6268, %v6268
      %v8691 = vpack.c.bf16 %v6276, %v6276
      %v8692 = vpack.c.bf16 %v6284, %v6284
      %v8693 = vpack.c.bf16 %v6283, %v6283
      %v8694 = vpack.c.bf16 %v6285, %v6285
      %v8695 = vld [vmem:[%s11] sm:$0xf]
      %v8696 = vld [vmem:[%s12] sm:$0x1]
      %v8698 = vlaneseq
      %v8699 = vshrl.u32 %v8698, 7
      %v8700 = vsub.s32 0, %v8699
      %v8701 = vrot.slane %v8696, %v8700
      %v8767 = vunpack.c.l.b16 %v8631
      %v8768 = vunpack.c.l.b16 %v8632
      %v8769 = vunpack.c.l.b16 %v8633
      %v8770 = vunpack.c.l.b16 %v8634
      %v8771 = vunpack.c.l.b16 %v8635
      %v8772 = vunpack.c.l.b16 %v8636
      %v8773 = vunpack.c.l.b16 %v8637
      %v8774 = vunpack.c.l.b16 %v8638
      %v8775 = vunpack.c.l.b16 %v8639
      %v8776 = vunpack.c.l.b16 %v8640
      %v8777 = vunpack.c.l.b16 %v8641
      %v8778 = vunpack.c.l.b16 %v8642
      %v8779 = vunpack.c.l.b16 %v8643
      %v8780 = vunpack.c.l.b16 %v8644
      %v8781 = vunpack.c.l.b16 %v8645
      %v8782 = vunpack.c.l.b16 %v8646
      %v8783 = vunpack.c.l.b16 %v8647
      %v8784 = vunpack.c.l.b16 %v8648
      %v8785 = vunpack.c.l.b16 %v8649
      %v8786 = vunpack.c.l.b16 %v8650
      %v8787 = vunpack.c.l.b16 %v8651
      %v8788 = vunpack.c.l.b16 %v8652
      %v8789 = vunpack.c.l.b16 %v8653
      %v8790 = vunpack.c.l.b16 %v8654
      %v8791 = vunpack.c.l.b16 %v8655
      %v8792 = vunpack.c.l.b16 %v8656
      %v8793 = vunpack.c.l.b16 %v8657
      %v8794 = vunpack.c.l.b16 %v8658
      %v8795 = vunpack.c.l.b16 %v8659
      %v8796 = vunpack.c.l.b16 %v8660
      %v8797 = vunpack.c.l.b16 %v8661
      %v8798 = vunpack.c.l.b16 %v8662
      %v8799 = vunpack.c.l.b16 %v8663
      %v8800 = vunpack.c.l.b16 %v8664
      %v8801 = vunpack.c.l.b16 %v8665
      %v8802 = vunpack.c.l.b16 %v8666
      %v8803 = vunpack.c.l.b16 %v8667
      %v8804 = vunpack.c.l.b16 %v8668
      %v8805 = vunpack.c.l.b16 %v8669
      %v8806 = vunpack.c.l.b16 %v8670
      %v8807 = vunpack.c.l.b16 %v8671
      %v8808 = vunpack.c.l.b16 %v8672
      %v8809 = vunpack.c.l.b16 %v8673
      %v8810 = vunpack.c.l.b16 %v8674
      %v8811 = vunpack.c.l.b16 %v8675
      %v8812 = vunpack.c.l.b16 %v8676
      %v8813 = vunpack.c.l.b16 %v8677
      %v8814 = vunpack.c.l.b16 %v8678
      %v8815 = vunpack.c.l.b16 %v8679
      %v8816 = vunpack.c.l.b16 %v8680
      %v8817 = vunpack.c.l.b16 %v8681
      %v8818 = vunpack.c.l.b16 %v8682
      %v8819 = vunpack.c.l.b16 %v8683
      %v8820 = vunpack.c.l.b16 %v8684
      %v8821 = vunpack.c.l.b16 %v8685
      %v8822 = vunpack.c.l.b16 %v8686
      %v8823 = vunpack.c.l.b16 %v8687
      %v8824 = vunpack.c.l.b16 %v8688
      %v8825 = vunpack.c.l.b16 %v8689
      %v8826 = vunpack.c.l.b16 %v8690
      %v8827 = vunpack.c.l.b16 %v8691
      %v8828 = vunpack.c.l.b16 %v8692
      %v8829 = vunpack.c.l.b16 %v8693
      %v8830 = vunpack.c.l.b16 %v8694
      %v8831 = vrot.slane %v8768, 7
      %v8832 = vsel %vm6734, %v8831, %v8767
      %v8833 = vrot.slane %v8769, 6
      %v8834 = vsel %vm6736, %v8833, %v8832
      %v8835 = vrot.slane %v8770, 5
      %v8836 = vsel %vm6738, %v8835, %v8834
      %v8837 = vrot.slane %v8771, 4
      %v8838 = vsel %vm6740, %v8837, %v8836
      %v8839 = vrot.slane %v8772, 3
      %v8840 = vsel %vm6742, %v8839, %v8838
      %v8841 = vrot.slane %v8773, 2
      %v8842 = vsel %vm6744, %v8841, %v8840
      %v8843 = vrot.slane %v8774, 1
      %v8844 = vsel %vm6746, %v8843, %v8842
      %v8845 = vrot.slane %v8776, 7
      %v8846 = vsel %vm6734, %v8845, %v8775
      %v8847 = vrot.slane %v8777, 6
      %v8848 = vsel %vm6736, %v8847, %v8846
      %v8849 = vrot.slane %v8778, 5
      %v8850 = vsel %vm6738, %v8849, %v8848
      %v8851 = vrot.slane %v8779, 4
      %v8852 = vsel %vm6740, %v8851, %v8850
      %v8853 = vrot.slane %v8780, 3
      %v8854 = vsel %vm6742, %v8853, %v8852
      %v8855 = vrot.slane %v8781, 2
      %v8856 = vsel %vm6744, %v8855, %v8854
      %v8857 = vrot.slane %v8782, 1
      %v8858 = vsel %vm6746, %v8857, %v8856
      %v8859 = vrot.slane %v8784, 7
      %v8860 = vsel %vm6734, %v8859, %v8783
      %v8861 = vrot.slane %v8785, 6
      %v8862 = vsel %vm6736, %v8861, %v8860
      %v8863 = vrot.slane %v8786, 5
      %v8864 = vsel %vm6738, %v8863, %v8862
      %v8865 = vrot.slane %v8787, 4
      %v8866 = vsel %vm6740, %v8865, %v8864
      %v8867 = vrot.slane %v8788, 3
      %v8868 = vsel %vm6742, %v8867, %v8866
      %v8869 = vrot.slane %v8789, 2
      %v8870 = vsel %vm6744, %v8869, %v8868
      %v8871 = vrot.slane %v8790, 1
      %v8872 = vsel %vm6746, %v8871, %v8870
      %v8873 = vrot.slane %v8792, 7
      %v8874 = vsel %vm6734, %v8873, %v8791
      %v8875 = vrot.slane %v8793, 6
      %v8876 = vsel %vm6736, %v8875, %v8874
      %v8877 = vrot.slane %v8794, 5
      %v8878 = vsel %vm6738, %v8877, %v8876
      %v8879 = vrot.slane %v8795, 4
      %v8880 = vsel %vm6740, %v8879, %v8878
      %v8881 = vrot.slane %v8796, 3
      %v8882 = vsel %vm6742, %v8881, %v8880
      %v8883 = vrot.slane %v8797, 2
      %v8884 = vsel %vm6744, %v8883, %v8882
      %v8885 = vrot.slane %v8798, 1
      %v8886 = vsel %vm6746, %v8885, %v8884
      %v8887 = vrot.slane %v8800, 7
      %v8888 = vsel %vm6734, %v8887, %v8799
      %v8889 = vrot.slane %v8801, 6
      %v8890 = vsel %vm6736, %v8889, %v8888
      %v8891 = vrot.slane %v8802, 5
      %v8892 = vsel %vm6738, %v8891, %v8890
      %v8893 = vrot.slane %v8803, 4
      %v8894 = vsel %vm6740, %v8893, %v8892
      %v8895 = vrot.slane %v8804, 3
      %v8896 = vsel %vm6742, %v8895, %v8894
      %v8897 = vrot.slane %v8805, 2
      %v8898 = vsel %vm6744, %v8897, %v8896
      %v8899 = vrot.slane %v8806, 1
      %v8900 = vsel %vm6746, %v8899, %v8898
      %v8901 = vrot.slane %v8808, 7
      %v8902 = vsel %vm6734, %v8901, %v8807
      %v8903 = vrot.slane %v8809, 6
      %v8904 = vsel %vm6736, %v8903, %v8902
      %v8905 = vrot.slane %v8810, 5
      %v8906 = vsel %vm6738, %v8905, %v8904
      %v8907 = vrot.slane %v8811, 4
      %v8908 = vsel %vm6740, %v8907, %v8906
      %v8909 = vrot.slane %v8812, 3
      %v8910 = vsel %vm6742, %v8909, %v8908
      %v8911 = vrot.slane %v8813, 2
      %v8912 = vsel %vm6744, %v8911, %v8910
      %v8913 = vrot.slane %v8814, 1
      %v8914 = vsel %vm6746, %v8913, %v8912
      %v8915 = vrot.slane %v8816, 7
      %v8916 = vsel %vm6734, %v8915, %v8815
      %v8917 = vrot.slane %v8817, 6
      %v8918 = vsel %vm6736, %v8917, %v8916
      %v8919 = vrot.slane %v8818, 5
      %v8920 = vsel %vm6738, %v8919, %v8918
      %v8921 = vrot.slane %v8819, 4
      %v8922 = vsel %vm6740, %v8921, %v8920
      %v8923 = vrot.slane %v8820, 3
      %v8924 = vsel %vm6742, %v8923, %v8922
      %v8925 = vrot.slane %v8821, 2
      %v8926 = vsel %vm6744, %v8925, %v8924
      %v8927 = vrot.slane %v8822, 1
      %v8928 = vsel %vm6746, %v8927, %v8926
      %v8929 = vrot.slane %v8824, 7
      %v8930 = vsel %vm6734, %v8929, %v8823
      %v8931 = vrot.slane %v8825, 6
      %v8932 = vsel %vm6736, %v8931, %v8930
      %v8933 = vrot.slane %v8826, 5
      %v8934 = vsel %vm6738, %v8933, %v8932
      %v8935 = vrot.slane %v8827, 4
      %v8936 = vsel %vm6740, %v8935, %v8934
      %v8937 = vrot.slane %v8828, 3
      %v8938 = vsel %vm6742, %v8937, %v8936
      %v8939 = vrot.slane %v8829, 2
      %v8940 = vsel %vm6744, %v8939, %v8938
      %v8941 = vrot.slane %v8830, 1
      %v8942 = vsel %vm6746, %v8941, %v8940
      %v8943 = vpack.c.b16 %v8858, %v8844
      %v8944 = vpack.c.b16 %v8886, %v8872
      %v8945 = vpack.c.b16 %v8914, %v8900
      %v8946 = vpack.c.b16 %v8942, %v8928
      %v8948 = vsel %vm537, %v8943, 0
      %v8951 = vsel %vm537, %v8944, 0
      %v8954 = vsel %vm537, %v8945, 0
      %v8957 = vsel %vm537, %v8946, 0
      %v8960 = vsel %vm3559, %v8695, 0
      %8962 = vmatprep.subr.bf16.mxu0 0
      %8963 = vmatpush1.bf16.msra.mxu0 %v8960
      %8964 = vmatprep.subr.bf16.mxu0 0
      %8965 = vmatpush1.bf16.msra.mxu0 0
      %8966 = vmatprep.subr.bf16.mxu0 0
      %8967 = vmatpush1.bf16.msra.mxu0 0
      %8968 = vmatprep.subr.bf16.mxu0 0
      %8969 = vmatpush1.bf16.msra.mxu0 0
      %8970 = vmatprep.subr.bf16.mxu0 0
      %8971 = vmatpush1.bf16.msra.mxu0 0
      %8972 = vmatprep.subr.bf16.mxu0 0
      %8973 = vmatpush1.bf16.msra.mxu0 0
      %8974 = vmatprep.subr.bf16.mxu0 0
      %8975 = vmatpush1.bf16.msra.mxu0 0
      %8976 = vmatprep.subr.bf16.mxu0 0
      %8977 = vmatpush1.bf16.msra.mxu0 0
      %8978 = vmatprep.subr.bf16.mxu0 0
      %8979 = vmatpush1.bf16.msra.mxu0 0
      %8980 = vmatprep.subr.bf16.mxu0 0
      %8981 = vmatpush1.bf16.msra.mxu0 0
      %8982 = vmatprep.subr.bf16.mxu0 0
      %8983 = vmatpush1.bf16.msra.mxu0 0
      %8984 = vmatprep.subr.bf16.mxu0 0
      %8985 = vmatpush1.bf16.msra.mxu0 0
      %8986 = vmatprep.subr.bf16.mxu0 0
      %8987 = vmatpush1.bf16.msra.mxu0 0
      %8988 = vmatprep.subr.bf16.mxu0 0
      %8989 = vmatpush1.bf16.msra.mxu0 0
      %8990 = vmatprep.subr.bf16.mxu0 0
      %8991 = vmatpush1.bf16.msra.mxu0 0
      %8992 = vmatprep.subr.bf16.mxu0 0
      %8993 = vmatpush1.bf16.msra.mxu0 0
      %8994 = vmatprep.mubr.bf16.mxu0 0
      %8995 = vmatmul.mubr.bf16.gmra.mrb[0].mxu0 %v8948
      %v8996 = vpop.f32.mrb[0].mxu0
      %v8997 = vadd.f32 %v8701, %v8996
      %v8998 = vpop.f32.mrb[0].mxu0
      %v8999 = vpop.f32.mrb[0].mxu0
      %v9000 = vpop.f32.mrb[0].mxu0
      %9001 = vmatprep.mubr.bf16.mxu0 0
      %9002 = vmatmul.mubr.bf16.gmra.mrb[0].mxu0 %v8951
      %v9003 = vpop.f32.mrb[0].mxu0
      %v9004 = vadd.f32 %v8701, %v9003
      %v9005 = vpop.f32.mrb[0].mxu0
      %v9006 = vpop.f32.mrb[0].mxu0
      %v9007 = vpop.f32.mrb[0].mxu0
      %9008 = vmatprep.mubr.bf16.mxu0 0
      %9009 = vmatmul.mubr.bf16.gmra.mrb[0].mxu0 %v8954
      %v9010 = vpop.f32.mrb[0].mxu0
      %v9011 = vadd.f32 %v8701, %v9010
      %v9012 = vpop.f32.mrb[0].mxu0
      %v9013 = vpop.f32.mrb[0].mxu0
      %v9014 = vpop.f32.mrb[0].mxu0
      %9015 = vmatprep.mubr.bf16.mxu0 0
      %9016 = vmatmul.mubr.bf16.gmra.mrb[0].mxu0 %v8957
      %v9017 = vpop.f32.mrb[0].mxu0
      %v9018 = vadd.f32 %v8701, %v9017
      %v9019 = vpop.f32.mrb[0].mxu0
      %v9020 = vpop.f32.mrb[0].mxu0
      %v9021 = vpop.f32.mrb[0].mxu0
      %9022 = vdwg.mxu0
      %v9023 = vadd.f32 %v8627, %v8997
      %v9024 = vadd.f32 %v8628, %v9004
      %v9025 = vadd.f32 %v8629, %v9011
      %v9026 = vadd.f32 %v8630, %v9018
      %v9031 = vcombine.high %v9023, %v9023
      %v9033 = vunpack.c.l.s4 1983009808
      %v9034 = vunpack.c.0.s8 %v9033
      %v9035 = vlaneseq
      %v9036 = vshrl.u32 %v9035, 7
      %v9037 = vsub.s32 %v9034, %v9036
      %v9038 = vrot.slane %v9023, %v9037
      %v9040 = vunpack.c.l.s4 1983009808
      %v9041 = vunpack.c.0.s8 %v9040
      %v9042 = vlaneseq
      %v9043 = vshrl.u32 %v9042, 7
      %v9044 = vsub.s32 %v9041, %v9043
      %v9045 = vrot.slane %v9031, %v9044
      %v9046 = vcombine.high %v9038, %v9038
      %v9047 = vcombine.high %v9045, %v9045
      %v9048 = vcombine.high %v9024, %v9024
      %v9050 = vunpack.c.l.s4 1983009808
      %v9051 = vunpack.c.0.s8 %v9050
      %v9052 = vlaneseq
      %v9053 = vshrl.u32 %v9052, 7
      %v9054 = vsub.s32 %v9051, %v9053
      %v9055 = vrot.slane %v9024, %v9054
      %v9057 = vunpack.c.l.s4 1983009808
      %v9058 = vunpack.c.0.s8 %v9057
      %v9059 = vlaneseq
      %v9060 = vshrl.u32 %v9059, 7
      %v9061 = vsub.s32 %v9058, %v9060
      %v9062 = vrot.slane %v9048, %v9061
      %v9063 = vcombine.high %v9055, %v9055
      %v9064 = vcombine.high %v9062, %v9062
      %v9065 = vcombine.high %v9025, %v9025
      %v9067 = vunpack.c.l.s4 1983009808
      %v9068 = vunpack.c.0.s8 %v9067
      %v9069 = vlaneseq
      %v9070 = vshrl.u32 %v9069, 7
      %v9071 = vsub.s32 %v9068, %v9070
      %v9072 = vrot.slane %v9025, %v9071
      %v9074 = vunpack.c.l.s4 1983009808
      %v9075 = vunpack.c.0.s8 %v9074
      %v9076 = vlaneseq
      %v9077 = vshrl.u32 %v9076, 7
      %v9078 = vsub.s32 %v9075, %v9077
      %v9079 = vrot.slane %v9065, %v9078
      %v9080 = vcombine.high %v9072, %v9072
      %v9081 = vcombine.high %v9079, %v9079
      %v9082 = vcombine.high %v9026, %v9026
      %v9084 = vunpack.c.l.s4 1983009808
      %v9085 = vunpack.c.0.s8 %v9084
      %v9086 = vlaneseq
      %v9087 = vshrl.u32 %v9086, 7
      %v9088 = vsub.s32 %v9085, %v9087
      %v9089 = vrot.slane %v9026, %v9088
      %v9091 = vunpack.c.l.s4 1983009808
      %v9092 = vunpack.c.0.s8 %v9091
      %v9093 = vlaneseq
      %v9094 = vshrl.u32 %v9093, 7
      %v9095 = vsub.s32 %v9092, %v9094
      %v9096 = vrot.slane %v9082, %v9095
      %v9097 = vcombine.high %v9089, %v9089
      %v9098 = vcombine.high %v9096, %v9096
      %v9115 = vmax.f32 %v9038, 0.0
      %v9116 = vmax.f32 %v9046, 0.0
      %v9117 = vmax.f32 %v9045, 0.0
      %v9118 = vmax.f32 %v9047, 0.0
      %v9119 = vmax.f32 %v9055, 0.0
      %v9120 = vmax.f32 %v9063, 0.0
      %v9121 = vmax.f32 %v9062, 0.0
      %v9122 = vmax.f32 %v9064, 0.0
      %v9123 = vmax.f32 %v9072, 0.0
      %v9124 = vmax.f32 %v9080, 0.0
      %v9125 = vmax.f32 %v9079, 0.0
      %v9126 = vmax.f32 %v9081, 0.0
      %v9127 = vmax.f32 %v9089, 0.0
      %v9128 = vmax.f32 %v9097, 0.0
      %v9129 = vmax.f32 %v9096, 0.0
      %v9130 = vmax.f32 %v9098, 0.0
      %v9147 = vlaneseq
      %v9148 = vshrl.u32 %v9147, 7
      %v9149 = vsub.s32 0, %v9148
      %v9150 = vrot.slane %v9115, %v9149
      %v9151 = vlaneseq
      %v9152 = vshrl.u32 %v9151, 7
      %v9153 = vsub.s32 0, %v9152
      %v9154 = vrot.slane %v9116, %v9153
      %v9155 = vlaneseq
      %v9156 = vshrl.u32 %v9155, 7
      %v9157 = vsub.s32 0, %v9156
      %v9158 = vrot.slane %v9117, %v9157
      %v9159 = vlaneseq
      %v9160 = vshrl.u32 %v9159, 7
      %v9161 = vsub.s32 0, %v9160
      %v9162 = vrot.slane %v9118, %v9161
      %v9163 = vlaneseq
      %v9164 = vshrl.u32 %v9163, 7
      %v9165 = vsub.s32 0, %v9164
      %v9166 = vrot.slane %v9119, %v9165
      %v9167 = vlaneseq
      %v9168 = vshrl.u32 %v9167, 7
      %v9169 = vsub.s32 0, %v9168
      %v9170 = vrot.slane %v9120, %v9169
      %v9171 = vlaneseq
      %v9172 = vshrl.u32 %v9171, 7
      %v9173 = vsub.s32 0, %v9172
      %v9174 = vrot.slane %v9121, %v9173
      %v9175 = vlaneseq
      %v9176 = vshrl.u32 %v9175, 7
      %v9177 = vsub.s32 0, %v9176
      %v9178 = vrot.slane %v9122, %v9177
      %v9179 = vlaneseq
      %v9180 = vshrl.u32 %v9179, 7
      %v9181 = vsub.s32 0, %v9180
      %v9182 = vrot.slane %v9123, %v9181
      %v9183 = vlaneseq
      %v9184 = vshrl.u32 %v9183, 7
      %v9185 = vsub.s32 0, %v9184
      %v9186 = vrot.slane %v9124, %v9185
      %v9187 = vlaneseq
      %v9188 = vshrl.u32 %v9187, 7
      %v9189 = vsub.s32 0, %v9188
      %v9190 = vrot.slane %v9125, %v9189
      %v9191 = vlaneseq
      %v9192 = vshrl.u32 %v9191, 7
      %v9193 = vsub.s32 0, %v9192
      %v9194 = vrot.slane %v9126, %v9193
      %v9195 = vlaneseq
      %v9196 = vshrl.u32 %v9195, 7
      %v9197 = vsub.s32 0, %v9196
      %v9198 = vrot.slane %v9127, %v9197
      %v9199 = vlaneseq
      %v9200 = vshrl.u32 %v9199, 7
      %v9201 = vsub.s32 0, %v9200
      %v9202 = vrot.slane %v9128, %v9201
      %v9203 = vlaneseq
      %v9204 = vshrl.u32 %v9203, 7
      %v9205 = vsub.s32 0, %v9204
      %v9206 = vrot.slane %v9129, %v9205
      %v9207 = vlaneseq
      %v9208 = vshrl.u32 %v9207, 7
      %v9209 = vsub.s32 0, %v9208
      %v9210 = vrot.slane %v9130, %v9209
      %v9211 = vsel %vm6734, %v9154, %v9150
      %v9212 = vsel %vm6736, %v9158, %v9211
      %v9213 = vsel %vm6738, %v9162, %v9212
      %v9214 = vsel %vm6740, %v9166, %v9213
      %v9215 = vsel %vm6742, %v9170, %v9214
      %v9216 = vsel %vm6744, %v9174, %v9215
      %v9217 = vsel %vm6746, %v9178, %v9216
      %v9218 = vsel %vm6734, %v9186, %v9182
      %v9219 = vsel %vm6736, %v9190, %v9218
      %v9220 = vsel %vm6738, %v9194, %v9219
      %v9221 = vsel %vm6740, %v9198, %v9220
      %v9222 = vsel %vm6742, %v9202, %v9221
      %v9223 = vsel %vm6744, %v9206, %v9222
      %v9224 = vsel %vm6746, %v9210, %v9223
      %v9227 = vsel %vm602, %v9217, 0.0
      %v9228 = vsel %vm602, %v9224, 0.0
      %v9229 = vadd.f32 %v9227, %v9228
      %v9230 = vrot.slane %v9229, 4
      %v9231 = vadd.f32 %v9229, %v9230
      %v9232 = vrot.slane %v9231, 2
      %v9233 = vadd.f32 %v9231, %v9232
      %v9234 = vrot.slane %v9233, 1
      %v9235 = vadd.f32 %v9233, %v9234
      %v9236 = vld [vmem:[%s13] sm:$0x1]
      %v9237 = vmul.f32 %v9235, %v9236
      %v9238 = vsel %vm610, %v9237, 0.0
      %9239 = vadd.xlane.f32.xlu0 %v9238
      %v9240 = vpop.xlane.xlu0 %9239
      %v9241 = vld [vmem:[#allocation6] sm:$0x1]
      %v9242 = vadd.f32 %v9240, %v9241
      %vm9243 = vcmask 0
      %9244 = vst.msk [vmem:[%s492] sm:$0x1] %vm9243, %v9242
      %p9245 = scmp.lt.s32.totalorder %s28, 1
      %s9246 = scalar_select %p9245, %s28, 1
      %s9247 = scalar_lea.vmem %s15, %s9246
      // Predicated region
      $region81: #{discriminator_forward.1} parent=79 // pred_check
        %p9248 = pneg %p366
      $region82: #{discriminator_forward.1} parent=79 // pred_check_branch
        %9250 = sbr.rel (%p9248) target = $region84
      $region83: #{discriminator_forward.1} parent=79 // pred_region
        _
      $region84: #{discriminator_forward.1} parent=79 // pred_fallthru
        _
    $region80: #{discriminator_forward.1} parent=5 // pred_fallthru
      _
    %p9251 = scmp.le.s32.totalorder 2, %s23
    // Predicated region
    $region85: #{discriminator_forward.1} parent=5 // pred_check
      %p9252 = pneg %p9251
    $region86: #{discriminator_forward.1} parent=5 // pred_check_branch
      %9254 = sbr.rel (%p9252) target = $region88
    $region87: #{discriminator_forward.1} parent=5 // pred_region
      %s9255 = ssub.s32 %s23, 2
      // Predicated region
      $region89: #{discriminator_forward.1} parent=87 // pred_check
        %p9256 = pneg %p372
      $region90: #{discriminator_forward.1} parent=87 // pred_check_branch
        %9258 = sbr.rel (%p9256) target = $region92
      $region91: #{discriminator_forward.1} parent=87 // pred_region
        %p9259 = scmp.lt.s32.totalorder %s29, 1
        %s9260 = scalar_select %p9259, %s29, 1
        %s9261 = scalar_lea.vmem %s15, %s9260
      $region92: #{discriminator_forward.1} parent=87 // pred_fallthru
        _
    $region88: #{discriminator_forward.1} parent=5 // pred_fallthru
      _
  $region6: #{discriminator_forward.1} parent=0 // loop_footer
    %s27 = sadd.s32 1, %s23
  $region7: #{discriminator_forward.1} parent=0 // loop_footer_branch
    %22 = sbr.rel target = $region3
  $region8: #{discriminator_forward.1} parent=0 // loop_exit
    _

</llo_original>
